<compile_context>
chip_gen: v5e
topology: v5e:2x2
jax: 0.10.0
libtpu: 0.0.40
codegen_flags: <defaults>
</compile_context>

<pallas_src>
import functools

import jax
import jax.numpy as jnp
from jax.experimental import pallas as pl
from jax.experimental.pallas import tpu as pltpu

EPS = 1e-5
DEF_TM = 512          # M tile (rows per grid step)
DEF_TK = 512          # K tile (256-aligned for v6e/v7x MXU)
_MB = 1024 * 1024


def _round_up(x, m):
    return (x + m - 1) // m * m


def _cdiv(a, b):
    return (a + b - 1) // b


def _cp_round(c):
    # 256-align the output-channel padding for v6e/v7x (256-wide MXU); 128 is
    # enough (and cheaper) for small channel counts.
    return _round_up(c, 256) if c > 128 else 128


def _choose_k(k_real):
    """Return (padded K, K tile) with K tile <= DEF_TK and tile | padded K."""
    kp = _round_up(k_real, 128)
    tk = min(DEF_TK, kp)
    nk = _cdiv(kp, tk)
    return nk * tk, tk


def _pad2(a, rows, cols):
    return jnp.pad(a, ((0, rows - a.shape[0]), (0, cols - a.shape[1])))


def _pad_row(v, cols):
    return jnp.pad(v, (0, cols - v.shape[0])).reshape(1, cols).astype(jnp.float32)


# ---------------- Pass 1: K-tiled matmul + bias + per-tile channel stats -----

def _emit_stats(y, i, tm, m_real, sum_ref, ssq_ref):
    """Per-M-tile partial sum / sum-of-squares. Only the last tile masks rows."""
    last = pl.num_programs(0) - 1

    @pl.when(i < last)
    def _():
        sum_ref[...] = jnp.sum(y, axis=0, keepdims=True)
        ssq_ref[...] = jnp.sum(y * y, axis=0, keepdims=True)

    @pl.when(i == last)
    def _():
        row = i * tm + jax.lax.broadcasted_iota(jnp.int32, (tm, 1), 0)
        yv = jnp.where(row < m_real, y, 0.0)
        sum_ref[...] = jnp.sum(yv, axis=0, keepdims=True)
        ssq_ref[...] = jnp.sum(yv * yv, axis=0, keepdims=True)


def _mm_stats_kernel(p_ref, w_ref, b_ref, y_ref, sum_ref, ssq_ref, acc_ref, *,
                     tm, m_real):
    i = pl.program_id(0)
    k = pl.program_id(1)

    @pl.when(k == 0)
    def _():
        acc_ref[...] = jnp.zeros_like(acc_ref)

    acc_ref[...] += jnp.dot(p_ref[...], w_ref[...],
                            preferred_element_type=jnp.float32)

    @pl.when(k == pl.num_programs(1) - 1)
    def _():
        y = acc_ref[...] + b_ref[...]
        y_ref[...] = y.astype(y_ref.dtype)
        _emit_stats(y, i, tm, m_real, sum_ref, ssq_ref)


def _mm_stats_skip_kernel(p_ref, w_ref, b_ref, xs_ref, ws_ref, bs_ref,
                          y_ref, sum_ref, ssq_ref,
                          ys_ref, ssum_ref, sssq_ref, acc_ref, *, tm, m_real):
    i = pl.program_id(0)
    k = pl.program_id(1)

    @pl.when(k == 0)
    def _():
        acc_ref[...] = jnp.zeros_like(acc_ref)
        # Fused projection-skip 1x1x1 conv + its batch stats (K = Cin is small,
        # weight is VMEM-resident, only computed once per M tile).
        ys = jnp.dot(xs_ref[...], ws_ref[...],
                     preferred_element_type=jnp.float32) + bs_ref[...]
        ys_ref[...] = ys.astype(ys_ref.dtype)
        _emit_stats(ys, i, tm, m_real, ssum_ref, sssq_ref)

    acc_ref[...] += jnp.dot(p_ref[...], w_ref[...],
                            preferred_element_type=jnp.float32)

    @pl.when(k == pl.num_programs(1) - 1)
    def _():
        y = acc_ref[...] + b_ref[...]
        y_ref[...] = y.astype(y_ref.dtype)
        _emit_stats(y, i, tm, m_real, sum_ref, ssq_ref)


def _matmul_stats(p, w, b, tm, tk, m_real, *, skip=None):
    """p: (Mp, Kp) bf16, w: (Kp, Cp) bf16, b: (1, Cp) f32.
    Optional skip=(xs (Mp,Cinp) bf16, ws (Cinp,Cp) bf16, bs (1,Cp) f32)."""
    m_pad, kp = p.shape
    cp = w.shape[1]
    num_m = m_pad // tm
    num_k = kp // tk

    in_specs = [
        pl.BlockSpec((tm, tk), lambda i, k: (i, k)),
        pl.BlockSpec((tk, cp), lambda i, k: (k, 0)),
        pl.BlockSpec((1, cp), lambda i, k: (0, 0)),
    ]
    out_shapes = [
        jax.ShapeDtypeStruct((m_pad, cp), jnp.bfloat16),        # raw conv out (bf16)
        jax.ShapeDtypeStruct((num_m, 1, cp), jnp.float32),      # partial sums
        jax.ShapeDtypeStruct((num_m, 1, cp), jnp.float32),      # partial sum-of-sq
    ]
    out_specs = [
        pl.BlockSpec((tm, cp), lambda i, k: (i, 0)),
        pl.BlockSpec((None, 1, cp), lambda i, k: (i, 0, 0)),
        pl.BlockSpec((None, 1, cp), lambda i, k: (i, 0, 0)),
    ]
    args = [p, w, b]

    # Rough double-buffered VMEM budget (+ f32 accumulator scratch).
    est = (2 * tm * tk * 2 + 2 * tk * cp * 2 + 2 * cp * 4
           + 2 * tm * cp * 2 + 4 * cp * 4 + tm * cp * 4)

    if skip is None:
        kernel = functools.partial(_mm_stats_kernel, tm=tm, m_real=m_real)
    else:
        xs, ws, bs = skip
        cinp = xs.shape[1]
        kernel = functools.partial(_mm_stats_skip_kernel, tm=tm, m_real=m_real)
        in_specs += [
            pl.BlockSpec((tm, cinp), lambda i, k: (i, 0)),
            pl.BlockSpec((cinp, cp), lambda i, k: (0, 0)),
            pl.BlockSpec((1, cp), lambda i, k: (0, 0)),
        ]
        out_shapes += [
            jax.ShapeDtypeStruct((m_pad, cp), jnp.bfloat16),    # raw skip out (bf16)
            jax.ShapeDtypeStruct((num_m, 1, cp), jnp.float32),
            jax.ShapeDtypeStruct((num_m, 1, cp), jnp.float32),
        ]
        out_specs += [
            pl.BlockSpec((tm, cp), lambda i, k: (i, 0)),
            pl.BlockSpec((None, 1, cp), lambda i, k: (i, 0, 0)),
            pl.BlockSpec((None, 1, cp), lambda i, k: (i, 0, 0)),
        ]
        args += [xs, ws, bs]
        est += (2 * tm * cinp * 2 + 2 * cinp * cp * 2 + 2 * cp * 4
                + 2 * tm * cp * 2 + 4 * cp * 4)

    vmem_limit = int(min(max(2 * est, 32 * _MB), 64 * _MB))

    return pl.pallas_call(
        kernel,
        out_shape=tuple(out_shapes),
        grid=(num_m, num_k),
        in_specs=in_specs,
        out_specs=tuple(out_specs),
        scratch_shapes=[pltpu.VMEM((tm, cp), jnp.float32)],
        compiler_params=pltpu.CompilerParams(
            dimension_semantics=("parallel", "arbitrary"),
            vmem_limit_bytes=vmem_limit),
    )(*args)


# --------------------- Pass 2: tiled elementwise epilogues -------------------

def _bn_relu_kernel(y_ref, sc_ref, sh_ref, o_ref):
    y = y_ref[...].astype(jnp.float32) * sc_ref[...] + sh_ref[...]
    o_ref[...] = jnp.maximum(y, 0.0).astype(o_ref.dtype)


def _bn_add_ident_relu_kernel(y_ref, id_ref, sc_ref, sh_ref, o_ref):
    y = y_ref[...].astype(jnp.float32) * sc_ref[...] + sh_ref[...]
    y = y + id_ref[...].astype(jnp.float32)
    o_ref[...] = jnp.maximum(y, 0.0).astype(o_ref.dtype)


def _bn_add_proj_relu_kernel(y_ref, ys_ref, sc2_ref, sh2_ref, scs_ref, shs_ref,
                             o_ref):
    y = y_ref[...].astype(jnp.float32) * sc2_ref[...] + sh2_ref[...]
    s = ys_ref[...].astype(jnp.float32) * scs_ref[...] + shs_ref[...]
    o_ref[...] = jnp.maximum(y + s, 0.0).astype(o_ref.dtype)


def _elementwise(kernel, big, small, m_pad, cp, out_dtype, tm):
    num_m = m_pad // tm
    in_specs = ([pl.BlockSpec((tm, cp), lambda i: (i, 0)) for _ in big]
                + [pl.BlockSpec((1, cp), lambda i: (0, 0)) for _ in small])
    est = (len(big) + 1) * 2 * tm * cp * 4 + (len(small)) * 2 * cp * 4
    vmem_limit = int(min(max(2 * est, 32 * _MB), 64 * _MB))
    return pl.pallas_call(
        kernel,
        out_shape=jax.ShapeDtypeStruct((m_pad, cp), out_dtype),
        grid=(num_m,),
        in_specs=in_specs,
        out_specs=pl.BlockSpec((tm, cp), lambda i: (i, 0)),
        compiler_params=pltpu.CompilerParams(
            dimension_semantics=("parallel",),
            vmem_limit_bytes=vmem_limit),
    )(*big, *small)


# ------------------------------- JAX glue ------------------------------------

def _im2col_3d(x, stride):
    """x: (N, D, H, W, C) channels-last (bf16); 3x3x3 kernel, padding=1."""
    N, D, H, W, C = x.shape
    xp = jnp.pad(x, ((0, 0), (1, 1), (1, 1), (1, 1), (0, 0)))
    Do = (D + 2 - 3) // stride + 1
    Ho = (H + 2 - 3) // stride + 1
    Wo = (W + 2 - 3) // stride + 1
    cols = []
    for kd in range(3):
        for kh in range(3):
            for kw in range(3):
                cols.append(xp[:,
                               kd:kd + stride * Do:stride,
                               kh:kh + stride * Ho:stride,
                               kw:kw + stride * Wo:stride, :])
    p = jnp.stack(cols, axis=4)                      # (N, Do, Ho, Wo, 27, C)
    return p.reshape(N * Do * Ho * Wo, 27 * C), (N, Do, Ho, Wo)


def _pack_conv3_weight(w):
    """PyTorch (Cout, Cin, 3, 3, 3) -> (27*Cin, Cout) matching im2col order."""
    cout, cin = w.shape[0], w.shape[1]
    return jnp.transpose(w, (2, 3, 4, 1, 0)).reshape(27 * cin, cout)


def _bn_scale_shift(psum, pssq, count, g, beta, cp):
    """Fold training-mode BN (batch stats) into per-channel scale/shift (f32).

    psum/pssq are (num_m_tiles, 1, cp) partial accumulations (f32).
    """
    s = jnp.sum(psum, axis=0)                        # (1, cp)
    ss = jnp.sum(pssq, axis=0)
    mean = s / count
    var = jnp.maximum(ss / count - mean * mean, 0.0)
    g_p = jnp.pad(g, (0, cp - g.shape[0])).reshape(1, cp)
    b_p = jnp.pad(beta, (0, cp - beta.shape[0])).reshape(1, cp)
    scale = g_p * jax.lax.rsqrt(var + EPS)
    shift = b_p - mean * scale
    return scale.astype(jnp.float32), shift.astype(jnp.float32)


@functools.partial(jax.jit, static_argnames=("stride",))
def residual_block_3d(x_ncdhw, params, stride=1):
    x = jnp.transpose(x_ncdhw, (0, 2, 3, 4, 1)).astype(jnp.float32)  # NDHWC f32
    x_bf = x.astype(jnp.bfloat16)          # cast BEFORE im2col: patches only in bf16
    cin = x.shape[-1]
    cout = params["w1"].shape[0]
    cp = _cp_round(cout)

    # ---- conv1 (matmul + bias + stats) ----
    p1, (N, Do, Ho, Wo) = _im2col_3d(x_bf, stride)    # (M, 27*cin) bf16
    M = N * Do * Ho * Wo
    tm = min(DEF_TM, _round_up(M, 8))
    m_pad = _round_up(M, tm)

    k1p, tk1 = _choose_k(27 * cin)
    p1 = _pad2(p1, m_pad, k1p)
    w1 = _pad2(_pack_conv3_weight(params["w1"]), k1p, cp).astype(jnp.bfloat16)
    b1 = _pad_row(params["b1"], cp)
    y1_raw, s1, ss1 = _matmul_stats(p1, w1, b1, tm, tk1, M)
    sc1, sh1 = _bn_scale_shift(s1, ss1, M, params["g1"], params["be1"], cp)

    # ---- bn1 + relu epilogue (bf16 activation feeding conv2) ----
    y1 = _elementwise(_bn_relu_kernel, [y1_raw], [sc1, sh1],
                      m_pad, cp, jnp.bfloat16, tm)

    # ---- conv2 (+ fused projection skip when needed) ----
    y1_nd = y1[:M, :cout].reshape(N, Do, Ho, Wo, cout)        # bf16
    p2, _ = _im2col_3d(y1_nd, 1)                              # (M, 27*cout) bf16
    k2p, tk2 = _choose_k(27 * cout)
    p2 = _pad2(p2, m_pad, k2p)
    w2 = _pad2(_pack_conv3_weight(params["w2"]), k2p, cp).astype(jnp.bfloat16)
    b2 = _pad_row(params["b2"], cp)

    has_proj = (stride != 1) or (cin != cout)
    if has_proj:
        xs = x_bf[:, ::stride, ::stride, ::stride, :].reshape(M, cin)
        cinp = _round_up(cin, 128)
        xs = _pad2(xs, m_pad, cinp)
        ws = _pad2(params["ws"].reshape(cout, cin).T, cinp, cp).astype(jnp.bfloat16)
        bs = _pad_row(params["bs"], cp)
        y2_raw, s2, ss2, ys_raw, s_s, ss_s = _matmul_stats(
            p2, w2, b2, tm, tk2, M, skip=(xs, ws, bs))
        sc2, sh2 = _bn_scale_shift(s2, ss2, M, params["g2"], params["be2"], cp)
        scs, shs = _bn_scale_shift(s_s, ss_s, M, params["gs"], params["bes"], cp)
        out = _elementwise(_bn_add_proj_relu_kernel,
                           [y2_raw, ys_raw], [sc2, sh2, scs, shs],
                           m_pad, cp, jnp.float32, tm)
    else:
        y2_raw, s2, ss2 = _matmul_stats(p2, w2, b2, tm, tk2, M)
        sc2, sh2 = _bn_scale_shift(s2, ss2, M, params["g2"], params["be2"], cp)
        ident = _pad2(x.reshape(M, cin), m_pad, cp)           # exact f32 residual add
        out = _elementwise(_bn_add_ident_relu_kernel,
                           [y2_raw, ident], [sc2, sh2],
                           m_pad, cp, jnp.float32, tm)

    out = out[:M, :cout].reshape(N, Do, Ho, Wo, cout)
    return jnp.transpose(out, (0, 4, 1, 2, 3))                # back to NCDHW


# ---------------------------- pure-JAX reference -----------------------------

def _ref_conv3d(x, w, b, stride, pad):
    y = jax.lax.conv_general_dilated(
        x, w, window_strides=(stride,) * 3, padding=[(pad, pad)] * 3,
        dimension_numbers=("NCDHW", "OIDHW", "NCDHW"))
    return y + b.reshape(1, -1, 1, 1, 1)


def _ref_bn(x, g, b):
    mean = x.mean(axis=(0, 2, 3, 4), keepdims=True)
    var = ((x - mean) ** 2).mean(axis=(0, 2, 3, 4), keepdims=True)
    return (g.reshape(1, -1, 1, 1, 1) * (x - mean) * jax.lax.rsqrt(var + EPS)
            + b.reshape(1, -1, 1, 1, 1))


def residual_block_3d_ref(x, params, stride=1):
    cin = x.shape[1]
    cout = params["w1"].shape[0]
    out = _ref_conv3d(x, params["w1"], params["b1"], stride, 1)
    out = jnp.maximum(_ref_bn(out, params["g1"], params["be1"]), 0.0)
    out = _ref_conv3d(out, params["w2"], params["b2"], 1, 1)
    out = _ref_bn(out, params["g2"], params["be2"])
    if stride != 1 or cin != cout:
        ident = _ref_conv3d(x, params["ws"], params["bs"], stride, 0)
        ident = _ref_bn(ident, params["gs"], params["bes"])
    else:
        ident = x
    return jnp.maximum(out + ident, 0.0)


# --------------------------------- main ---------------------------------------

def _make_params(key, cin, cout, with_skip):
    ks = jax.random.split(key, 12)
    p = {
        "w1": 0.1 * jax.random.normal(ks[0], (cout, cin, 3, 3, 3), jnp.float32),
        "b1": 0.1 * jax.random.normal(ks[1], (cout,), jnp.float32),
        "g1": 1.0 + 0.1 * jax.random.normal(ks[2], (cout,), jnp.float32),
        "be1": 0.1 * jax.random.normal(ks[3], (cout,), jnp.float32),
        "w2": 0.1 * jax.random.normal(ks[4], (cout, cout, 3, 3, 3), jnp.float32),
        "b2": 0.1 * jax.random.normal(ks[5], (cout,), jnp.float32),
        "g2": 1.0 + 0.1 * jax.random.normal(ks[6], (cout,), jnp.float32),
        "be2": 0.1 * jax.random.normal(ks[7], (cout,), jnp.float32),
    }
    if with_skip:
        p.update({
            "ws": 0.1 * jax.random.normal(ks[8], (cout, cin, 1, 1, 1), jnp.float32),
            "bs": 0.1 * jax.random.normal(ks[9], (cout,), jnp.float32),
            "gs": 1.0 + 0.1 * jax.random.normal(ks[10], (cout,), jnp.float32),
            "bes": 0.1 * jax.random.normal(ks[11], (cout,), jnp.float32),
        })
    return p


if __name__ == "__main__":
    key = jax.random.PRNGKey(0)
    ATOL, RTOL = 5e-2, 5e-2   # bf16 matmuls / bf16 intermediates vs f32 reference

    # Case 1: projection skip (in_channels != out_channels), stride=1.
    N, Cin, Cout, D, H, W = 2, 4, 8, 8, 8, 8
    kx, kp = jax.random.split(key)
    x = jax.random.normal(kx, (N, Cin, D, H, W), jnp.float32)
    params = _make_params(kp, Cin, Cout, with_skip=True)

    out = jax.block_until_ready(residual_block_3d(x, params, stride=1))
    ref = residual_block_3d_ref(x, params, stride=1)
    assert out.shape == (N, Cout, D, H, W)
    assert jnp.allclose(out, ref, atol=ATOL, rtol=RTOL), "mismatch (proj skip)"

    # Case 2: identity skip (in_channels == out_channels, stride=1).
    kx2, kp2 = jax.random.split(kp)
    x2 = jax.random.normal(kx2, (N, Cout, D, H, W), jnp.float32)
    params2 = _make_params(kp2, Cout, Cout, with_skip=False)
    out2 = jax.block_until_ready(residual_block_3d(x2, params2, stride=1))
    ref2 = residual_block_3d_ref(x2, params2, stride=1)
    assert jnp.allclose(out2, ref2, atol=ATOL, rtol=RTOL), "mismatch (identity)"

    # Case 3: strided projection skip (stride=2).
    kx3, kp3 = jax.random.split(kp2)
    x3 = jax.random.normal(kx3, (N, Cin, D, H, W), jnp.float32)
    params3 = _make_params(kp3, Cin, Cout, with_skip=True)
    out3 = jax.block_until_ready(residual_block_3d(x3, params3, stride=2))
    ref3 = residual_block_3d_ref(x3, params3, stride=2)
    assert out3.shape == (N, Cout, D // 2, H // 2, W // 2)
    assert jnp.allclose(out3, ref3, atol=ATOL, rtol=RTOL), "mismatch (stride=2)"

    print("KERNEL_OK")
</pallas_src>

<mosaic_0001>
module attributes {stable_mosaic.version = 11 : i64} {
  func.func @_bn_relu_kernel(%arg0: i32, %arg1: memref<512x128xbf16, #tpu.memory_space<vmem>>, %arg2: memref<1x128xf32, #tpu.memory_space<vmem>>, %arg3: memref<1x128xf32, #tpu.memory_space<vmem>>, %arg4: memref<512x128xbf16, #tpu.memory_space<vmem>>) attributes {dimension_semantics = [#tpu.dimension_semantics<parallel>], iteration_bounds = array<i64: 2>, scalar_prefetch = 0 : i64, scratch_operands = 0 : i64, tpu.core_type = #tpu.core_type<tc>, window_params = [{transform_indices = @transform_0, window_bounds = array<i64: 512, 128>}, {pipeline_mode = #tpu.pipeline_mode<synchronous>, transform_indices = @transform_1, window_bounds = array<i64: 1, 128>}, {pipeline_mode = #tpu.pipeline_mode<synchronous>, transform_indices = @transform_2, window_bounds = array<i64: 1, 128>}, {transform_indices = @transform_3, window_bounds = array<i64: 512, 128>}]} {
    %c0 = arith.constant 0 : index
    %c0_0 = arith.constant 0 : index
    %0 = vector.load %arg1[%c0, %c0_0] : memref<512x128xbf16, #tpu.memory_space<vmem>>, vector<512x128xbf16>
    %1 = arith.extf %0 : vector<512x128xbf16> to vector<512x128xf32>
    %c0_1 = arith.constant 0 : index
    %c0_2 = arith.constant 0 : index
    %2 = vector.load %arg2[%c0_1, %c0_2] : memref<1x128xf32, #tpu.memory_space<vmem>>, vector<1x128xf32>
    %3 = vector.broadcast %2 : vector<1x128xf32> to vector<512x128xf32>
    %4 = arith.mulf %1, %3 : vector<512x128xf32>
    %c0_3 = arith.constant 0 : index
    %c0_4 = arith.constant 0 : index
    %5 = vector.load %arg3[%c0_3, %c0_4] : memref<1x128xf32, #tpu.memory_space<vmem>>, vector<1x128xf32>
    %6 = vector.broadcast %5 : vector<1x128xf32> to vector<512x128xf32>
    %7 = arith.addf %4, %6 : vector<512x128xf32>
    %cst = arith.constant 0.000000e+00 : f32
    %8 = vector.broadcast %cst : f32 to vector<512x128xf32>
    %9 = arith.maximumf %7, %8 : vector<512x128xf32>
    %10 = arith.truncf %9 : vector<512x128xf32> to vector<512x128xbf16>
    %c0_5 = arith.constant 0 : index
    %c0_6 = arith.constant 0 : index
    %11 = vector.load %arg4[%c0_5, %c0_6] : memref<512x128xbf16, #tpu.memory_space<vmem>>, vector<512x128xbf16>
    tpu.vector_store %arg4[%c0_5, %c0_6], %10 {strides = array<i32>} : memref<512x128xbf16, #tpu.memory_space<vmem>>, vector<512x128xbf16>,
    return
  }
  func.func @transform_0(%arg0: i32) -> (i32, i32) {
    %c0_i32 = arith.constant 0 : i32
    %c0_i32_0 = arith.constant 0 : i32
    return %arg0, %c0_i32 : i32, i32
  }
  func.func @transform_1(%arg0: i32) -> (i32, i32) {
    %c0_i32 = arith.constant 0 : i32
    %c0_i32_0 = arith.constant 0 : i32
    %c0_i32_1 = arith.constant 0 : i32
    return %c0_i32, %c0_i32_0 : i32, i32
  }
  func.func @transform_2(%arg0: i32) -> (i32, i32) {
    %c0_i32 = arith.constant 0 : i32
    %c0_i32_0 = arith.constant 0 : i32
    %c0_i32_1 = arith.constant 0 : i32
    return %c0_i32, %c0_i32_0 : i32, i32
  }
  func.func @transform_3(%arg0: i32) -> (i32, i32) {
    %c0_i32 = arith.constant 0 : i32
    %c0_i32_0 = arith.constant 0 : i32
    return %arg0, %c0_i32 : i32, i32
  }
}

module attributes {stable_mosaic.version = 11 : i64} {
  func.func @_mm_stats_kernel(%arg0: i32, %arg1: i32, %arg2: memref<512x128xbf16, #tpu.memory_space<vmem>>, %arg3: memref<128x128xbf16, #tpu.memory_space<vmem>>, %arg4: memref<1x128xf32, #tpu.memory_space<vmem>>, %arg5: memref<512x128xbf16, #tpu.memory_space<vmem>>, %arg6: memref<1x1x128xf32, #tpu.memory_space<vmem>>, %arg7: memref<1x1x128xf32, #tpu.memory_space<vmem>>, %arg8: memref<512x128xf32, #tpu.memory_space<vmem>>) attributes {dimension_semantics = [#tpu.dimension_semantics<parallel>, #tpu.dimension_semantics<arbitrary>], iteration_bounds = array<i64: 2, 1>, scalar_prefetch = 0 : i64, scratch_operands = 1 : i64, tpu.core_type = #tpu.core_type<tc>, window_params = [{transform_indices = @transform_0, window_bounds = array<i64: 512, 128>}, {transform_indices = @transform_1, window_bounds = array<i64: 128, 128>}, {pipeline_mode = #tpu.pipeline_mode<synchronous>, transform_indices = @transform_2, window_bounds = array<i64: 1, 128>}, {transform_indices = @transform_3, window_bounds = array<i64: 512, 128>}, {transform_indices = @transform_4, window_bounds = array<i64: 1, 1, 128>}, {transform_indices = @transform_5, window_bounds = array<i64: 1, 1, 128>}]} {
    %c0_i32 = arith.constant 0 : i32
    %0 = arith.cmpi eq, %arg1, %c0_i32 : i32
    %1 = arith.extui %0 : i1 to i32
    %c0_i32_0 = arith.constant 0 : i32
    %2 = arith.cmpi ne, %1, %c0_i32_0 : i32
    scf.if %2 {
      %cst_10 = arith.constant 0.000000e+00 : f32
      %12 = vector.broadcast %cst_10 : f32 to vector<512x128xf32>
      %c0_11 = arith.constant 0 : index
      %c0_12 = arith.constant 0 : index
      %13 = vector.load %arg8[%c0_11, %c0_12] : memref<512x128xf32, #tpu.memory_space<vmem>>, vector<512x128xf32>
      tpu.vector_store %arg8[%c0_11, %c0_12], %12 {strides = array<i32>} : memref<512x128xf32, #tpu.memory_space<vmem>>, vector<512x128xf32>,
    } else {
    }
    %c0 = arith.constant 0 : index
    %c0_1 = arith.constant 0 : index
    %3 = vector.load %arg8[%c0, %c0_1] : memref<512x128xf32, #tpu.memory_space<vmem>>, vector<512x128xf32>
    %c0_2 = arith.constant 0 : index
    %c0_3 = arith.constant 0 : index
    %4 = vector.load %arg2[%c0_2, %c0_3] : memref<512x128xbf16, #tpu.memory_space<vmem>>, vector<512x128xbf16>
    %c0_4 = arith.constant 0 : index
    %c0_5 = arith.constant 0 : index
    %5 = vector.load %arg3[%c0_4, %c0_5] : memref<128x128xbf16, #tpu.memory_space<vmem>>, vector<128x128xbf16>
    %cst = arith.constant dense<0.000000e+00> : vector<512x128xf32>
    %6 = tpu.matmul %4, %5, %cst {dimension_numbers = #tpu.dot_dimension_numbers<[1], [0], [0], [1], [0, 0, 1, 1], [], []>} : vector<512x128xbf16>, vector<128x128xbf16>, vector<512x128xf32> -> vector<512x128xf32>
    %7 = arith.addf %3, %6 : vector<512x128xf32>
    %c0_6 = arith.constant 0 : index
    %c0_7 = arith.constant 0 : index
    %8 = vector.load %arg8[%c0_6, %c0_7] : memref<512x128xf32, #tpu.memory_space<vmem>>, vector<512x128xf32>
    tpu.vector_store %arg8[%c0_6, %c0_7], %7 {strides = array<i32>} : memref<512x128xf32, #tpu.memory_space<vmem>>, vector<512x128xf32>,
    %c0_i32_8 = arith.constant 0 : i32
    %9 = arith.cmpi eq, %arg1, %c0_i32_8 : i32
    %10 = arith.extui %9 : i1 to i32
    %c0_i32_9 = arith.constant 0 : i32
    %11 = arith.cmpi ne, %10, %c0_i32_9 : i32
    scf.if %11 {
      %c0_10 = arith.constant 0 : index
      %c0_11 = arith.constant 0 : index
      %12 = vector.load %arg8[%c0_10, %c0_11] : memref<512x128xf32, #tpu.memory_space<vmem>>, vector<512x128xf32>
      %c0_12 = arith.constant 0 : index
      %c0_13 = arith.constant 0 : index
      %13 = vector.load %arg4[%c0_12, %c0_13] : memref<1x128xf32, #tpu.memory_space<vmem>>, vector<1x128xf32>
      %14 = vector.broadcast %13 : vector<1x128xf32> to vector<512x128xf32>
      %15 = arith.addf %12, %14 : vector<512x128xf32>
      %16 = arith.truncf %15 : vector<512x128xf32> to vector<512x128xbf16>
      %c0_14 = arith.constant 0 : index
      %c0_15 = arith.constant 0 : index
      %17 = vector.load %arg5[%c0_14, %c0_15] : memref<512x128xbf16, #tpu.memory_space<vmem>>, vector<512x128xbf16>
      tpu.vector_store %arg5[%c0_14, %c0_15], %16 {strides = array<i32>} : memref<512x128xbf16, #tpu.memory_space<vmem>>, vector<512x128xbf16>,
      %c1_i32 = arith.constant 1 : i32
      %18 = arith.cmpi slt, %arg0, %c1_i32 : i32
      %19 = arith.extui %18 : i1 to i32
      %c0_i32_16 = arith.constant 0 : i32
      %20 = arith.cmpi ne, %19, %c0_i32_16 : i32
      scf.if %20 {
        %cst_19 = arith.constant dense<0.000000e+00> : vector<128xf32>
        %24 = vector.multi_reduction <add>, %15, %cst_19 [0] : vector<512x128xf32> to vector<128xf32>
        %25 = vector.shape_cast %24 : vector<128xf32> to vector<1x128xf32>
        %c0_20 = arith.constant 0 : index
        %c0_21 = arith.constant 0 : index
        %c0_22 = arith.constant 0 : index
        %26 = vector.load %arg6[%c0_20, %c0_21, %c0_22] : memref<1x1x128xf32, #tpu.memory_space<vmem>>, vector<1x1x128xf32>
        %27 = vector.shape_cast %26 : vector<1x1x128xf32> to vector<1x128xf32>
        %28 = vector.shape_cast %25 : vector<1x128xf32> to vector<1x1x128xf32>
        tpu.vector_store %arg6[%c0_20, %c0_21, %c0_22], %28 {strides = array<i32>} : memref<1x1x128xf32, #tpu.memory_space<vmem>>, vector<1x1x128xf32>,
        %29 = arith.mulf %15, %15 : vector<512x128xf32>
        %cst_23 = arith.constant dense<0.000000e+00> : vector<128xf32>
        %30 = vector.multi_reduction <add>, %29, %cst_23 [0] : vector<512x128xf32> to vector<128xf32>
        %31 = vector.shape_cast %30 : vector<128xf32> to vector<1x128xf32>
        %c0_24 = arith.constant 0 : index
        %c0_25 = arith.constant 0 : index
        %c0_26 = arith.constant 0 : index
        %32 = vector.load %arg7[%c0_24, %c0_25, %c0_26] : memref<1x1x128xf32, #tpu.memory_space<vmem>>, vector<1x1x128xf32>
        %33 = vector.shape_cast %32 : vector<1x1x128xf32> to vector<1x128xf32>
        %34 = vector.shape_cast %31 : vector<1x128xf32> to vector<1x1x128xf32>
        tpu.vector_store %arg7[%c0_24, %c0_25, %c0_26], %34 {strides = array<i32>} : memref<1x1x128xf32, #tpu.memory_space<vmem>>, vector<1x1x128xf32>,
      } else {
      }
      %c1_i32_17 = arith.constant 1 : i32
      %21 = arith.cmpi eq, %arg0, %c1_i32_17 : i32
      %22 = arith.extui %21 : i1 to i32
      %c0_i32_18 = arith.constant 0 : i32
      %23 = arith.cmpi ne, %22, %c0_i32_18 : i32
      scf.if %23 {
        %c512_i32 = arith.constant 512 : i32
        %24 = arith.muli %arg0, %c512_i32 : i32
        %25 = tpu.iota {dimensions = array<i32: 0>} : vector<512x1xi32>
        %26 = vector.broadcast %24 : i32 to vector<512x1xi32>
        %27 = arith.addi %26, %25 : vector<512x1xi32>
        %c1024_i32 = arith.constant 1024 : i32
        %28 = vector.broadcast %c1024_i32 : i32 to vector<512x1xi32>
        %29 = arith.cmpi slt, %27, %28 : vector<512x1xi32>
        %cst_19 = arith.constant 0.000000e+00 : f32
        %30 = vector.shape_cast %29 : vector<512x1xi1> to vector<512x1xi1>
        %31 = vector.broadcast %30 : vector<512x1xi1> to vector<512x128xi1>
        %32 = vector.broadcast %cst_19 : f32 to vector<512x128xf32>
        %33 = arith.select %31, %15, %32 : vector<512x128xi1>, vector<512x128xf32>
        %cst_20 = arith.constant dense<0.000000e+00> : vector<128xf32>
        %34 = vector.multi_reduction <add>, %33, %cst_20 [0] : vector<512x128xf32> to vector<128xf32>
        %35 = vector.shape_cast %34 : vector<128xf32> to vector<1x128xf32>
        %c0_21 = arith.constant 0 : index
        %c0_22 = arith.constant 0 : index
        %c0_23 = arith.constant 0 : index
        %36 = vector.load %arg6[%c0_21, %c0_22, %c0_23] : memref<1x1x128xf32, #tpu.memory_space<vmem>>, vector<1x1x128xf32>
        %37 = vector.shape_cast %36 : vector<1x1x128xf32> to vector<1x128xf32>
        %38 = vector.shape_cast %35 : vector<1x128xf32> to vector<1x1x128xf32>
        tpu.vector_store %arg6[%c0_21, %c0_22, %c0_23], %38 {strides = array<i32>} : memref<1x1x128xf32, #tpu.memory_space<vmem>>, vector<1x1x128xf32>,
        %39 = arith.mulf %33, %33 : vector<512x128xf32>
        %cst_24 = arith.constant dense<0.000000e+00> : vector<128xf32>
        %40 = vector.multi_reduction <add>, %39, %cst_24 [0] : vector<512x128xf32> to vector<128xf32>
        %41 = vector.shape_cast %40 : vector<128xf32> to vector<1x128xf32>
        %c0_25 = arith.constant 0 : index
        %c0_26 = arith.constant 0 : index
        %c0_27 = arith.constant 0 : index
        %42 = vector.load %arg7[%c0_25, %c0_26, %c0_27] : memref<1x1x128xf32, #tpu.memory_space<vmem>>, vector<1x1x128xf32>
        %43 = vector.shape_cast %42 : vector<1x1x128xf32> to vector<1x128xf32>
        %44 = vector.shape_cast %41 : vector<1x128xf32> to vector<1x1x128xf32>
        tpu.vector_store %arg7[%c0_25, %c0_26, %c0_27], %44 {strides = array<i32>} : memref<1x1x128xf32, #tpu.memory_space<vmem>>, vector<1x1x128xf32>,
      } else {
      }
    } else {
    }
    return
  }
  func.func @transform_0(%arg0: i32, %arg1: i32) -> (i32, i32) {
    %c0_i32 = arith.constant 0 : i32
    return %arg0, %arg1 : i32, i32
  }
  func.func @transform_1(%arg0: i32, %arg1: i32) -> (i32, i32) {
    %c0_i32 = arith.constant 0 : i32
    %c0_i32_0 = arith.constant 0 : i32
    return %arg1, %c0_i32 : i32, i32
  }
  func.func @transform_2(%arg0: i32, %arg1: i32) -> (i32, i32) {
    %c0_i32 = arith.constant 0 : i32
    %c0_i32_0 = arith.constant 0 : i32
    %c0_i32_1 = arith.constant 0 : i32
    return %c0_i32, %c0_i32_0 : i32, i32
  }
  func.func @transform_3(%arg0: i32, %arg1: i32) -> (i32, i32) {
    %c0_i32 = arith.constant 0 : i32
    %c0_i32_0 = arith.constant 0 : i32
    return %arg0, %c0_i32 : i32, i32
  }
  func.func @transform_4(%arg0: i32, %arg1: i32) -> (i32, i32, i32) {
    %c0_i32 = arith.constant 0 : i32
    %c0_i32_0 = arith.constant 0 : i32
    %c0_i32_1 = arith.constant 0 : i32
    return %arg0, %c0_i32, %c0_i32_0 : i32, i32, i32
  }
  func.func @transform_5(%arg0: i32, %arg1: i32) -> (i32, i32, i32) {
    %c0_i32 = arith.constant 0 : i32
    %c0_i32_0 = arith.constant 0 : i32
    %c0_i32_1 = arith.constant 0 : i32
    return %arg0, %c0_i32, %c0_i32_0 : i32, i32, i32
  }
}

module attributes {stable_mosaic.version = 11 : i64} {
  func.func @_bn_add_proj_relu_kernel(%arg0: i32, %arg1: memref<512x128xbf16, #tpu.memory_space<vmem>>, %arg2: memref<512x128xbf16, #tpu.memory_space<vmem>>, %arg3: memref<1x128xf32, #tpu.memory_space<vmem>>, %arg4: memref<1x128xf32, #tpu.memory_space<vmem>>, %arg5: memref<1x128xf32, #tpu.memory_space<vmem>>, %arg6: memref<1x128xf32, #tpu.memory_space<vmem>>, %arg7: memref<512x128xf32, #tpu.memory_space<vmem>>) attributes {dimension_semantics = [#tpu.dimension_semantics<parallel>], iteration_bounds = array<i64: 2>, scalar_prefetch = 0 : i64, scratch_operands = 0 : i64, tpu.core_type = #tpu.core_type<tc>, window_params = [{transform_indices = @transform_0, window_bounds = array<i64: 512, 128>}, {transform_indices = @transform_1, window_bounds = array<i64: 512, 128>}, {pipeline_mode = #tpu.pipeline_mode<synchronous>, transform_indices = @transform_2, window_bounds = array<i64: 1, 128>}, {pipeline_mode = #tpu.pipeline_mode<synchronous>, transform_indices = @transform_3, window_bounds = array<i64: 1, 128>}, {pipeline_mode = #tpu.pipeline_mode<synchronous>, transform_indices = @transform_4, window_bounds = array<i64: 1, 128>}, {pipeline_mode = #tpu.pipeline_mode<synchronous>, transform_indices = @transform_5, window_bounds = array<i64: 1, 128>}, {transform_indices = @transform_6, window_bounds = array<i64: 512, 128>}]} {
    %c0 = arith.constant 0 : index
    %c0_0 = arith.constant 0 : index
    %0 = vector.load %arg1[%c0, %c0_0] : memref<512x128xbf16, #tpu.memory_space<vmem>>, vector<512x128xbf16>
    %1 = arith.extf %0 : vector<512x128xbf16> to vector<512x128xf32>
    %c0_1 = arith.constant 0 : index
    %c0_2 = arith.constant 0 : index
    %2 = vector.load %arg3[%c0_1, %c0_2] : memref<1x128xf32, #tpu.memory_space<vmem>>, vector<1x128xf32>
    %3 = vector.broadcast %2 : vector<1x128xf32> to vector<512x128xf32>
    %4 = arith.mulf %1, %3 : vector<512x128xf32>
    %c0_3 = arith.constant 0 : index
    %c0_4 = arith.constant 0 : index
    %5 = vector.load %arg4[%c0_3, %c0_4] : memref<1x128xf32, #tpu.memory_space<vmem>>, vector<1x128xf32>
    %6 = vector.broadcast %5 : vector<1x128xf32> to vector<512x128xf32>
    %7 = arith.addf %4, %6 : vector<512x128xf32>
    %c0_5 = arith.constant 0 : index
    %c0_6 = arith.constant 0 : index
    %8 = vector.load %arg2[%c0_5, %c0_6] : memref<512x128xbf16, #tpu.memory_space<vmem>>, vector<512x128xbf16>
    %9 = arith.extf %8 : vector<512x128xbf16> to vector<512x128xf32>
    %c0_7 = arith.constant 0 : index
    %c0_8 = arith.constant 0 : index
    %10 = vector.load %arg5[%c0_7, %c0_8] : memref<1x128xf32, #tpu.memory_space<vmem>>, vector<1x128xf32>
    %11 = vector.broadcast %10 : vector<1x128xf32> to vector<512x128xf32>
    %12 = arith.mulf %9, %11 : vector<512x128xf32>
    %c0_9 = arith.constant 0 : index
    %c0_10 = arith.constant 0 : index
    %13 = vector.load %arg6[%c0_9, %c0_10] : memref<1x128xf32, #tpu.memory_space<vmem>>, vector<1x128xf32>
    %14 = vector.broadcast %13 : vector<1x128xf32> to vector<512x128xf32>
    %15 = arith.addf %12, %14 : vector<512x128xf32>
    %16 = arith.addf %7, %15 : vector<512x128xf32>
    %cst = arith.constant 0.000000e+00 : f32
    %17 = vector.broadcast %cst : f32 to vector<512x128xf32>
    %18 = arith.maximumf %16, %17 : vector<512x128xf32>
    %c0_11 = arith.constant 0 : index
    %c0_12 = arith.constant 0 : index
    %19 = vector.load %arg7[%c0_11, %c0_12] : memref<512x128xf32, #tpu.memory_space<vmem>>, vector<512x128xf32>
    tpu.vector_store %arg7[%c0_11, %c0_12], %18 {strides = array<i32>} : memref<512x128xf32, #tpu.memory_space<vmem>>, vector<512x128xf32>,
    return
  }
  func.func @transform_0(%arg0: i32) -> (i32, i32) {
    %c0_i32 = arith.constant 0 : i32
    %c0_i32_0 = arith.constant 0 : i32
    return %arg0, %c0_i32 : i32, i32
  }
  func.func @transform_1(%arg0: i32) -> (i32, i32) {
    %c0_i32 = arith.constant 0 : i32
    %c0_i32_0 = arith.constant 0 : i32
    return %arg0, %c0_i32 : i32, i32
  }
  func.func @transform_2(%arg0: i32) -> (i32, i32) {
    %c0_i32 = arith.constant 0 : i32
    %c0_i32_0 = arith.constant 0 : i32
    %c0_i32_1 = arith.constant 0 : i32
    return %c0_i32, %c0_i32_0 : i32, i32
  }
  func.func @transform_3(%arg0: i32) -> (i32, i32) {
    %c0_i32 = arith.constant 0 : i32
    %c0_i32_0 = arith.constant 0 : i32
    %c0_i32_1 = arith.constant 0 : i32
    return %c0_i32, %c0_i32_0 : i32, i32
  }
  func.func @transform_4(%arg0: i32) -> (i32, i32) {
    %c0_i32 = arith.constant 0 : i32
    %c0_i32_0 = arith.constant 0 : i32
    %c0_i32_1 = arith.constant 0 : i32
    return %c0_i32, %c0_i32_0 : i32, i32
  }
  func.func @transform_5(%arg0: i32) -> (i32, i32) {
    %c0_i32 = arith.constant 0 : i32
    %c0_i32_0 = arith.constant 0 : i32
    %c0_i32_1 = arith.constant 0 : i32
    return %c0_i32, %c0_i32_0 : i32, i32
  }
  func.func @transform_6(%arg0: i32) -> (i32, i32) {
    %c0_i32 = arith.constant 0 : i32
    %c0_i32_0 = arith.constant 0 : i32
    return %arg0, %c0_i32 : i32, i32
  }
}

module attributes {stable_mosaic.version = 11 : i64} {
  func.func @_mm_stats_skip_kernel(%arg0: i32, %arg1: i32, %arg2: memref<512x256xbf16, #tpu.memory_space<vmem>>, %arg3: memref<256x128xbf16, #tpu.memory_space<vmem>>, %arg4: memref<1x128xf32, #tpu.memory_space<vmem>>, %arg5: memref<512x128xbf16, #tpu.memory_space<vmem>>, %arg6: memref<128x128xbf16, #tpu.memory_space<vmem>>, %arg7: memref<1x128xf32, #tpu.memory_space<vmem>>, %arg8: memref<512x128xbf16, #tpu.memory_space<vmem>>, %arg9: memref<1x1x128xf32, #tpu.memory_space<vmem>>, %arg10: memref<1x1x128xf32, #tpu.memory_space<vmem>>, %arg11: memref<512x128xbf16, #tpu.memory_space<vmem>>, %arg12: memref<1x1x128xf32, #tpu.memory_space<vmem>>, %arg13: memref<1x1x128xf32, #tpu.memory_space<vmem>>, %arg14: memref<512x128xf32, #tpu.memory_space<vmem>>) attributes {dimension_semantics = [#tpu.dimension_semantics<parallel>, #tpu.dimension_semantics<arbitrary>], iteration_bounds = array<i64: 2, 1>, scalar_prefetch = 0 : i64, scratch_operands = 1 : i64, tpu.core_type = #tpu.core_type<tc>, window_params = [{transform_indices = @transform_0, window_bounds = array<i64: 512, 256>}, {transform_indices = @transform_1, window_bounds = array<i64: 256, 128>}, {pipeline_mode = #tpu.pipeline_mode<synchronous>, transform_indices = @transform_2, window_bounds = array<i64: 1, 128>}, {transform_indices = @transform_3, window_bounds = array<i64: 512, 128>}, {pipeline_mode = #tpu.pipeline_mode<synchronous>, transform_indices = @transform_4, window_bounds = array<i64: 128, 128>}, {pipeline_mode = #tpu.pipeline_mode<synchronous>, transform_indices = @transform_5, window_bounds = array<i64: 1, 128>}, {transform_indices = @transform_6, window_bounds = array<i64: 512, 128>}, {transform_indices = @transform_7, window_bounds = array<i64: 1, 1, 128>}, {transform_indices = @transform_8, window_bounds = array<i64: 1, 1, 128>}, {transform_indices = @transform_9, window_bounds = array<i64: 512, 128>}, {transform_indices = @transform_10, window_bounds = array<i64: 1, 1, 128>}, {transform_indices = @transform_11, window_bounds = array<i64: 1, 1, 128>}]} {
    %c0_i32 = arith.constant 0 : i32
    %0 = arith.cmpi eq, %arg1, %c0_i32 : i32
    %1 = arith.extui %0 : i1 to i32
    %c0_i32_0 = arith.constant 0 : i32
    %2 = arith.cmpi ne, %1, %c0_i32_0 : i32
    scf.if %2 {
      %cst_10 = arith.constant 0.000000e+00 : f32
      %12 = vector.broadcast %cst_10 : f32 to vector<512x128xf32>
      %c0_11 = arith.constant 0 : index
      %c0_12 = arith.constant 0 : index
      %13 = vector.load %arg14[%c0_11, %c0_12] : memref<512x128xf32, #tpu.memory_space<vmem>>, vector<512x128xf32>
      tpu.vector_store %arg14[%c0_11, %c0_12], %12 {strides = array<i32>} : memref<512x128xf32, #tpu.memory_space<vmem>>, vector<512x128xf32>,
      %c0_13 = arith.constant 0 : index
      %c0_14 = arith.constant 0 : index
      %14 = vector.load %arg5[%c0_13, %c0_14] : memref<512x128xbf16, #tpu.memory_space<vmem>>, vector<512x128xbf16>
      %c0_15 = arith.constant 0 : index
      %c0_16 = arith.constant 0 : index
      %15 = vector.load %arg6[%c0_15, %c0_16] : memref<128x128xbf16, #tpu.memory_space<vmem>>, vector<128x128xbf16>
      %cst_17 = arith.constant dense<0.000000e+00> : vector<512x128xf32>
      %16 = tpu.matmul %14, %15, %cst_17 {dimension_numbers = #tpu.dot_dimension_numbers<[1], [0], [0], [1], [0, 0, 1, 1], [], []>} : vector<512x128xbf16>, vector<128x128xbf16>, vector<512x128xf32> -> vector<512x128xf32>
      %c0_18 = arith.constant 0 : index
      %c0_19 = arith.constant 0 : index
      %17 = vector.load %arg7[%c0_18, %c0_19] : memref<1x128xf32, #tpu.memory_space<vmem>>, vector<1x128xf32>
      %18 = vector.broadcast %17 : vector<1x128xf32> to vector<512x128xf32>
      %19 = arith.addf %16, %18 : vector<512x128xf32>
      %20 = arith.truncf %19 : vector<512x128xf32> to vector<512x128xbf16>
      %c0_20 = arith.constant 0 : index
      %c0_21 = arith.constant 0 : index
      %21 = vector.load %arg11[%c0_20, %c0_21] : memref<512x128xbf16, #tpu.memory_space<vmem>>, vector<512x128xbf16>
      tpu.vector_store %arg11[%c0_20, %c0_21], %20 {strides = array<i32>} : memref<512x128xbf16, #tpu.memory_space<vmem>>, vector<512x128xbf16>,
      %c1_i32 = arith.constant 1 : i32
      %22 = arith.cmpi slt, %arg0, %c1_i32 : i32
      %23 = arith.extui %22 : i1 to i32
      %c0_i32_22 = arith.constant 0 : i32
      %24 = arith.cmpi ne, %23, %c0_i32_22 : i32
      scf.if %24 {
        %cst_25 = arith.constant dense<0.000000e+00> : vector<128xf32>
        %28 = vector.multi_reduction <add>, %19, %cst_25 [0] : vector<512x128xf32> to vector<128xf32>
        %29 = vector.shape_cast %28 : vector<128xf32> to vector<1x128xf32>
        %c0_26 = arith.constant 0 : index
        %c0_27 = arith.constant 0 : index
        %c0_28 = arith.constant 0 : index
        %30 = vector.load %arg12[%c0_26, %c0_27, %c0_28] : memref<1x1x128xf32, #tpu.memory_space<vmem>>, vector<1x1x128xf32>
        %31 = vector.shape_cast %30 : vector<1x1x128xf32> to vector<1x128xf32>
        %32 = vector.shape_cast %29 : vector<1x128xf32> to vector<1x1x128xf32>
        tpu.vector_store %arg12[%c0_26, %c0_27, %c0_28], %32 {strides = array<i32>} : memref<1x1x128xf32, #tpu.memory_space<vmem>>, vector<1x1x128xf32>,
        %33 = arith.mulf %19, %19 : vector<512x128xf32>
        %cst_29 = arith.constant dense<0.000000e+00> : vector<128xf32>
        %34 = vector.multi_reduction <add>, %33, %cst_29 [0] : vector<512x128xf32> to vector<128xf32>
        %35 = vector.shape_cast %34 : vector<128xf32> to vector<1x128xf32>
        %c0_30 = arith.constant 0 : index
        %c0_31 = arith.constant 0 : index
        %c0_32 = arith.constant 0 : index
        %36 = vector.load %arg13[%c0_30, %c0_31, %c0_32] : memref<1x1x128xf32, #tpu.memory_space<vmem>>, vector<1x1x128xf32>
        %37 = vector.shape_cast %36 : vector<1x1x128xf32> to vector<1x128xf32>
        %38 = vector.shape_cast %35 : vector<1x128xf32> to vector<1x1x128xf32>
        tpu.vector_store %arg13[%c0_30, %c0_31, %c0_32], %38 {strides = array<i32>} : memref<1x1x128xf32, #tpu.memory_space<vmem>>, vector<1x1x128xf32>,
      } else {
      }
      %c1_i32_23 = arith.constant 1 : i32
      %25 = arith.cmpi eq, %arg0, %c1_i32_23 : i32
      %26 = arith.extui %25 : i1 to i32
      %c0_i32_24 = arith.constant 0 : i32
      %27 = arith.cmpi ne, %26, %c0_i32_24 : i32
      scf.if %27 {
        %c512_i32 = arith.constant 512 : i32
        %28 = arith.muli %arg0, %c512_i32 : i32
        %29 = tpu.iota {dimensions = array<i32: 0>} : vector<512x1xi32>
        %30 = vector.broadcast %28 : i32 to vector<512x1xi32>
        %31 = arith.addi %30, %29 : vector<512x1xi32>
        %c1024_i32 = arith.constant 1024 : i32
        %32 = vector.broadcast %c1024_i32 : i32 to vector<512x1xi32>
        %33 = arith.cmpi slt, %31, %32 : vector<512x1xi32>
        %cst_25 = arith.constant 0.000000e+00 : f32
        %34 = vector.shape_cast %33 : vector<512x1xi1> to vector<512x1xi1>
        %35 = vector.broadcast %34 : vector<512x1xi1> to vector<512x128xi1>
        %36 = vector.broadcast %cst_25 : f32 to vector<512x128xf32>
        %37 = arith.select %35, %19, %36 : vector<512x128xi1>, vector<512x128xf32>
        %cst_26 = arith.constant dense<0.000000e+00> : vector<128xf32>
        %38 = vector.multi_reduction <add>, %37, %cst_26 [0] : vector<512x128xf32> to vector<128xf32>
        %39 = vector.shape_cast %38 : vector<128xf32> to vector<1x128xf32>
        %c0_27 = arith.constant 0 : index
        %c0_28 = arith.constant 0 : index
        %c0_29 = arith.constant 0 : index
        %40 = vector.load %arg12[%c0_27, %c0_28, %c0_29] : memref<1x1x128xf32, #tpu.memory_space<vmem>>, vector<1x1x128xf32>
        %41 = vector.shape_cast %40 : vector<1x1x128xf32> to vector<1x128xf32>
        %42 = vector.shape_cast %39 : vector<1x128xf32> to vector<1x1x128xf32>
        tpu.vector_store %arg12[%c0_27, %c0_28, %c0_29], %42 {strides = array<i32>} : memref<1x1x128xf32, #tpu.memory_space<vmem>>, vector<1x1x128xf32>,
        %43 = arith.mulf %37, %37 : vector<512x128xf32>
        %cst_30 = arith.constant dense<0.000000e+00> : vector<128xf32>
        %44 = vector.multi_reduction <add>, %43, %cst_30 [0] : vector<512x128xf32> to vector<128xf32>
        %45 = vector.shape_cast %44 : vector<128xf32> to vector<1x128xf32>
        %c0_31 = arith.constant 0 : index
        %c0_32 = arith.constant 0 : index
        %c0_33 = arith.constant 0 : index
        %46 = vector.load %arg13[%c0_31, %c0_32, %c0_33] : memref<1x1x128xf32, #tpu.memory_space<vmem>>, vector<1x1x128xf32>
        %47 = vector.shape_cast %46 : vector<1x1x128xf32> to vector<1x128xf32>
        %48 = vector.shape_cast %45 : vector<1x128xf32> to vector<1x1x128xf32>
        tpu.vector_store %arg13[%c0_31, %c0_32, %c0_33], %48 {strides = array<i32>} : memref<1x1x128xf32, #tpu.memory_space<vmem>>, vector<1x1x128xf32>,
      } else {
      }
    } else {
    }
    %c0 = arith.constant 0 : index
    %c0_1 = arith.constant 0 : index
    %3 = vector.load %arg14[%c0, %c0_1] : memref<512x128xf32, #tpu.memory_space<vmem>>, vector<512x128xf32>
    %c0_2 = arith.constant 0 : index
    %c0_3 = arith.constant 0 : index
    %4 = vector.load %arg2[%c0_2, %c0_3] : memref<512x256xbf16, #tpu.memory_space<vmem>>, vector<512x256xbf16>
    %c0_4 = arith.constant 0 : index
    %c0_5 = arith.constant 0 : index
    %5 = vector.load %arg3[%c0_4, %c0_5] : memref<256x128xbf16, #tpu.memory_space<vmem>>, vector<256x128xbf16>
    %cst = arith.constant dense<0.000000e+00> : vector<512x128xf32>
    %6 = tpu.matmul %4, %5, %cst {dimension_numbers = #tpu.dot_dimension_numbers<[1], [0], [0], [1], [0, 0, 1, 1], [], []>} : vector<512x256xbf16>, vector<256x128xbf16>, vector<512x128xf32> -> vector<512x128xf32>
    %7 = arith.addf %3, %6 : vector<512x128xf32>
    %c0_6 = arith.constant 0 : index
    %c0_7 = arith.constant 0 : index
    %8 = vector.load %arg14[%c0_6, %c0_7] : memref<512x128xf32, #tpu.memory_space<vmem>>, vector<512x128xf32>
    tpu.vector_store %arg14[%c0_6, %c0_7], %7 {strides = array<i32>} : memref<512x128xf32, #tpu.memory_space<vmem>>, vector<512x128xf32>,
    %c0_i32_8 = arith.constant 0 : i32
    %9 = arith.cmpi eq, %arg1, %c0_i32_8 : i32
    %10 = arith.extui %9 : i1 to i32
    %c0_i32_9 = arith.constant 0 : i32
    %11 = arith.cmpi ne, %10, %c0_i32_9 : i32
    scf.if %11 {
      %c0_10 = arith.constant 0 : index
      %c0_11 = arith.constant 0 : index
      %12 = vector.load %arg14[%c0_10, %c0_11] : memref<512x128xf32, #tpu.memory_space<vmem>>, vector<512x128xf32>
      %c0_12 = arith.constant 0 : index
      %c0_13 = arith.constant 0 : index
      %13 = vector.load %arg4[%c0_12, %c0_13] : memref<1x128xf32, #tpu.memory_space<vmem>>, vector<1x128xf32>
      %14 = vector.broadcast %13 : vector<1x128xf32> to vector<512x128xf32>
      %15 = arith.addf %12, %14 : vector<512x128xf32>
      %16 = arith.truncf %15 : vector<512x128xf32> to vector<512x128xbf16>
      %c0_14 = arith.constant 0 : index
      %c0_15 = arith.constant 0 : index
      %17 = vector.load %arg8[%c0_14, %c0_15] : memref<512x128xbf16, #tpu.memory_space<vmem>>, vector<512x128xbf16>
      tpu.vector_store %arg8[%c0_14, %c0_15], %16 {strides = array<i32>} : memref<512x128xbf16, #tpu.memory_space<vmem>>, vector<512x128xbf16>,
      %c1_i32 = arith.constant 1 : i32
      %18 = arith.cmpi slt, %arg0, %c1_i32 : i32
      %19 = arith.extui %18 : i1 to i32
      %c0_i32_16 = arith.constant 0 : i32
      %20 = arith.cmpi ne, %19, %c0_i32_16 : i32
      scf.if %20 {
        %cst_19 = arith.constant dense<0.000000e+00> : vector<128xf32>
        %24 = vector.multi_reduction <add>, %15, %cst_19 [0] : vector<512x128xf32> to vector<128xf32>
        %25 = vector.shape_cast %24 : vector<128xf32> to vector<1x128xf32>
        %c0_20 = arith.constant 0 : index
        %c0_21 = arith.constant 0 : index
        %c0_22 = arith.constant 0 : index
        %26 = vector.load %arg9[%c0_20, %c0_21, %c0_22] : memref<1x1x128xf32, #tpu.memory_space<vmem>>, vector<1x1x128xf32>
        %27 = vector.shape_cast %26 : vector<1x1x128xf32> to vector<1x128xf32>
        %28 = vector.shape_cast %25 : vector<1x128xf32> to vector<1x1x128xf32>
        tpu.vector_store %arg9[%c0_20, %c0_21, %c0_22], %28 {strides = array<i32>} : memref<1x1x128xf32, #tpu.memory_space<vmem>>, vector<1x1x128xf32>,
        %29 = arith.mulf %15, %15 : vector<512x128xf32>
        %cst_23 = arith.constant dense<0.000000e+00> : vector<128xf32>
        %30 = vector.multi_reduction <add>, %29, %cst_23 [0] : vector<512x128xf32> to vector<128xf32>
        %31 = vector.shape_cast %30 : vector<128xf32> to vector<1x128xf32>
        %c0_24 = arith.constant 0 : index
        %c0_25 = arith.constant 0 : index
        %c0_26 = arith.constant 0 : index
        %32 = vector.load %arg10[%c0_24, %c0_25, %c0_26] : memref<1x1x128xf32, #tpu.memory_space<vmem>>, vector<1x1x128xf32>
        %33 = vector.shape_cast %32 : vector<1x1x128xf32> to vector<1x128xf32>
        %34 = vector.shape_cast %31 : vector<1x128xf32> to vector<1x1x128xf32>
        tpu.vector_store %arg10[%c0_24, %c0_25, %c0_26], %34 {strides = array<i32>} : memref<1x1x128xf32, #tpu.memory_space<vmem>>, vector<1x1x128xf32>,
      } else {
      }
      %c1_i32_17 = arith.constant 1 : i32
      %21 = arith.cmpi eq, %arg0, %c1_i32_17 : i32
      %22 = arith.extui %21 : i1 to i32
      %c0_i32_18 = arith.constant 0 : i32
      %23 = arith.cmpi ne, %22, %c0_i32_18 : i32
      scf.if %23 {
        %c512_i32 = arith.constant 512 : i32
        %24 = arith.muli %arg0, %c512_i32 : i32
        %25 = tpu.iota {dimensions = array<i32: 0>} : vector<512x1xi32>
        %26 = vector.broadcast %24 : i32 to vector<512x1xi32>
        %27 = arith.addi %26, %25 : vector<512x1xi32>
        %c1024_i32 = arith.constant 1024 : i32
        %28 = vector.broadcast %c1024_i32 : i32 to vector<512x1xi32>
        %29 = arith.cmpi slt, %27, %28 : vector<512x1xi32>
        %cst_19 = arith.constant 0.000000e+00 : f32
        %30 = vector.shape_cast %29 : vector<512x1xi1> to vector<512x1xi1>
        %31 = vector.broadcast %30 : vector<512x1xi1> to vector<512x128xi1>
        %32 = vector.broadcast %cst_19 : f32 to vector<512x128xf32>
        %33 = arith.select %31, %15, %32 : vector<512x128xi1>, vector<512x128xf32>
        %cst_20 = arith.constant dense<0.000000e+00> : vector<128xf32>
        %34 = vector.multi_reduction <add>, %33, %cst_20 [0] : vector<512x128xf32> to vector<128xf32>
        %35 = vector.shape_cast %34 : vector<128xf32> to vector<1x128xf32>
        %c0_21 = arith.constant 0 : index
        %c0_22 = arith.constant 0 : index
        %c0_23 = arith.constant 0 : index
        %36 = vector.load %arg9[%c0_21, %c0_22, %c0_23] : memref<1x1x128xf32, #tpu.memory_space<vmem>>, vector<1x1x128xf32>
        %37 = vector.shape_cast %36 : vector<1x1x128xf32> to vector<1x128xf32>
        %38 = vector.shape_cast %35 : vector<1x128xf32> to vector<1x1x128xf32>
        tpu.vector_store %arg9[%c0_21, %c0_22, %c0_23], %38 {strides = array<i32>} : memref<1x1x128xf32, #tpu.memory_space<vmem>>, vector<1x1x128xf32>,
        %39 = arith.mulf %33, %33 : vector<512x128xf32>
        %cst_24 = arith.constant dense<0.000000e+00> : vector<128xf32>
        %40 = vector.multi_reduction <add>, %39, %cst_24 [0] : vector<512x128xf32> to vector<128xf32>
        %41 = vector.shape_cast %40 : vector<128xf32> to vector<1x128xf32>
        %c0_25 = arith.constant 0 : index
        %c0_26 = arith.constant 0 : index
        %c0_27 = arith.constant 0 : index
        %42 = vector.load %arg10[%c0_25, %c0_26, %c0_27] : memref<1x1x128xf32, #tpu.memory_space<vmem>>, vector<1x1x128xf32>
        %43 = vector.shape_cast %42 : vector<1x1x128xf32> to vector<1x128xf32>
        %44 = vector.shape_cast %41 : vector<1x128xf32> to vector<1x1x128xf32>
        tpu.vector_store %arg10[%c0_25, %c0_26, %c0_27], %44 {strides = array<i32>} : memref<1x1x128xf32, #tpu.memory_space<vmem>>, vector<1x1x128xf32>,
      } else {
      }
    } else {
    }
    return
  }
  func.func @transform_0(%arg0: i32, %arg1: i32) -> (i32, i32) {
    %c0_i32 = arith.constant 0 : i32
    return %arg0, %arg1 : i32, i32
  }
  func.func @transform_1(%arg0: i32, %arg1: i32) -> (i32, i32) {
    %c0_i32 = arith.constant 0 : i32
    %c0_i32_0 = arith.constant 0 : i32
    return %arg1, %c0_i32 : i32, i32
  }
  func.func @transform_2(%arg0: i32, %arg1: i32) -> (i32, i32) {
    %c0_i32 = arith.constant 0 : i32
    %c0_i32_0 = arith.constant 0 : i32
    %c0_i32_1 = arith.constant 0 : i32
    return %c0_i32, %c0_i32_0 : i32, i32
  }
  func.func @transform_3(%arg0: i32, %arg1: i32) -> (i32, i32) {
    %c0_i32 = arith.constant 0 : i32
    %c0_i32_0 = arith.constant 0 : i32
    return %arg0, %c0_i32 : i32, i32
  }
  func.func @transform_4(%arg0: i32, %arg1: i32) -> (i32, i32) {
    %c0_i32 = arith.constant 0 : i32
    %c0_i32_0 = arith.constant 0 : i32
    %c0_i32_1 = arith.constant 0 : i32
    return %c0_i32, %c0_i32_0 : i32, i32
  }
  func.func @transform_5(%arg0: i32, %arg1: i32) -> (i32, i32) {
    %c0_i32 = arith.constant 0 : i32
    %c0_i32_0 = arith.constant 0 : i32
    %c0_i32_1 = arith.constant 0 : i32
    return %c0_i32, %c0_i32_0 : i32, i32
  }
  func.func @transform_6(%arg0: i32, %arg1: i32) -> (i32, i32) {
    %c0_i32 = arith.constant 0 : i32
    %c0_i32_0 = arith.constant 0 : i32
    return %arg0, %c0_i32 : i32, i32
  }
  func.func @transform_7(%arg0: i32, %arg1: i32) -> (i32, i32, i32) {
    %c0_i32 = arith.constant 0 : i32
    %c0_i32_0 = arith.constant 0 : i32
    %c0_i32_1 = arith.constant 0 : i32
    return %arg0, %c0_i32, %c0_i32_0 : i32, i32, i32
  }
  func.func @transform_8(%arg0: i32, %arg1: i32) -> (i32, i32, i32) {
    %c0_i32 = arith.constant 0 : i32
    %c0_i32_0 = arith.constant 0 : i32
    %c0_i32_1 = arith.constant 0 : i32
    return %arg0, %c0_i32, %c0_i32_0 : i32, i32, i32
  }
  func.func @transform_9(%arg0: i32, %arg1: i32) -> (i32, i32) {
    %c0_i32 = arith.constant 0 : i32
    %c0_i32_0 = arith.constant 0 : i32
    return %arg0, %c0_i32 : i32, i32
  }
  func.func @transform_10(%arg0: i32, %arg1: i32) -> (i32, i32, i32) {
    %c0_i32 = arith.constant 0 : i32
    %c0_i32_0 = arith.constant 0 : i32
    %c0_i32_1 = arith.constant 0 : i32
    return %arg0, %c0_i32, %c0_i32_0 : i32, i32, i32
  }
  func.func @transform_11(%arg0: i32, %arg1: i32) -> (i32, i32, i32) {
    %c0_i32 = arith.constant 0 : i32
    %c0_i32_0 = arith.constant 0 : i32
    %c0_i32_1 = arith.constant 0 : i32
    return %arg0, %c0_i32, %c0_i32_0 : i32, i32, i32
  }
}

</mosaic_0001>

<llo_original>
// kernel: residual_block_3d.5
$region0: #{residual_block_3d.5}
  #allocation0 [shape = 'u32[]', space=smem, size = 0x4, offset = 0x4, fixed_abs, tag = 'smem constant byte address 0x4 - core index']
  #allocation1 [shape = 'u32[72,128]{1,0:T(1,128)}', space=vmem, size = 0x9000, scoped, tag = 'internal scratch']
  %s0 = inlined_call_operand.vmem [shape: bf16[1024,128], index: 0, kind: input, shape index: {}]
  %s1 = inlined_call_operand.vmem [shape: f32[1,128], index: 1, kind: input, shape index: {}]
  %s2 = inlined_call_operand.vmem [shape: f32[1,128], index: 2, kind: input, shape index: {}]
  %s3 = inlined_call_operand.vmem [shape: bf16[1024,128], index: 3, kind: output, shape index: {}]
  %s4 = sld [smem:[#allocation0]]
  $region45: #{residual_block_3d.5} parent=0
    _
  %s6 = ssub.s32 1, %s4
  %s7 = scalar_select 0, %s6, %s4
  loop: start=0, step=1, limit=4
  $region2: #{residual_block_3d.5} parent=0 // loop_pre_header
    _
  $region3: #{residual_block_3d.5} parent=0 // loop_header
    %s9 = sphi 0, %s13
    %p10 = scmp.ge.s32.totalorder %s9, 4
    %s19 = sphi 0, %s21
    %s22 = sphi 0, %s19
    %s23 = sphi 0, %s22
    %s39 = sphi 0, %s23
    %s43 = sphi 0, %s43
    %s45 = sphi 0, %s43
    %s46 = sphi 0, %s45
    %s60 = sphi 0, %s46
    %s64 = sphi 0, %s64
    %s66 = sphi 0, %s64
    %s67 = sphi 0, %s66
    %s81 = sphi 0, %s67
    %s87 = sphi 0, %s89
    %s90 = sphi 0, %s87
    %s91 = sphi 0, %s90
    %s107 = sphi 0, %s91
  $region4: #{residual_block_3d.5} parent=0 // loop_header_branch
    %12 = sbr.rel (%p10) target = $region8
  $region5: #{residual_block_3d.5} parent=0 // loop_body
    %s14 = ssub.s32 %s9, 1
    %s15 = ssub.s32 %s9, 2
    %s16 = sadd.s32 %s9, 1
    %s17 = ssub.s32 %s9, %s16
    %p18 = scmp.eq.s32.totalorder %s17, 0
    %s20 = sadd.s32 %s19, 1
    %s21 = scalar_select %p18, %s19, %s20
    %p24 = pneg %p18
    %p25 = scmp.eq.s32.totalorder %s9, 1
    %p26 = por %p24, %p25
    %p27 = scmp.ne.s32.totalorder %s19, %s22
    %p28 = scmp.eq.s32.totalorder %s9, 0
    %p29 = por %p27, %p28
    %p30 = scmp.ne.s32.totalorder %s19, %s22
    %p31 = scmp.eq.s32.totalorder %s14, 1
    %p32 = por %p30, %p31
    %p33 = scmp.ne.s32.totalorder %s22, %s23
    %p34 = scmp.eq.s32.totalorder %s14, 0
    %p35 = por %p33, %p34
    %p36 = scmp.ne.s32.totalorder %s22, %s23
    %p37 = scmp.eq.s32.totalorder %s15, 1
    %p38 = por %p36, %p37
    %p40 = scmp.ne.s32.totalorder %s23, %s39
    %p41 = scmp.eq.s32.totalorder %s15, 0
    %p42 = por %p40, %p41
    %s44 = sadd.s32 %s43, 1
    %p47 = scmp.eq.s32.totalorder %s9, 1
    %p48 = scmp.ne.s32.totalorder %s43, %s45
    %p49 = scmp.eq.s32.totalorder %s9, 0
    %p50 = por %p48, %p49
    %p51 = scmp.ne.s32.totalorder %s43, %s45
    %p52 = scmp.eq.s32.totalorder %s14, 1
    %p53 = por %p51, %p52
    %p54 = scmp.ne.s32.totalorder %s45, %s46
    %p55 = scmp.eq.s32.totalorder %s14, 0
    %p56 = por %p54, %p55
    %p57 = scmp.ne.s32.totalorder %s45, %s46
    %p58 = scmp.eq.s32.totalorder %s15, 1
    %p59 = por %p57, %p58
    %p61 = scmp.ne.s32.totalorder %s46, %s60
    %p62 = scmp.eq.s32.totalorder %s15, 0
    %p63 = por %p61, %p62
    %s65 = sadd.s32 %s64, 1
    %p68 = scmp.eq.s32.totalorder %s9, 1
    %p69 = scmp.ne.s32.totalorder %s64, %s66
    %p70 = scmp.eq.s32.totalorder %s9, 0
    %p71 = por %p69, %p70
    %p72 = scmp.ne.s32.totalorder %s64, %s66
    %p73 = scmp.eq.s32.totalorder %s14, 1
    %p74 = por %p72, %p73
    %p75 = scmp.ne.s32.totalorder %s66, %s67
    %p76 = scmp.eq.s32.totalorder %s14, 0
    %p77 = por %p75, %p76
    %p78 = scmp.ne.s32.totalorder %s66, %s67
    %p79 = scmp.eq.s32.totalorder %s15, 1
    %p80 = por %p78, %p79
    %p82 = scmp.ne.s32.totalorder %s67, %s81
    %p83 = scmp.eq.s32.totalorder %s15, 0
    %p84 = por %p82, %p83
    %s85 = ssub.s32 %s9, %s16
    %p86 = scmp.eq.s32.totalorder %s85, 0
    %s88 = sadd.s32 %s87, 1
    %s89 = scalar_select %p86, %s87, %s88
    %p92 = pneg %p86
    %p93 = scmp.eq.s32.totalorder %s9, 1
    %p94 = por %p92, %p93
    %p95 = scmp.ne.s32.totalorder %s87, %s90
    %p96 = scmp.eq.s32.totalorder %s9, 0
    %p97 = por %p95, %p96
    %p98 = scmp.ne.s32.totalorder %s87, %s90
    %p99 = scmp.eq.s32.totalorder %s14, 1
    %p100 = por %p98, %p99
    %p101 = scmp.ne.s32.totalorder %s90, %s91
    %p102 = scmp.eq.s32.totalorder %s14, 0
    %p103 = por %p101, %p102
    %p104 = scmp.ne.s32.totalorder %s90, %s91
    %p105 = scmp.eq.s32.totalorder %s15, 1
    %p106 = por %p104, %p105
    %p108 = scmp.ne.s32.totalorder %s91, %s107
    %p109 = scmp.eq.s32.totalorder %s15, 0
    %p110 = por %p108, %p109
    %p111 = scmp.le.s32.totalorder 1, %s9
    %p112 = scmp.lt.s32.totalorder %s9, 3
    %p113 = pnand %p111, %p112
    %p114 = pneg %p113
    // Predicated region
    $region9: #{residual_block_3d.5} parent=5 // pred_check
      _
    $region10: #{residual_block_3d.5} parent=5 // pred_check_branch
      %116 = sbr.rel (%p113) target = $region12
    $region11: #{residual_block_3d.5} parent=5 // pred_region
      %s117 = ssub.s32 %s9, 1
      // Predicated region
      $region13: #{residual_block_3d.5} parent=11 // pred_check
        %p118 = pneg %p56
      $region14: #{residual_block_3d.5} parent=11 // pred_check_branch
        %120 = sbr.rel (%p118) target = $region16
      $region15: #{residual_block_3d.5} parent=11 // pred_region
        _
      $region16: #{residual_block_3d.5} parent=11 // pred_fallthru
        _
      // Predicated region
      $region17: #{residual_block_3d.5} parent=11 // pred_check
        %p121 = pneg %p77
      $region18: #{residual_block_3d.5} parent=11 // pred_check_branch
        %123 = sbr.rel (%p121) target = $region20
      $region19: #{residual_block_3d.5} parent=11 // pred_region
        _
      $region20: #{residual_block_3d.5} parent=11 // pred_fallthru
        _
    $region12: #{residual_block_3d.5} parent=5 // pred_fallthru
      _
    %p124 = scmp.lt.s32.totalorder %s9, 2
    // Predicated region
    $region21: #{residual_block_3d.5} parent=5 // pred_check
      %p125 = pneg %p124
    $region22: #{residual_block_3d.5} parent=5 // pred_check_branch
      %127 = sbr.rel (%p125) target = $region24
    $region23: #{residual_block_3d.5} parent=5 // pred_region
      // Predicated region
      $region25: #{residual_block_3d.5} parent=23 // pred_check
        %p128 = pneg %p29
      $region26: #{residual_block_3d.5} parent=23 // pred_check_branch
        %130 = sbr.rel (%p128) target = $region28
      $region27: #{residual_block_3d.5} parent=23 // pred_region
        %s131 = smul.u32 64, %s9
        %p132 = scmp.lt.s32.totalorder %s131, 127
        %s133 = scalar_select %p132, %s131, 127
        %s134 = smul.addr %s133, 4
        %s135 = scalar_lea.vmem %s0, %s134
        %s136 = smul.u32 64, %s9
      $region28: #{residual_block_3d.5} parent=23 // pred_fallthru
        _
    $region24: #{residual_block_3d.5} parent=5 // pred_fallthru
      _
    %p137 = scmp.le.s32.totalorder 1, %s9
    %p138 = scmp.lt.s32.totalorder %s9, 3
    %p139 = pnand %p137, %p138
    %p140 = pneg %p139
    // Predicated region
    $region29: #{residual_block_3d.5} parent=5 // pred_check
      _
    $region30: #{residual_block_3d.5} parent=5 // pred_check_branch
      %142 = sbr.rel (%p139) target = $region32
    $region31: #{residual_block_3d.5} parent=5 // pred_region
      %s143 = ssub.s32 %s9, 1
      %s144 = smul.u32 64, %s14
      %p145 = scmp.lt.s32.totalorder %s144, 127
      %s146 = scalar_select %p145, %s144, 127
      %s147 = smul.addr %s146, 4
      %s148 = scalar_lea.vmem %s0, %s147
      %p149 = pneg %p35
      %p150 = pneg %p32
      %p151 = pneg %p56
      %p152 = pneg %p53
      %p153 = pneg %p77
      %p154 = pneg %p74
      %p155 = pneg %p103
      %p156 = pneg %p100
      %s157 = smul.u32 64, %s14
      %p158 = scmp.lt.s32.totalorder %s157, 127
      %s159 = scalar_select %p158, %s157, 127
      %s160 = smul.addr %s159, 4
      %s161 = scalar_lea.vmem %s3, %s160
      %s162 = smul.u32 64, %s14
      %p163 = scmp.lt.s32.totalorder %s162, 127
      %s164 = scalar_select %p163, %s162, 127
      %s165 = smul.addr %s164, 4
      %s166 = scalar_lea.vmem %s0, %s165
      %s167 = smul.u32 64, %s14
      %s168 = smul.u32 64, %s14
      %p169 = scmp.lt.s32.totalorder %s168, 127
      %s170 = scalar_select %p169, %s168, 127
      %s171 = smul.addr %s170, 4
      %s172 = scalar_lea.vmem %s3, %s171
      %s173 = smul.u32 64, %s14
      %v174 = vld [vmem:[%s166] sm:$0xf]
      %v175 = vld [vmem:[%s166 + $0x4] sm:$0xf]
      %v176 = vld [vmem:[%s166 + $0x8] sm:$0xf]
      %v177 = vld [vmem:[%s166 + $0xc] sm:$0xf]
      %v178 = vld [vmem:[%s166 + $0x10] sm:$0xf]
      %v179 = vld [vmem:[%s166 + $0x14] sm:$0xf]
      %v180 = vld [vmem:[%s166 + $0x18] sm:$0xf]
      %v181 = vld [vmem:[%s166 + $0x1c] sm:$0xf]
      %v182 = vld [vmem:[%s166 + $0x20] sm:$0xf]
      %v183 = vld [vmem:[%s166 + $0x24] sm:$0xf]
      %v184 = vld [vmem:[%s166 + $0x28] sm:$0xf]
      %v185 = vld [vmem:[%s166 + $0x2c] sm:$0xf]
      %v186 = vld [vmem:[%s166 + $0x30] sm:$0xf]
      %v187 = vld [vmem:[%s166 + $0x34] sm:$0xf]
      %v188 = vld [vmem:[%s166 + $0x38] sm:$0xf]
      %v189 = vld [vmem:[%s166 + $0x3c] sm:$0xf]
      %v190 = vld [vmem:[%s166 + $0x40] sm:$0xf]
      %v191 = vld [vmem:[%s166 + $0x44] sm:$0xf]
      %v192 = vld [vmem:[%s166 + $0x48] sm:$0xf]
      %v193 = vld [vmem:[%s166 + $0x4c] sm:$0xf]
      %v194 = vld [vmem:[%s166 + $0x50] sm:$0xf]
      %v195 = vld [vmem:[%s166 + $0x54] sm:$0xf]
      %v196 = vld [vmem:[%s166 + $0x58] sm:$0xf]
      %v197 = vld [vmem:[%s166 + $0x5c] sm:$0xf]
      %v198 = vld [vmem:[%s166 + $0x60] sm:$0xf]
      %v199 = vld [vmem:[%s166 + $0x64] sm:$0xf]
      %v200 = vld [vmem:[%s166 + $0x68] sm:$0xf]
      %v201 = vld [vmem:[%s166 + $0x6c] sm:$0xf]
      %v202 = vld [vmem:[%s166 + $0x70] sm:$0xf]
      %v203 = vld [vmem:[%s166 + $0x74] sm:$0xf]
      %v204 = vld [vmem:[%s166 + $0x78] sm:$0xf]
      %v205 = vld [vmem:[%s166 + $0x7c] sm:$0xf]
      %v206 = vld [vmem:[%s166 + $0x80] sm:$0xf]
      %v207 = vld [vmem:[%s166 + $0x84] sm:$0xf]
      %v208 = vld [vmem:[%s166 + $0x88] sm:$0xf]
      %v209 = vld [vmem:[%s166 + $0x8c] sm:$0xf]
      %v210 = vld [vmem:[%s166 + $0x90] sm:$0xf]
      %v211 = vld [vmem:[%s166 + $0x94] sm:$0xf]
      %v212 = vld [vmem:[%s166 + $0x98] sm:$0xf]
      %v213 = vld [vmem:[%s166 + $0x9c] sm:$0xf]
      %v214 = vld [vmem:[%s166 + $0xa0] sm:$0xf]
      %v215 = vld [vmem:[%s166 + $0xa4] sm:$0xf]
      %v216 = vld [vmem:[%s166 + $0xa8] sm:$0xf]
      %v217 = vld [vmem:[%s166 + $0xac] sm:$0xf]
      %v218 = vld [vmem:[%s166 + $0xb0] sm:$0xf]
      %v219 = vld [vmem:[%s166 + $0xb4] sm:$0xf]
      %v220 = vld [vmem:[%s166 + $0xb8] sm:$0xf]
      %v221 = vld [vmem:[%s166 + $0xbc] sm:$0xf]
      %v222 = vld [vmem:[%s166 + $0xc0] sm:$0xf]
      %v223 = vld [vmem:[%s166 + $0xc4] sm:$0xf]
      %v224 = vld [vmem:[%s166 + $0xc8] sm:$0xf]
      %v225 = vld [vmem:[%s166 + $0xcc] sm:$0xf]
      %v226 = vld [vmem:[%s166 + $0xd0] sm:$0xf]
      %v227 = vld [vmem:[%s166 + $0xd4] sm:$0xf]
      %v228 = vld [vmem:[%s166 + $0xd8] sm:$0xf]
      %v229 = vld [vmem:[%s166 + $0xdc] sm:$0xf]
      %v230 = vld [vmem:[%s166 + $0xe0] sm:$0xf]
      %v231 = vld [vmem:[%s166 + $0xe4] sm:$0xf]
      %v232 = vld [vmem:[%s166 + $0xe8] sm:$0xf]
      %v233 = vld [vmem:[%s166 + $0xec] sm:$0xf]
      %v234 = vld [vmem:[%s166 + $0xf0] sm:$0xf]
      %v235 = vld [vmem:[%s166 + $0xf4] sm:$0xf]
      %v236 = vld [vmem:[%s166 + $0xf8] sm:$0xf]
      %v237 = vld [vmem:[%s166 + $0xfc] sm:$0xf]
      %v238 = vunpack.c.l.bf16 %v174
      %v239 = vunpack.c.l.bf16 %v175
      %v240 = vunpack.c.l.bf16 %v176
      %v241 = vunpack.c.l.bf16 %v177
      %v242 = vunpack.c.l.bf16 %v178
      %v243 = vunpack.c.l.bf16 %v179
      %v244 = vunpack.c.l.bf16 %v180
      %v245 = vunpack.c.l.bf16 %v181
      %v246 = vunpack.c.l.bf16 %v182
      %v247 = vunpack.c.l.bf16 %v183
      %v248 = vunpack.c.l.bf16 %v184
      %v249 = vunpack.c.l.bf16 %v185
      %v250 = vunpack.c.l.bf16 %v186
      %v251 = vunpack.c.l.bf16 %v187
      %v252 = vunpack.c.l.bf16 %v188
      %v253 = vunpack.c.l.bf16 %v189
      %v254 = vunpack.c.l.bf16 %v190
      %v255 = vunpack.c.l.bf16 %v191
      %v256 = vunpack.c.l.bf16 %v192
      %v257 = vunpack.c.l.bf16 %v193
      %v258 = vunpack.c.l.bf16 %v194
      %v259 = vunpack.c.l.bf16 %v195
      %v260 = vunpack.c.l.bf16 %v196
      %v261 = vunpack.c.l.bf16 %v197
      %v262 = vunpack.c.l.bf16 %v198
      %v263 = vunpack.c.l.bf16 %v199
      %v264 = vunpack.c.l.bf16 %v200
      %v265 = vunpack.c.l.bf16 %v201
      %v266 = vunpack.c.l.bf16 %v202
      %v267 = vunpack.c.l.bf16 %v203
      %v268 = vunpack.c.l.bf16 %v204
      %v269 = vunpack.c.l.bf16 %v205
      %v270 = vunpack.c.l.bf16 %v206
      %v271 = vunpack.c.l.bf16 %v207
      %v272 = vunpack.c.l.bf16 %v208
      %v273 = vunpack.c.l.bf16 %v209
      %v274 = vunpack.c.l.bf16 %v210
      %v275 = vunpack.c.l.bf16 %v211
      %v276 = vunpack.c.l.bf16 %v212
      %v277 = vunpack.c.l.bf16 %v213
      %v278 = vunpack.c.l.bf16 %v214
      %v279 = vunpack.c.l.bf16 %v215
      %v280 = vunpack.c.l.bf16 %v216
      %v281 = vunpack.c.l.bf16 %v217
      %v282 = vunpack.c.l.bf16 %v218
      %v283 = vunpack.c.l.bf16 %v219
      %v284 = vunpack.c.l.bf16 %v220
      %v285 = vunpack.c.l.bf16 %v221
      %v286 = vunpack.c.l.bf16 %v222
      %v287 = vunpack.c.l.bf16 %v223
      %v288 = vunpack.c.l.bf16 %v224
      %v289 = vunpack.c.l.bf16 %v225
      %v290 = vunpack.c.l.bf16 %v226
      %v291 = vunpack.c.l.bf16 %v227
      %v292 = vunpack.c.l.bf16 %v228
      %v293 = vunpack.c.l.bf16 %v229
      %v294 = vunpack.c.l.bf16 %v230
      %v295 = vunpack.c.l.bf16 %v231
      %v296 = vunpack.c.l.bf16 %v232
      %v297 = vunpack.c.l.bf16 %v233
      %v298 = vunpack.c.l.bf16 %v234
      %v299 = vunpack.c.l.bf16 %v235
      %v300 = vunpack.c.l.bf16 %v236
      %v301 = vunpack.c.l.bf16 %v237
      %v302 = vld [vmem:[%s1] sm:$0x1]
      %v304 = vperm.slane %v302, 0
      %v306 = vmul.f32 %v238, %v304
      %v307 = vmul.f32 %v239, %v304
      %v308 = vmul.f32 %v240, %v304
      %v309 = vmul.f32 %v241, %v304
      %v310 = vmul.f32 %v242, %v304
      %v311 = vmul.f32 %v243, %v304
      %v312 = vmul.f32 %v244, %v304
      %v313 = vmul.f32 %v245, %v304
      %v314 = vmul.f32 %v246, %v304
      %v315 = vmul.f32 %v247, %v304
      %v316 = vmul.f32 %v248, %v304
      %v317 = vmul.f32 %v249, %v304
      %v318 = vmul.f32 %v250, %v304
      %v319 = vmul.f32 %v251, %v304
      %v320 = vmul.f32 %v252, %v304
      %v321 = vmul.f32 %v253, %v304
      %v322 = vmul.f32 %v254, %v304
      %v323 = vmul.f32 %v255, %v304
      %v324 = vmul.f32 %v256, %v304
      %v325 = vmul.f32 %v257, %v304
      %v326 = vmul.f32 %v258, %v304
      %v327 = vmul.f32 %v259, %v304
      %v328 = vmul.f32 %v260, %v304
      %v329 = vmul.f32 %v261, %v304
      %v330 = vmul.f32 %v262, %v304
      %v331 = vmul.f32 %v263, %v304
      %v332 = vmul.f32 %v264, %v304
      %v333 = vmul.f32 %v265, %v304
      %v334 = vmul.f32 %v266, %v304
      %v335 = vmul.f32 %v267, %v304
      %v336 = vmul.f32 %v268, %v304
      %v337 = vmul.f32 %v269, %v304
      %v338 = vmul.f32 %v270, %v304
      %v339 = vmul.f32 %v271, %v304
      %v340 = vmul.f32 %v272, %v304
      %v341 = vmul.f32 %v273, %v304
      %v342 = vmul.f32 %v274, %v304
      %v343 = vmul.f32 %v275, %v304
      %v344 = vmul.f32 %v276, %v304
      %v345 = vmul.f32 %v277, %v304
      %v346 = vmul.f32 %v278, %v304
      %v347 = vmul.f32 %v279, %v304
      %v348 = vmul.f32 %v280, %v304
      %v349 = vmul.f32 %v281, %v304
      %v350 = vmul.f32 %v282, %v304
      %v351 = vmul.f32 %v283, %v304
      %v352 = vmul.f32 %v284, %v304
      %v353 = vmul.f32 %v285, %v304
      %v354 = vmul.f32 %v286, %v304
      %v355 = vmul.f32 %v287, %v304
      %v356 = vmul.f32 %v288, %v304
      %v357 = vmul.f32 %v289, %v304
      %v358 = vmul.f32 %v290, %v304
      %v359 = vmul.f32 %v291, %v304
      %v360 = vmul.f32 %v292, %v304
      %v361 = vmul.f32 %v293, %v304
      %v362 = vmul.f32 %v294, %v304
      %v363 = vmul.f32 %v295, %v304
      %v364 = vmul.f32 %v296, %v304
      %v365 = vmul.f32 %v297, %v304
      %v366 = vmul.f32 %v298, %v304
      %v367 = vmul.f32 %v299, %v304
      %v368 = vmul.f32 %v300, %v304
      %v369 = vmul.f32 %v301, %v304
      %v370 = vld [vmem:[%s2] sm:$0x1]
      %v372 = vperm.slane %v370, 0
      %v374 = vadd.f32 %v306, %v372
      %v375 = vadd.f32 %v307, %v372
      %v376 = vadd.f32 %v308, %v372
      %v377 = vadd.f32 %v309, %v372
      %v378 = vadd.f32 %v310, %v372
      %v379 = vadd.f32 %v311, %v372
      %v380 = vadd.f32 %v312, %v372
      %v381 = vadd.f32 %v313, %v372
      %v382 = vadd.f32 %v314, %v372
      %v383 = vadd.f32 %v315, %v372
      %v384 = vadd.f32 %v316, %v372
      %v385 = vadd.f32 %v317, %v372
      %v386 = vadd.f32 %v318, %v372
      %v387 = vadd.f32 %v319, %v372
      %v388 = vadd.f32 %v320, %v372
      %v389 = vadd.f32 %v321, %v372
      %v390 = vadd.f32 %v322, %v372
      %v391 = vadd.f32 %v323, %v372
      %v392 = vadd.f32 %v324, %v372
      %v393 = vadd.f32 %v325, %v372
      %v394 = vadd.f32 %v326, %v372
      %v395 = vadd.f32 %v327, %v372
      %v396 = vadd.f32 %v328, %v372
      %v397 = vadd.f32 %v329, %v372
      %v398 = vadd.f32 %v330, %v372
      %v399 = vadd.f32 %v331, %v372
      %v400 = vadd.f32 %v332, %v372
      %v401 = vadd.f32 %v333, %v372
      %v402 = vadd.f32 %v334, %v372
      %v403 = vadd.f32 %v335, %v372
      %v404 = vadd.f32 %v336, %v372
      %v405 = vadd.f32 %v337, %v372
      %v406 = vadd.f32 %v338, %v372
      %v407 = vadd.f32 %v339, %v372
      %v408 = vadd.f32 %v340, %v372
      %v409 = vadd.f32 %v341, %v372
      %v410 = vadd.f32 %v342, %v372
      %v411 = vadd.f32 %v343, %v372
      %v412 = vadd.f32 %v344, %v372
      %v413 = vadd.f32 %v345, %v372
      %v414 = vadd.f32 %v346, %v372
      %v415 = vadd.f32 %v347, %v372
      %v416 = vadd.f32 %v348, %v372
      %v417 = vadd.f32 %v349, %v372
      %v418 = vadd.f32 %v350, %v372
      %v419 = vadd.f32 %v351, %v372
      %v420 = vadd.f32 %v352, %v372
      %v421 = vadd.f32 %v353, %v372
      %v422 = vadd.f32 %v354, %v372
      %v423 = vadd.f32 %v355, %v372
      %v424 = vadd.f32 %v356, %v372
      %v425 = vadd.f32 %v357, %v372
      %v426 = vadd.f32 %v358, %v372
      %v427 = vadd.f32 %v359, %v372
      %v428 = vadd.f32 %v360, %v372
      %v429 = vadd.f32 %v361, %v372
      %v430 = vadd.f32 %v362, %v372
      %v431 = vadd.f32 %v363, %v372
      %v432 = vadd.f32 %v364, %v372
      %v433 = vadd.f32 %v365, %v372
      %v434 = vadd.f32 %v366, %v372
      %v435 = vadd.f32 %v367, %v372
      %v436 = vadd.f32 %v368, %v372
      %v437 = vadd.f32 %v369, %v372
      %v438 = vmax.f32 %v374, 0.0
      %v439 = vmax.f32 %v375, 0.0
      %v440 = vmax.f32 %v376, 0.0
      %v441 = vmax.f32 %v377, 0.0
      %v442 = vmax.f32 %v378, 0.0
      %v443 = vmax.f32 %v379, 0.0
      %v444 = vmax.f32 %v380, 0.0
      %v445 = vmax.f32 %v381, 0.0
      %v446 = vmax.f32 %v382, 0.0
      %v447 = vmax.f32 %v383, 0.0
      %v448 = vmax.f32 %v384, 0.0
      %v449 = vmax.f32 %v385, 0.0
      %v450 = vmax.f32 %v386, 0.0
      %v451 = vmax.f32 %v387, 0.0
      %v452 = vmax.f32 %v388, 0.0
      %v453 = vmax.f32 %v389, 0.0
      %v454 = vmax.f32 %v390, 0.0
      %v455 = vmax.f32 %v391, 0.0
      %v456 = vmax.f32 %v392, 0.0
      %v457 = vmax.f32 %v393, 0.0
      %v458 = vmax.f32 %v394, 0.0
      %v459 = vmax.f32 %v395, 0.0
      %v460 = vmax.f32 %v396, 0.0
      %v461 = vmax.f32 %v397, 0.0
      %v462 = vmax.f32 %v398, 0.0
      %v463 = vmax.f32 %v399, 0.0
      %v464 = vmax.f32 %v400, 0.0
      %v465 = vmax.f32 %v401, 0.0
      %v466 = vmax.f32 %v402, 0.0
      %v467 = vmax.f32 %v403, 0.0
      %v468 = vmax.f32 %v404, 0.0
      %v469 = vmax.f32 %v405, 0.0
      %v470 = vmax.f32 %v406, 0.0
      %v471 = vmax.f32 %v407, 0.0
      %v472 = vmax.f32 %v408, 0.0
      %v473 = vmax.f32 %v409, 0.0
      %v474 = vmax.f32 %v410, 0.0
      %v475 = vmax.f32 %v411, 0.0
      %v476 = vmax.f32 %v412, 0.0
      %v477 = vmax.f32 %v413, 0.0
      %v478 = vmax.f32 %v414, 0.0
      %v479 = vmax.f32 %v415, 0.0
      %v480 = vmax.f32 %v416, 0.0
      %v481 = vmax.f32 %v417, 0.0
      %v482 = vmax.f32 %v418, 0.0
      %v483 = vmax.f32 %v419, 0.0
      %v484 = vmax.f32 %v420, 0.0
      %v485 = vmax.f32 %v421, 0.0
      %v486 = vmax.f32 %v422, 0.0
      %v487 = vmax.f32 %v423, 0.0
      %v488 = vmax.f32 %v424, 0.0
      %v489 = vmax.f32 %v425, 0.0
      %v490 = vmax.f32 %v426, 0.0
      %v491 = vmax.f32 %v427, 0.0
      %v492 = vmax.f32 %v428, 0.0
      %v493 = vmax.f32 %v429, 0.0
      %v494 = vmax.f32 %v430, 0.0
      %v495 = vmax.f32 %v431, 0.0
      %v496 = vmax.f32 %v432, 0.0
      %v497 = vmax.f32 %v433, 0.0
      %v498 = vmax.f32 %v434, 0.0
      %v499 = vmax.f32 %v435, 0.0
      %v500 = vmax.f32 %v436, 0.0
      %v501 = vmax.f32 %v437, 0.0
      %v502 = vpack.c.bf16 %v438, %v438
      %v503 = vpack.c.bf16 %v439, %v439
      %v504 = vpack.c.bf16 %v440, %v440
      %v505 = vpack.c.bf16 %v441, %v441
      %v506 = vpack.c.bf16 %v442, %v442
      %v507 = vpack.c.bf16 %v443, %v443
      %v508 = vpack.c.bf16 %v444, %v444
      %v509 = vpack.c.bf16 %v445, %v445
      %v510 = vpack.c.bf16 %v446, %v446
      %v511 = vpack.c.bf16 %v447, %v447
      %v512 = vpack.c.bf16 %v448, %v448
      %v513 = vpack.c.bf16 %v449, %v449
      %v514 = vpack.c.bf16 %v450, %v450
      %v515 = vpack.c.bf16 %v451, %v451
      %v516 = vpack.c.bf16 %v452, %v452
      %v517 = vpack.c.bf16 %v453, %v453
      %v518 = vpack.c.bf16 %v454, %v454
      %v519 = vpack.c.bf16 %v455, %v455
      %v520 = vpack.c.bf16 %v456, %v456
      %v521 = vpack.c.bf16 %v457, %v457
      %v522 = vpack.c.bf16 %v458, %v458
      %v523 = vpack.c.bf16 %v459, %v459
      %v524 = vpack.c.bf16 %v460, %v460
      %v525 = vpack.c.bf16 %v461, %v461
      %v526 = vpack.c.bf16 %v462, %v462
      %v527 = vpack.c.bf16 %v463, %v463
      %v528 = vpack.c.bf16 %v464, %v464
      %v529 = vpack.c.bf16 %v465, %v465
      %v530 = vpack.c.bf16 %v466, %v466
      %v531 = vpack.c.bf16 %v467, %v467
      %v532 = vpack.c.bf16 %v468, %v468
      %v533 = vpack.c.bf16 %v469, %v469
      %v534 = vpack.c.bf16 %v470, %v470
      %v535 = vpack.c.bf16 %v471, %v471
      %v536 = vpack.c.bf16 %v472, %v472
      %v537 = vpack.c.bf16 %v473, %v473
      %v538 = vpack.c.bf16 %v474, %v474
      %v539 = vpack.c.bf16 %v475, %v475
      %v540 = vpack.c.bf16 %v476, %v476
      %v541 = vpack.c.bf16 %v477, %v477
      %v542 = vpack.c.bf16 %v478, %v478
      %v543 = vpack.c.bf16 %v479, %v479
      %v544 = vpack.c.bf16 %v480, %v480
      %v545 = vpack.c.bf16 %v481, %v481
      %v546 = vpack.c.bf16 %v482, %v482
      %v547 = vpack.c.bf16 %v483, %v483
      %v548 = vpack.c.bf16 %v484, %v484
      %v549 = vpack.c.bf16 %v485, %v485
      %v550 = vpack.c.bf16 %v486, %v486
      %v551 = vpack.c.bf16 %v487, %v487
      %v552 = vpack.c.bf16 %v488, %v488
      %v553 = vpack.c.bf16 %v489, %v489
      %v554 = vpack.c.bf16 %v490, %v490
      %v555 = vpack.c.bf16 %v491, %v491
      %v556 = vpack.c.bf16 %v492, %v492
      %v557 = vpack.c.bf16 %v493, %v493
      %v558 = vpack.c.bf16 %v494, %v494
      %v559 = vpack.c.bf16 %v495, %v495
      %v560 = vpack.c.bf16 %v496, %v496
      %v561 = vpack.c.bf16 %v497, %v497
      %v562 = vpack.c.bf16 %v498, %v498
      %v563 = vpack.c.bf16 %v499, %v499
      %v564 = vpack.c.bf16 %v500, %v500
      %v565 = vpack.c.bf16 %v501, %v501
      %566 = vst [vmem:[%s172] sm:$0xf] %v502
      %567 = vst [vmem:[%s172 + $0x4] sm:$0xf] %v503
      %568 = vst [vmem:[%s172 + $0x8] sm:$0xf] %v504
      %569 = vst [vmem:[%s172 + $0xc] sm:$0xf] %v505
      %570 = vst [vmem:[%s172 + $0x10] sm:$0xf] %v506
      %571 = vst [vmem:[%s172 + $0x14] sm:$0xf] %v507
      %572 = vst [vmem:[%s172 + $0x18] sm:$0xf] %v508
      %573 = vst [vmem:[%s172 + $0x1c] sm:$0xf] %v509
      %574 = vst [vmem:[%s172 + $0x20] sm:$0xf] %v510
      %575 = vst [vmem:[%s172 + $0x24] sm:$0xf] %v511
      %576 = vst [vmem:[%s172 + $0x28] sm:$0xf] %v512
      %577 = vst [vmem:[%s172 + $0x2c] sm:$0xf] %v513
      %578 = vst [vmem:[%s172 + $0x30] sm:$0xf] %v514
      %579 = vst [vmem:[%s172 + $0x34] sm:$0xf] %v515
      %580 = vst [vmem:[%s172 + $0x38] sm:$0xf] %v516
      %581 = vst [vmem:[%s172 + $0x3c] sm:$0xf] %v517
      %582 = vst [vmem:[%s172 + $0x40] sm:$0xf] %v518
      %583 = vst [vmem:[%s172 + $0x44] sm:$0xf] %v519
      %584 = vst [vmem:[%s172 + $0x48] sm:$0xf] %v520
      %585 = vst [vmem:[%s172 + $0x4c] sm:$0xf] %v521
      %586 = vst [vmem:[%s172 + $0x50] sm:$0xf] %v522
      %587 = vst [vmem:[%s172 + $0x54] sm:$0xf] %v523
      %588 = vst [vmem:[%s172 + $0x58] sm:$0xf] %v524
      %589 = vst [vmem:[%s172 + $0x5c] sm:$0xf] %v525
      %590 = vst [vmem:[%s172 + $0x60] sm:$0xf] %v526
      %591 = vst [vmem:[%s172 + $0x64] sm:$0xf] %v527
      %592 = vst [vmem:[%s172 + $0x68] sm:$0xf] %v528
      %593 = vst [vmem:[%s172 + $0x6c] sm:$0xf] %v529
      %594 = vst [vmem:[%s172 + $0x70] sm:$0xf] %v530
      %595 = vst [vmem:[%s172 + $0x74] sm:$0xf] %v531
      %596 = vst [vmem:[%s172 + $0x78] sm:$0xf] %v532
      %597 = vst [vmem:[%s172 + $0x7c] sm:$0xf] %v533
      %598 = vst [vmem:[%s172 + $0x80] sm:$0xf] %v534
      %599 = vst [vmem:[%s172 + $0x84] sm:$0xf] %v535
      %600 = vst [vmem:[%s172 + $0x88] sm:$0xf] %v536
      %601 = vst [vmem:[%s172 + $0x8c] sm:$0xf] %v537
      %602 = vst [vmem:[%s172 + $0x90] sm:$0xf] %v538
      %603 = vst [vmem:[%s172 + $0x94] sm:$0xf] %v539
      %604 = vst [vmem:[%s172 + $0x98] sm:$0xf] %v540
      %605 = vst [vmem:[%s172 + $0x9c] sm:$0xf] %v541
      %606 = vst [vmem:[%s172 + $0xa0] sm:$0xf] %v542
      %607 = vst [vmem:[%s172 + $0xa4] sm:$0xf] %v543
      %608 = vst [vmem:[%s172 + $0xa8] sm:$0xf] %v544
      %609 = vst [vmem:[%s172 + $0xac] sm:$0xf] %v545
      %610 = vst [vmem:[%s172 + $0xb0] sm:$0xf] %v546
      %611 = vst [vmem:[%s172 + $0xb4] sm:$0xf] %v547
      %612 = vst [vmem:[%s172 + $0xb8] sm:$0xf] %v548
      %613 = vst [vmem:[%s172 + $0xbc] sm:$0xf] %v549
      %614 = vst [vmem:[%s172 + $0xc0] sm:$0xf] %v550
      %615 = vst [vmem:[%s172 + $0xc4] sm:$0xf] %v551
      %616 = vst [vmem:[%s172 + $0xc8] sm:$0xf] %v552
      %617 = vst [vmem:[%s172 + $0xcc] sm:$0xf] %v553
      %618 = vst [vmem:[%s172 + $0xd0] sm:$0xf] %v554
      %619 = vst [vmem:[%s172 + $0xd4] sm:$0xf] %v555
      %620 = vst [vmem:[%s172 + $0xd8] sm:$0xf] %v556
      %621 = vst [vmem:[%s172 + $0xdc] sm:$0xf] %v557
      %622 = vst [vmem:[%s172 + $0xe0] sm:$0xf] %v558
      %623 = vst [vmem:[%s172 + $0xe4] sm:$0xf] %v559
      %624 = vst [vmem:[%s172 + $0xe8] sm:$0xf] %v560
      %625 = vst [vmem:[%s172 + $0xec] sm:$0xf] %v561
      %626 = vst [vmem:[%s172 + $0xf0] sm:$0xf] %v562
      %627 = vst [vmem:[%s172 + $0xf4] sm:$0xf] %v563
      %628 = vst [vmem:[%s172 + $0xf8] sm:$0xf] %v564
      %629 = vst [vmem:[%s172 + $0xfc] sm:$0xf] %v565
      %s630 = smul.u32 64, %s14
      %p631 = scmp.lt.s32.totalorder %s630, 127
      %s632 = scalar_select %p631, %s630, 127
      %s633 = smul.addr %s632, 4
      %s634 = scalar_lea.vmem %s3, %s633
      // Predicated region
      $region33: #{residual_block_3d.5} parent=31 // pred_check
        %p635 = pneg %p100
      $region34: #{residual_block_3d.5} parent=31 // pred_check_branch
        %637 = sbr.rel (%p635) target = $region36
      $region35: #{residual_block_3d.5} parent=31 // pred_region
        %s638 = smul.u32 64, %s14
      $region36: #{residual_block_3d.5} parent=31 // pred_fallthru
        _
    $region32: #{residual_block_3d.5} parent=5 // pred_fallthru
      _
    %p639 = scmp.le.s32.totalorder 2, %s9
    // Predicated region
    $region37: #{residual_block_3d.5} parent=5 // pred_check
      %p640 = pneg %p639
    $region38: #{residual_block_3d.5} parent=5 // pred_check_branch
      %642 = sbr.rel (%p640) target = $region40
    $region39: #{residual_block_3d.5} parent=5 // pred_region
      %s643 = ssub.s32 %s9, 2
      // Predicated region
      $region41: #{residual_block_3d.5} parent=39 // pred_check
        %p644 = pneg %p106
      $region42: #{residual_block_3d.5} parent=39 // pred_check_branch
        %646 = sbr.rel (%p644) target = $region44
      $region43: #{residual_block_3d.5} parent=39 // pred_region
        %s647 = smul.u32 64, %s15
        %p648 = scmp.lt.s32.totalorder %s647, 127
        %s649 = scalar_select %p648, %s647, 127
        %s650 = smul.addr %s649, 4
        %s651 = scalar_lea.vmem %s3, %s650
      $region44: #{residual_block_3d.5} parent=39 // pred_fallthru
        _
    $region40: #{residual_block_3d.5} parent=5 // pred_fallthru
      _
  $region6: #{residual_block_3d.5} parent=0 // loop_footer
    %s13 = sadd.s32 1, %s9
  $region7: #{residual_block_3d.5} parent=0 // loop_footer_branch
    %8 = sbr.rel target = $region3
  $region8: #{residual_block_3d.5} parent=0 // loop_exit
    _

// kernel: residual_block_3d.4
$region0: #{residual_block_3d.4}
  #allocation0 [shape = 'u32[]', space=smem, size = 0x4, offset = 0x4, fixed_abs, tag = 'smem constant byte address 0x4 - core index']
  #allocation1 [shape = 'u32[72,128]{1,0:T(1,128)}', space=vmem, size = 0x9000, scoped, tag = 'internal scratch']
  #allocation2 [shape = 'f32[512,128]{1,0:T(8,128)}', space=vmem, size = 0x40000, scoped, tag = 'scratch operand']
  %s0 = inlined_call_operand.vmem [shape: bf16[1024,128], index: 0, kind: input, shape index: {}]
  %s1 = inlined_call_operand.vmem [shape: bf16[128,128], index: 1, kind: input, shape index: {}]
  %s2 = inlined_call_operand.vmem [shape: f32[1,128], index: 2, kind: input, shape index: {}]
  %s3 = inlined_call_operand.vmem [shape: bf16[1024,128], index: 3, kind: output, shape index: {0}]
  %s4 = inlined_call_operand.vmem [shape: f32[2,1,128], index: 4, kind: output, shape index: {1}]
  %s5 = inlined_call_operand.vmem [shape: f32[2,1,128], index: 5, kind: output, shape index: {2}]
  %6 = xla_tuple %s3, %s4, %s5
  %s7 = sld [smem:[#allocation0]]
  $region77: #{residual_block_3d.4} parent=0
    _
  %s9 = ssub.s32 1, %s7
  %s10 = scalar_select 0, %s9, %s7
  loop: start=0, step=1, limit=4
  $region2: #{residual_block_3d.4} parent=0 // loop_pre_header
    _
  $region3: #{residual_block_3d.4} parent=0 // loop_header
    %s12 = sphi 0, %s16
    %p13 = scmp.ge.s32.totalorder %s12, 4
    %s19 = sphi 0, %s31
    %s20 = sphi 0, %s27
    %s21 = sphi 0, %s19
    %s22 = sphi 0, %s20
    %s23 = sphi 0, %s21
    %s24 = sphi 0, %s22
    %s36 = sphi 0, %s38
    %s39 = sphi 0, %s36
    %s40 = sphi 0, %s39
    %s56 = sphi 0, %s40
    %s62 = sphi 0, %s64
    %s65 = sphi 0, %s62
    %s66 = sphi 0, %s65
    %s82 = sphi 0, %s66
    %s86 = sphi 0, %s86
    %s88 = sphi 0, %s86
    %s89 = sphi 0, %s88
    %s103 = sphi 0, %s89
    %s109 = sphi 0, %s111
    %s112 = sphi 0, %s109
    %s113 = sphi 0, %s112
    %s129 = sphi 0, %s113
    %s135 = sphi 0, %s137
    %s138 = sphi 0, %s135
    %s139 = sphi 0, %s138
    %s155 = sphi 0, %s139
    %s161 = sphi 0, %s163
    %s164 = sphi 0, %s161
    %s165 = sphi 0, %s164
    %s181 = sphi 0, %s165
  $region4: #{residual_block_3d.4} parent=0 // loop_header_branch
    %15 = sbr.rel (%p13) target = $region8
  $region5: #{residual_block_3d.4} parent=0 // loop_body
    %s17 = ssub.s32 %s12, 1
    %s18 = ssub.s32 %s12, 2
    %s25 = sadd.s32 1, %s20
    %p26 = scmp.ge.s32.totalorder %s25, 1
    %s27 = scalar_select %p26, 0, %s25
    %s28 = sadd.s32 1, %s19
    %s29 = scalar_select %p26, %s28, %s19
    %p30 = scmp.ge.s32.totalorder %s29, 2
    %s31 = scalar_select %p30, 0, %s29
    %s32 = ssub.s32 %s19, %s31
    %s33 = ssub.s32 %s20, %s27
    %s34 = sor.u32 %s32, %s33
    %p35 = scmp.eq.s32.totalorder %s34, 0
    %s37 = sadd.s32 %s36, 1
    %s38 = scalar_select %p35, %s36, %s37
    %p41 = pneg %p35
    %p42 = scmp.eq.s32.totalorder %s12, 1
    %p43 = por %p41, %p42
    %p44 = scmp.ne.s32.totalorder %s36, %s39
    %p45 = scmp.eq.s32.totalorder %s12, 0
    %p46 = por %p44, %p45
    %p47 = scmp.ne.s32.totalorder %s36, %s39
    %p48 = scmp.eq.s32.totalorder %s17, 1
    %p49 = por %p47, %p48
    %p50 = scmp.ne.s32.totalorder %s39, %s40
    %p51 = scmp.eq.s32.totalorder %s17, 0
    %p52 = por %p50, %p51
    %p53 = scmp.ne.s32.totalorder %s39, %s40
    %p54 = scmp.eq.s32.totalorder %s18, 1
    %p55 = por %p53, %p54
    %p57 = scmp.ne.s32.totalorder %s40, %s56
    %p58 = scmp.eq.s32.totalorder %s18, 0
    %p59 = por %p57, %p58
    %s60 = ssub.s32 %s20, %s27
    %p61 = scmp.eq.s32.totalorder %s60, 0
    %s63 = sadd.s32 %s62, 1
    %s64 = scalar_select %p61, %s62, %s63
    %p67 = pneg %p61
    %p68 = scmp.eq.s32.totalorder %s12, 1
    %p69 = por %p67, %p68
    %p70 = scmp.ne.s32.totalorder %s62, %s65
    %p71 = scmp.eq.s32.totalorder %s12, 0
    %p72 = por %p70, %p71
    %p73 = scmp.ne.s32.totalorder %s62, %s65
    %p74 = scmp.eq.s32.totalorder %s17, 1
    %p75 = por %p73, %p74
    %p76 = scmp.ne.s32.totalorder %s65, %s66
    %p77 = scmp.eq.s32.totalorder %s17, 0
    %p78 = por %p76, %p77
    %p79 = scmp.ne.s32.totalorder %s65, %s66
    %p80 = scmp.eq.s32.totalorder %s18, 1
    %p81 = por %p79, %p80
    %p83 = scmp.ne.s32.totalorder %s66, %s82
    %p84 = scmp.eq.s32.totalorder %s18, 0
    %p85 = por %p83, %p84
    %s87 = sadd.s32 %s86, 1
    %p90 = scmp.eq.s32.totalorder %s12, 1
    %p91 = scmp.ne.s32.totalorder %s86, %s88
    %p92 = scmp.eq.s32.totalorder %s12, 0
    %p93 = por %p91, %p92
    %p94 = scmp.ne.s32.totalorder %s86, %s88
    %p95 = scmp.eq.s32.totalorder %s17, 1
    %p96 = por %p94, %p95
    %p97 = scmp.ne.s32.totalorder %s88, %s89
    %p98 = scmp.eq.s32.totalorder %s17, 0
    %p99 = por %p97, %p98
    %p100 = scmp.ne.s32.totalorder %s88, %s89
    %p101 = scmp.eq.s32.totalorder %s18, 1
    %p102 = por %p100, %p101
    %p104 = scmp.ne.s32.totalorder %s89, %s103
    %p105 = scmp.eq.s32.totalorder %s18, 0
    %p106 = por %p104, %p105
    %s107 = ssub.s32 %s19, %s31
    %p108 = scmp.eq.s32.totalorder %s107, 0
    %s110 = sadd.s32 %s109, 1
    %s111 = scalar_select %p108, %s109, %s110
    %p114 = pneg %p108
    %p115 = scmp.eq.s32.totalorder %s12, 1
    %p116 = por %p114, %p115
    %p117 = scmp.ne.s32.totalorder %s109, %s112
    %p118 = scmp.eq.s32.totalorder %s12, 0
    %p119 = por %p117, %p118
    %p120 = scmp.ne.s32.totalorder %s109, %s112
    %p121 = scmp.eq.s32.totalorder %s17, 1
    %p122 = por %p120, %p121
    %p123 = scmp.ne.s32.totalorder %s112, %s113
    %p124 = scmp.eq.s32.totalorder %s17, 0
    %p125 = por %p123, %p124
    %p126 = scmp.ne.s32.totalorder %s112, %s113
    %p127 = scmp.eq.s32.totalorder %s18, 1
    %p128 = por %p126, %p127
    %p130 = scmp.ne.s32.totalorder %s113, %s129
    %p131 = scmp.eq.s32.totalorder %s18, 0
    %p132 = por %p130, %p131
    %s133 = ssub.s32 %s19, %s31
    %p134 = scmp.eq.s32.totalorder %s133, 0
    %s136 = sadd.s32 %s135, 1
    %s137 = scalar_select %p134, %s135, %s136
    %p140 = pneg %p134
    %p141 = scmp.eq.s32.totalorder %s12, 1
    %p142 = por %p140, %p141
    %p143 = scmp.ne.s32.totalorder %s135, %s138
    %p144 = scmp.eq.s32.totalorder %s12, 0
    %p145 = por %p143, %p144
    %p146 = scmp.ne.s32.totalorder %s135, %s138
    %p147 = scmp.eq.s32.totalorder %s17, 1
    %p148 = por %p146, %p147
    %p149 = scmp.ne.s32.totalorder %s138, %s139
    %p150 = scmp.eq.s32.totalorder %s17, 0
    %p151 = por %p149, %p150
    %p152 = scmp.ne.s32.totalorder %s138, %s139
    %p153 = scmp.eq.s32.totalorder %s18, 1
    %p154 = por %p152, %p153
    %p156 = scmp.ne.s32.totalorder %s139, %s155
    %p157 = scmp.eq.s32.totalorder %s18, 0
    %p158 = por %p156, %p157
    %s159 = ssub.s32 %s19, %s31
    %p160 = scmp.eq.s32.totalorder %s159, 0
    %s162 = sadd.s32 %s161, 1
    %s163 = scalar_select %p160, %s161, %s162
    %p166 = pneg %p160
    %p167 = scmp.eq.s32.totalorder %s12, 1
    %p168 = por %p166, %p167
    %p169 = scmp.ne.s32.totalorder %s161, %s164
    %p170 = scmp.eq.s32.totalorder %s12, 0
    %p171 = por %p169, %p170
    %p172 = scmp.ne.s32.totalorder %s161, %s164
    %p173 = scmp.eq.s32.totalorder %s17, 1
    %p174 = por %p172, %p173
    %p175 = scmp.ne.s32.totalorder %s164, %s165
    %p176 = scmp.eq.s32.totalorder %s17, 0
    %p177 = por %p175, %p176
    %p178 = scmp.ne.s32.totalorder %s164, %s165
    %p179 = scmp.eq.s32.totalorder %s18, 1
    %p180 = por %p178, %p179
    %p182 = scmp.ne.s32.totalorder %s165, %s181
    %p183 = scmp.eq.s32.totalorder %s18, 0
    %p184 = por %p182, %p183
    %p185 = scmp.le.s32.totalorder 1, %s12
    %p186 = scmp.lt.s32.totalorder %s12, 3
    %p187 = pnand %p185, %p186
    %p188 = pneg %p187
    // Predicated region
    $region9: #{residual_block_3d.4} parent=5 // pred_check
      _
    $region10: #{residual_block_3d.4} parent=5 // pred_check_branch
      %190 = sbr.rel (%p187) target = $region12
    $region11: #{residual_block_3d.4} parent=5 // pred_region
      %s191 = ssub.s32 %s12, 1
      // Predicated region
      $region13: #{residual_block_3d.4} parent=11 // pred_check
        %p192 = pneg %p78
      $region14: #{residual_block_3d.4} parent=11 // pred_check_branch
        %194 = sbr.rel (%p192) target = $region16
      $region15: #{residual_block_3d.4} parent=11 // pred_region
        %s195 = smul.u32 16, %s22
        %p196 = scmp.lt.s32.totalorder %s195, 15
        %s197 = scalar_select %p196, %s195, 15
        %s198 = smul.addr %s197, 4
        %s199 = scalar_lea.vmem %s1, %s198
        %s200 = smul.u32 16, %s22
      $region16: #{residual_block_3d.4} parent=11 // pred_fallthru
        _
      // Predicated region
      $region17: #{residual_block_3d.4} parent=11 // pred_check
        %p201 = pneg %p99
      $region18: #{residual_block_3d.4} parent=11 // pred_check_branch
        %203 = sbr.rel (%p201) target = $region20
      $region19: #{residual_block_3d.4} parent=11 // pred_region
        _
      $region20: #{residual_block_3d.4} parent=11 // pred_fallthru
        _
    $region12: #{residual_block_3d.4} parent=5 // pred_fallthru
      _
    %p204 = scmp.lt.s32.totalorder %s12, 2
    // Predicated region
    $region21: #{residual_block_3d.4} parent=5 // pred_check
      %p205 = pneg %p204
    $region22: #{residual_block_3d.4} parent=5 // pred_check_branch
      %207 = sbr.rel (%p205) target = $region24
    $region23: #{residual_block_3d.4} parent=5 // pred_region
      // Predicated region
      $region25: #{residual_block_3d.4} parent=23 // pred_check
        %p208 = pneg %p46
      $region26: #{residual_block_3d.4} parent=23 // pred_check_branch
        %210 = sbr.rel (%p208) target = $region28
      $region27: #{residual_block_3d.4} parent=23 // pred_region
        %s211 = smul.u32 64, %s19
        %p212 = scmp.lt.s32.totalorder %s211, 127
        %s213 = scalar_select %p212, %s211, 127
        %p214 = scmp.lt.s32.totalorder %s20, 0
        %s215 = scalar_select %p214, %s20, 0
        %s216 = sadd.s32 %s215, %s213
        %s217 = smul.addr %s216, 4
        %s218 = scalar_lea.vmem %s0, %s217
        %s219 = smul.u32 64, %s19
      $region28: #{residual_block_3d.4} parent=23 // pred_fallthru
        _
    $region24: #{residual_block_3d.4} parent=5 // pred_fallthru
      _
    %p220 = scmp.le.s32.totalorder 1, %s12
    %p221 = scmp.lt.s32.totalorder %s12, 3
    %p222 = pnand %p220, %p221
    %p223 = pneg %p222
    // Predicated region
    $region29: #{residual_block_3d.4} parent=5 // pred_check
      _
    $region30: #{residual_block_3d.4} parent=5 // pred_check_branch
      %225 = sbr.rel (%p222) target = $region32
    $region31: #{residual_block_3d.4} parent=5 // pred_region
      %s226 = ssub.s32 %s12, 1
      %s227 = smul.u32 64, %s21
      %p228 = scmp.lt.s32.totalorder %s227, 127
      %s229 = scalar_select %p228, %s227, 127
      %p230 = scmp.lt.s32.totalorder %s22, 0
      %s231 = scalar_select %p230, %s22, 0
      %s232 = sadd.s32 %s231, %s229
      %s233 = smul.addr %s232, 4
      %s234 = scalar_lea.vmem %s0, %s233
      %p235 = pneg %p52
      %p236 = pneg %p49
      %s237 = smul.u32 16, %s22
      %p238 = scmp.lt.s32.totalorder %s237, 15
      %s239 = scalar_select %p238, %s237, 15
      %s240 = smul.addr %s239, 4
      %s241 = scalar_lea.vmem %s1, %s240
      %p242 = pneg %p78
      %p243 = pneg %p75
      %p244 = pneg %p99
      %p245 = pneg %p96
      %p246 = pneg %p125
      %p247 = pneg %p122
      %s248 = smul.u32 64, %s21
      %p249 = scmp.lt.s32.totalorder %s248, 127
      %s250 = scalar_select %p249, %s248, 127
      %s251 = smul.addr %s250, 4
      %s252 = scalar_lea.vmem %s3, %s251
      %p253 = pneg %p151
      %p254 = pneg %p148
      %p255 = scmp.lt.s32.totalorder %s21, 1
      %s256 = scalar_select %p255, %s21, 1
      %s257 = scalar_lea.vmem %s4, %s256
      %p258 = pneg %p177
      %p259 = pneg %p174
      %p260 = scmp.lt.s32.totalorder %s21, 1
      %s261 = scalar_select %p260, %s21, 1
      %s262 = scalar_lea.vmem %s5, %s261
      %s263 = smul.u32 64, %s21
      %p264 = scmp.lt.s32.totalorder %s263, 127
      %s265 = scalar_select %p264, %s263, 127
      %p266 = scmp.lt.s32.totalorder %s22, 0
      %s267 = scalar_select %p266, %s22, 0
      %s268 = sadd.s32 %s267, %s265
      %s269 = smul.addr %s268, 4
      %s270 = scalar_lea.vmem %s0, %s269
      %s271 = smul.u32 64, %s21
      %s272 = smul.u32 16, %s22
      %p273 = scmp.lt.s32.totalorder %s272, 15
      %s274 = scalar_select %p273, %s272, 15
      %s275 = smul.addr %s274, 4
      %s276 = scalar_lea.vmem %s1, %s275
      %s277 = smul.u32 16, %s22
      %s278 = smul.u32 64, %s21
      %p279 = scmp.lt.s32.totalorder %s278, 127
      %s280 = scalar_select %p279, %s278, 127
      %s281 = smul.addr %s280, 4
      %s282 = scalar_lea.vmem %s3, %s281
      %s283 = smul.u32 64, %s21
      %p284 = scmp.lt.s32.totalorder %s21, 1
      %s285 = scalar_select %p284, %s21, 1
      %s286 = scalar_lea.vmem %s4, %s285
      %p287 = scmp.lt.s32.totalorder %s21, 1
      %s288 = scalar_select %p287, %s21, 1
      %s289 = scalar_lea.vmem %s5, %s288
      %p290 = scmp.eq.s32.totalorder %s22, 0
      // Predicated region
      $region33: #{residual_block_3d.4} parent=31 // pred_check
        %p291 = pneg %p290
      $region34: #{residual_block_3d.4} parent=31 // pred_check_branch
        %293 = sbr.rel (%p291) target = $region36
      $region35: #{residual_block_3d.4} parent=31 // pred_region
        %294 = vst [vmem:[#allocation2] sm:$0xff] 0.0
        %295 = vst [vmem:[#allocation2 + $0x8] sm:$0xff] 0.0
        %296 = vst [vmem:[#allocation2 + $0x10] sm:$0xff] 0.0
        %297 = vst [vmem:[#allocation2 + $0x18] sm:$0xff] 0.0
        %298 = vst [vmem:[#allocation2 + $0x20] sm:$0xff] 0.0
        %299 = vst [vmem:[#allocation2 + $0x28] sm:$0xff] 0.0
        %300 = vst [vmem:[#allocation2 + $0x30] sm:$0xff] 0.0
        %301 = vst [vmem:[#allocation2 + $0x38] sm:$0xff] 0.0
        %302 = vst [vmem:[#allocation2 + $0x40] sm:$0xff] 0.0
        %303 = vst [vmem:[#allocation2 + $0x48] sm:$0xff] 0.0
        %304 = vst [vmem:[#allocation2 + $0x50] sm:$0xff] 0.0
        %305 = vst [vmem:[#allocation2 + $0x58] sm:$0xff] 0.0
        %306 = vst [vmem:[#allocation2 + $0x60] sm:$0xff] 0.0
        %307 = vst [vmem:[#allocation2 + $0x68] sm:$0xff] 0.0
        %308 = vst [vmem:[#allocation2 + $0x70] sm:$0xff] 0.0
        %309 = vst [vmem:[#allocation2 + $0x78] sm:$0xff] 0.0
        %310 = vst [vmem:[#allocation2 + $0x80] sm:$0xff] 0.0
        %311 = vst [vmem:[#allocation2 + $0x88] sm:$0xff] 0.0
        %312 = vst [vmem:[#allocation2 + $0x90] sm:$0xff] 0.0
        %313 = vst [vmem:[#allocation2 + $0x98] sm:$0xff] 0.0
        %314 = vst [vmem:[#allocation2 + $0xa0] sm:$0xff] 0.0
        %315 = vst [vmem:[#allocation2 + $0xa8] sm:$0xff] 0.0
        %316 = vst [vmem:[#allocation2 + $0xb0] sm:$0xff] 0.0
        %317 = vst [vmem:[#allocation2 + $0xb8] sm:$0xff] 0.0
        %318 = vst [vmem:[#allocation2 + $0xc0] sm:$0xff] 0.0
        %319 = vst [vmem:[#allocation2 + $0xc8] sm:$0xff] 0.0
        %320 = vst [vmem:[#allocation2 + $0xd0] sm:$0xff] 0.0
        %321 = vst [vmem:[#allocation2 + $0xd8] sm:$0xff] 0.0
        %322 = vst [vmem:[#allocation2 + $0xe0] sm:$0xff] 0.0
        %323 = vst [vmem:[#allocation2 + $0xe8] sm:$0xff] 0.0
        %324 = vst [vmem:[#allocation2 + $0xf0] sm:$0xff] 0.0
        %325 = vst [vmem:[#allocation2 + $0xf8] sm:$0xff] 0.0
        %326 = vst [vmem:[#allocation2 + $0x100] sm:$0xff] 0.0
        %327 = vst [vmem:[#allocation2 + $0x108] sm:$0xff] 0.0
        %328 = vst [vmem:[#allocation2 + $0x110] sm:$0xff] 0.0
        %329 = vst [vmem:[#allocation2 + $0x118] sm:$0xff] 0.0
        %330 = vst [vmem:[#allocation2 + $0x120] sm:$0xff] 0.0
        %331 = vst [vmem:[#allocation2 + $0x128] sm:$0xff] 0.0
        %332 = vst [vmem:[#allocation2 + $0x130] sm:$0xff] 0.0
        %333 = vst [vmem:[#allocation2 + $0x138] sm:$0xff] 0.0
        %334 = vst [vmem:[#allocation2 + $0x140] sm:$0xff] 0.0
        %335 = vst [vmem:[#allocation2 + $0x148] sm:$0xff] 0.0
        %336 = vst [vmem:[#allocation2 + $0x150] sm:$0xff] 0.0
        %337 = vst [vmem:[#allocation2 + $0x158] sm:$0xff] 0.0
        %338 = vst [vmem:[#allocation2 + $0x160] sm:$0xff] 0.0
        %339 = vst [vmem:[#allocation2 + $0x168] sm:$0xff] 0.0
        %340 = vst [vmem:[#allocation2 + $0x170] sm:$0xff] 0.0
        %341 = vst [vmem:[#allocation2 + $0x178] sm:$0xff] 0.0
        %342 = vst [vmem:[#allocation2 + $0x180] sm:$0xff] 0.0
        %343 = vst [vmem:[#allocation2 + $0x188] sm:$0xff] 0.0
        %344 = vst [vmem:[#allocation2 + $0x190] sm:$0xff] 0.0
        %345 = vst [vmem:[#allocation2 + $0x198] sm:$0xff] 0.0
        %346 = vst [vmem:[#allocation2 + $0x1a0] sm:$0xff] 0.0
        %347 = vst [vmem:[#allocation2 + $0x1a8] sm:$0xff] 0.0
        %348 = vst [vmem:[#allocation2 + $0x1b0] sm:$0xff] 0.0
        %349 = vst [vmem:[#allocation2 + $0x1b8] sm:$0xff] 0.0
        %350 = vst [vmem:[#allocation2 + $0x1c0] sm:$0xff] 0.0
        %351 = vst [vmem:[#allocation2 + $0x1c8] sm:$0xff] 0.0
        %352 = vst [vmem:[#allocation2 + $0x1d0] sm:$0xff] 0.0
        %353 = vst [vmem:[#allocation2 + $0x1d8] sm:$0xff] 0.0
        %354 = vst [vmem:[#allocation2 + $0x1e0] sm:$0xff] 0.0
        %355 = vst [vmem:[#allocation2 + $0x1e8] sm:$0xff] 0.0
        %356 = vst [vmem:[#allocation2 + $0x1f0] sm:$0xff] 0.0
        %357 = vst [vmem:[#allocation2 + $0x1f8] sm:$0xff] 0.0
      $region36: #{residual_block_3d.4} parent=31 // pred_fallthru
        _
      %v358 = vld [vmem:[#allocation2] sm:$0xff]
      %v359 = vld [vmem:[#allocation2 + $0x8] sm:$0xff]
      %v360 = vld [vmem:[#allocation2 + $0x10] sm:$0xff]
      %v361 = vld [vmem:[#allocation2 + $0x18] sm:$0xff]
      %v362 = vld [vmem:[#allocation2 + $0x20] sm:$0xff]
      %v363 = vld [vmem:[#allocation2 + $0x28] sm:$0xff]
      %v364 = vld [vmem:[#allocation2 + $0x30] sm:$0xff]
      %v365 = vld [vmem:[#allocation2 + $0x38] sm:$0xff]
      %v366 = vld [vmem:[#allocation2 + $0x40] sm:$0xff]
      %v367 = vld [vmem:[#allocation2 + $0x48] sm:$0xff]
      %v368 = vld [vmem:[#allocation2 + $0x50] sm:$0xff]
      %v369 = vld [vmem:[#allocation2 + $0x58] sm:$0xff]
      %v370 = vld [vmem:[#allocation2 + $0x60] sm:$0xff]
      %v371 = vld [vmem:[#allocation2 + $0x68] sm:$0xff]
      %v372 = vld [vmem:[#allocation2 + $0x70] sm:$0xff]
      %v373 = vld [vmem:[#allocation2 + $0x78] sm:$0xff]
      %v374 = vld [vmem:[#allocation2 + $0x80] sm:$0xff]
      %v375 = vld [vmem:[#allocation2 + $0x88] sm:$0xff]
      %v376 = vld [vmem:[#allocation2 + $0x90] sm:$0xff]
      %v377 = vld [vmem:[#allocation2 + $0x98] sm:$0xff]
      %v378 = vld [vmem:[#allocation2 + $0xa0] sm:$0xff]
      %v379 = vld [vmem:[#allocation2 + $0xa8] sm:$0xff]
      %v380 = vld [vmem:[#allocation2 + $0xb0] sm:$0xff]
      %v381 = vld [vmem:[#allocation2 + $0xb8] sm:$0xff]
      %v382 = vld [vmem:[#allocation2 + $0xc0] sm:$0xff]
      %v383 = vld [vmem:[#allocation2 + $0xc8] sm:$0xff]
      %v384 = vld [vmem:[#allocation2 + $0xd0] sm:$0xff]
      %v385 = vld [vmem:[#allocation2 + $0xd8] sm:$0xff]
      %v386 = vld [vmem:[#allocation2 + $0xe0] sm:$0xff]
      %v387 = vld [vmem:[#allocation2 + $0xe8] sm:$0xff]
      %v388 = vld [vmem:[#allocation2 + $0xf0] sm:$0xff]
      %v389 = vld [vmem:[#allocation2 + $0xf8] sm:$0xff]
      %v390 = vld [vmem:[#allocation2 + $0x100] sm:$0xff]
      %v391 = vld [vmem:[#allocation2 + $0x108] sm:$0xff]
      %v392 = vld [vmem:[#allocation2 + $0x110] sm:$0xff]
      %v393 = vld [vmem:[#allocation2 + $0x118] sm:$0xff]
      %v394 = vld [vmem:[#allocation2 + $0x120] sm:$0xff]
      %v395 = vld [vmem:[#allocation2 + $0x128] sm:$0xff]
      %v396 = vld [vmem:[#allocation2 + $0x130] sm:$0xff]
      %v397 = vld [vmem:[#allocation2 + $0x138] sm:$0xff]
      %v398 = vld [vmem:[#allocation2 + $0x140] sm:$0xff]
      %v399 = vld [vmem:[#allocation2 + $0x148] sm:$0xff]
      %v400 = vld [vmem:[#allocation2 + $0x150] sm:$0xff]
      %v401 = vld [vmem:[#allocation2 + $0x158] sm:$0xff]
      %v402 = vld [vmem:[#allocation2 + $0x160] sm:$0xff]
      %v403 = vld [vmem:[#allocation2 + $0x168] sm:$0xff]
      %v404 = vld [vmem:[#allocation2 + $0x170] sm:$0xff]
      %v405 = vld [vmem:[#allocation2 + $0x178] sm:$0xff]
      %v406 = vld [vmem:[#allocation2 + $0x180] sm:$0xff]
      %v407 = vld [vmem:[#allocation2 + $0x188] sm:$0xff]
      %v408 = vld [vmem:[#allocation2 + $0x190] sm:$0xff]
      %v409 = vld [vmem:[#allocation2 + $0x198] sm:$0xff]
      %v410 = vld [vmem:[#allocation2 + $0x1a0] sm:$0xff]
      %v411 = vld [vmem:[#allocation2 + $0x1a8] sm:$0xff]
      %v412 = vld [vmem:[#allocation2 + $0x1b0] sm:$0xff]
      %v413 = vld [vmem:[#allocation2 + $0x1b8] sm:$0xff]
      %v414 = vld [vmem:[#allocation2 + $0x1c0] sm:$0xff]
      %v415 = vld [vmem:[#allocation2 + $0x1c8] sm:$0xff]
      %v416 = vld [vmem:[#allocation2 + $0x1d0] sm:$0xff]
      %v417 = vld [vmem:[#allocation2 + $0x1d8] sm:$0xff]
      %v418 = vld [vmem:[#allocation2 + $0x1e0] sm:$0xff]
      %v419 = vld [vmem:[#allocation2 + $0x1e8] sm:$0xff]
      %v420 = vld [vmem:[#allocation2 + $0x1f0] sm:$0xff]
      %v421 = vld [vmem:[#allocation2 + $0x1f8] sm:$0xff]
      %v422 = vld [vmem:[%s270] sm:$0xf]
      %v423 = vld [vmem:[%s270 + $0x4] sm:$0xf]
      %v424 = vld [vmem:[%s270 + $0x8] sm:$0xf]
      %v425 = vld [vmem:[%s270 + $0xc] sm:$0xf]
      %v426 = vld [vmem:[%s270 + $0x10] sm:$0xf]
      %v427 = vld [vmem:[%s270 + $0x14] sm:$0xf]
      %v428 = vld [vmem:[%s270 + $0x18] sm:$0xf]
      %v429 = vld [vmem:[%s270 + $0x1c] sm:$0xf]
      %v430 = vld [vmem:[%s270 + $0x20] sm:$0xf]
      %v431 = vld [vmem:[%s270 + $0x24] sm:$0xf]
      %v432 = vld [vmem:[%s270 + $0x28] sm:$0xf]
      %v433 = vld [vmem:[%s270 + $0x2c] sm:$0xf]
      %v434 = vld [vmem:[%s270 + $0x30] sm:$0xf]
      %v435 = vld [vmem:[%s270 + $0x34] sm:$0xf]
      %v436 = vld [vmem:[%s270 + $0x38] sm:$0xf]
      %v437 = vld [vmem:[%s270 + $0x3c] sm:$0xf]
      %v438 = vld [vmem:[%s270 + $0x40] sm:$0xf]
      %v439 = vld [vmem:[%s270 + $0x44] sm:$0xf]
      %v440 = vld [vmem:[%s270 + $0x48] sm:$0xf]
      %v441 = vld [vmem:[%s270 + $0x4c] sm:$0xf]
      %v442 = vld [vmem:[%s270 + $0x50] sm:$0xf]
      %v443 = vld [vmem:[%s270 + $0x54] sm:$0xf]
      %v444 = vld [vmem:[%s270 + $0x58] sm:$0xf]
      %v445 = vld [vmem:[%s270 + $0x5c] sm:$0xf]
      %v446 = vld [vmem:[%s270 + $0x60] sm:$0xf]
      %v447 = vld [vmem:[%s270 + $0x64] sm:$0xf]
      %v448 = vld [vmem:[%s270 + $0x68] sm:$0xf]
      %v449 = vld [vmem:[%s270 + $0x6c] sm:$0xf]
      %v450 = vld [vmem:[%s270 + $0x70] sm:$0xf]
      %v451 = vld [vmem:[%s270 + $0x74] sm:$0xf]
      %v452 = vld [vmem:[%s270 + $0x78] sm:$0xf]
      %v453 = vld [vmem:[%s270 + $0x7c] sm:$0xf]
      %v454 = vld [vmem:[%s270 + $0x80] sm:$0xf]
      %v455 = vld [vmem:[%s270 + $0x84] sm:$0xf]
      %v456 = vld [vmem:[%s270 + $0x88] sm:$0xf]
      %v457 = vld [vmem:[%s270 + $0x8c] sm:$0xf]
      %v458 = vld [vmem:[%s270 + $0x90] sm:$0xf]
      %v459 = vld [vmem:[%s270 + $0x94] sm:$0xf]
      %v460 = vld [vmem:[%s270 + $0x98] sm:$0xf]
      %v461 = vld [vmem:[%s270 + $0x9c] sm:$0xf]
      %v462 = vld [vmem:[%s270 + $0xa0] sm:$0xf]
      %v463 = vld [vmem:[%s270 + $0xa4] sm:$0xf]
      %v464 = vld [vmem:[%s270 + $0xa8] sm:$0xf]
      %v465 = vld [vmem:[%s270 + $0xac] sm:$0xf]
      %v466 = vld [vmem:[%s270 + $0xb0] sm:$0xf]
      %v467 = vld [vmem:[%s270 + $0xb4] sm:$0xf]
      %v468 = vld [vmem:[%s270 + $0xb8] sm:$0xf]
      %v469 = vld [vmem:[%s270 + $0xbc] sm:$0xf]
      %v470 = vld [vmem:[%s270 + $0xc0] sm:$0xf]
      %v471 = vld [vmem:[%s270 + $0xc4] sm:$0xf]
      %v472 = vld [vmem:[%s270 + $0xc8] sm:$0xf]
      %v473 = vld [vmem:[%s270 + $0xcc] sm:$0xf]
      %v474 = vld [vmem:[%s270 + $0xd0] sm:$0xf]
      %v475 = vld [vmem:[%s270 + $0xd4] sm:$0xf]
      %v476 = vld [vmem:[%s270 + $0xd8] sm:$0xf]
      %v477 = vld [vmem:[%s270 + $0xdc] sm:$0xf]
      %v478 = vld [vmem:[%s270 + $0xe0] sm:$0xf]
      %v479 = vld [vmem:[%s270 + $0xe4] sm:$0xf]
      %v480 = vld [vmem:[%s270 + $0xe8] sm:$0xf]
      %v481 = vld [vmem:[%s270 + $0xec] sm:$0xf]
      %v482 = vld [vmem:[%s270 + $0xf0] sm:$0xf]
      %v483 = vld [vmem:[%s270 + $0xf4] sm:$0xf]
      %v484 = vld [vmem:[%s270 + $0xf8] sm:$0xf]
      %v485 = vld [vmem:[%s270 + $0xfc] sm:$0xf]
      %v486 = vld [vmem:[%s276] sm:$0xf]
      %v487 = vld [vmem:[%s276 + $0x4] sm:$0xf]
      %v488 = vld [vmem:[%s276 + $0x8] sm:$0xf]
      %v489 = vld [vmem:[%s276 + $0xc] sm:$0xf]
      %v490 = vld [vmem:[%s276 + $0x10] sm:$0xf]
      %v491 = vld [vmem:[%s276 + $0x14] sm:$0xf]
      %v492 = vld [vmem:[%s276 + $0x18] sm:$0xf]
      %v493 = vld [vmem:[%s276 + $0x1c] sm:$0xf]
      %v494 = vld [vmem:[%s276 + $0x20] sm:$0xf]
      %v495 = vld [vmem:[%s276 + $0x24] sm:$0xf]
      %v496 = vld [vmem:[%s276 + $0x28] sm:$0xf]
      %v497 = vld [vmem:[%s276 + $0x2c] sm:$0xf]
      %v498 = vld [vmem:[%s276 + $0x30] sm:$0xf]
      %v499 = vld [vmem:[%s276 + $0x34] sm:$0xf]
      %v500 = vld [vmem:[%s276 + $0x38] sm:$0xf]
      %v501 = vld [vmem:[%s276 + $0x3c] sm:$0xf]
      %v566 = vunpack.c.l.b16 %v422
      %v567 = vunpack.c.l.b16 %v423
      %v568 = vunpack.c.l.b16 %v424
      %v569 = vunpack.c.l.b16 %v425
      %v570 = vunpack.c.l.b16 %v426
      %v571 = vunpack.c.l.b16 %v427
      %v572 = vunpack.c.l.b16 %v428
      %v573 = vunpack.c.l.b16 %v429
      %v574 = vunpack.c.l.b16 %v430
      %v575 = vunpack.c.l.b16 %v431
      %v576 = vunpack.c.l.b16 %v432
      %v577 = vunpack.c.l.b16 %v433
      %v578 = vunpack.c.l.b16 %v434
      %v579 = vunpack.c.l.b16 %v435
      %v580 = vunpack.c.l.b16 %v436
      %v581 = vunpack.c.l.b16 %v437
      %v582 = vunpack.c.l.b16 %v438
      %v583 = vunpack.c.l.b16 %v439
      %v584 = vunpack.c.l.b16 %v440
      %v585 = vunpack.c.l.b16 %v441
      %v586 = vunpack.c.l.b16 %v442
      %v587 = vunpack.c.l.b16 %v443
      %v588 = vunpack.c.l.b16 %v444
      %v589 = vunpack.c.l.b16 %v445
      %v590 = vunpack.c.l.b16 %v446
      %v591 = vunpack.c.l.b16 %v447
      %v592 = vunpack.c.l.b16 %v448
      %v593 = vunpack.c.l.b16 %v449
      %v594 = vunpack.c.l.b16 %v450
      %v595 = vunpack.c.l.b16 %v451
      %v596 = vunpack.c.l.b16 %v452
      %v597 = vunpack.c.l.b16 %v453
      %v598 = vunpack.c.l.b16 %v454
      %v599 = vunpack.c.l.b16 %v455
      %v600 = vunpack.c.l.b16 %v456
      %v601 = vunpack.c.l.b16 %v457
      %v602 = vunpack.c.l.b16 %v458
      %v603 = vunpack.c.l.b16 %v459
      %v604 = vunpack.c.l.b16 %v460
      %v605 = vunpack.c.l.b16 %v461
      %v606 = vunpack.c.l.b16 %v462
      %v607 = vunpack.c.l.b16 %v463
      %v608 = vunpack.c.l.b16 %v464
      %v609 = vunpack.c.l.b16 %v465
      %v610 = vunpack.c.l.b16 %v466
      %v611 = vunpack.c.l.b16 %v467
      %v612 = vunpack.c.l.b16 %v468
      %v613 = vunpack.c.l.b16 %v469
      %v614 = vunpack.c.l.b16 %v470
      %v615 = vunpack.c.l.b16 %v471
      %v616 = vunpack.c.l.b16 %v472
      %v617 = vunpack.c.l.b16 %v473
      %v618 = vunpack.c.l.b16 %v474
      %v619 = vunpack.c.l.b16 %v475
      %v620 = vunpack.c.l.b16 %v476
      %v621 = vunpack.c.l.b16 %v477
      %v622 = vunpack.c.l.b16 %v478
      %v623 = vunpack.c.l.b16 %v479
      %v624 = vunpack.c.l.b16 %v480
      %v625 = vunpack.c.l.b16 %v481
      %v626 = vunpack.c.l.b16 %v482
      %v627 = vunpack.c.l.b16 %v483
      %v628 = vunpack.c.l.b16 %v484
      %v629 = vunpack.c.l.b16 %v485
      %v630 = vpack.c.b16 %v567, %v566
      %v631 = vpack.c.b16 %v569, %v568
      %v632 = vpack.c.b16 %v571, %v570
      %v633 = vpack.c.b16 %v573, %v572
      %v634 = vpack.c.b16 %v575, %v574
      %v635 = vpack.c.b16 %v577, %v576
      %v636 = vpack.c.b16 %v579, %v578
      %v637 = vpack.c.b16 %v581, %v580
      %v638 = vpack.c.b16 %v583, %v582
      %v639 = vpack.c.b16 %v585, %v584
      %v640 = vpack.c.b16 %v587, %v586
      %v641 = vpack.c.b16 %v589, %v588
      %v642 = vpack.c.b16 %v591, %v590
      %v643 = vpack.c.b16 %v593, %v592
      %v644 = vpack.c.b16 %v595, %v594
      %v645 = vpack.c.b16 %v597, %v596
      %v646 = vpack.c.b16 %v599, %v598
      %v647 = vpack.c.b16 %v601, %v600
      %v648 = vpack.c.b16 %v603, %v602
      %v649 = vpack.c.b16 %v605, %v604
      %v650 = vpack.c.b16 %v607, %v606
      %v651 = vpack.c.b16 %v609, %v608
      %v652 = vpack.c.b16 %v611, %v610
      %v653 = vpack.c.b16 %v613, %v612
      %v654 = vpack.c.b16 %v615, %v614
      %v655 = vpack.c.b16 %v617, %v616
      %v656 = vpack.c.b16 %v619, %v618
      %v657 = vpack.c.b16 %v621, %v620
      %v658 = vpack.c.b16 %v623, %v622
      %v659 = vpack.c.b16 %v625, %v624
      %v660 = vpack.c.b16 %v627, %v626
      %v661 = vpack.c.b16 %v629, %v628
      %v710 = vunpack.c.l.b16 %v486
      %v711 = vunpack.c.l.b16 %v487
      %v712 = vunpack.c.l.b16 %v488
      %v713 = vunpack.c.l.b16 %v489
      %v714 = vunpack.c.l.b16 %v490
      %v715 = vunpack.c.l.b16 %v491
      %v716 = vunpack.c.l.b16 %v492
      %v717 = vunpack.c.l.b16 %v493
      %v718 = vunpack.c.l.b16 %v494
      %v719 = vunpack.c.l.b16 %v495
      %v720 = vunpack.c.l.b16 %v496
      %v721 = vunpack.c.l.b16 %v497
      %v722 = vunpack.c.l.b16 %v498
      %v723 = vunpack.c.l.b16 %v499
      %v724 = vunpack.c.l.b16 %v500
      %v725 = vunpack.c.l.b16 %v501
      %v726 = vpack.c.b16 %v711, %v710
      %v727 = vpack.c.b16 %v713, %v712
      %v728 = vpack.c.b16 %v715, %v714
      %v729 = vpack.c.b16 %v717, %v716
      %v730 = vpack.c.b16 %v719, %v718
      %v731 = vpack.c.b16 %v721, %v720
      %v732 = vpack.c.b16 %v723, %v722
      %v733 = vpack.c.b16 %v725, %v724
      %742 = vmatpush.bf16.msra.mxu0 %v733
      %743 = vmatpush.bf16.msra.mxu0 %v732
      %744 = vmatpush.bf16.msra.mxu0 %v731
      %745 = vmatpush.bf16.msra.mxu0 %v730
      %746 = vmatpush.bf16.msra.mxu0 %v729
      %747 = vmatpush.bf16.msra.mxu0 %v728
      %748 = vmatpush.bf16.msra.mxu0 %v727
      %749 = vmatpush.bf16.msra.mxu0 %v726
      %750 = vmatmul.bf16.gmra.mxu0 %v630
      %v751 = vpop.f32.mrf.mxu0
      %v752 = vadd.f32 0.0, %v751
      %v753 = vpop.f32.mrf.mxu0
      %v754 = vadd.f32 0.0, %v753
      %755 = vmatmul.bf16.gmra.mxu0 %v631
      %v756 = vpop.f32.mrf.mxu0
      %v757 = vadd.f32 0.0, %v756
      %v758 = vpop.f32.mrf.mxu0
      %v759 = vadd.f32 0.0, %v758
      %760 = vmatmul.bf16.gmra.mxu0 %v632
      %v761 = vpop.f32.mrf.mxu0
      %v762 = vadd.f32 0.0, %v761
      %v763 = vpop.f32.mrf.mxu0
      %v764 = vadd.f32 0.0, %v763
      %765 = vmatmul.bf16.gmra.mxu0 %v633
      %v766 = vpop.f32.mrf.mxu0
      %v767 = vadd.f32 0.0, %v766
      %v768 = vpop.f32.mrf.mxu0
      %v769 = vadd.f32 0.0, %v768
      %770 = vmatmul.bf16.gmra.mxu0 %v634
      %v771 = vpop.f32.mrf.mxu0
      %v772 = vadd.f32 0.0, %v771
      %v773 = vpop.f32.mrf.mxu0
      %v774 = vadd.f32 0.0, %v773
      %775 = vmatmul.bf16.gmra.mxu0 %v635
      %v776 = vpop.f32.mrf.mxu0
      %v777 = vadd.f32 0.0, %v776
      %v778 = vpop.f32.mrf.mxu0
      %v779 = vadd.f32 0.0, %v778
      %780 = vmatmul.bf16.gmra.mxu0 %v636
      %v781 = vpop.f32.mrf.mxu0
      %v782 = vadd.f32 0.0, %v781
      %v783 = vpop.f32.mrf.mxu0
      %v784 = vadd.f32 0.0, %v783
      %785 = vmatmul.bf16.gmra.mxu0 %v637
      %v786 = vpop.f32.mrf.mxu0
      %v787 = vadd.f32 0.0, %v786
      %v788 = vpop.f32.mrf.mxu0
      %v789 = vadd.f32 0.0, %v788
      %790 = vmatmul.bf16.gmra.mxu0 %v638
      %v791 = vpop.f32.mrf.mxu0
      %v792 = vadd.f32 0.0, %v791
      %v793 = vpop.f32.mrf.mxu0
      %v794 = vadd.f32 0.0, %v793
      %795 = vmatmul.bf16.gmra.mxu0 %v639
      %v796 = vpop.f32.mrf.mxu0
      %v797 = vadd.f32 0.0, %v796
      %v798 = vpop.f32.mrf.mxu0
      %v799 = vadd.f32 0.0, %v798
      %800 = vmatmul.bf16.gmra.mxu0 %v640
      %v801 = vpop.f32.mrf.mxu0
      %v802 = vadd.f32 0.0, %v801
      %v803 = vpop.f32.mrf.mxu0
      %v804 = vadd.f32 0.0, %v803
      %805 = vmatmul.bf16.gmra.mxu0 %v641
      %v806 = vpop.f32.mrf.mxu0
      %v807 = vadd.f32 0.0, %v806
      %v808 = vpop.f32.mrf.mxu0
      %v809 = vadd.f32 0.0, %v808
      %810 = vmatmul.bf16.gmra.mxu0 %v642
      %v811 = vpop.f32.mrf.mxu0
      %v812 = vadd.f32 0.0, %v811
      %v813 = vpop.f32.mrf.mxu0
      %v814 = vadd.f32 0.0, %v813
      %815 = vmatmul.bf16.gmra.mxu0 %v643
      %v816 = vpop.f32.mrf.mxu0
      %v817 = vadd.f32 0.0, %v816
      %v818 = vpop.f32.mrf.mxu0
      %v819 = vadd.f32 0.0, %v818
      %820 = vmatmul.bf16.gmra.mxu0 %v644
      %v821 = vpop.f32.mrf.mxu0
      %v822 = vadd.f32 0.0, %v821
      %v823 = vpop.f32.mrf.mxu0
      %v824 = vadd.f32 0.0, %v823
      %825 = vmatmul.bf16.gmra.mxu0 %v645
      %v826 = vpop.f32.mrf.mxu0
      %v827 = vadd.f32 0.0, %v826
      %v828 = vpop.f32.mrf.mxu0
      %v829 = vadd.f32 0.0, %v828
      %830 = vmatmul.bf16.gmra.mxu0 %v646
      %v831 = vpop.f32.mrf.mxu0
      %v832 = vadd.f32 0.0, %v831
      %v833 = vpop.f32.mrf.mxu0
      %v834 = vadd.f32 0.0, %v833
      %835 = vmatmul.bf16.gmra.mxu0 %v647
      %v836 = vpop.f32.mrf.mxu0
      %v837 = vadd.f32 0.0, %v836
      %v838 = vpop.f32.mrf.mxu0
      %v839 = vadd.f32 0.0, %v838
      %840 = vmatmul.bf16.gmra.mxu0 %v648
      %v841 = vpop.f32.mrf.mxu0
      %v842 = vadd.f32 0.0, %v841
      %v843 = vpop.f32.mrf.mxu0
      %v844 = vadd.f32 0.0, %v843
      %845 = vmatmul.bf16.gmra.mxu0 %v649
      %v846 = vpop.f32.mrf.mxu0
      %v847 = vadd.f32 0.0, %v846
      %v848 = vpop.f32.mrf.mxu0
      %v849 = vadd.f32 0.0, %v848
      %850 = vmatmul.bf16.gmra.mxu0 %v650
      %v851 = vpop.f32.mrf.mxu0
      %v852 = vadd.f32 0.0, %v851
      %v853 = vpop.f32.mrf.mxu0
      %v854 = vadd.f32 0.0, %v853
      %855 = vmatmul.bf16.gmra.mxu0 %v651
      %v856 = vpop.f32.mrf.mxu0
      %v857 = vadd.f32 0.0, %v856
      %v858 = vpop.f32.mrf.mxu0
      %v859 = vadd.f32 0.0, %v858
      %860 = vmatmul.bf16.gmra.mxu0 %v652
      %v861 = vpop.f32.mrf.mxu0
      %v862 = vadd.f32 0.0, %v861
      %v863 = vpop.f32.mrf.mxu0
      %v864 = vadd.f32 0.0, %v863
      %865 = vmatmul.bf16.gmra.mxu0 %v653
      %v866 = vpop.f32.mrf.mxu0
      %v867 = vadd.f32 0.0, %v866
      %v868 = vpop.f32.mrf.mxu0
      %v869 = vadd.f32 0.0, %v868
      %870 = vmatmul.bf16.gmra.mxu0 %v654
      %v871 = vpop.f32.mrf.mxu0
      %v872 = vadd.f32 0.0, %v871
      %v873 = vpop.f32.mrf.mxu0
      %v874 = vadd.f32 0.0, %v873
      %875 = vmatmul.bf16.gmra.mxu0 %v655
      %v876 = vpop.f32.mrf.mxu0
      %v877 = vadd.f32 0.0, %v876
      %v878 = vpop.f32.mrf.mxu0
      %v879 = vadd.f32 0.0, %v878
      %880 = vmatmul.bf16.gmra.mxu0 %v656
      %v881 = vpop.f32.mrf.mxu0
      %v882 = vadd.f32 0.0, %v881
      %v883 = vpop.f32.mrf.mxu0
      %v884 = vadd.f32 0.0, %v883
      %885 = vmatmul.bf16.gmra.mxu0 %v657
      %v886 = vpop.f32.mrf.mxu0
      %v887 = vadd.f32 0.0, %v886
      %v888 = vpop.f32.mrf.mxu0
      %v889 = vadd.f32 0.0, %v888
      %890 = vmatmul.bf16.gmra.mxu0 %v658
      %v891 = vpop.f32.mrf.mxu0
      %v892 = vadd.f32 0.0, %v891
      %v893 = vpop.f32.mrf.mxu0
      %v894 = vadd.f32 0.0, %v893
      %895 = vmatmul.bf16.gmra.mxu0 %v659
      %v896 = vpop.f32.mrf.mxu0
      %v897 = vadd.f32 0.0, %v896
      %v898 = vpop.f32.mrf.mxu0
      %v899 = vadd.f32 0.0, %v898
      %900 = vmatmul.bf16.gmra.mxu0 %v660
      %v901 = vpop.f32.mrf.mxu0
      %v902 = vadd.f32 0.0, %v901
      %v903 = vpop.f32.mrf.mxu0
      %v904 = vadd.f32 0.0, %v903
      %905 = vmatmul.bf16.gmra.mxu0 %v661
      %v906 = vpop.f32.mrf.mxu0
      %v907 = vadd.f32 0.0, %v906
      %v908 = vpop.f32.mrf.mxu0
      %v909 = vadd.f32 0.0, %v908
      %910 = vdwg.mxu0
      %v911 = vadd.f32 %v358, %v752
      %v912 = vadd.f32 %v359, %v754
      %v913 = vadd.f32 %v360, %v757
      %v914 = vadd.f32 %v361, %v759
      %v915 = vadd.f32 %v362, %v762
      %v916 = vadd.f32 %v363, %v764
      %v917 = vadd.f32 %v364, %v767
      %v918 = vadd.f32 %v365, %v769
      %v919 = vadd.f32 %v366, %v772
      %v920 = vadd.f32 %v367, %v774
      %v921 = vadd.f32 %v368, %v777
      %v922 = vadd.f32 %v369, %v779
      %v923 = vadd.f32 %v370, %v782
      %v924 = vadd.f32 %v371, %v784
      %v925 = vadd.f32 %v372, %v787
      %v926 = vadd.f32 %v373, %v789
      %v927 = vadd.f32 %v374, %v792
      %v928 = vadd.f32 %v375, %v794
      %v929 = vadd.f32 %v376, %v797
      %v930 = vadd.f32 %v377, %v799
      %v931 = vadd.f32 %v378, %v802
      %v932 = vadd.f32 %v379, %v804
      %v933 = vadd.f32 %v380, %v807
      %v934 = vadd.f32 %v381, %v809
      %v935 = vadd.f32 %v382, %v812
      %v936 = vadd.f32 %v383, %v814
      %v937 = vadd.f32 %v384, %v817
      %v938 = vadd.f32 %v385, %v819
      %v939 = vadd.f32 %v386, %v822
      %v940 = vadd.f32 %v387, %v824
      %v941 = vadd.f32 %v388, %v827
      %v942 = vadd.f32 %v389, %v829
      %v943 = vadd.f32 %v390, %v832
      %v944 = vadd.f32 %v391, %v834
      %v945 = vadd.f32 %v392, %v837
      %v946 = vadd.f32 %v393, %v839
      %v947 = vadd.f32 %v394, %v842
      %v948 = vadd.f32 %v395, %v844
      %v949 = vadd.f32 %v396, %v847
      %v950 = vadd.f32 %v397, %v849
      %v951 = vadd.f32 %v398, %v852
      %v952 = vadd.f32 %v399, %v854
      %v953 = vadd.f32 %v400, %v857
      %v954 = vadd.f32 %v401, %v859
      %v955 = vadd.f32 %v402, %v862
      %v956 = vadd.f32 %v403, %v864
      %v957 = vadd.f32 %v404, %v867
      %v958 = vadd.f32 %v405, %v869
      %v959 = vadd.f32 %v406, %v872
      %v960 = vadd.f32 %v407, %v874
      %v961 = vadd.f32 %v408, %v877
      %v962 = vadd.f32 %v409, %v879
      %v963 = vadd.f32 %v410, %v882
      %v964 = vadd.f32 %v411, %v884
      %v965 = vadd.f32 %v412, %v887
      %v966 = vadd.f32 %v413, %v889
      %v967 = vadd.f32 %v414, %v892
      %v968 = vadd.f32 %v415, %v894
      %v969 = vadd.f32 %v416, %v897
      %v970 = vadd.f32 %v417, %v899
      %v971 = vadd.f32 %v418, %v902
      %v972 = vadd.f32 %v419, %v904
      %v973 = vadd.f32 %v420, %v907
      %v974 = vadd.f32 %v421, %v909
      %975 = vst [vmem:[#allocation2] sm:$0xff] %v911
      %976 = vst [vmem:[#allocation2 + $0x8] sm:$0xff] %v912
      %977 = vst [vmem:[#allocation2 + $0x10] sm:$0xff] %v913
      %978 = vst [vmem:[#allocation2 + $0x18] sm:$0xff] %v914
      %979 = vst [vmem:[#allocation2 + $0x20] sm:$0xff] %v915
      %980 = vst [vmem:[#allocation2 + $0x28] sm:$0xff] %v916
      %981 = vst [vmem:[#allocation2 + $0x30] sm:$0xff] %v917
      %982 = vst [vmem:[#allocation2 + $0x38] sm:$0xff] %v918
      %983 = vst [vmem:[#allocation2 + $0x40] sm:$0xff] %v919
      %984 = vst [vmem:[#allocation2 + $0x48] sm:$0xff] %v920
      %985 = vst [vmem:[#allocation2 + $0x50] sm:$0xff] %v921
      %986 = vst [vmem:[#allocation2 + $0x58] sm:$0xff] %v922
      %987 = vst [vmem:[#allocation2 + $0x60] sm:$0xff] %v923
      %988 = vst [vmem:[#allocation2 + $0x68] sm:$0xff] %v924
      %989 = vst [vmem:[#allocation2 + $0x70] sm:$0xff] %v925
      %990 = vst [vmem:[#allocation2 + $0x78] sm:$0xff] %v926
      %991 = vst [vmem:[#allocation2 + $0x80] sm:$0xff] %v927
      %992 = vst [vmem:[#allocation2 + $0x88] sm:$0xff] %v928
      %993 = vst [vmem:[#allocation2 + $0x90] sm:$0xff] %v929
      %994 = vst [vmem:[#allocation2 + $0x98] sm:$0xff] %v930
      %995 = vst [vmem:[#allocation2 + $0xa0] sm:$0xff] %v931
      %996 = vst [vmem:[#allocation2 + $0xa8] sm:$0xff] %v932
      %997 = vst [vmem:[#allocation2 + $0xb0] sm:$0xff] %v933
      %998 = vst [vmem:[#allocation2 + $0xb8] sm:$0xff] %v934
      %999 = vst [vmem:[#allocation2 + $0xc0] sm:$0xff] %v935
      %1000 = vst [vmem:[#allocation2 + $0xc8] sm:$0xff] %v936
      %1001 = vst [vmem:[#allocation2 + $0xd0] sm:$0xff] %v937
      %1002 = vst [vmem:[#allocation2 + $0xd8] sm:$0xff] %v938
      %1003 = vst [vmem:[#allocation2 + $0xe0] sm:$0xff] %v939
      %1004 = vst [vmem:[#allocation2 + $0xe8] sm:$0xff] %v940
      %1005 = vst [vmem:[#allocation2 + $0xf0] sm:$0xff] %v941
      %1006 = vst [vmem:[#allocation2 + $0xf8] sm:$0xff] %v942
      %1007 = vst [vmem:[#allocation2 + $0x100] sm:$0xff] %v943
      %1008 = vst [vmem:[#allocation2 + $0x108] sm:$0xff] %v944
      %1009 = vst [vmem:[#allocation2 + $0x110] sm:$0xff] %v945
      %1010 = vst [vmem:[#allocation2 + $0x118] sm:$0xff] %v946
      %1011 = vst [vmem:[#allocation2 + $0x120] sm:$0xff] %v947
      %1012 = vst [vmem:[#allocation2 + $0x128] sm:$0xff] %v948
      %1013 = vst [vmem:[#allocation2 + $0x130] sm:$0xff] %v949
      %1014 = vst [vmem:[#allocation2 + $0x138] sm:$0xff] %v950
      %1015 = vst [vmem:[#allocation2 + $0x140] sm:$0xff] %v951
      %1016 = vst [vmem:[#allocation2 + $0x148] sm:$0xff] %v952
      %1017 = vst [vmem:[#allocation2 + $0x150] sm:$0xff] %v953
      %1018 = vst [vmem:[#allocation2 + $0x158] sm:$0xff] %v954
      %1019 = vst [vmem:[#allocation2 + $0x160] sm:$0xff] %v955
      %1020 = vst [vmem:[#allocation2 + $0x168] sm:$0xff] %v956
      %1021 = vst [vmem:[#allocation2 + $0x170] sm:$0xff] %v957
      %1022 = vst [vmem:[#allocation2 + $0x178] sm:$0xff] %v958
      %1023 = vst [vmem:[#allocation2 + $0x180] sm:$0xff] %v959
      %1024 = vst [vmem:[#allocation2 + $0x188] sm:$0xff] %v960
      %1025 = vst [vmem:[#allocation2 + $0x190] sm:$0xff] %v961
      %1026 = vst [vmem:[#allocation2 + $0x198] sm:$0xff] %v962
      %1027 = vst [vmem:[#allocation2 + $0x1a0] sm:$0xff] %v963
      %1028 = vst [vmem:[#allocation2 + $0x1a8] sm:$0xff] %v964
      %1029 = vst [vmem:[#allocation2 + $0x1b0] sm:$0xff] %v965
      %1030 = vst [vmem:[#allocation2 + $0x1b8] sm:$0xff] %v966
      %1031 = vst [vmem:[#allocation2 + $0x1c0] sm:$0xff] %v967
      %1032 = vst [vmem:[#allocation2 + $0x1c8] sm:$0xff] %v968
      %1033 = vst [vmem:[#allocation2 + $0x1d0] sm:$0xff] %v969
      %1034 = vst [vmem:[#allocation2 + $0x1d8] sm:$0xff] %v970
      %1035 = vst [vmem:[#allocation2 + $0x1e0] sm:$0xff] %v971
      %1036 = vst [vmem:[#allocation2 + $0x1e8] sm:$0xff] %v972
      %1037 = vst [vmem:[#allocation2 + $0x1f0] sm:$0xff] %v973
      %1038 = vst [vmem:[#allocation2 + $0x1f8] sm:$0xff] %v974
      // Predicated region
      $region37: #{residual_block_3d.4} parent=31 // pred_check
        %p1039 = pneg %p290
      $region38: #{residual_block_3d.4} parent=31 // pred_check_branch
        %1041 = sbr.rel (%p1039) target = $region40
      $region39: #{residual_block_3d.4} parent=31 // pred_region
        %v1042 = vld [vmem:[#allocation2] sm:$0xff]
        %v1043 = vld [vmem:[#allocation2 + $0x8] sm:$0xff]
        %v1044 = vld [vmem:[#allocation2 + $0x10] sm:$0xff]
        %v1045 = vld [vmem:[#allocation2 + $0x18] sm:$0xff]
        %v1046 = vld [vmem:[#allocation2 + $0x20] sm:$0xff]
        %v1047 = vld [vmem:[#allocation2 + $0x28] sm:$0xff]
        %v1048 = vld [vmem:[#allocation2 + $0x30] sm:$0xff]
        %v1049 = vld [vmem:[#allocation2 + $0x38] sm:$0xff]
        %v1050 = vld [vmem:[#allocation2 + $0x40] sm:$0xff]
        %v1051 = vld [vmem:[#allocation2 + $0x48] sm:$0xff]
        %v1052 = vld [vmem:[#allocation2 + $0x50] sm:$0xff]
        %v1053 = vld [vmem:[#allocation2 + $0x58] sm:$0xff]
        %v1054 = vld [vmem:[#allocation2 + $0x60] sm:$0xff]
        %v1055 = vld [vmem:[#allocation2 + $0x68] sm:$0xff]
        %v1056 = vld [vmem:[#allocation2 + $0x70] sm:$0xff]
        %v1057 = vld [vmem:[#allocation2 + $0x78] sm:$0xff]
        %v1058 = vld [vmem:[#allocation2 + $0x80] sm:$0xff]
        %v1059 = vld [vmem:[#allocation2 + $0x88] sm:$0xff]
        %v1060 = vld [vmem:[#allocation2 + $0x90] sm:$0xff]
        %v1061 = vld [vmem:[#allocation2 + $0x98] sm:$0xff]
        %v1062 = vld [vmem:[#allocation2 + $0xa0] sm:$0xff]
        %v1063 = vld [vmem:[#allocation2 + $0xa8] sm:$0xff]
        %v1064 = vld [vmem:[#allocation2 + $0xb0] sm:$0xff]
        %v1065 = vld [vmem:[#allocation2 + $0xb8] sm:$0xff]
        %v1066 = vld [vmem:[#allocation2 + $0xc0] sm:$0xff]
        %v1067 = vld [vmem:[#allocation2 + $0xc8] sm:$0xff]
        %v1068 = vld [vmem:[#allocation2 + $0xd0] sm:$0xff]
        %v1069 = vld [vmem:[#allocation2 + $0xd8] sm:$0xff]
        %v1070 = vld [vmem:[#allocation2 + $0xe0] sm:$0xff]
        %v1071 = vld [vmem:[#allocation2 + $0xe8] sm:$0xff]
        %v1072 = vld [vmem:[#allocation2 + $0xf0] sm:$0xff]
        %v1073 = vld [vmem:[#allocation2 + $0xf8] sm:$0xff]
        %v1074 = vld [vmem:[#allocation2 + $0x100] sm:$0xff]
        %v1075 = vld [vmem:[#allocation2 + $0x108] sm:$0xff]
        %v1076 = vld [vmem:[#allocation2 + $0x110] sm:$0xff]
        %v1077 = vld [vmem:[#allocation2 + $0x118] sm:$0xff]
        %v1078 = vld [vmem:[#allocation2 + $0x120] sm:$0xff]
        %v1079 = vld [vmem:[#allocation2 + $0x128] sm:$0xff]
        %v1080 = vld [vmem:[#allocation2 + $0x130] sm:$0xff]
        %v1081 = vld [vmem:[#allocation2 + $0x138] sm:$0xff]
        %v1082 = vld [vmem:[#allocation2 + $0x140] sm:$0xff]
        %v1083 = vld [vmem:[#allocation2 + $0x148] sm:$0xff]
        %v1084 = vld [vmem:[#allocation2 + $0x150] sm:$0xff]
        %v1085 = vld [vmem:[#allocation2 + $0x158] sm:$0xff]
        %v1086 = vld [vmem:[#allocation2 + $0x160] sm:$0xff]
        %v1087 = vld [vmem:[#allocation2 + $0x168] sm:$0xff]
        %v1088 = vld [vmem:[#allocation2 + $0x170] sm:$0xff]
        %v1089 = vld [vmem:[#allocation2 + $0x178] sm:$0xff]
        %v1090 = vld [vmem:[#allocation2 + $0x180] sm:$0xff]
        %v1091 = vld [vmem:[#allocation2 + $0x188] sm:$0xff]
        %v1092 = vld [vmem:[#allocation2 + $0x190] sm:$0xff]
        %v1093 = vld [vmem:[#allocation2 + $0x198] sm:$0xff]
        %v1094 = vld [vmem:[#allocation2 + $0x1a0] sm:$0xff]
        %v1095 = vld [vmem:[#allocation2 + $0x1a8] sm:$0xff]
        %v1096 = vld [vmem:[#allocation2 + $0x1b0] sm:$0xff]
        %v1097 = vld [vmem:[#allocation2 + $0x1b8] sm:$0xff]
        %v1098 = vld [vmem:[#allocation2 + $0x1c0] sm:$0xff]
        %v1099 = vld [vmem:[#allocation2 + $0x1c8] sm:$0xff]
        %v1100 = vld [vmem:[#allocation2 + $0x1d0] sm:$0xff]
        %v1101 = vld [vmem:[#allocation2 + $0x1d8] sm:$0xff]
        %v1102 = vld [vmem:[#allocation2 + $0x1e0] sm:$0xff]
        %v1103 = vld [vmem:[#allocation2 + $0x1e8] sm:$0xff]
        %v1104 = vld [vmem:[#allocation2 + $0x1f0] sm:$0xff]
        %v1105 = vld [vmem:[#allocation2 + $0x1f8] sm:$0xff]
        %v1106 = vld [vmem:[%s2] sm:$0x1]
        %v1108 = vperm.slane %v1106, 0
        %v1110 = vadd.f32 %v1042, %v1108
        %v1111 = vadd.f32 %v1043, %v1108
        %v1112 = vadd.f32 %v1044, %v1108
        %v1113 = vadd.f32 %v1045, %v1108
        %v1114 = vadd.f32 %v1046, %v1108
        %v1115 = vadd.f32 %v1047, %v1108
        %v1116 = vadd.f32 %v1048, %v1108
        %v1117 = vadd.f32 %v1049, %v1108
        %v1118 = vadd.f32 %v1050, %v1108
        %v1119 = vadd.f32 %v1051, %v1108
        %v1120 = vadd.f32 %v1052, %v1108
        %v1121 = vadd.f32 %v1053, %v1108
        %v1122 = vadd.f32 %v1054, %v1108
        %v1123 = vadd.f32 %v1055, %v1108
        %v1124 = vadd.f32 %v1056, %v1108
        %v1125 = vadd.f32 %v1057, %v1108
        %v1126 = vadd.f32 %v1058, %v1108
        %v1127 = vadd.f32 %v1059, %v1108
        %v1128 = vadd.f32 %v1060, %v1108
        %v1129 = vadd.f32 %v1061, %v1108
        %v1130 = vadd.f32 %v1062, %v1108
        %v1131 = vadd.f32 %v1063, %v1108
        %v1132 = vadd.f32 %v1064, %v1108
        %v1133 = vadd.f32 %v1065, %v1108
        %v1134 = vadd.f32 %v1066, %v1108
        %v1135 = vadd.f32 %v1067, %v1108
        %v1136 = vadd.f32 %v1068, %v1108
        %v1137 = vadd.f32 %v1069, %v1108
        %v1138 = vadd.f32 %v1070, %v1108
        %v1139 = vadd.f32 %v1071, %v1108
        %v1140 = vadd.f32 %v1072, %v1108
        %v1141 = vadd.f32 %v1073, %v1108
        %v1142 = vadd.f32 %v1074, %v1108
        %v1143 = vadd.f32 %v1075, %v1108
        %v1144 = vadd.f32 %v1076, %v1108
        %v1145 = vadd.f32 %v1077, %v1108
        %v1146 = vadd.f32 %v1078, %v1108
        %v1147 = vadd.f32 %v1079, %v1108
        %v1148 = vadd.f32 %v1080, %v1108
        %v1149 = vadd.f32 %v1081, %v1108
        %v1150 = vadd.f32 %v1082, %v1108
        %v1151 = vadd.f32 %v1083, %v1108
        %v1152 = vadd.f32 %v1084, %v1108
        %v1153 = vadd.f32 %v1085, %v1108
        %v1154 = vadd.f32 %v1086, %v1108
        %v1155 = vadd.f32 %v1087, %v1108
        %v1156 = vadd.f32 %v1088, %v1108
        %v1157 = vadd.f32 %v1089, %v1108
        %v1158 = vadd.f32 %v1090, %v1108
        %v1159 = vadd.f32 %v1091, %v1108
        %v1160 = vadd.f32 %v1092, %v1108
        %v1161 = vadd.f32 %v1093, %v1108
        %v1162 = vadd.f32 %v1094, %v1108
        %v1163 = vadd.f32 %v1095, %v1108
        %v1164 = vadd.f32 %v1096, %v1108
        %v1165 = vadd.f32 %v1097, %v1108
        %v1166 = vadd.f32 %v1098, %v1108
        %v1167 = vadd.f32 %v1099, %v1108
        %v1168 = vadd.f32 %v1100, %v1108
        %v1169 = vadd.f32 %v1101, %v1108
        %v1170 = vadd.f32 %v1102, %v1108
        %v1171 = vadd.f32 %v1103, %v1108
        %v1172 = vadd.f32 %v1104, %v1108
        %v1173 = vadd.f32 %v1105, %v1108
        %v1174 = vpack.c.bf16 %v1110, %v1110
        %v1175 = vpack.c.bf16 %v1111, %v1111
        %v1176 = vpack.c.bf16 %v1112, %v1112
        %v1177 = vpack.c.bf16 %v1113, %v1113
        %v1178 = vpack.c.bf16 %v1114, %v1114
        %v1179 = vpack.c.bf16 %v1115, %v1115
        %v1180 = vpack.c.bf16 %v1116, %v1116
        %v1181 = vpack.c.bf16 %v1117, %v1117
        %v1182 = vpack.c.bf16 %v1118, %v1118
        %v1183 = vpack.c.bf16 %v1119, %v1119
        %v1184 = vpack.c.bf16 %v1120, %v1120
        %v1185 = vpack.c.bf16 %v1121, %v1121
        %v1186 = vpack.c.bf16 %v1122, %v1122
        %v1187 = vpack.c.bf16 %v1123, %v1123
        %v1188 = vpack.c.bf16 %v1124, %v1124
        %v1189 = vpack.c.bf16 %v1125, %v1125
        %v1190 = vpack.c.bf16 %v1126, %v1126
        %v1191 = vpack.c.bf16 %v1127, %v1127
        %v1192 = vpack.c.bf16 %v1128, %v1128
        %v1193 = vpack.c.bf16 %v1129, %v1129
        %v1194 = vpack.c.bf16 %v1130, %v1130
        %v1195 = vpack.c.bf16 %v1131, %v1131
        %v1196 = vpack.c.bf16 %v1132, %v1132
        %v1197 = vpack.c.bf16 %v1133, %v1133
        %v1198 = vpack.c.bf16 %v1134, %v1134
        %v1199 = vpack.c.bf16 %v1135, %v1135
        %v1200 = vpack.c.bf16 %v1136, %v1136
        %v1201 = vpack.c.bf16 %v1137, %v1137
        %v1202 = vpack.c.bf16 %v1138, %v1138
        %v1203 = vpack.c.bf16 %v1139, %v1139
        %v1204 = vpack.c.bf16 %v1140, %v1140
        %v1205 = vpack.c.bf16 %v1141, %v1141
        %v1206 = vpack.c.bf16 %v1142, %v1142
        %v1207 = vpack.c.bf16 %v1143, %v1143
        %v1208 = vpack.c.bf16 %v1144, %v1144
        %v1209 = vpack.c.bf16 %v1145, %v1145
        %v1210 = vpack.c.bf16 %v1146, %v1146
        %v1211 = vpack.c.bf16 %v1147, %v1147
        %v1212 = vpack.c.bf16 %v1148, %v1148
        %v1213 = vpack.c.bf16 %v1149, %v1149
        %v1214 = vpack.c.bf16 %v1150, %v1150
        %v1215 = vpack.c.bf16 %v1151, %v1151
        %v1216 = vpack.c.bf16 %v1152, %v1152
        %v1217 = vpack.c.bf16 %v1153, %v1153
        %v1218 = vpack.c.bf16 %v1154, %v1154
        %v1219 = vpack.c.bf16 %v1155, %v1155
        %v1220 = vpack.c.bf16 %v1156, %v1156
        %v1221 = vpack.c.bf16 %v1157, %v1157
        %v1222 = vpack.c.bf16 %v1158, %v1158
        %v1223 = vpack.c.bf16 %v1159, %v1159
        %v1224 = vpack.c.bf16 %v1160, %v1160
        %v1225 = vpack.c.bf16 %v1161, %v1161
        %v1226 = vpack.c.bf16 %v1162, %v1162
        %v1227 = vpack.c.bf16 %v1163, %v1163
        %v1228 = vpack.c.bf16 %v1164, %v1164
        %v1229 = vpack.c.bf16 %v1165, %v1165
        %v1230 = vpack.c.bf16 %v1166, %v1166
        %v1231 = vpack.c.bf16 %v1167, %v1167
        %v1232 = vpack.c.bf16 %v1168, %v1168
        %v1233 = vpack.c.bf16 %v1169, %v1169
        %v1234 = vpack.c.bf16 %v1170, %v1170
        %v1235 = vpack.c.bf16 %v1171, %v1171
        %v1236 = vpack.c.bf16 %v1172, %v1172
        %v1237 = vpack.c.bf16 %v1173, %v1173
        %1238 = vst [vmem:[%s282] sm:$0xf] %v1174
        %1239 = vst [vmem:[%s282 + $0x4] sm:$0xf] %v1175
        %1240 = vst [vmem:[%s282 + $0x8] sm:$0xf] %v1176
        %1241 = vst [vmem:[%s282 + $0xc] sm:$0xf] %v1177
        %1242 = vst [vmem:[%s282 + $0x10] sm:$0xf] %v1178
        %1243 = vst [vmem:[%s282 + $0x14] sm:$0xf] %v1179
        %1244 = vst [vmem:[%s282 + $0x18] sm:$0xf] %v1180
        %1245 = vst [vmem:[%s282 + $0x1c] sm:$0xf] %v1181
        %1246 = vst [vmem:[%s282 + $0x20] sm:$0xf] %v1182
        %1247 = vst [vmem:[%s282 + $0x24] sm:$0xf] %v1183
        %1248 = vst [vmem:[%s282 + $0x28] sm:$0xf] %v1184
        %1249 = vst [vmem:[%s282 + $0x2c] sm:$0xf] %v1185
        %1250 = vst [vmem:[%s282 + $0x30] sm:$0xf] %v1186
        %1251 = vst [vmem:[%s282 + $0x34] sm:$0xf] %v1187
        %1252 = vst [vmem:[%s282 + $0x38] sm:$0xf] %v1188
        %1253 = vst [vmem:[%s282 + $0x3c] sm:$0xf] %v1189
        %1254 = vst [vmem:[%s282 + $0x40] sm:$0xf] %v1190
        %1255 = vst [vmem:[%s282 + $0x44] sm:$0xf] %v1191
        %1256 = vst [vmem:[%s282 + $0x48] sm:$0xf] %v1192
        %1257 = vst [vmem:[%s282 + $0x4c] sm:$0xf] %v1193
        %1258 = vst [vmem:[%s282 + $0x50] sm:$0xf] %v1194
        %1259 = vst [vmem:[%s282 + $0x54] sm:$0xf] %v1195
        %1260 = vst [vmem:[%s282 + $0x58] sm:$0xf] %v1196
        %1261 = vst [vmem:[%s282 + $0x5c] sm:$0xf] %v1197
        %1262 = vst [vmem:[%s282 + $0x60] sm:$0xf] %v1198
        %1263 = vst [vmem:[%s282 + $0x64] sm:$0xf] %v1199
        %1264 = vst [vmem:[%s282 + $0x68] sm:$0xf] %v1200
        %1265 = vst [vmem:[%s282 + $0x6c] sm:$0xf] %v1201
        %1266 = vst [vmem:[%s282 + $0x70] sm:$0xf] %v1202
        %1267 = vst [vmem:[%s282 + $0x74] sm:$0xf] %v1203
        %1268 = vst [vmem:[%s282 + $0x78] sm:$0xf] %v1204
        %1269 = vst [vmem:[%s282 + $0x7c] sm:$0xf] %v1205
        %1270 = vst [vmem:[%s282 + $0x80] sm:$0xf] %v1206
        %1271 = vst [vmem:[%s282 + $0x84] sm:$0xf] %v1207
        %1272 = vst [vmem:[%s282 + $0x88] sm:$0xf] %v1208
        %1273 = vst [vmem:[%s282 + $0x8c] sm:$0xf] %v1209
        %1274 = vst [vmem:[%s282 + $0x90] sm:$0xf] %v1210
        %1275 = vst [vmem:[%s282 + $0x94] sm:$0xf] %v1211
        %1276 = vst [vmem:[%s282 + $0x98] sm:$0xf] %v1212
        %1277 = vst [vmem:[%s282 + $0x9c] sm:$0xf] %v1213
        %1278 = vst [vmem:[%s282 + $0xa0] sm:$0xf] %v1214
        %1279 = vst [vmem:[%s282 + $0xa4] sm:$0xf] %v1215
        %1280 = vst [vmem:[%s282 + $0xa8] sm:$0xf] %v1216
        %1281 = vst [vmem:[%s282 + $0xac] sm:$0xf] %v1217
        %1282 = vst [vmem:[%s282 + $0xb0] sm:$0xf] %v1218
        %1283 = vst [vmem:[%s282 + $0xb4] sm:$0xf] %v1219
        %1284 = vst [vmem:[%s282 + $0xb8] sm:$0xf] %v1220
        %1285 = vst [vmem:[%s282 + $0xbc] sm:$0xf] %v1221
        %1286 = vst [vmem:[%s282 + $0xc0] sm:$0xf] %v1222
        %1287 = vst [vmem:[%s282 + $0xc4] sm:$0xf] %v1223
        %1288 = vst [vmem:[%s282 + $0xc8] sm:$0xf] %v1224
        %1289 = vst [vmem:[%s282 + $0xcc] sm:$0xf] %v1225
        %1290 = vst [vmem:[%s282 + $0xd0] sm:$0xf] %v1226
        %1291 = vst [vmem:[%s282 + $0xd4] sm:$0xf] %v1227
        %1292 = vst [vmem:[%s282 + $0xd8] sm:$0xf] %v1228
        %1293 = vst [vmem:[%s282 + $0xdc] sm:$0xf] %v1229
        %1294 = vst [vmem:[%s282 + $0xe0] sm:$0xf] %v1230
        %1295 = vst [vmem:[%s282 + $0xe4] sm:$0xf] %v1231
        %1296 = vst [vmem:[%s282 + $0xe8] sm:$0xf] %v1232
        %1297 = vst [vmem:[%s282 + $0xec] sm:$0xf] %v1233
        %1298 = vst [vmem:[%s282 + $0xf0] sm:$0xf] %v1234
        %1299 = vst [vmem:[%s282 + $0xf4] sm:$0xf] %v1235
        %1300 = vst [vmem:[%s282 + $0xf8] sm:$0xf] %v1236
        %1301 = vst [vmem:[%s282 + $0xfc] sm:$0xf] %v1237
        %p1302 = scmp.lt.s32.totalorder %s21, 1
        // Predicated region
        $region41: #{residual_block_3d.4} parent=39 // pred_check
          %p1303 = pneg %p1302
        $region42: #{residual_block_3d.4} parent=39 // pred_check_branch
          %1305 = sbr.rel (%p1303) target = $region44
        $region43: #{residual_block_3d.4} parent=39 // pred_region
          %v1306 = vadd.f32 %v1110, %v1111
          %v1307 = vadd.f32 %v1306, %v1112
          %v1308 = vadd.f32 %v1307, %v1113
          %v1309 = vadd.f32 %v1308, %v1114
          %v1310 = vadd.f32 %v1309, %v1115
          %v1311 = vadd.f32 %v1310, %v1116
          %v1312 = vadd.f32 %v1311, %v1117
          %v1313 = vadd.f32 %v1312, %v1118
          %v1314 = vadd.f32 %v1313, %v1119
          %v1315 = vadd.f32 %v1314, %v1120
          %v1316 = vadd.f32 %v1315, %v1121
          %v1317 = vadd.f32 %v1316, %v1122
          %v1318 = vadd.f32 %v1317, %v1123
          %v1319 = vadd.f32 %v1318, %v1124
          %v1320 = vadd.f32 %v1319, %v1125
          %v1321 = vadd.f32 %v1320, %v1126
          %v1322 = vadd.f32 %v1321, %v1127
          %v1323 = vadd.f32 %v1322, %v1128
          %v1324 = vadd.f32 %v1323, %v1129
          %v1325 = vadd.f32 %v1324, %v1130
          %v1326 = vadd.f32 %v1325, %v1131
          %v1327 = vadd.f32 %v1326, %v1132
          %v1328 = vadd.f32 %v1327, %v1133
          %v1329 = vadd.f32 %v1328, %v1134
          %v1330 = vadd.f32 %v1329, %v1135
          %v1331 = vadd.f32 %v1330, %v1136
          %v1332 = vadd.f32 %v1331, %v1137
          %v1333 = vadd.f32 %v1332, %v1138
          %v1334 = vadd.f32 %v1333, %v1139
          %v1335 = vadd.f32 %v1334, %v1140
          %v1336 = vadd.f32 %v1335, %v1141
          %v1337 = vadd.f32 %v1336, %v1142
          %v1338 = vadd.f32 %v1337, %v1143
          %v1339 = vadd.f32 %v1338, %v1144
          %v1340 = vadd.f32 %v1339, %v1145
          %v1341 = vadd.f32 %v1340, %v1146
          %v1342 = vadd.f32 %v1341, %v1147
          %v1343 = vadd.f32 %v1342, %v1148
          %v1344 = vadd.f32 %v1343, %v1149
          %v1345 = vadd.f32 %v1344, %v1150
          %v1346 = vadd.f32 %v1345, %v1151
          %v1347 = vadd.f32 %v1346, %v1152
          %v1348 = vadd.f32 %v1347, %v1153
          %v1349 = vadd.f32 %v1348, %v1154
          %v1350 = vadd.f32 %v1349, %v1155
          %v1351 = vadd.f32 %v1350, %v1156
          %v1352 = vadd.f32 %v1351, %v1157
          %v1353 = vadd.f32 %v1352, %v1158
          %v1354 = vadd.f32 %v1353, %v1159
          %v1355 = vadd.f32 %v1354, %v1160
          %v1356 = vadd.f32 %v1355, %v1161
          %v1357 = vadd.f32 %v1356, %v1162
          %v1358 = vadd.f32 %v1357, %v1163
          %v1359 = vadd.f32 %v1358, %v1164
          %v1360 = vadd.f32 %v1359, %v1165
          %v1361 = vadd.f32 %v1360, %v1166
          %v1362 = vadd.f32 %v1361, %v1167
          %v1363 = vadd.f32 %v1362, %v1168
          %v1364 = vadd.f32 %v1363, %v1169
          %v1365 = vadd.f32 %v1364, %v1170
          %v1366 = vadd.f32 %v1365, %v1171
          %v1367 = vadd.f32 %v1366, %v1172
          %v1368 = vadd.f32 %v1367, %v1173
          %v1369 = vrot.slane %v1368, 4
          %v1370 = vadd.f32 %v1368, %v1369
          %v1371 = vrot.slane %v1370, 2
          %v1372 = vadd.f32 %v1370, %v1371
          %v1373 = vrot.slane %v1372, 1
          %v1374 = vadd.f32 %v1372, %v1373
          %1375 = vst [vmem:[%s286] sm:$0x1] %v1374
          %v1376 = vmul.f32 %v1110, %v1110
          %v1377 = vmul.f32 %v1111, %v1111
          %v1378 = vmul.f32 %v1112, %v1112
          %v1379 = vmul.f32 %v1113, %v1113
          %v1380 = vmul.f32 %v1114, %v1114
          %v1381 = vmul.f32 %v1115, %v1115
          %v1382 = vmul.f32 %v1116, %v1116
          %v1383 = vmul.f32 %v1117, %v1117
          %v1384 = vmul.f32 %v1118, %v1118
          %v1385 = vmul.f32 %v1119, %v1119
          %v1386 = vmul.f32 %v1120, %v1120
          %v1387 = vmul.f32 %v1121, %v1121
          %v1388 = vmul.f32 %v1122, %v1122
          %v1389 = vmul.f32 %v1123, %v1123
          %v1390 = vmul.f32 %v1124, %v1124
          %v1391 = vmul.f32 %v1125, %v1125
          %v1392 = vmul.f32 %v1126, %v1126
          %v1393 = vmul.f32 %v1127, %v1127
          %v1394 = vmul.f32 %v1128, %v1128
          %v1395 = vmul.f32 %v1129, %v1129
          %v1396 = vmul.f32 %v1130, %v1130
          %v1397 = vmul.f32 %v1131, %v1131
          %v1398 = vmul.f32 %v1132, %v1132
          %v1399 = vmul.f32 %v1133, %v1133
          %v1400 = vmul.f32 %v1134, %v1134
          %v1401 = vmul.f32 %v1135, %v1135
          %v1402 = vmul.f32 %v1136, %v1136
          %v1403 = vmul.f32 %v1137, %v1137
          %v1404 = vmul.f32 %v1138, %v1138
          %v1405 = vmul.f32 %v1139, %v1139
          %v1406 = vmul.f32 %v1140, %v1140
          %v1407 = vmul.f32 %v1141, %v1141
          %v1408 = vmul.f32 %v1142, %v1142
          %v1409 = vmul.f32 %v1143, %v1143
          %v1410 = vmul.f32 %v1144, %v1144
          %v1411 = vmul.f32 %v1145, %v1145
          %v1412 = vmul.f32 %v1146, %v1146
          %v1413 = vmul.f32 %v1147, %v1147
          %v1414 = vmul.f32 %v1148, %v1148
          %v1415 = vmul.f32 %v1149, %v1149
          %v1416 = vmul.f32 %v1150, %v1150
          %v1417 = vmul.f32 %v1151, %v1151
          %v1418 = vmul.f32 %v1152, %v1152
          %v1419 = vmul.f32 %v1153, %v1153
          %v1420 = vmul.f32 %v1154, %v1154
          %v1421 = vmul.f32 %v1155, %v1155
          %v1422 = vmul.f32 %v1156, %v1156
          %v1423 = vmul.f32 %v1157, %v1157
          %v1424 = vmul.f32 %v1158, %v1158
          %v1425 = vmul.f32 %v1159, %v1159
          %v1426 = vmul.f32 %v1160, %v1160
          %v1427 = vmul.f32 %v1161, %v1161
          %v1428 = vmul.f32 %v1162, %v1162
          %v1429 = vmul.f32 %v1163, %v1163
          %v1430 = vmul.f32 %v1164, %v1164
          %v1431 = vmul.f32 %v1165, %v1165
          %v1432 = vmul.f32 %v1166, %v1166
          %v1433 = vmul.f32 %v1167, %v1167
          %v1434 = vmul.f32 %v1168, %v1168
          %v1435 = vmul.f32 %v1169, %v1169
          %v1436 = vmul.f32 %v1170, %v1170
          %v1437 = vmul.f32 %v1171, %v1171
          %v1438 = vmul.f32 %v1172, %v1172
          %v1439 = vmul.f32 %v1173, %v1173
          %v1440 = vadd.f32 %v1376, %v1377
          %v1441 = vadd.f32 %v1440, %v1378
          %v1442 = vadd.f32 %v1441, %v1379
          %v1443 = vadd.f32 %v1442, %v1380
          %v1444 = vadd.f32 %v1443, %v1381
          %v1445 = vadd.f32 %v1444, %v1382
          %v1446 = vadd.f32 %v1445, %v1383
          %v1447 = vadd.f32 %v1446, %v1384
          %v1448 = vadd.f32 %v1447, %v1385
          %v1449 = vadd.f32 %v1448, %v1386
          %v1450 = vadd.f32 %v1449, %v1387
          %v1451 = vadd.f32 %v1450, %v1388
          %v1452 = vadd.f32 %v1451, %v1389
          %v1453 = vadd.f32 %v1452, %v1390
          %v1454 = vadd.f32 %v1453, %v1391
          %v1455 = vadd.f32 %v1454, %v1392
          %v1456 = vadd.f32 %v1455, %v1393
          %v1457 = vadd.f32 %v1456, %v1394
          %v1458 = vadd.f32 %v1457, %v1395
          %v1459 = vadd.f32 %v1458, %v1396
          %v1460 = vadd.f32 %v1459, %v1397
          %v1461 = vadd.f32 %v1460, %v1398
          %v1462 = vadd.f32 %v1461, %v1399
          %v1463 = vadd.f32 %v1462, %v1400
          %v1464 = vadd.f32 %v1463, %v1401
          %v1465 = vadd.f32 %v1464, %v1402
          %v1466 = vadd.f32 %v1465, %v1403
          %v1467 = vadd.f32 %v1466, %v1404
          %v1468 = vadd.f32 %v1467, %v1405
          %v1469 = vadd.f32 %v1468, %v1406
          %v1470 = vadd.f32 %v1469, %v1407
          %v1471 = vadd.f32 %v1470, %v1408
          %v1472 = vadd.f32 %v1471, %v1409
          %v1473 = vadd.f32 %v1472, %v1410
          %v1474 = vadd.f32 %v1473, %v1411
          %v1475 = vadd.f32 %v1474, %v1412
          %v1476 = vadd.f32 %v1475, %v1413
          %v1477 = vadd.f32 %v1476, %v1414
          %v1478 = vadd.f32 %v1477, %v1415
          %v1479 = vadd.f32 %v1478, %v1416
          %v1480 = vadd.f32 %v1479, %v1417
          %v1481 = vadd.f32 %v1480, %v1418
          %v1482 = vadd.f32 %v1481, %v1419
          %v1483 = vadd.f32 %v1482, %v1420
          %v1484 = vadd.f32 %v1483, %v1421
          %v1485 = vadd.f32 %v1484, %v1422
          %v1486 = vadd.f32 %v1485, %v1423
          %v1487 = vadd.f32 %v1486, %v1424
          %v1488 = vadd.f32 %v1487, %v1425
          %v1489 = vadd.f32 %v1488, %v1426
          %v1490 = vadd.f32 %v1489, %v1427
          %v1491 = vadd.f32 %v1490, %v1428
          %v1492 = vadd.f32 %v1491, %v1429
          %v1493 = vadd.f32 %v1492, %v1430
          %v1494 = vadd.f32 %v1493, %v1431
          %v1495 = vadd.f32 %v1494, %v1432
          %v1496 = vadd.f32 %v1495, %v1433
          %v1497 = vadd.f32 %v1496, %v1434
          %v1498 = vadd.f32 %v1497, %v1435
          %v1499 = vadd.f32 %v1498, %v1436
          %v1500 = vadd.f32 %v1499, %v1437
          %v1501 = vadd.f32 %v1500, %v1438
          %v1502 = vadd.f32 %v1501, %v1439
          %v1503 = vrot.slane %v1502, 4
          %v1504 = vadd.f32 %v1502, %v1503
          %v1505 = vrot.slane %v1504, 2
          %v1506 = vadd.f32 %v1504, %v1505
          %v1507 = vrot.slane %v1506, 1
          %v1508 = vadd.f32 %v1506, %v1507
          %1509 = vst [vmem:[%s289] sm:$0x1] %v1508
        $region44: #{residual_block_3d.4} parent=39 // pred_fallthru
          _
        %p1510 = scmp.eq.s32.totalorder %s21, 1
        // Predicated region
        $region45: #{residual_block_3d.4} parent=39 // pred_check
          %p1511 = pneg %p1510
        $region46: #{residual_block_3d.4} parent=39 // pred_check_branch
          %1513 = sbr.rel (%p1511) target = $region48
        $region47: #{residual_block_3d.4} parent=39 // pred_region
          %s1514 = smul.u32 %s21, 512
          %v1515 = vlaneseq
          %v1516 = vshrl.u32 %v1515, 7
          %v1517 = vadd.s32 %v1516, 8
          %v1518 = vadd.s32 %v1516, 16
          %v1519 = vadd.s32 %v1516, 24
          %v1520 = vadd.s32 %v1516, 32
          %v1521 = vadd.s32 %v1516, 40
          %v1522 = vadd.s32 %v1516, 48
          %v1523 = vadd.s32 %v1516, 56
          %v1524 = vadd.s32 %v1516, 64
          %v1525 = vadd.s32 %v1516, 72
          %v1526 = vadd.s32 %v1516, 80
          %v1527 = vadd.s32 %v1516, 88
          %v1528 = vadd.s32 %v1516, 96
          %v1529 = vadd.s32 %v1516, 104
          %v1530 = vadd.s32 %v1516, 112
          %v1531 = vadd.s32 %v1516, 120
          %v1532 = vadd.s32 %v1516, 128
          %v1533 = vadd.s32 %v1516, 136
          %v1534 = vadd.s32 %v1516, 144
          %v1535 = vadd.s32 %v1516, 152
          %v1536 = vadd.s32 %v1516, 160
          %v1537 = vadd.s32 %v1516, 168
          %v1538 = vadd.s32 %v1516, 176
          %v1539 = vadd.s32 %v1516, 184
          %v1540 = vadd.s32 %v1516, 192
          %v1541 = vadd.s32 %v1516, 200
          %v1542 = vadd.s32 %v1516, 208
          %v1543 = vadd.s32 %v1516, 216
          %v1544 = vadd.s32 %v1516, 224
          %v1545 = vadd.s32 %v1516, 232
          %v1546 = vadd.s32 %v1516, 240
          %v1547 = vadd.s32 %v1516, 248
          %v1548 = vadd.s32 %v1516, 256
          %v1549 = vadd.s32 %v1516, 264
          %v1550 = vadd.s32 %v1516, 272
          %v1551 = vadd.s32 %v1516, 280
          %v1552 = vadd.s32 %v1516, 288
          %v1553 = vadd.s32 %v1516, 296
          %v1554 = vadd.s32 %v1516, 304
          %v1555 = vadd.s32 %v1516, 312
          %v1556 = vadd.s32 %v1516, 320
          %v1557 = vadd.s32 %v1516, 328
          %v1558 = vadd.s32 %v1516, 336
          %v1559 = vadd.s32 %v1516, 344
          %v1560 = vadd.s32 %v1516, 352
          %v1561 = vadd.s32 %v1516, 360
          %v1562 = vadd.s32 %v1516, 368
          %v1563 = vadd.s32 %v1516, 376
          %v1564 = vadd.s32 %v1516, 384
          %v1565 = vadd.s32 %v1516, 392
          %v1566 = vadd.s32 %v1516, 400
          %v1567 = vadd.s32 %v1516, 408
          %v1568 = vadd.s32 %v1516, 416
          %v1569 = vadd.s32 %v1516, 424
          %v1570 = vadd.s32 %v1516, 432
          %v1571 = vadd.s32 %v1516, 440
          %v1572 = vadd.s32 %v1516, 448
          %v1573 = vadd.s32 %v1516, 456
          %v1574 = vadd.s32 %v1516, 464
          %v1575 = vadd.s32 %v1516, 472
          %v1576 = vadd.s32 %v1516, 480
          %v1577 = vadd.s32 %v1516, 488
          %v1578 = vadd.s32 %v1516, 496
          %v1579 = vadd.s32 %v1516, 504
          %v1580 = vstv %s1514
          %v1581 = vadd.s32 %v1580, %v1516
          %v1582 = vadd.s32 %v1580, %v1517
          %v1583 = vadd.s32 %v1580, %v1518
          %v1584 = vadd.s32 %v1580, %v1519
          %v1585 = vadd.s32 %v1580, %v1520
          %v1586 = vadd.s32 %v1580, %v1521
          %v1587 = vadd.s32 %v1580, %v1522
          %v1588 = vadd.s32 %v1580, %v1523
          %v1589 = vadd.s32 %v1580, %v1524
          %v1590 = vadd.s32 %v1580, %v1525
          %v1591 = vadd.s32 %v1580, %v1526
          %v1592 = vadd.s32 %v1580, %v1527
          %v1593 = vadd.s32 %v1580, %v1528
          %v1594 = vadd.s32 %v1580, %v1529
          %v1595 = vadd.s32 %v1580, %v1530
          %v1596 = vadd.s32 %v1580, %v1531
          %v1597 = vadd.s32 %v1580, %v1532
          %v1598 = vadd.s32 %v1580, %v1533
          %v1599 = vadd.s32 %v1580, %v1534
          %v1600 = vadd.s32 %v1580, %v1535
          %v1601 = vadd.s32 %v1580, %v1536
          %v1602 = vadd.s32 %v1580, %v1537
          %v1603 = vadd.s32 %v1580, %v1538
          %v1604 = vadd.s32 %v1580, %v1539
          %v1605 = vadd.s32 %v1580, %v1540
          %v1606 = vadd.s32 %v1580, %v1541
          %v1607 = vadd.s32 %v1580, %v1542
          %v1608 = vadd.s32 %v1580, %v1543
          %v1609 = vadd.s32 %v1580, %v1544
          %v1610 = vadd.s32 %v1580, %v1545
          %v1611 = vadd.s32 %v1580, %v1546
          %v1612 = vadd.s32 %v1580, %v1547
          %v1613 = vadd.s32 %v1580, %v1548
          %v1614 = vadd.s32 %v1580, %v1549
          %v1615 = vadd.s32 %v1580, %v1550
          %v1616 = vadd.s32 %v1580, %v1551
          %v1617 = vadd.s32 %v1580, %v1552
          %v1618 = vadd.s32 %v1580, %v1553
          %v1619 = vadd.s32 %v1580, %v1554
          %v1620 = vadd.s32 %v1580, %v1555
          %v1621 = vadd.s32 %v1580, %v1556
          %v1622 = vadd.s32 %v1580, %v1557
          %v1623 = vadd.s32 %v1580, %v1558
          %v1624 = vadd.s32 %v1580, %v1559
          %v1625 = vadd.s32 %v1580, %v1560
          %v1626 = vadd.s32 %v1580, %v1561
          %v1627 = vadd.s32 %v1580, %v1562
          %v1628 = vadd.s32 %v1580, %v1563
          %v1629 = vadd.s32 %v1580, %v1564
          %v1630 = vadd.s32 %v1580, %v1565
          %v1631 = vadd.s32 %v1580, %v1566
          %v1632 = vadd.s32 %v1580, %v1567
          %v1633 = vadd.s32 %v1580, %v1568
          %v1634 = vadd.s32 %v1580, %v1569
          %v1635 = vadd.s32 %v1580, %v1570
          %v1636 = vadd.s32 %v1580, %v1571
          %v1637 = vadd.s32 %v1580, %v1572
          %v1638 = vadd.s32 %v1580, %v1573
          %v1639 = vadd.s32 %v1580, %v1574
          %v1640 = vadd.s32 %v1580, %v1575
          %v1641 = vadd.s32 %v1580, %v1576
          %v1642 = vadd.s32 %v1580, %v1577
          %v1643 = vadd.s32 %v1580, %v1578
          %v1644 = vadd.s32 %v1580, %v1579
          %vm1645 = vcmp.lt.s32.totalorder %v1581, 1024
          %vm1646 = vcmp.lt.s32.totalorder %v1582, 1024
          %vm1647 = vcmp.lt.s32.totalorder %v1583, 1024
          %vm1648 = vcmp.lt.s32.totalorder %v1584, 1024
          %vm1649 = vcmp.lt.s32.totalorder %v1585, 1024
          %vm1650 = vcmp.lt.s32.totalorder %v1586, 1024
          %vm1651 = vcmp.lt.s32.totalorder %v1587, 1024
          %vm1652 = vcmp.lt.s32.totalorder %v1588, 1024
          %vm1653 = vcmp.lt.s32.totalorder %v1589, 1024
          %vm1654 = vcmp.lt.s32.totalorder %v1590, 1024
          %vm1655 = vcmp.lt.s32.totalorder %v1591, 1024
          %vm1656 = vcmp.lt.s32.totalorder %v1592, 1024
          %vm1657 = vcmp.lt.s32.totalorder %v1593, 1024
          %vm1658 = vcmp.lt.s32.totalorder %v1594, 1024
          %vm1659 = vcmp.lt.s32.totalorder %v1595, 1024
          %vm1660 = vcmp.lt.s32.totalorder %v1596, 1024
          %vm1661 = vcmp.lt.s32.totalorder %v1597, 1024
          %vm1662 = vcmp.lt.s32.totalorder %v1598, 1024
          %vm1663 = vcmp.lt.s32.totalorder %v1599, 1024
          %vm1664 = vcmp.lt.s32.totalorder %v1600, 1024
          %vm1665 = vcmp.lt.s32.totalorder %v1601, 1024
          %vm1666 = vcmp.lt.s32.totalorder %v1602, 1024
          %vm1667 = vcmp.lt.s32.totalorder %v1603, 1024
          %vm1668 = vcmp.lt.s32.totalorder %v1604, 1024
          %vm1669 = vcmp.lt.s32.totalorder %v1605, 1024
          %vm1670 = vcmp.lt.s32.totalorder %v1606, 1024
          %vm1671 = vcmp.lt.s32.totalorder %v1607, 1024
          %vm1672 = vcmp.lt.s32.totalorder %v1608, 1024
          %vm1673 = vcmp.lt.s32.totalorder %v1609, 1024
          %vm1674 = vcmp.lt.s32.totalorder %v1610, 1024
          %vm1675 = vcmp.lt.s32.totalorder %v1611, 1024
          %vm1676 = vcmp.lt.s32.totalorder %v1612, 1024
          %vm1677 = vcmp.lt.s32.totalorder %v1613, 1024
          %vm1678 = vcmp.lt.s32.totalorder %v1614, 1024
          %vm1679 = vcmp.lt.s32.totalorder %v1615, 1024
          %vm1680 = vcmp.lt.s32.totalorder %v1616, 1024
          %vm1681 = vcmp.lt.s32.totalorder %v1617, 1024
          %vm1682 = vcmp.lt.s32.totalorder %v1618, 1024
          %vm1683 = vcmp.lt.s32.totalorder %v1619, 1024
          %vm1684 = vcmp.lt.s32.totalorder %v1620, 1024
          %vm1685 = vcmp.lt.s32.totalorder %v1621, 1024
          %vm1686 = vcmp.lt.s32.totalorder %v1622, 1024
          %vm1687 = vcmp.lt.s32.totalorder %v1623, 1024
          %vm1688 = vcmp.lt.s32.totalorder %v1624, 1024
          %vm1689 = vcmp.lt.s32.totalorder %v1625, 1024
          %vm1690 = vcmp.lt.s32.totalorder %v1626, 1024
          %vm1691 = vcmp.lt.s32.totalorder %v1627, 1024
          %vm1692 = vcmp.lt.s32.totalorder %v1628, 1024
          %vm1693 = vcmp.lt.s32.totalorder %v1629, 1024
          %vm1694 = vcmp.lt.s32.totalorder %v1630, 1024
          %vm1695 = vcmp.lt.s32.totalorder %v1631, 1024
          %vm1696 = vcmp.lt.s32.totalorder %v1632, 1024
          %vm1697 = vcmp.lt.s32.totalorder %v1633, 1024
          %vm1698 = vcmp.lt.s32.totalorder %v1634, 1024
          %vm1699 = vcmp.lt.s32.totalorder %v1635, 1024
          %vm1700 = vcmp.lt.s32.totalorder %v1636, 1024
          %vm1701 = vcmp.lt.s32.totalorder %v1637, 1024
          %vm1702 = vcmp.lt.s32.totalorder %v1638, 1024
          %vm1703 = vcmp.lt.s32.totalorder %v1639, 1024
          %vm1704 = vcmp.lt.s32.totalorder %v1640, 1024
          %vm1705 = vcmp.lt.s32.totalorder %v1641, 1024
          %vm1706 = vcmp.lt.s32.totalorder %v1642, 1024
          %vm1707 = vcmp.lt.s32.totalorder %v1643, 1024
          %vm1708 = vcmp.lt.s32.totalorder %v1644, 1024
          %v1709 = vsel %vm1645, 1, 0
          %v1710 = vsel %vm1646, 1, 0
          %v1711 = vsel %vm1647, 1, 0
          %v1712 = vsel %vm1648, 1, 0
          %v1713 = vsel %vm1649, 1, 0
          %v1714 = vsel %vm1650, 1, 0
          %v1715 = vsel %vm1651, 1, 0
          %v1716 = vsel %vm1652, 1, 0
          %v1717 = vsel %vm1653, 1, 0
          %v1718 = vsel %vm1654, 1, 0
          %v1719 = vsel %vm1655, 1, 0
          %v1720 = vsel %vm1656, 1, 0
          %v1721 = vsel %vm1657, 1, 0
          %v1722 = vsel %vm1658, 1, 0
          %v1723 = vsel %vm1659, 1, 0
          %v1724 = vsel %vm1660, 1, 0
          %v1725 = vsel %vm1661, 1, 0
          %v1726 = vsel %vm1662, 1, 0
          %v1727 = vsel %vm1663, 1, 0
          %v1728 = vsel %vm1664, 1, 0
          %v1729 = vsel %vm1665, 1, 0
          %v1730 = vsel %vm1666, 1, 0
          %v1731 = vsel %vm1667, 1, 0
          %v1732 = vsel %vm1668, 1, 0
          %v1733 = vsel %vm1669, 1, 0
          %v1734 = vsel %vm1670, 1, 0
          %v1735 = vsel %vm1671, 1, 0
          %v1736 = vsel %vm1672, 1, 0
          %v1737 = vsel %vm1673, 1, 0
          %v1738 = vsel %vm1674, 1, 0
          %v1739 = vsel %vm1675, 1, 0
          %v1740 = vsel %vm1676, 1, 0
          %v1741 = vsel %vm1677, 1, 0
          %v1742 = vsel %vm1678, 1, 0
          %v1743 = vsel %vm1679, 1, 0
          %v1744 = vsel %vm1680, 1, 0
          %v1745 = vsel %vm1681, 1, 0
          %v1746 = vsel %vm1682, 1, 0
          %v1747 = vsel %vm1683, 1, 0
          %v1748 = vsel %vm1684, 1, 0
          %v1749 = vsel %vm1685, 1, 0
          %v1750 = vsel %vm1686, 1, 0
          %v1751 = vsel %vm1687, 1, 0
          %v1752 = vsel %vm1688, 1, 0
          %v1753 = vsel %vm1689, 1, 0
          %v1754 = vsel %vm1690, 1, 0
          %v1755 = vsel %vm1691, 1, 0
          %v1756 = vsel %vm1692, 1, 0
          %v1757 = vsel %vm1693, 1, 0
          %v1758 = vsel %vm1694, 1, 0
          %v1759 = vsel %vm1695, 1, 0
          %v1760 = vsel %vm1696, 1, 0
          %v1761 = vsel %vm1697, 1, 0
          %v1762 = vsel %vm1698, 1, 0
          %v1763 = vsel %vm1699, 1, 0
          %v1764 = vsel %vm1700, 1, 0
          %v1765 = vsel %vm1701, 1, 0
          %v1766 = vsel %vm1702, 1, 0
          %v1767 = vsel %vm1703, 1, 0
          %v1768 = vsel %vm1704, 1, 0
          %v1769 = vsel %vm1705, 1, 0
          %v1770 = vsel %vm1706, 1, 0
          %v1771 = vsel %vm1707, 1, 0
          %v1772 = vsel %vm1708, 1, 0
          %vm1773 = vcmp.eq.s32.totalorder %v1709, 1
          %vm1774 = vcmp.eq.s32.totalorder %v1710, 1
          %vm1775 = vcmp.eq.s32.totalorder %v1711, 1
          %vm1776 = vcmp.eq.s32.totalorder %v1712, 1
          %vm1777 = vcmp.eq.s32.totalorder %v1713, 1
          %vm1778 = vcmp.eq.s32.totalorder %v1714, 1
          %vm1779 = vcmp.eq.s32.totalorder %v1715, 1
          %vm1780 = vcmp.eq.s32.totalorder %v1716, 1
          %vm1781 = vcmp.eq.s32.totalorder %v1717, 1
          %vm1782 = vcmp.eq.s32.totalorder %v1718, 1
          %vm1783 = vcmp.eq.s32.totalorder %v1719, 1
          %vm1784 = vcmp.eq.s32.totalorder %v1720, 1
          %vm1785 = vcmp.eq.s32.totalorder %v1721, 1
          %vm1786 = vcmp.eq.s32.totalorder %v1722, 1
          %vm1787 = vcmp.eq.s32.totalorder %v1723, 1
          %vm1788 = vcmp.eq.s32.totalorder %v1724, 1
          %vm1789 = vcmp.eq.s32.totalorder %v1725, 1
          %vm1790 = vcmp.eq.s32.totalorder %v1726, 1
          %vm1791 = vcmp.eq.s32.totalorder %v1727, 1
          %vm1792 = vcmp.eq.s32.totalorder %v1728, 1
          %vm1793 = vcmp.eq.s32.totalorder %v1729, 1
          %vm1794 = vcmp.eq.s32.totalorder %v1730, 1
          %vm1795 = vcmp.eq.s32.totalorder %v1731, 1
          %vm1796 = vcmp.eq.s32.totalorder %v1732, 1
          %vm1797 = vcmp.eq.s32.totalorder %v1733, 1
          %vm1798 = vcmp.eq.s32.totalorder %v1734, 1
          %vm1799 = vcmp.eq.s32.totalorder %v1735, 1
          %vm1800 = vcmp.eq.s32.totalorder %v1736, 1
          %vm1801 = vcmp.eq.s32.totalorder %v1737, 1
          %vm1802 = vcmp.eq.s32.totalorder %v1738, 1
          %vm1803 = vcmp.eq.s32.totalorder %v1739, 1
          %vm1804 = vcmp.eq.s32.totalorder %v1740, 1
          %vm1805 = vcmp.eq.s32.totalorder %v1741, 1
          %vm1806 = vcmp.eq.s32.totalorder %v1742, 1
          %vm1807 = vcmp.eq.s32.totalorder %v1743, 1
          %vm1808 = vcmp.eq.s32.totalorder %v1744, 1
          %vm1809 = vcmp.eq.s32.totalorder %v1745, 1
          %vm1810 = vcmp.eq.s32.totalorder %v1746, 1
          %vm1811 = vcmp.eq.s32.totalorder %v1747, 1
          %vm1812 = vcmp.eq.s32.totalorder %v1748, 1
          %vm1813 = vcmp.eq.s32.totalorder %v1749, 1
          %vm1814 = vcmp.eq.s32.totalorder %v1750, 1
          %vm1815 = vcmp.eq.s32.totalorder %v1751, 1
          %vm1816 = vcmp.eq.s32.totalorder %v1752, 1
          %vm1817 = vcmp.eq.s32.totalorder %v1753, 1
          %vm1818 = vcmp.eq.s32.totalorder %v1754, 1
          %vm1819 = vcmp.eq.s32.totalorder %v1755, 1
          %vm1820 = vcmp.eq.s32.totalorder %v1756, 1
          %vm1821 = vcmp.eq.s32.totalorder %v1757, 1
          %vm1822 = vcmp.eq.s32.totalorder %v1758, 1
          %vm1823 = vcmp.eq.s32.totalorder %v1759, 1
          %vm1824 = vcmp.eq.s32.totalorder %v1760, 1
          %vm1825 = vcmp.eq.s32.totalorder %v1761, 1
          %vm1826 = vcmp.eq.s32.totalorder %v1762, 1
          %vm1827 = vcmp.eq.s32.totalorder %v1763, 1
          %vm1828 = vcmp.eq.s32.totalorder %v1764, 1
          %vm1829 = vcmp.eq.s32.totalorder %v1765, 1
          %vm1830 = vcmp.eq.s32.totalorder %v1766, 1
          %vm1831 = vcmp.eq.s32.totalorder %v1767, 1
          %vm1832 = vcmp.eq.s32.totalorder %v1768, 1
          %vm1833 = vcmp.eq.s32.totalorder %v1769, 1
          %vm1834 = vcmp.eq.s32.totalorder %v1770, 1
          %vm1835 = vcmp.eq.s32.totalorder %v1771, 1
          %vm1836 = vcmp.eq.s32.totalorder %v1772, 1
          %v1837 = vsel %vm1773, %v1110, 0.0
          %v1838 = vsel %vm1774, %v1111, 0.0
          %v1839 = vsel %vm1775, %v1112, 0.0
          %v1840 = vsel %vm1776, %v1113, 0.0
          %v1841 = vsel %vm1777, %v1114, 0.0
          %v1842 = vsel %vm1778, %v1115, 0.0
          %v1843 = vsel %vm1779, %v1116, 0.0
          %v1844 = vsel %vm1780, %v1117, 0.0
          %v1845 = vsel %vm1781, %v1118, 0.0
          %v1846 = vsel %vm1782, %v1119, 0.0
          %v1847 = vsel %vm1783, %v1120, 0.0
          %v1848 = vsel %vm1784, %v1121, 0.0
          %v1849 = vsel %vm1785, %v1122, 0.0
          %v1850 = vsel %vm1786, %v1123, 0.0
          %v1851 = vsel %vm1787, %v1124, 0.0
          %v1852 = vsel %vm1788, %v1125, 0.0
          %v1853 = vsel %vm1789, %v1126, 0.0
          %v1854 = vsel %vm1790, %v1127, 0.0
          %v1855 = vsel %vm1791, %v1128, 0.0
          %v1856 = vsel %vm1792, %v1129, 0.0
          %v1857 = vsel %vm1793, %v1130, 0.0
          %v1858 = vsel %vm1794, %v1131, 0.0
          %v1859 = vsel %vm1795, %v1132, 0.0
          %v1860 = vsel %vm1796, %v1133, 0.0
          %v1861 = vsel %vm1797, %v1134, 0.0
          %v1862 = vsel %vm1798, %v1135, 0.0
          %v1863 = vsel %vm1799, %v1136, 0.0
          %v1864 = vsel %vm1800, %v1137, 0.0
          %v1865 = vsel %vm1801, %v1138, 0.0
          %v1866 = vsel %vm1802, %v1139, 0.0
          %v1867 = vsel %vm1803, %v1140, 0.0
          %v1868 = vsel %vm1804, %v1141, 0.0
          %v1869 = vsel %vm1805, %v1142, 0.0
          %v1870 = vsel %vm1806, %v1143, 0.0
          %v1871 = vsel %vm1807, %v1144, 0.0
          %v1872 = vsel %vm1808, %v1145, 0.0
          %v1873 = vsel %vm1809, %v1146, 0.0
          %v1874 = vsel %vm1810, %v1147, 0.0
          %v1875 = vsel %vm1811, %v1148, 0.0
          %v1876 = vsel %vm1812, %v1149, 0.0
          %v1877 = vsel %vm1813, %v1150, 0.0
          %v1878 = vsel %vm1814, %v1151, 0.0
          %v1879 = vsel %vm1815, %v1152, 0.0
          %v1880 = vsel %vm1816, %v1153, 0.0
          %v1881 = vsel %vm1817, %v1154, 0.0
          %v1882 = vsel %vm1818, %v1155, 0.0
          %v1883 = vsel %vm1819, %v1156, 0.0
          %v1884 = vsel %vm1820, %v1157, 0.0
          %v1885 = vsel %vm1821, %v1158, 0.0
          %v1886 = vsel %vm1822, %v1159, 0.0
          %v1887 = vsel %vm1823, %v1160, 0.0
          %v1888 = vsel %vm1824, %v1161, 0.0
          %v1889 = vsel %vm1825, %v1162, 0.0
          %v1890 = vsel %vm1826, %v1163, 0.0
          %v1891 = vsel %vm1827, %v1164, 0.0
          %v1892 = vsel %vm1828, %v1165, 0.0
          %v1893 = vsel %vm1829, %v1166, 0.0
          %v1894 = vsel %vm1830, %v1167, 0.0
          %v1895 = vsel %vm1831, %v1168, 0.0
          %v1896 = vsel %vm1832, %v1169, 0.0
          %v1897 = vsel %vm1833, %v1170, 0.0
          %v1898 = vsel %vm1834, %v1171, 0.0
          %v1899 = vsel %vm1835, %v1172, 0.0
          %v1900 = vsel %vm1836, %v1173, 0.0
          %v1901 = vadd.f32 %v1837, %v1838
          %v1902 = vadd.f32 %v1901, %v1839
          %v1903 = vadd.f32 %v1902, %v1840
          %v1904 = vadd.f32 %v1903, %v1841
          %v1905 = vadd.f32 %v1904, %v1842
          %v1906 = vadd.f32 %v1905, %v1843
          %v1907 = vadd.f32 %v1906, %v1844
          %v1908 = vadd.f32 %v1907, %v1845
          %v1909 = vadd.f32 %v1908, %v1846
          %v1910 = vadd.f32 %v1909, %v1847
          %v1911 = vadd.f32 %v1910, %v1848
          %v1912 = vadd.f32 %v1911, %v1849
          %v1913 = vadd.f32 %v1912, %v1850
          %v1914 = vadd.f32 %v1913, %v1851
          %v1915 = vadd.f32 %v1914, %v1852
          %v1916 = vadd.f32 %v1915, %v1853
          %v1917 = vadd.f32 %v1916, %v1854
          %v1918 = vadd.f32 %v1917, %v1855
          %v1919 = vadd.f32 %v1918, %v1856
          %v1920 = vadd.f32 %v1919, %v1857
          %v1921 = vadd.f32 %v1920, %v1858
          %v1922 = vadd.f32 %v1921, %v1859
          %v1923 = vadd.f32 %v1922, %v1860
          %v1924 = vadd.f32 %v1923, %v1861
          %v1925 = vadd.f32 %v1924, %v1862
          %v1926 = vadd.f32 %v1925, %v1863
          %v1927 = vadd.f32 %v1926, %v1864
          %v1928 = vadd.f32 %v1927, %v1865
          %v1929 = vadd.f32 %v1928, %v1866
          %v1930 = vadd.f32 %v1929, %v1867
          %v1931 = vadd.f32 %v1930, %v1868
          %v1932 = vadd.f32 %v1931, %v1869
          %v1933 = vadd.f32 %v1932, %v1870
          %v1934 = vadd.f32 %v1933, %v1871
          %v1935 = vadd.f32 %v1934, %v1872
          %v1936 = vadd.f32 %v1935, %v1873
          %v1937 = vadd.f32 %v1936, %v1874
          %v1938 = vadd.f32 %v1937, %v1875
          %v1939 = vadd.f32 %v1938, %v1876
          %v1940 = vadd.f32 %v1939, %v1877
          %v1941 = vadd.f32 %v1940, %v1878
          %v1942 = vadd.f32 %v1941, %v1879
          %v1943 = vadd.f32 %v1942, %v1880
          %v1944 = vadd.f32 %v1943, %v1881
          %v1945 = vadd.f32 %v1944, %v1882
          %v1946 = vadd.f32 %v1945, %v1883
          %v1947 = vadd.f32 %v1946, %v1884
          %v1948 = vadd.f32 %v1947, %v1885
          %v1949 = vadd.f32 %v1948, %v1886
          %v1950 = vadd.f32 %v1949, %v1887
          %v1951 = vadd.f32 %v1950, %v1888
          %v1952 = vadd.f32 %v1951, %v1889
          %v1953 = vadd.f32 %v1952, %v1890
          %v1954 = vadd.f32 %v1953, %v1891
          %v1955 = vadd.f32 %v1954, %v1892
          %v1956 = vadd.f32 %v1955, %v1893
          %v1957 = vadd.f32 %v1956, %v1894
          %v1958 = vadd.f32 %v1957, %v1895
          %v1959 = vadd.f32 %v1958, %v1896
          %v1960 = vadd.f32 %v1959, %v1897
          %v1961 = vadd.f32 %v1960, %v1898
          %v1962 = vadd.f32 %v1961, %v1899
          %v1963 = vadd.f32 %v1962, %v1900
          %v1964 = vrot.slane %v1963, 4
          %v1965 = vadd.f32 %v1963, %v1964
          %v1966 = vrot.slane %v1965, 2
          %v1967 = vadd.f32 %v1965, %v1966
          %v1968 = vrot.slane %v1967, 1
          %v1969 = vadd.f32 %v1967, %v1968
          %1970 = vst [vmem:[%s286] sm:$0x1] %v1969
          %v1971 = vmul.f32 %v1837, %v1837
          %v1972 = vmul.f32 %v1838, %v1838
          %v1973 = vmul.f32 %v1839, %v1839
          %v1974 = vmul.f32 %v1840, %v1840
          %v1975 = vmul.f32 %v1841, %v1841
          %v1976 = vmul.f32 %v1842, %v1842
          %v1977 = vmul.f32 %v1843, %v1843
          %v1978 = vmul.f32 %v1844, %v1844
          %v1979 = vmul.f32 %v1845, %v1845
          %v1980 = vmul.f32 %v1846, %v1846
          %v1981 = vmul.f32 %v1847, %v1847
          %v1982 = vmul.f32 %v1848, %v1848
          %v1983 = vmul.f32 %v1849, %v1849
          %v1984 = vmul.f32 %v1850, %v1850
          %v1985 = vmul.f32 %v1851, %v1851
          %v1986 = vmul.f32 %v1852, %v1852
          %v1987 = vmul.f32 %v1853, %v1853
          %v1988 = vmul.f32 %v1854, %v1854
          %v1989 = vmul.f32 %v1855, %v1855
          %v1990 = vmul.f32 %v1856, %v1856
          %v1991 = vmul.f32 %v1857, %v1857
          %v1992 = vmul.f32 %v1858, %v1858
          %v1993 = vmul.f32 %v1859, %v1859
          %v1994 = vmul.f32 %v1860, %v1860
          %v1995 = vmul.f32 %v1861, %v1861
          %v1996 = vmul.f32 %v1862, %v1862
          %v1997 = vmul.f32 %v1863, %v1863
          %v1998 = vmul.f32 %v1864, %v1864
          %v1999 = vmul.f32 %v1865, %v1865
          %v2000 = vmul.f32 %v1866, %v1866
          %v2001 = vmul.f32 %v1867, %v1867
          %v2002 = vmul.f32 %v1868, %v1868
          %v2003 = vmul.f32 %v1869, %v1869
          %v2004 = vmul.f32 %v1870, %v1870
          %v2005 = vmul.f32 %v1871, %v1871
          %v2006 = vmul.f32 %v1872, %v1872
          %v2007 = vmul.f32 %v1873, %v1873
          %v2008 = vmul.f32 %v1874, %v1874
          %v2009 = vmul.f32 %v1875, %v1875
          %v2010 = vmul.f32 %v1876, %v1876
          %v2011 = vmul.f32 %v1877, %v1877
          %v2012 = vmul.f32 %v1878, %v1878
          %v2013 = vmul.f32 %v1879, %v1879
          %v2014 = vmul.f32 %v1880, %v1880
          %v2015 = vmul.f32 %v1881, %v1881
          %v2016 = vmul.f32 %v1882, %v1882
          %v2017 = vmul.f32 %v1883, %v1883
          %v2018 = vmul.f32 %v1884, %v1884
          %v2019 = vmul.f32 %v1885, %v1885
          %v2020 = vmul.f32 %v1886, %v1886
          %v2021 = vmul.f32 %v1887, %v1887
          %v2022 = vmul.f32 %v1888, %v1888
          %v2023 = vmul.f32 %v1889, %v1889
          %v2024 = vmul.f32 %v1890, %v1890
          %v2025 = vmul.f32 %v1891, %v1891
          %v2026 = vmul.f32 %v1892, %v1892
          %v2027 = vmul.f32 %v1893, %v1893
          %v2028 = vmul.f32 %v1894, %v1894
          %v2029 = vmul.f32 %v1895, %v1895
          %v2030 = vmul.f32 %v1896, %v1896
          %v2031 = vmul.f32 %v1897, %v1897
          %v2032 = vmul.f32 %v1898, %v1898
          %v2033 = vmul.f32 %v1899, %v1899
          %v2034 = vmul.f32 %v1900, %v1900
          %v2035 = vadd.f32 %v1971, %v1972
          %v2036 = vadd.f32 %v2035, %v1973
          %v2037 = vadd.f32 %v2036, %v1974
          %v2038 = vadd.f32 %v2037, %v1975
          %v2039 = vadd.f32 %v2038, %v1976
          %v2040 = vadd.f32 %v2039, %v1977
          %v2041 = vadd.f32 %v2040, %v1978
          %v2042 = vadd.f32 %v2041, %v1979
          %v2043 = vadd.f32 %v2042, %v1980
          %v2044 = vadd.f32 %v2043, %v1981
          %v2045 = vadd.f32 %v2044, %v1982
          %v2046 = vadd.f32 %v2045, %v1983
          %v2047 = vadd.f32 %v2046, %v1984
          %v2048 = vadd.f32 %v2047, %v1985
          %v2049 = vadd.f32 %v2048, %v1986
          %v2050 = vadd.f32 %v2049, %v1987
          %v2051 = vadd.f32 %v2050, %v1988
          %v2052 = vadd.f32 %v2051, %v1989
          %v2053 = vadd.f32 %v2052, %v1990
          %v2054 = vadd.f32 %v2053, %v1991
          %v2055 = vadd.f32 %v2054, %v1992
          %v2056 = vadd.f32 %v2055, %v1993
          %v2057 = vadd.f32 %v2056, %v1994
          %v2058 = vadd.f32 %v2057, %v1995
          %v2059 = vadd.f32 %v2058, %v1996
          %v2060 = vadd.f32 %v2059, %v1997
          %v2061 = vadd.f32 %v2060, %v1998
          %v2062 = vadd.f32 %v2061, %v1999
          %v2063 = vadd.f32 %v2062, %v2000
          %v2064 = vadd.f32 %v2063, %v2001
          %v2065 = vadd.f32 %v2064, %v2002
          %v2066 = vadd.f32 %v2065, %v2003
          %v2067 = vadd.f32 %v2066, %v2004
          %v2068 = vadd.f32 %v2067, %v2005
          %v2069 = vadd.f32 %v2068, %v2006
          %v2070 = vadd.f32 %v2069, %v2007
          %v2071 = vadd.f32 %v2070, %v2008
          %v2072 = vadd.f32 %v2071, %v2009
          %v2073 = vadd.f32 %v2072, %v2010
          %v2074 = vadd.f32 %v2073, %v2011
          %v2075 = vadd.f32 %v2074, %v2012
          %v2076 = vadd.f32 %v2075, %v2013
          %v2077 = vadd.f32 %v2076, %v2014
          %v2078 = vadd.f32 %v2077, %v2015
          %v2079 = vadd.f32 %v2078, %v2016
          %v2080 = vadd.f32 %v2079, %v2017
          %v2081 = vadd.f32 %v2080, %v2018
          %v2082 = vadd.f32 %v2081, %v2019
          %v2083 = vadd.f32 %v2082, %v2020
          %v2084 = vadd.f32 %v2083, %v2021
          %v2085 = vadd.f32 %v2084, %v2022
          %v2086 = vadd.f32 %v2085, %v2023
          %v2087 = vadd.f32 %v2086, %v2024
          %v2088 = vadd.f32 %v2087, %v2025
          %v2089 = vadd.f32 %v2088, %v2026
          %v2090 = vadd.f32 %v2089, %v2027
          %v2091 = vadd.f32 %v2090, %v2028
          %v2092 = vadd.f32 %v2091, %v2029
          %v2093 = vadd.f32 %v2092, %v2030
          %v2094 = vadd.f32 %v2093, %v2031
          %v2095 = vadd.f32 %v2094, %v2032
          %v2096 = vadd.f32 %v2095, %v2033
          %v2097 = vadd.f32 %v2096, %v2034
          %v2098 = vrot.slane %v2097, 4
          %v2099 = vadd.f32 %v2097, %v2098
          %v2100 = vrot.slane %v2099, 2
          %v2101 = vadd.f32 %v2099, %v2100
          %v2102 = vrot.slane %v2101, 1
          %v2103 = vadd.f32 %v2101, %v2102
          %2104 = vst [vmem:[%s289] sm:$0x1] %v2103
        $region48: #{residual_block_3d.4} parent=39 // pred_fallthru
          _
      $region40: #{residual_block_3d.4} parent=31 // pred_fallthru
        _
      %s2105 = smul.u32 64, %s21
      %p2106 = scmp.lt.s32.totalorder %s2105, 127
      %s2107 = scalar_select %p2106, %s2105, 127
      %s2108 = smul.addr %s2107, 4
      %s2109 = scalar_lea.vmem %s3, %s2108
      %p2110 = scmp.lt.s32.totalorder %s21, 1
      %s2111 = scalar_select %p2110, %s21, 1
      %s2112 = scalar_lea.vmem %s4, %s2111
      %p2113 = scmp.lt.s32.totalorder %s21, 1
      %s2114 = scalar_select %p2113, %s21, 1
      %s2115 = scalar_lea.vmem %s5, %s2114
      // Predicated region
      $region49: #{residual_block_3d.4} parent=31 // pred_check
        %p2116 = pneg %p122
      $region50: #{residual_block_3d.4} parent=31 // pred_check_branch
        %2118 = sbr.rel (%p2116) target = $region52
      $region51: #{residual_block_3d.4} parent=31 // pred_region
        %s2119 = smul.u32 64, %s21
      $region52: #{residual_block_3d.4} parent=31 // pred_fallthru
        _
      // Predicated region
      $region53: #{residual_block_3d.4} parent=31 // pred_check
        %p2120 = pneg %p148
      $region54: #{residual_block_3d.4} parent=31 // pred_check_branch
        %2122 = sbr.rel (%p2120) target = $region56
      $region55: #{residual_block_3d.4} parent=31 // pred_region
        _
      $region56: #{residual_block_3d.4} parent=31 // pred_fallthru
        _
      // Predicated region
      $region57: #{residual_block_3d.4} parent=31 // pred_check
        %p2123 = pneg %p174
      $region58: #{residual_block_3d.4} parent=31 // pred_check_branch
        %2125 = sbr.rel (%p2123) target = $region60
      $region59: #{residual_block_3d.4} parent=31 // pred_region
        _
      $region60: #{residual_block_3d.4} parent=31 // pred_fallthru
        _
    $region32: #{residual_block_3d.4} parent=5 // pred_fallthru
      _
    %p2126 = scmp.le.s32.totalorder 2, %s12
    // Predicated region
    $region61: #{residual_block_3d.4} parent=5 // pred_check
      %p2127 = pneg %p2126
    $region62: #{residual_block_3d.4} parent=5 // pred_check_branch
      %2129 = sbr.rel (%p2127) target = $region64
    $region63: #{residual_block_3d.4} parent=5 // pred_region
      %s2130 = ssub.s32 %s12, 2
      // Predicated region
      $region65: #{residual_block_3d.4} parent=63 // pred_check
        %p2131 = pneg %p128
      $region66: #{residual_block_3d.4} parent=63 // pred_check_branch
        %2133 = sbr.rel (%p2131) target = $region68
      $region67: #{residual_block_3d.4} parent=63 // pred_region
        %s2134 = smul.u32 64, %s23
        %p2135 = scmp.lt.s32.totalorder %s2134, 127
        %s2136 = scalar_select %p2135, %s2134, 127
        %s2137 = smul.addr %s2136, 4
        %s2138 = scalar_lea.vmem %s3, %s2137
      $region68: #{residual_block_3d.4} parent=63 // pred_fallthru
        _
      // Predicated region
      $region69: #{residual_block_3d.4} parent=63 // pred_check
        %p2139 = pneg %p154
      $region70: #{residual_block_3d.4} parent=63 // pred_check_branch
        %2141 = sbr.rel (%p2139) target = $region72
      $region71: #{residual_block_3d.4} parent=63 // pred_region
        %p2142 = scmp.lt.s32.totalorder %s23, 1
        %s2143 = scalar_select %p2142, %s23, 1
        %s2144 = scalar_lea.vmem %s4, %s2143
      $region72: #{residual_block_3d.4} parent=63 // pred_fallthru
        _
      // Predicated region
      $region73: #{residual_block_3d.4} parent=63 // pred_check
        %p2145 = pneg %p180
      $region74: #{residual_block_3d.4} parent=63 // pred_check_branch
        %2147 = sbr.rel (%p2145) target = $region76
      $region75: #{residual_block_3d.4} parent=63 // pred_region
        %p2148 = scmp.lt.s32.totalorder %s23, 1
        %s2149 = scalar_select %p2148, %s23, 1
        %s2150 = scalar_lea.vmem %s5, %s2149
      $region76: #{residual_block_3d.4} parent=63 // pred_fallthru
        _
    $region64: #{residual_block_3d.4} parent=5 // pred_fallthru
      _
  $region6: #{residual_block_3d.4} parent=0 // loop_footer
    %s16 = sadd.s32 1, %s12
  $region7: #{residual_block_3d.4} parent=0 // loop_footer_branch
    %11 = sbr.rel target = $region3
  $region8: #{residual_block_3d.4} parent=0 // loop_exit
    _

// kernel: residual_block_3d.7
$region0: #{residual_block_3d.7}
  #allocation0 [shape = 'u32[]', space=smem, size = 0x4, offset = 0x4, fixed_abs, tag = 'smem constant byte address 0x4 - core index']
  #allocation1 [shape = 'u32[72,128]{1,0:T(1,128)}', space=vmem, size = 0x9000, scoped, tag = 'internal scratch']
  %s0 = inlined_call_operand.vmem [shape: bf16[1024,128], index: 0, kind: input, shape index: {}]
  %s1 = inlined_call_operand.vmem [shape: bf16[1024,128], index: 1, kind: input, shape index: {}]
  %s2 = inlined_call_operand.vmem [shape: f32[1,128], index: 2, kind: input, shape index: {}]
  %s3 = inlined_call_operand.vmem [shape: f32[1,128], index: 3, kind: input, shape index: {}]
  %s4 = inlined_call_operand.vmem [shape: f32[1,128], index: 4, kind: input, shape index: {}]
  %s5 = inlined_call_operand.vmem [shape: f32[1,128], index: 5, kind: input, shape index: {}]
  %s6 = inlined_call_operand.vmem [shape: f32[1024,128], index: 6, kind: output, shape index: {}]
  %s7 = sld [smem:[#allocation0]]
  $region57: #{residual_block_3d.7} parent=0
    _
  %s9 = ssub.s32 1, %s7
  %s10 = scalar_select 0, %s9, %s7
  loop: start=0, step=1, limit=4
  $region2: #{residual_block_3d.7} parent=0 // loop_pre_header
    _
  $region3: #{residual_block_3d.7} parent=0 // loop_header
    %s12 = sphi 0, %s16
    %p13 = scmp.ge.s32.totalorder %s12, 4
    %s22 = sphi 0, %s24
    %s25 = sphi 0, %s22
    %s26 = sphi 0, %s25
    %s42 = sphi 0, %s26
    %s48 = sphi 0, %s50
    %s51 = sphi 0, %s48
    %s52 = sphi 0, %s51
    %s68 = sphi 0, %s52
    %s72 = sphi 0, %s72
    %s74 = sphi 0, %s72
    %s75 = sphi 0, %s74
    %s89 = sphi 0, %s75
    %s93 = sphi 0, %s93
    %s95 = sphi 0, %s93
    %s96 = sphi 0, %s95
    %s110 = sphi 0, %s96
    %s114 = sphi 0, %s114
    %s116 = sphi 0, %s114
    %s117 = sphi 0, %s116
    %s131 = sphi 0, %s117
    %s135 = sphi 0, %s135
    %s137 = sphi 0, %s135
    %s138 = sphi 0, %s137
    %s152 = sphi 0, %s138
    %s158 = sphi 0, %s160
    %s161 = sphi 0, %s158
    %s162 = sphi 0, %s161
    %s178 = sphi 0, %s162
  $region4: #{residual_block_3d.7} parent=0 // loop_header_branch
    %15 = sbr.rel (%p13) target = $region8
  $region5: #{residual_block_3d.7} parent=0 // loop_body
    %s17 = ssub.s32 %s12, 1
    %s18 = ssub.s32 %s12, 2
    %s19 = sadd.s32 %s12, 1
    %s20 = ssub.s32 %s12, %s19
    %p21 = scmp.eq.s32.totalorder %s20, 0
    %s23 = sadd.s32 %s22, 1
    %s24 = scalar_select %p21, %s22, %s23
    %p27 = pneg %p21
    %p28 = scmp.eq.s32.totalorder %s12, 1
    %p29 = por %p27, %p28
    %p30 = scmp.ne.s32.totalorder %s22, %s25
    %p31 = scmp.eq.s32.totalorder %s12, 0
    %p32 = por %p30, %p31
    %p33 = scmp.ne.s32.totalorder %s22, %s25
    %p34 = scmp.eq.s32.totalorder %s17, 1
    %p35 = por %p33, %p34
    %p36 = scmp.ne.s32.totalorder %s25, %s26
    %p37 = scmp.eq.s32.totalorder %s17, 0
    %p38 = por %p36, %p37
    %p39 = scmp.ne.s32.totalorder %s25, %s26
    %p40 = scmp.eq.s32.totalorder %s18, 1
    %p41 = por %p39, %p40
    %p43 = scmp.ne.s32.totalorder %s26, %s42
    %p44 = scmp.eq.s32.totalorder %s18, 0
    %p45 = por %p43, %p44
    %s46 = ssub.s32 %s12, %s19
    %p47 = scmp.eq.s32.totalorder %s46, 0
    %s49 = sadd.s32 %s48, 1
    %s50 = scalar_select %p47, %s48, %s49
    %p53 = pneg %p47
    %p54 = scmp.eq.s32.totalorder %s12, 1
    %p55 = por %p53, %p54
    %p56 = scmp.ne.s32.totalorder %s48, %s51
    %p57 = scmp.eq.s32.totalorder %s12, 0
    %p58 = por %p56, %p57
    %p59 = scmp.ne.s32.totalorder %s48, %s51
    %p60 = scmp.eq.s32.totalorder %s17, 1
    %p61 = por %p59, %p60
    %p62 = scmp.ne.s32.totalorder %s51, %s52
    %p63 = scmp.eq.s32.totalorder %s17, 0
    %p64 = por %p62, %p63
    %p65 = scmp.ne.s32.totalorder %s51, %s52
    %p66 = scmp.eq.s32.totalorder %s18, 1
    %p67 = por %p65, %p66
    %p69 = scmp.ne.s32.totalorder %s52, %s68
    %p70 = scmp.eq.s32.totalorder %s18, 0
    %p71 = por %p69, %p70
    %s73 = sadd.s32 %s72, 1
    %p76 = scmp.eq.s32.totalorder %s12, 1
    %p77 = scmp.ne.s32.totalorder %s72, %s74
    %p78 = scmp.eq.s32.totalorder %s12, 0
    %p79 = por %p77, %p78
    %p80 = scmp.ne.s32.totalorder %s72, %s74
    %p81 = scmp.eq.s32.totalorder %s17, 1
    %p82 = por %p80, %p81
    %p83 = scmp.ne.s32.totalorder %s74, %s75
    %p84 = scmp.eq.s32.totalorder %s17, 0
    %p85 = por %p83, %p84
    %p86 = scmp.ne.s32.totalorder %s74, %s75
    %p87 = scmp.eq.s32.totalorder %s18, 1
    %p88 = por %p86, %p87
    %p90 = scmp.ne.s32.totalorder %s75, %s89
    %p91 = scmp.eq.s32.totalorder %s18, 0
    %p92 = por %p90, %p91
    %s94 = sadd.s32 %s93, 1
    %p97 = scmp.eq.s32.totalorder %s12, 1
    %p98 = scmp.ne.s32.totalorder %s93, %s95
    %p99 = scmp.eq.s32.totalorder %s12, 0
    %p100 = por %p98, %p99
    %p101 = scmp.ne.s32.totalorder %s93, %s95
    %p102 = scmp.eq.s32.totalorder %s17, 1
    %p103 = por %p101, %p102
    %p104 = scmp.ne.s32.totalorder %s95, %s96
    %p105 = scmp.eq.s32.totalorder %s17, 0
    %p106 = por %p104, %p105
    %p107 = scmp.ne.s32.totalorder %s95, %s96
    %p108 = scmp.eq.s32.totalorder %s18, 1
    %p109 = por %p107, %p108
    %p111 = scmp.ne.s32.totalorder %s96, %s110
    %p112 = scmp.eq.s32.totalorder %s18, 0
    %p113 = por %p111, %p112
    %s115 = sadd.s32 %s114, 1
    %p118 = scmp.eq.s32.totalorder %s12, 1
    %p119 = scmp.ne.s32.totalorder %s114, %s116
    %p120 = scmp.eq.s32.totalorder %s12, 0
    %p121 = por %p119, %p120
    %p122 = scmp.ne.s32.totalorder %s114, %s116
    %p123 = scmp.eq.s32.totalorder %s17, 1
    %p124 = por %p122, %p123
    %p125 = scmp.ne.s32.totalorder %s116, %s117
    %p126 = scmp.eq.s32.totalorder %s17, 0
    %p127 = por %p125, %p126
    %p128 = scmp.ne.s32.totalorder %s116, %s117
    %p129 = scmp.eq.s32.totalorder %s18, 1
    %p130 = por %p128, %p129
    %p132 = scmp.ne.s32.totalorder %s117, %s131
    %p133 = scmp.eq.s32.totalorder %s18, 0
    %p134 = por %p132, %p133
    %s136 = sadd.s32 %s135, 1
    %p139 = scmp.eq.s32.totalorder %s12, 1
    %p140 = scmp.ne.s32.totalorder %s135, %s137
    %p141 = scmp.eq.s32.totalorder %s12, 0
    %p142 = por %p140, %p141
    %p143 = scmp.ne.s32.totalorder %s135, %s137
    %p144 = scmp.eq.s32.totalorder %s17, 1
    %p145 = por %p143, %p144
    %p146 = scmp.ne.s32.totalorder %s137, %s138
    %p147 = scmp.eq.s32.totalorder %s17, 0
    %p148 = por %p146, %p147
    %p149 = scmp.ne.s32.totalorder %s137, %s138
    %p150 = scmp.eq.s32.totalorder %s18, 1
    %p151 = por %p149, %p150
    %p153 = scmp.ne.s32.totalorder %s138, %s152
    %p154 = scmp.eq.s32.totalorder %s18, 0
    %p155 = por %p153, %p154
    %s156 = ssub.s32 %s12, %s19
    %p157 = scmp.eq.s32.totalorder %s156, 0
    %s159 = sadd.s32 %s158, 1
    %s160 = scalar_select %p157, %s158, %s159
    %p163 = pneg %p157
    %p164 = scmp.eq.s32.totalorder %s12, 1
    %p165 = por %p163, %p164
    %p166 = scmp.ne.s32.totalorder %s158, %s161
    %p167 = scmp.eq.s32.totalorder %s12, 0
    %p168 = por %p166, %p167
    %p169 = scmp.ne.s32.totalorder %s158, %s161
    %p170 = scmp.eq.s32.totalorder %s17, 1
    %p171 = por %p169, %p170
    %p172 = scmp.ne.s32.totalorder %s161, %s162
    %p173 = scmp.eq.s32.totalorder %s17, 0
    %p174 = por %p172, %p173
    %p175 = scmp.ne.s32.totalorder %s161, %s162
    %p176 = scmp.eq.s32.totalorder %s18, 1
    %p177 = por %p175, %p176
    %p179 = scmp.ne.s32.totalorder %s162, %s178
    %p180 = scmp.eq.s32.totalorder %s18, 0
    %p181 = por %p179, %p180
    %p182 = scmp.le.s32.totalorder 1, %s12
    %p183 = scmp.lt.s32.totalorder %s12, 3
    %p184 = pnand %p182, %p183
    %p185 = pneg %p184
    // Predicated region
    $region9: #{residual_block_3d.7} parent=5 // pred_check
      _
    $region10: #{residual_block_3d.7} parent=5 // pred_check_branch
      %187 = sbr.rel (%p184) target = $region12
    $region11: #{residual_block_3d.7} parent=5 // pred_region
      %s188 = ssub.s32 %s12, 1
      // Predicated region
      $region13: #{residual_block_3d.7} parent=11 // pred_check
        %p189 = pneg %p85
      $region14: #{residual_block_3d.7} parent=11 // pred_check_branch
        %191 = sbr.rel (%p189) target = $region16
      $region15: #{residual_block_3d.7} parent=11 // pred_region
        _
      $region16: #{residual_block_3d.7} parent=11 // pred_fallthru
        _
      // Predicated region
      $region17: #{residual_block_3d.7} parent=11 // pred_check
        %p192 = pneg %p106
      $region18: #{residual_block_3d.7} parent=11 // pred_check_branch
        %194 = sbr.rel (%p192) target = $region20
      $region19: #{residual_block_3d.7} parent=11 // pred_region
        _
      $region20: #{residual_block_3d.7} parent=11 // pred_fallthru
        _
      // Predicated region
      $region21: #{residual_block_3d.7} parent=11 // pred_check
        %p195 = pneg %p127
      $region22: #{residual_block_3d.7} parent=11 // pred_check_branch
        %197 = sbr.rel (%p195) target = $region24
      $region23: #{residual_block_3d.7} parent=11 // pred_region
        _
      $region24: #{residual_block_3d.7} parent=11 // pred_fallthru
        _
      // Predicated region
      $region25: #{residual_block_3d.7} parent=11 // pred_check
        %p198 = pneg %p148
      $region26: #{residual_block_3d.7} parent=11 // pred_check_branch
        %200 = sbr.rel (%p198) target = $region28
      $region27: #{residual_block_3d.7} parent=11 // pred_region
        _
      $region28: #{residual_block_3d.7} parent=11 // pred_fallthru
        _
    $region12: #{residual_block_3d.7} parent=5 // pred_fallthru
      _
    %p201 = scmp.lt.s32.totalorder %s12, 2
    // Predicated region
    $region29: #{residual_block_3d.7} parent=5 // pred_check
      %p202 = pneg %p201
    $region30: #{residual_block_3d.7} parent=5 // pred_check_branch
      %204 = sbr.rel (%p202) target = $region32
    $region31: #{residual_block_3d.7} parent=5 // pred_region
      // Predicated region
      $region33: #{residual_block_3d.7} parent=31 // pred_check
        %p205 = pneg %p32
      $region34: #{residual_block_3d.7} parent=31 // pred_check_branch
        %207 = sbr.rel (%p205) target = $region36
      $region35: #{residual_block_3d.7} parent=31 // pred_region
        %s208 = smul.u32 64, %s12
        %p209 = scmp.lt.s32.totalorder %s208, 127
        %s210 = scalar_select %p209, %s208, 127
        %s211 = smul.addr %s210, 4
        %s212 = scalar_lea.vmem %s0, %s211
        %s213 = smul.u32 64, %s12
      $region36: #{residual_block_3d.7} parent=31 // pred_fallthru
        _
      // Predicated region
      $region37: #{residual_block_3d.7} parent=31 // pred_check
        %p214 = pneg %p58
      $region38: #{residual_block_3d.7} parent=31 // pred_check_branch
        %216 = sbr.rel (%p214) target = $region40
      $region39: #{residual_block_3d.7} parent=31 // pred_region
        %s217 = smul.u32 64, %s12
        %p218 = scmp.lt.s32.totalorder %s217, 127
        %s219 = scalar_select %p218, %s217, 127
        %s220 = smul.addr %s219, 4
        %s221 = scalar_lea.vmem %s1, %s220
        %s222 = smul.u32 64, %s12
      $region40: #{residual_block_3d.7} parent=31 // pred_fallthru
        _
    $region32: #{residual_block_3d.7} parent=5 // pred_fallthru
      _
    %p223 = scmp.le.s32.totalorder 1, %s12
    %p224 = scmp.lt.s32.totalorder %s12, 3
    %p225 = pnand %p223, %p224
    %p226 = pneg %p225
    // Predicated region
    $region41: #{residual_block_3d.7} parent=5 // pred_check
      _
    $region42: #{residual_block_3d.7} parent=5 // pred_check_branch
      %228 = sbr.rel (%p225) target = $region44
    $region43: #{residual_block_3d.7} parent=5 // pred_region
      %s229 = ssub.s32 %s12, 1
      %s230 = smul.u32 64, %s17
      %p231 = scmp.lt.s32.totalorder %s230, 127
      %s232 = scalar_select %p231, %s230, 127
      %s233 = smul.addr %s232, 4
      %s234 = scalar_lea.vmem %s0, %s233
      %p235 = pneg %p38
      %p236 = pneg %p35
      %s237 = smul.u32 64, %s17
      %p238 = scmp.lt.s32.totalorder %s237, 127
      %s239 = scalar_select %p238, %s237, 127
      %s240 = smul.addr %s239, 4
      %s241 = scalar_lea.vmem %s1, %s240
      %p242 = pneg %p64
      %p243 = pneg %p61
      %p244 = pneg %p85
      %p245 = pneg %p82
      %p246 = pneg %p106
      %p247 = pneg %p103
      %p248 = pneg %p127
      %p249 = pneg %p124
      %p250 = pneg %p148
      %p251 = pneg %p145
      %p252 = pneg %p174
      %p253 = pneg %p171
      %s254 = smul.u32 64, %s17
      %p255 = scmp.lt.s32.totalorder %s254, 127
      %s256 = scalar_select %p255, %s254, 127
      %s257 = smul.addr %s256, 8
      %s258 = scalar_lea.vmem %s6, %s257
      %s259 = smul.u32 64, %s17
      %p260 = scmp.lt.s32.totalorder %s259, 127
      %s261 = scalar_select %p260, %s259, 127
      %s262 = smul.addr %s261, 4
      %s263 = scalar_lea.vmem %s0, %s262
      %s264 = smul.u32 64, %s17
      %s265 = smul.u32 64, %s17
      %p266 = scmp.lt.s32.totalorder %s265, 127
      %s267 = scalar_select %p266, %s265, 127
      %s268 = smul.addr %s267, 4
      %s269 = scalar_lea.vmem %s1, %s268
      %s270 = smul.u32 64, %s17
      %s271 = smul.u32 64, %s17
      %p272 = scmp.lt.s32.totalorder %s271, 127
      %s273 = scalar_select %p272, %s271, 127
      %s274 = smul.addr %s273, 8
      %s275 = scalar_lea.vmem %s6, %s274
      %s276 = smul.u32 64, %s17
      %v277 = vld [vmem:[%s263] sm:$0xf]
      %v278 = vld [vmem:[%s263 + $0x4] sm:$0xf]
      %v279 = vld [vmem:[%s263 + $0x8] sm:$0xf]
      %v280 = vld [vmem:[%s263 + $0xc] sm:$0xf]
      %v281 = vld [vmem:[%s263 + $0x10] sm:$0xf]
      %v282 = vld [vmem:[%s263 + $0x14] sm:$0xf]
      %v283 = vld [vmem:[%s263 + $0x18] sm:$0xf]
      %v284 = vld [vmem:[%s263 + $0x1c] sm:$0xf]
      %v285 = vld [vmem:[%s263 + $0x20] sm:$0xf]
      %v286 = vld [vmem:[%s263 + $0x24] sm:$0xf]
      %v287 = vld [vmem:[%s263 + $0x28] sm:$0xf]
      %v288 = vld [vmem:[%s263 + $0x2c] sm:$0xf]
      %v289 = vld [vmem:[%s263 + $0x30] sm:$0xf]
      %v290 = vld [vmem:[%s263 + $0x34] sm:$0xf]
      %v291 = vld [vmem:[%s263 + $0x38] sm:$0xf]
      %v292 = vld [vmem:[%s263 + $0x3c] sm:$0xf]
      %v293 = vld [vmem:[%s263 + $0x40] sm:$0xf]
      %v294 = vld [vmem:[%s263 + $0x44] sm:$0xf]
      %v295 = vld [vmem:[%s263 + $0x48] sm:$0xf]
      %v296 = vld [vmem:[%s263 + $0x4c] sm:$0xf]
      %v297 = vld [vmem:[%s263 + $0x50] sm:$0xf]
      %v298 = vld [vmem:[%s263 + $0x54] sm:$0xf]
      %v299 = vld [vmem:[%s263 + $0x58] sm:$0xf]
      %v300 = vld [vmem:[%s263 + $0x5c] sm:$0xf]
      %v301 = vld [vmem:[%s263 + $0x60] sm:$0xf]
      %v302 = vld [vmem:[%s263 + $0x64] sm:$0xf]
      %v303 = vld [vmem:[%s263 + $0x68] sm:$0xf]
      %v304 = vld [vmem:[%s263 + $0x6c] sm:$0xf]
      %v305 = vld [vmem:[%s263 + $0x70] sm:$0xf]
      %v306 = vld [vmem:[%s263 + $0x74] sm:$0xf]
      %v307 = vld [vmem:[%s263 + $0x78] sm:$0xf]
      %v308 = vld [vmem:[%s263 + $0x7c] sm:$0xf]
      %v309 = vld [vmem:[%s263 + $0x80] sm:$0xf]
      %v310 = vld [vmem:[%s263 + $0x84] sm:$0xf]
      %v311 = vld [vmem:[%s263 + $0x88] sm:$0xf]
      %v312 = vld [vmem:[%s263 + $0x8c] sm:$0xf]
      %v313 = vld [vmem:[%s263 + $0x90] sm:$0xf]
      %v314 = vld [vmem:[%s263 + $0x94] sm:$0xf]
      %v315 = vld [vmem:[%s263 + $0x98] sm:$0xf]
      %v316 = vld [vmem:[%s263 + $0x9c] sm:$0xf]
      %v317 = vld [vmem:[%s263 + $0xa0] sm:$0xf]
      %v318 = vld [vmem:[%s263 + $0xa4] sm:$0xf]
      %v319 = vld [vmem:[%s263 + $0xa8] sm:$0xf]
      %v320 = vld [vmem:[%s263 + $0xac] sm:$0xf]
      %v321 = vld [vmem:[%s263 + $0xb0] sm:$0xf]
      %v322 = vld [vmem:[%s263 + $0xb4] sm:$0xf]
      %v323 = vld [vmem:[%s263 + $0xb8] sm:$0xf]
      %v324 = vld [vmem:[%s263 + $0xbc] sm:$0xf]
      %v325 = vld [vmem:[%s263 + $0xc0] sm:$0xf]
      %v326 = vld [vmem:[%s263 + $0xc4] sm:$0xf]
      %v327 = vld [vmem:[%s263 + $0xc8] sm:$0xf]
      %v328 = vld [vmem:[%s263 + $0xcc] sm:$0xf]
      %v329 = vld [vmem:[%s263 + $0xd0] sm:$0xf]
      %v330 = vld [vmem:[%s263 + $0xd4] sm:$0xf]
      %v331 = vld [vmem:[%s263 + $0xd8] sm:$0xf]
      %v332 = vld [vmem:[%s263 + $0xdc] sm:$0xf]
      %v333 = vld [vmem:[%s263 + $0xe0] sm:$0xf]
      %v334 = vld [vmem:[%s263 + $0xe4] sm:$0xf]
      %v335 = vld [vmem:[%s263 + $0xe8] sm:$0xf]
      %v336 = vld [vmem:[%s263 + $0xec] sm:$0xf]
      %v337 = vld [vmem:[%s263 + $0xf0] sm:$0xf]
      %v338 = vld [vmem:[%s263 + $0xf4] sm:$0xf]
      %v339 = vld [vmem:[%s263 + $0xf8] sm:$0xf]
      %v340 = vld [vmem:[%s263 + $0xfc] sm:$0xf]
      %v341 = vunpack.c.l.bf16 %v277
      %v342 = vunpack.c.l.bf16 %v278
      %v343 = vunpack.c.l.bf16 %v279
      %v344 = vunpack.c.l.bf16 %v280
      %v345 = vunpack.c.l.bf16 %v281
      %v346 = vunpack.c.l.bf16 %v282
      %v347 = vunpack.c.l.bf16 %v283
      %v348 = vunpack.c.l.bf16 %v284
      %v349 = vunpack.c.l.bf16 %v285
      %v350 = vunpack.c.l.bf16 %v286
      %v351 = vunpack.c.l.bf16 %v287
      %v352 = vunpack.c.l.bf16 %v288
      %v353 = vunpack.c.l.bf16 %v289
      %v354 = vunpack.c.l.bf16 %v290
      %v355 = vunpack.c.l.bf16 %v291
      %v356 = vunpack.c.l.bf16 %v292
      %v357 = vunpack.c.l.bf16 %v293
      %v358 = vunpack.c.l.bf16 %v294
      %v359 = vunpack.c.l.bf16 %v295
      %v360 = vunpack.c.l.bf16 %v296
      %v361 = vunpack.c.l.bf16 %v297
      %v362 = vunpack.c.l.bf16 %v298
      %v363 = vunpack.c.l.bf16 %v299
      %v364 = vunpack.c.l.bf16 %v300
      %v365 = vunpack.c.l.bf16 %v301
      %v366 = vunpack.c.l.bf16 %v302
      %v367 = vunpack.c.l.bf16 %v303
      %v368 = vunpack.c.l.bf16 %v304
      %v369 = vunpack.c.l.bf16 %v305
      %v370 = vunpack.c.l.bf16 %v306
      %v371 = vunpack.c.l.bf16 %v307
      %v372 = vunpack.c.l.bf16 %v308
      %v373 = vunpack.c.l.bf16 %v309
      %v374 = vunpack.c.l.bf16 %v310
      %v375 = vunpack.c.l.bf16 %v311
      %v376 = vunpack.c.l.bf16 %v312
      %v377 = vunpack.c.l.bf16 %v313
      %v378 = vunpack.c.l.bf16 %v314
      %v379 = vunpack.c.l.bf16 %v315
      %v380 = vunpack.c.l.bf16 %v316
      %v381 = vunpack.c.l.bf16 %v317
      %v382 = vunpack.c.l.bf16 %v318
      %v383 = vunpack.c.l.bf16 %v319
      %v384 = vunpack.c.l.bf16 %v320
      %v385 = vunpack.c.l.bf16 %v321
      %v386 = vunpack.c.l.bf16 %v322
      %v387 = vunpack.c.l.bf16 %v323
      %v388 = vunpack.c.l.bf16 %v324
      %v389 = vunpack.c.l.bf16 %v325
      %v390 = vunpack.c.l.bf16 %v326
      %v391 = vunpack.c.l.bf16 %v327
      %v392 = vunpack.c.l.bf16 %v328
      %v393 = vunpack.c.l.bf16 %v329
      %v394 = vunpack.c.l.bf16 %v330
      %v395 = vunpack.c.l.bf16 %v331
      %v396 = vunpack.c.l.bf16 %v332
      %v397 = vunpack.c.l.bf16 %v333
      %v398 = vunpack.c.l.bf16 %v334
      %v399 = vunpack.c.l.bf16 %v335
      %v400 = vunpack.c.l.bf16 %v336
      %v401 = vunpack.c.l.bf16 %v337
      %v402 = vunpack.c.l.bf16 %v338
      %v403 = vunpack.c.l.bf16 %v339
      %v404 = vunpack.c.l.bf16 %v340
      %v405 = vld [vmem:[%s2] sm:$0x1]
      %v407 = vperm.slane %v405, 0
      %v409 = vmul.f32 %v341, %v407
      %v410 = vmul.f32 %v342, %v407
      %v411 = vmul.f32 %v343, %v407
      %v412 = vmul.f32 %v344, %v407
      %v413 = vmul.f32 %v345, %v407
      %v414 = vmul.f32 %v346, %v407
      %v415 = vmul.f32 %v347, %v407
      %v416 = vmul.f32 %v348, %v407
      %v417 = vmul.f32 %v349, %v407
      %v418 = vmul.f32 %v350, %v407
      %v419 = vmul.f32 %v351, %v407
      %v420 = vmul.f32 %v352, %v407
      %v421 = vmul.f32 %v353, %v407
      %v422 = vmul.f32 %v354, %v407
      %v423 = vmul.f32 %v355, %v407
      %v424 = vmul.f32 %v356, %v407
      %v425 = vmul.f32 %v357, %v407
      %v426 = vmul.f32 %v358, %v407
      %v427 = vmul.f32 %v359, %v407
      %v428 = vmul.f32 %v360, %v407
      %v429 = vmul.f32 %v361, %v407
      %v430 = vmul.f32 %v362, %v407
      %v431 = vmul.f32 %v363, %v407
      %v432 = vmul.f32 %v364, %v407
      %v433 = vmul.f32 %v365, %v407
      %v434 = vmul.f32 %v366, %v407
      %v435 = vmul.f32 %v367, %v407
      %v436 = vmul.f32 %v368, %v407
      %v437 = vmul.f32 %v369, %v407
      %v438 = vmul.f32 %v370, %v407
      %v439 = vmul.f32 %v371, %v407
      %v440 = vmul.f32 %v372, %v407
      %v441 = vmul.f32 %v373, %v407
      %v442 = vmul.f32 %v374, %v407
      %v443 = vmul.f32 %v375, %v407
      %v444 = vmul.f32 %v376, %v407
      %v445 = vmul.f32 %v377, %v407
      %v446 = vmul.f32 %v378, %v407
      %v447 = vmul.f32 %v379, %v407
      %v448 = vmul.f32 %v380, %v407
      %v449 = vmul.f32 %v381, %v407
      %v450 = vmul.f32 %v382, %v407
      %v451 = vmul.f32 %v383, %v407
      %v452 = vmul.f32 %v384, %v407
      %v453 = vmul.f32 %v385, %v407
      %v454 = vmul.f32 %v386, %v407
      %v455 = vmul.f32 %v387, %v407
      %v456 = vmul.f32 %v388, %v407
      %v457 = vmul.f32 %v389, %v407
      %v458 = vmul.f32 %v390, %v407
      %v459 = vmul.f32 %v391, %v407
      %v460 = vmul.f32 %v392, %v407
      %v461 = vmul.f32 %v393, %v407
      %v462 = vmul.f32 %v394, %v407
      %v463 = vmul.f32 %v395, %v407
      %v464 = vmul.f32 %v396, %v407
      %v465 = vmul.f32 %v397, %v407
      %v466 = vmul.f32 %v398, %v407
      %v467 = vmul.f32 %v399, %v407
      %v468 = vmul.f32 %v400, %v407
      %v469 = vmul.f32 %v401, %v407
      %v470 = vmul.f32 %v402, %v407
      %v471 = vmul.f32 %v403, %v407
      %v472 = vmul.f32 %v404, %v407
      %v473 = vld [vmem:[%s3] sm:$0x1]
      %v475 = vperm.slane %v473, 0
      %v477 = vadd.f32 %v409, %v475
      %v478 = vadd.f32 %v410, %v475
      %v479 = vadd.f32 %v411, %v475
      %v480 = vadd.f32 %v412, %v475
      %v481 = vadd.f32 %v413, %v475
      %v482 = vadd.f32 %v414, %v475
      %v483 = vadd.f32 %v415, %v475
      %v484 = vadd.f32 %v416, %v475
      %v485 = vadd.f32 %v417, %v475
      %v486 = vadd.f32 %v418, %v475
      %v487 = vadd.f32 %v419, %v475
      %v488 = vadd.f32 %v420, %v475
      %v489 = vadd.f32 %v421, %v475
      %v490 = vadd.f32 %v422, %v475
      %v491 = vadd.f32 %v423, %v475
      %v492 = vadd.f32 %v424, %v475
      %v493 = vadd.f32 %v425, %v475
      %v494 = vadd.f32 %v426, %v475
      %v495 = vadd.f32 %v427, %v475
      %v496 = vadd.f32 %v428, %v475
      %v497 = vadd.f32 %v429, %v475
      %v498 = vadd.f32 %v430, %v475
      %v499 = vadd.f32 %v431, %v475
      %v500 = vadd.f32 %v432, %v475
      %v501 = vadd.f32 %v433, %v475
      %v502 = vadd.f32 %v434, %v475
      %v503 = vadd.f32 %v435, %v475
      %v504 = vadd.f32 %v436, %v475
      %v505 = vadd.f32 %v437, %v475
      %v506 = vadd.f32 %v438, %v475
      %v507 = vadd.f32 %v439, %v475
      %v508 = vadd.f32 %v440, %v475
      %v509 = vadd.f32 %v441, %v475
      %v510 = vadd.f32 %v442, %v475
      %v511 = vadd.f32 %v443, %v475
      %v512 = vadd.f32 %v444, %v475
      %v513 = vadd.f32 %v445, %v475
      %v514 = vadd.f32 %v446, %v475
      %v515 = vadd.f32 %v447, %v475
      %v516 = vadd.f32 %v448, %v475
      %v517 = vadd.f32 %v449, %v475
      %v518 = vadd.f32 %v450, %v475
      %v519 = vadd.f32 %v451, %v475
      %v520 = vadd.f32 %v452, %v475
      %v521 = vadd.f32 %v453, %v475
      %v522 = vadd.f32 %v454, %v475
      %v523 = vadd.f32 %v455, %v475
      %v524 = vadd.f32 %v456, %v475
      %v525 = vadd.f32 %v457, %v475
      %v526 = vadd.f32 %v458, %v475
      %v527 = vadd.f32 %v459, %v475
      %v528 = vadd.f32 %v460, %v475
      %v529 = vadd.f32 %v461, %v475
      %v530 = vadd.f32 %v462, %v475
      %v531 = vadd.f32 %v463, %v475
      %v532 = vadd.f32 %v464, %v475
      %v533 = vadd.f32 %v465, %v475
      %v534 = vadd.f32 %v466, %v475
      %v535 = vadd.f32 %v467, %v475
      %v536 = vadd.f32 %v468, %v475
      %v537 = vadd.f32 %v469, %v475
      %v538 = vadd.f32 %v470, %v475
      %v539 = vadd.f32 %v471, %v475
      %v540 = vadd.f32 %v472, %v475
      %v541 = vld [vmem:[%s269] sm:$0xf]
      %v542 = vld [vmem:[%s269 + $0x4] sm:$0xf]
      %v543 = vld [vmem:[%s269 + $0x8] sm:$0xf]
      %v544 = vld [vmem:[%s269 + $0xc] sm:$0xf]
      %v545 = vld [vmem:[%s269 + $0x10] sm:$0xf]
      %v546 = vld [vmem:[%s269 + $0x14] sm:$0xf]
      %v547 = vld [vmem:[%s269 + $0x18] sm:$0xf]
      %v548 = vld [vmem:[%s269 + $0x1c] sm:$0xf]
      %v549 = vld [vmem:[%s269 + $0x20] sm:$0xf]
      %v550 = vld [vmem:[%s269 + $0x24] sm:$0xf]
      %v551 = vld [vmem:[%s269 + $0x28] sm:$0xf]
      %v552 = vld [vmem:[%s269 + $0x2c] sm:$0xf]
      %v553 = vld [vmem:[%s269 + $0x30] sm:$0xf]
      %v554 = vld [vmem:[%s269 + $0x34] sm:$0xf]
      %v555 = vld [vmem:[%s269 + $0x38] sm:$0xf]
      %v556 = vld [vmem:[%s269 + $0x3c] sm:$0xf]
      %v557 = vld [vmem:[%s269 + $0x40] sm:$0xf]
      %v558 = vld [vmem:[%s269 + $0x44] sm:$0xf]
      %v559 = vld [vmem:[%s269 + $0x48] sm:$0xf]
      %v560 = vld [vmem:[%s269 + $0x4c] sm:$0xf]
      %v561 = vld [vmem:[%s269 + $0x50] sm:$0xf]
      %v562 = vld [vmem:[%s269 + $0x54] sm:$0xf]
      %v563 = vld [vmem:[%s269 + $0x58] sm:$0xf]
      %v564 = vld [vmem:[%s269 + $0x5c] sm:$0xf]
      %v565 = vld [vmem:[%s269 + $0x60] sm:$0xf]
      %v566 = vld [vmem:[%s269 + $0x64] sm:$0xf]
      %v567 = vld [vmem:[%s269 + $0x68] sm:$0xf]
      %v568 = vld [vmem:[%s269 + $0x6c] sm:$0xf]
      %v569 = vld [vmem:[%s269 + $0x70] sm:$0xf]
      %v570 = vld [vmem:[%s269 + $0x74] sm:$0xf]
      %v571 = vld [vmem:[%s269 + $0x78] sm:$0xf]
      %v572 = vld [vmem:[%s269 + $0x7c] sm:$0xf]
      %v573 = vld [vmem:[%s269 + $0x80] sm:$0xf]
      %v574 = vld [vmem:[%s269 + $0x84] sm:$0xf]
      %v575 = vld [vmem:[%s269 + $0x88] sm:$0xf]
      %v576 = vld [vmem:[%s269 + $0x8c] sm:$0xf]
      %v577 = vld [vmem:[%s269 + $0x90] sm:$0xf]
      %v578 = vld [vmem:[%s269 + $0x94] sm:$0xf]
      %v579 = vld [vmem:[%s269 + $0x98] sm:$0xf]
      %v580 = vld [vmem:[%s269 + $0x9c] sm:$0xf]
      %v581 = vld [vmem:[%s269 + $0xa0] sm:$0xf]
      %v582 = vld [vmem:[%s269 + $0xa4] sm:$0xf]
      %v583 = vld [vmem:[%s269 + $0xa8] sm:$0xf]
      %v584 = vld [vmem:[%s269 + $0xac] sm:$0xf]
      %v585 = vld [vmem:[%s269 + $0xb0] sm:$0xf]
      %v586 = vld [vmem:[%s269 + $0xb4] sm:$0xf]
      %v587 = vld [vmem:[%s269 + $0xb8] sm:$0xf]
      %v588 = vld [vmem:[%s269 + $0xbc] sm:$0xf]
      %v589 = vld [vmem:[%s269 + $0xc0] sm:$0xf]
      %v590 = vld [vmem:[%s269 + $0xc4] sm:$0xf]
      %v591 = vld [vmem:[%s269 + $0xc8] sm:$0xf]
      %v592 = vld [vmem:[%s269 + $0xcc] sm:$0xf]
      %v593 = vld [vmem:[%s269 + $0xd0] sm:$0xf]
      %v594 = vld [vmem:[%s269 + $0xd4] sm:$0xf]
      %v595 = vld [vmem:[%s269 + $0xd8] sm:$0xf]
      %v596 = vld [vmem:[%s269 + $0xdc] sm:$0xf]
      %v597 = vld [vmem:[%s269 + $0xe0] sm:$0xf]
      %v598 = vld [vmem:[%s269 + $0xe4] sm:$0xf]
      %v599 = vld [vmem:[%s269 + $0xe8] sm:$0xf]
      %v600 = vld [vmem:[%s269 + $0xec] sm:$0xf]
      %v601 = vld [vmem:[%s269 + $0xf0] sm:$0xf]
      %v602 = vld [vmem:[%s269 + $0xf4] sm:$0xf]
      %v603 = vld [vmem:[%s269 + $0xf8] sm:$0xf]
      %v604 = vld [vmem:[%s269 + $0xfc] sm:$0xf]
      %v605 = vunpack.c.l.bf16 %v541
      %v606 = vunpack.c.l.bf16 %v542
      %v607 = vunpack.c.l.bf16 %v543
      %v608 = vunpack.c.l.bf16 %v544
      %v609 = vunpack.c.l.bf16 %v545
      %v610 = vunpack.c.l.bf16 %v546
      %v611 = vunpack.c.l.bf16 %v547
      %v612 = vunpack.c.l.bf16 %v548
      %v613 = vunpack.c.l.bf16 %v549
      %v614 = vunpack.c.l.bf16 %v550
      %v615 = vunpack.c.l.bf16 %v551
      %v616 = vunpack.c.l.bf16 %v552
      %v617 = vunpack.c.l.bf16 %v553
      %v618 = vunpack.c.l.bf16 %v554
      %v619 = vunpack.c.l.bf16 %v555
      %v620 = vunpack.c.l.bf16 %v556
      %v621 = vunpack.c.l.bf16 %v557
      %v622 = vunpack.c.l.bf16 %v558
      %v623 = vunpack.c.l.bf16 %v559
      %v624 = vunpack.c.l.bf16 %v560
      %v625 = vunpack.c.l.bf16 %v561
      %v626 = vunpack.c.l.bf16 %v562
      %v627 = vunpack.c.l.bf16 %v563
      %v628 = vunpack.c.l.bf16 %v564
      %v629 = vunpack.c.l.bf16 %v565
      %v630 = vunpack.c.l.bf16 %v566
      %v631 = vunpack.c.l.bf16 %v567
      %v632 = vunpack.c.l.bf16 %v568
      %v633 = vunpack.c.l.bf16 %v569
      %v634 = vunpack.c.l.bf16 %v570
      %v635 = vunpack.c.l.bf16 %v571
      %v636 = vunpack.c.l.bf16 %v572
      %v637 = vunpack.c.l.bf16 %v573
      %v638 = vunpack.c.l.bf16 %v574
      %v639 = vunpack.c.l.bf16 %v575
      %v640 = vunpack.c.l.bf16 %v576
      %v641 = vunpack.c.l.bf16 %v577
      %v642 = vunpack.c.l.bf16 %v578
      %v643 = vunpack.c.l.bf16 %v579
      %v644 = vunpack.c.l.bf16 %v580
      %v645 = vunpack.c.l.bf16 %v581
      %v646 = vunpack.c.l.bf16 %v582
      %v647 = vunpack.c.l.bf16 %v583
      %v648 = vunpack.c.l.bf16 %v584
      %v649 = vunpack.c.l.bf16 %v585
      %v650 = vunpack.c.l.bf16 %v586
      %v651 = vunpack.c.l.bf16 %v587
      %v652 = vunpack.c.l.bf16 %v588
      %v653 = vunpack.c.l.bf16 %v589
      %v654 = vunpack.c.l.bf16 %v590
      %v655 = vunpack.c.l.bf16 %v591
      %v656 = vunpack.c.l.bf16 %v592
      %v657 = vunpack.c.l.bf16 %v593
      %v658 = vunpack.c.l.bf16 %v594
      %v659 = vunpack.c.l.bf16 %v595
      %v660 = vunpack.c.l.bf16 %v596
      %v661 = vunpack.c.l.bf16 %v597
      %v662 = vunpack.c.l.bf16 %v598
      %v663 = vunpack.c.l.bf16 %v599
      %v664 = vunpack.c.l.bf16 %v600
      %v665 = vunpack.c.l.bf16 %v601
      %v666 = vunpack.c.l.bf16 %v602
      %v667 = vunpack.c.l.bf16 %v603
      %v668 = vunpack.c.l.bf16 %v604
      %v669 = vld [vmem:[%s4] sm:$0x1]
      %v671 = vperm.slane %v669, 0
      %v673 = vmul.f32 %v605, %v671
      %v674 = vmul.f32 %v606, %v671
      %v675 = vmul.f32 %v607, %v671
      %v676 = vmul.f32 %v608, %v671
      %v677 = vmul.f32 %v609, %v671
      %v678 = vmul.f32 %v610, %v671
      %v679 = vmul.f32 %v611, %v671
      %v680 = vmul.f32 %v612, %v671
      %v681 = vmul.f32 %v613, %v671
      %v682 = vmul.f32 %v614, %v671
      %v683 = vmul.f32 %v615, %v671
      %v684 = vmul.f32 %v616, %v671
      %v685 = vmul.f32 %v617, %v671
      %v686 = vmul.f32 %v618, %v671
      %v687 = vmul.f32 %v619, %v671
      %v688 = vmul.f32 %v620, %v671
      %v689 = vmul.f32 %v621, %v671
      %v690 = vmul.f32 %v622, %v671
      %v691 = vmul.f32 %v623, %v671
      %v692 = vmul.f32 %v624, %v671
      %v693 = vmul.f32 %v625, %v671
      %v694 = vmul.f32 %v626, %v671
      %v695 = vmul.f32 %v627, %v671
      %v696 = vmul.f32 %v628, %v671
      %v697 = vmul.f32 %v629, %v671
      %v698 = vmul.f32 %v630, %v671
      %v699 = vmul.f32 %v631, %v671
      %v700 = vmul.f32 %v632, %v671
      %v701 = vmul.f32 %v633, %v671
      %v702 = vmul.f32 %v634, %v671
      %v703 = vmul.f32 %v635, %v671
      %v704 = vmul.f32 %v636, %v671
      %v705 = vmul.f32 %v637, %v671
      %v706 = vmul.f32 %v638, %v671
      %v707 = vmul.f32 %v639, %v671
      %v708 = vmul.f32 %v640, %v671
      %v709 = vmul.f32 %v641, %v671
      %v710 = vmul.f32 %v642, %v671
      %v711 = vmul.f32 %v643, %v671
      %v712 = vmul.f32 %v644, %v671
      %v713 = vmul.f32 %v645, %v671
      %v714 = vmul.f32 %v646, %v671
      %v715 = vmul.f32 %v647, %v671
      %v716 = vmul.f32 %v648, %v671
      %v717 = vmul.f32 %v649, %v671
      %v718 = vmul.f32 %v650, %v671
      %v719 = vmul.f32 %v651, %v671
      %v720 = vmul.f32 %v652, %v671
      %v721 = vmul.f32 %v653, %v671
      %v722 = vmul.f32 %v654, %v671
      %v723 = vmul.f32 %v655, %v671
      %v724 = vmul.f32 %v656, %v671
      %v725 = vmul.f32 %v657, %v671
      %v726 = vmul.f32 %v658, %v671
      %v727 = vmul.f32 %v659, %v671
      %v728 = vmul.f32 %v660, %v671
      %v729 = vmul.f32 %v661, %v671
      %v730 = vmul.f32 %v662, %v671
      %v731 = vmul.f32 %v663, %v671
      %v732 = vmul.f32 %v664, %v671
      %v733 = vmul.f32 %v665, %v671
      %v734 = vmul.f32 %v666, %v671
      %v735 = vmul.f32 %v667, %v671
      %v736 = vmul.f32 %v668, %v671
      %v737 = vld [vmem:[%s5] sm:$0x1]
      %v739 = vperm.slane %v737, 0
      %v741 = vadd.f32 %v673, %v739
      %v742 = vadd.f32 %v674, %v739
      %v743 = vadd.f32 %v675, %v739
      %v744 = vadd.f32 %v676, %v739
      %v745 = vadd.f32 %v677, %v739
      %v746 = vadd.f32 %v678, %v739
      %v747 = vadd.f32 %v679, %v739
      %v748 = vadd.f32 %v680, %v739
      %v749 = vadd.f32 %v681, %v739
      %v750 = vadd.f32 %v682, %v739
      %v751 = vadd.f32 %v683, %v739
      %v752 = vadd.f32 %v684, %v739
      %v753 = vadd.f32 %v685, %v739
      %v754 = vadd.f32 %v686, %v739
      %v755 = vadd.f32 %v687, %v739
      %v756 = vadd.f32 %v688, %v739
      %v757 = vadd.f32 %v689, %v739
      %v758 = vadd.f32 %v690, %v739
      %v759 = vadd.f32 %v691, %v739
      %v760 = vadd.f32 %v692, %v739
      %v761 = vadd.f32 %v693, %v739
      %v762 = vadd.f32 %v694, %v739
      %v763 = vadd.f32 %v695, %v739
      %v764 = vadd.f32 %v696, %v739
      %v765 = vadd.f32 %v697, %v739
      %v766 = vadd.f32 %v698, %v739
      %v767 = vadd.f32 %v699, %v739
      %v768 = vadd.f32 %v700, %v739
      %v769 = vadd.f32 %v701, %v739
      %v770 = vadd.f32 %v702, %v739
      %v771 = vadd.f32 %v703, %v739
      %v772 = vadd.f32 %v704, %v739
      %v773 = vadd.f32 %v705, %v739
      %v774 = vadd.f32 %v706, %v739
      %v775 = vadd.f32 %v707, %v739
      %v776 = vadd.f32 %v708, %v739
      %v777 = vadd.f32 %v709, %v739
      %v778 = vadd.f32 %v710, %v739
      %v779 = vadd.f32 %v711, %v739
      %v780 = vadd.f32 %v712, %v739
      %v781 = vadd.f32 %v713, %v739
      %v782 = vadd.f32 %v714, %v739
      %v783 = vadd.f32 %v715, %v739
      %v784 = vadd.f32 %v716, %v739
      %v785 = vadd.f32 %v717, %v739
      %v786 = vadd.f32 %v718, %v739
      %v787 = vadd.f32 %v719, %v739
      %v788 = vadd.f32 %v720, %v739
      %v789 = vadd.f32 %v721, %v739
      %v790 = vadd.f32 %v722, %v739
      %v791 = vadd.f32 %v723, %v739
      %v792 = vadd.f32 %v724, %v739
      %v793 = vadd.f32 %v725, %v739
      %v794 = vadd.f32 %v726, %v739
      %v795 = vadd.f32 %v727, %v739
      %v796 = vadd.f32 %v728, %v739
      %v797 = vadd.f32 %v729, %v739
      %v798 = vadd.f32 %v730, %v739
      %v799 = vadd.f32 %v731, %v739
      %v800 = vadd.f32 %v732, %v739
      %v801 = vadd.f32 %v733, %v739
      %v802 = vadd.f32 %v734, %v739
      %v803 = vadd.f32 %v735, %v739
      %v804 = vadd.f32 %v736, %v739
      %v805 = vadd.f32 %v477, %v741
      %v806 = vadd.f32 %v478, %v742
      %v807 = vadd.f32 %v479, %v743
      %v808 = vadd.f32 %v480, %v744
      %v809 = vadd.f32 %v481, %v745
      %v810 = vadd.f32 %v482, %v746
      %v811 = vadd.f32 %v483, %v747
      %v812 = vadd.f32 %v484, %v748
      %v813 = vadd.f32 %v485, %v749
      %v814 = vadd.f32 %v486, %v750
      %v815 = vadd.f32 %v487, %v751
      %v816 = vadd.f32 %v488, %v752
      %v817 = vadd.f32 %v489, %v753
      %v818 = vadd.f32 %v490, %v754
      %v819 = vadd.f32 %v491, %v755
      %v820 = vadd.f32 %v492, %v756
      %v821 = vadd.f32 %v493, %v757
      %v822 = vadd.f32 %v494, %v758
      %v823 = vadd.f32 %v495, %v759
      %v824 = vadd.f32 %v496, %v760
      %v825 = vadd.f32 %v497, %v761
      %v826 = vadd.f32 %v498, %v762
      %v827 = vadd.f32 %v499, %v763
      %v828 = vadd.f32 %v500, %v764
      %v829 = vadd.f32 %v501, %v765
      %v830 = vadd.f32 %v502, %v766
      %v831 = vadd.f32 %v503, %v767
      %v832 = vadd.f32 %v504, %v768
      %v833 = vadd.f32 %v505, %v769
      %v834 = vadd.f32 %v506, %v770
      %v835 = vadd.f32 %v507, %v771
      %v836 = vadd.f32 %v508, %v772
      %v837 = vadd.f32 %v509, %v773
      %v838 = vadd.f32 %v510, %v774
      %v839 = vadd.f32 %v511, %v775
      %v840 = vadd.f32 %v512, %v776
      %v841 = vadd.f32 %v513, %v777
      %v842 = vadd.f32 %v514, %v778
      %v843 = vadd.f32 %v515, %v779
      %v844 = vadd.f32 %v516, %v780
      %v845 = vadd.f32 %v517, %v781
      %v846 = vadd.f32 %v518, %v782
      %v847 = vadd.f32 %v519, %v783
      %v848 = vadd.f32 %v520, %v784
      %v849 = vadd.f32 %v521, %v785
      %v850 = vadd.f32 %v522, %v786
      %v851 = vadd.f32 %v523, %v787
      %v852 = vadd.f32 %v524, %v788
      %v853 = vadd.f32 %v525, %v789
      %v854 = vadd.f32 %v526, %v790
      %v855 = vadd.f32 %v527, %v791
      %v856 = vadd.f32 %v528, %v792
      %v857 = vadd.f32 %v529, %v793
      %v858 = vadd.f32 %v530, %v794
      %v859 = vadd.f32 %v531, %v795
      %v860 = vadd.f32 %v532, %v796
      %v861 = vadd.f32 %v533, %v797
      %v862 = vadd.f32 %v534, %v798
      %v863 = vadd.f32 %v535, %v799
      %v864 = vadd.f32 %v536, %v800
      %v865 = vadd.f32 %v537, %v801
      %v866 = vadd.f32 %v538, %v802
      %v867 = vadd.f32 %v539, %v803
      %v868 = vadd.f32 %v540, %v804
      %v869 = vmax.f32 %v805, 0.0
      %v870 = vmax.f32 %v806, 0.0
      %v871 = vmax.f32 %v807, 0.0
      %v872 = vmax.f32 %v808, 0.0
      %v873 = vmax.f32 %v809, 0.0
      %v874 = vmax.f32 %v810, 0.0
      %v875 = vmax.f32 %v811, 0.0
      %v876 = vmax.f32 %v812, 0.0
      %v877 = vmax.f32 %v813, 0.0
      %v878 = vmax.f32 %v814, 0.0
      %v879 = vmax.f32 %v815, 0.0
      %v880 = vmax.f32 %v816, 0.0
      %v881 = vmax.f32 %v817, 0.0
      %v882 = vmax.f32 %v818, 0.0
      %v883 = vmax.f32 %v819, 0.0
      %v884 = vmax.f32 %v820, 0.0
      %v885 = vmax.f32 %v821, 0.0
      %v886 = vmax.f32 %v822, 0.0
      %v887 = vmax.f32 %v823, 0.0
      %v888 = vmax.f32 %v824, 0.0
      %v889 = vmax.f32 %v825, 0.0
      %v890 = vmax.f32 %v826, 0.0
      %v891 = vmax.f32 %v827, 0.0
      %v892 = vmax.f32 %v828, 0.0
      %v893 = vmax.f32 %v829, 0.0
      %v894 = vmax.f32 %v830, 0.0
      %v895 = vmax.f32 %v831, 0.0
      %v896 = vmax.f32 %v832, 0.0
      %v897 = vmax.f32 %v833, 0.0
      %v898 = vmax.f32 %v834, 0.0
      %v899 = vmax.f32 %v835, 0.0
      %v900 = vmax.f32 %v836, 0.0
      %v901 = vmax.f32 %v837, 0.0
      %v902 = vmax.f32 %v838, 0.0
      %v903 = vmax.f32 %v839, 0.0
      %v904 = vmax.f32 %v840, 0.0
      %v905 = vmax.f32 %v841, 0.0
      %v906 = vmax.f32 %v842, 0.0
      %v907 = vmax.f32 %v843, 0.0
      %v908 = vmax.f32 %v844, 0.0
      %v909 = vmax.f32 %v845, 0.0
      %v910 = vmax.f32 %v846, 0.0
      %v911 = vmax.f32 %v847, 0.0
      %v912 = vmax.f32 %v848, 0.0
      %v913 = vmax.f32 %v849, 0.0
      %v914 = vmax.f32 %v850, 0.0
      %v915 = vmax.f32 %v851, 0.0
      %v916 = vmax.f32 %v852, 0.0
      %v917 = vmax.f32 %v853, 0.0
      %v918 = vmax.f32 %v854, 0.0
      %v919 = vmax.f32 %v855, 0.0
      %v920 = vmax.f32 %v856, 0.0
      %v921 = vmax.f32 %v857, 0.0
      %v922 = vmax.f32 %v858, 0.0
      %v923 = vmax.f32 %v859, 0.0
      %v924 = vmax.f32 %v860, 0.0
      %v925 = vmax.f32 %v861, 0.0
      %v926 = vmax.f32 %v862, 0.0
      %v927 = vmax.f32 %v863, 0.0
      %v928 = vmax.f32 %v864, 0.0
      %v929 = vmax.f32 %v865, 0.0
      %v930 = vmax.f32 %v866, 0.0
      %v931 = vmax.f32 %v867, 0.0
      %v932 = vmax.f32 %v868, 0.0
      %933 = vst [vmem:[%s275] sm:$0xff] %v869
      %934 = vst [vmem:[%s275 + $0x8] sm:$0xff] %v870
      %935 = vst [vmem:[%s275 + $0x10] sm:$0xff] %v871
      %936 = vst [vmem:[%s275 + $0x18] sm:$0xff] %v872
      %937 = vst [vmem:[%s275 + $0x20] sm:$0xff] %v873
      %938 = vst [vmem:[%s275 + $0x28] sm:$0xff] %v874
      %939 = vst [vmem:[%s275 + $0x30] sm:$0xff] %v875
      %940 = vst [vmem:[%s275 + $0x38] sm:$0xff] %v876
      %941 = vst [vmem:[%s275 + $0x40] sm:$0xff] %v877
      %942 = vst [vmem:[%s275 + $0x48] sm:$0xff] %v878
      %943 = vst [vmem:[%s275 + $0x50] sm:$0xff] %v879
      %944 = vst [vmem:[%s275 + $0x58] sm:$0xff] %v880
      %945 = vst [vmem:[%s275 + $0x60] sm:$0xff] %v881
      %946 = vst [vmem:[%s275 + $0x68] sm:$0xff] %v882
      %947 = vst [vmem:[%s275 + $0x70] sm:$0xff] %v883
      %948 = vst [vmem:[%s275 + $0x78] sm:$0xff] %v884
      %949 = vst [vmem:[%s275 + $0x80] sm:$0xff] %v885
      %950 = vst [vmem:[%s275 + $0x88] sm:$0xff] %v886
      %951 = vst [vmem:[%s275 + $0x90] sm:$0xff] %v887
      %952 = vst [vmem:[%s275 + $0x98] sm:$0xff] %v888
      %953 = vst [vmem:[%s275 + $0xa0] sm:$0xff] %v889
      %954 = vst [vmem:[%s275 + $0xa8] sm:$0xff] %v890
      %955 = vst [vmem:[%s275 + $0xb0] sm:$0xff] %v891
      %956 = vst [vmem:[%s275 + $0xb8] sm:$0xff] %v892
      %957 = vst [vmem:[%s275 + $0xc0] sm:$0xff] %v893
      %958 = vst [vmem:[%s275 + $0xc8] sm:$0xff] %v894
      %959 = vst [vmem:[%s275 + $0xd0] sm:$0xff] %v895
      %960 = vst [vmem:[%s275 + $0xd8] sm:$0xff] %v896
      %961 = vst [vmem:[%s275 + $0xe0] sm:$0xff] %v897
      %962 = vst [vmem:[%s275 + $0xe8] sm:$0xff] %v898
      %963 = vst [vmem:[%s275 + $0xf0] sm:$0xff] %v899
      %964 = vst [vmem:[%s275 + $0xf8] sm:$0xff] %v900
      %965 = vst [vmem:[%s275 + $0x100] sm:$0xff] %v901
      %966 = vst [vmem:[%s275 + $0x108] sm:$0xff] %v902
      %967 = vst [vmem:[%s275 + $0x110] sm:$0xff] %v903
      %968 = vst [vmem:[%s275 + $0x118] sm:$0xff] %v904
      %969 = vst [vmem:[%s275 + $0x120] sm:$0xff] %v905
      %970 = vst [vmem:[%s275 + $0x128] sm:$0xff] %v906
      %971 = vst [vmem:[%s275 + $0x130] sm:$0xff] %v907
      %972 = vst [vmem:[%s275 + $0x138] sm:$0xff] %v908
      %973 = vst [vmem:[%s275 + $0x140] sm:$0xff] %v909
      %974 = vst [vmem:[%s275 + $0x148] sm:$0xff] %v910
      %975 = vst [vmem:[%s275 + $0x150] sm:$0xff] %v911
      %976 = vst [vmem:[%s275 + $0x158] sm:$0xff] %v912
      %977 = vst [vmem:[%s275 + $0x160] sm:$0xff] %v913
      %978 = vst [vmem:[%s275 + $0x168] sm:$0xff] %v914
      %979 = vst [vmem:[%s275 + $0x170] sm:$0xff] %v915
      %980 = vst [vmem:[%s275 + $0x178] sm:$0xff] %v916
      %981 = vst [vmem:[%s275 + $0x180] sm:$0xff] %v917
      %982 = vst [vmem:[%s275 + $0x188] sm:$0xff] %v918
      %983 = vst [vmem:[%s275 + $0x190] sm:$0xff] %v919
      %984 = vst [vmem:[%s275 + $0x198] sm:$0xff] %v920
      %985 = vst [vmem:[%s275 + $0x1a0] sm:$0xff] %v921
      %986 = vst [vmem:[%s275 + $0x1a8] sm:$0xff] %v922
      %987 = vst [vmem:[%s275 + $0x1b0] sm:$0xff] %v923
      %988 = vst [vmem:[%s275 + $0x1b8] sm:$0xff] %v924
      %989 = vst [vmem:[%s275 + $0x1c0] sm:$0xff] %v925
      %990 = vst [vmem:[%s275 + $0x1c8] sm:$0xff] %v926
      %991 = vst [vmem:[%s275 + $0x1d0] sm:$0xff] %v927
      %992 = vst [vmem:[%s275 + $0x1d8] sm:$0xff] %v928
      %993 = vst [vmem:[%s275 + $0x1e0] sm:$0xff] %v929
      %994 = vst [vmem:[%s275 + $0x1e8] sm:$0xff] %v930
      %995 = vst [vmem:[%s275 + $0x1f0] sm:$0xff] %v931
      %996 = vst [vmem:[%s275 + $0x1f8] sm:$0xff] %v932
      %s997 = smul.u32 64, %s17
      %p998 = scmp.lt.s32.totalorder %s997, 127
      %s999 = scalar_select %p998, %s997, 127
      %s1000 = smul.addr %s999, 8
      %s1001 = scalar_lea.vmem %s6, %s1000
      // Predicated region
      $region45: #{residual_block_3d.7} parent=43 // pred_check
        %p1002 = pneg %p171
      $region46: #{residual_block_3d.7} parent=43 // pred_check_branch
        %1004 = sbr.rel (%p1002) target = $region48
      $region47: #{residual_block_3d.7} parent=43 // pred_region
        %s1005 = smul.u32 64, %s17
      $region48: #{residual_block_3d.7} parent=43 // pred_fallthru
        _
    $region44: #{residual_block_3d.7} parent=5 // pred_fallthru
      _
    %p1006 = scmp.le.s32.totalorder 2, %s12
    // Predicated region
    $region49: #{residual_block_3d.7} parent=5 // pred_check
      %p1007 = pneg %p1006
    $region50: #{residual_block_3d.7} parent=5 // pred_check_branch
      %1009 = sbr.rel (%p1007) target = $region52
    $region51: #{residual_block_3d.7} parent=5 // pred_region
      %s1010 = ssub.s32 %s12, 2
      // Predicated region
      $region53: #{residual_block_3d.7} parent=51 // pred_check
        %p1011 = pneg %p177
      $region54: #{residual_block_3d.7} parent=51 // pred_check_branch
        %1013 = sbr.rel (%p1011) target = $region56
      $region55: #{residual_block_3d.7} parent=51 // pred_region
        %s1014 = smul.u32 64, %s18
        %p1015 = scmp.lt.s32.totalorder %s1014, 127
        %s1016 = scalar_select %p1015, %s1014, 127
        %s1017 = smul.addr %s1016, 8
        %s1018 = scalar_lea.vmem %s6, %s1017
      $region56: #{residual_block_3d.7} parent=51 // pred_fallthru
        _
    $region52: #{residual_block_3d.7} parent=5 // pred_fallthru
      _
  $region6: #{residual_block_3d.7} parent=0 // loop_footer
    %s16 = sadd.s32 1, %s12
  $region7: #{residual_block_3d.7} parent=0 // loop_footer_branch
    %11 = sbr.rel target = $region3
  $region8: #{residual_block_3d.7} parent=0 // loop_exit
    _

// kernel: residual_block_3d.6
$region0: #{residual_block_3d.6}
  #allocation0 [shape = 'u32[]', space=smem, size = 0x4, offset = 0x4, fixed_abs, tag = 'smem constant byte address 0x4 - core index']
  #allocation1 [shape = 'u32[72,128]{1,0:T(1,128)}', space=vmem, size = 0x9000, scoped, tag = 'internal scratch']
  #allocation2 [shape = 'f32[512,128]{1,0:T(8,128)}', space=vmem, size = 0x40000, scoped, tag = 'scratch operand']
  %s0 = inlined_call_operand.vmem [shape: bf16[1024,256], index: 0, kind: input, shape index: {}]
  %s1 = inlined_call_operand.vmem [shape: bf16[256,128], index: 1, kind: input, shape index: {}]
  %s2 = inlined_call_operand.vmem [shape: f32[1,128], index: 2, kind: input, shape index: {}]
  %s3 = inlined_call_operand.vmem [shape: bf16[1024,128], index: 3, kind: input, shape index: {}]
  %s4 = inlined_call_operand.vmem [shape: bf16[128,128], index: 4, kind: input, shape index: {}]
  %s5 = inlined_call_operand.vmem [shape: f32[1,128], index: 5, kind: input, shape index: {}]
  %s6 = inlined_call_operand.vmem [shape: bf16[1024,128], index: 6, kind: output, shape index: {0}]
  %s7 = inlined_call_operand.vmem [shape: f32[2,1,128], index: 7, kind: output, shape index: {1}]
  %s8 = inlined_call_operand.vmem [shape: f32[2,1,128], index: 8, kind: output, shape index: {2}]
  %s9 = inlined_call_operand.vmem [shape: bf16[1024,128], index: 9, kind: output, shape index: {3}]
  %s10 = inlined_call_operand.vmem [shape: f32[2,1,128], index: 10, kind: output, shape index: {4}]
  %s11 = inlined_call_operand.vmem [shape: f32[2,1,128], index: 11, kind: output, shape index: {5}]
  %12 = xla_tuple %s6, %s7, %s8, %s9, %s10, %s11
  %s13 = sld [smem:[#allocation0]]
  $region121: #{residual_block_3d.6} parent=0
    _
  %s15 = ssub.s32 1, %s13
  %s16 = scalar_select 0, %s15, %s13
  loop: start=0, step=1, limit=4
  $region2: #{residual_block_3d.6} parent=0 // loop_pre_header
    _
  $region3: #{residual_block_3d.6} parent=0 // loop_header
    %s18 = sphi 0, %s22
    %p19 = scmp.ge.s32.totalorder %s18, 4
    %s25 = sphi 0, %s37
    %s26 = sphi 0, %s33
    %s27 = sphi 0, %s25
    %s28 = sphi 0, %s26
    %s29 = sphi 0, %s27
    %s30 = sphi 0, %s28
    %s42 = sphi 0, %s44
    %s45 = sphi 0, %s42
    %s46 = sphi 0, %s45
    %s62 = sphi 0, %s46
    %s68 = sphi 0, %s70
    %s71 = sphi 0, %s68
    %s72 = sphi 0, %s71
    %s88 = sphi 0, %s72
    %s92 = sphi 0, %s92
    %s94 = sphi 0, %s92
    %s95 = sphi 0, %s94
    %s109 = sphi 0, %s95
    %s115 = sphi 0, %s117
    %s118 = sphi 0, %s115
    %s119 = sphi 0, %s118
    %s135 = sphi 0, %s119
    %s139 = sphi 0, %s139
    %s141 = sphi 0, %s139
    %s142 = sphi 0, %s141
    %s156 = sphi 0, %s142
    %s160 = sphi 0, %s160
    %s162 = sphi 0, %s160
    %s163 = sphi 0, %s162
    %s177 = sphi 0, %s163
    %s183 = sphi 0, %s185
    %s186 = sphi 0, %s183
    %s187 = sphi 0, %s186
    %s203 = sphi 0, %s187
    %s209 = sphi 0, %s211
    %s212 = sphi 0, %s209
    %s213 = sphi 0, %s212
    %s229 = sphi 0, %s213
    %s235 = sphi 0, %s237
    %s238 = sphi 0, %s235
    %s239 = sphi 0, %s238
    %s255 = sphi 0, %s239
    %s261 = sphi 0, %s263
    %s264 = sphi 0, %s261
    %s265 = sphi 0, %s264
    %s281 = sphi 0, %s265
    %s287 = sphi 0, %s289
    %s290 = sphi 0, %s287
    %s291 = sphi 0, %s290
    %s307 = sphi 0, %s291
    %s313 = sphi 0, %s315
    %s316 = sphi 0, %s313
    %s317 = sphi 0, %s316
    %s333 = sphi 0, %s317
  $region4: #{residual_block_3d.6} parent=0 // loop_header_branch
    %21 = sbr.rel (%p19) target = $region8
  $region5: #{residual_block_3d.6} parent=0 // loop_body
    %s23 = ssub.s32 %s18, 1
    %s24 = ssub.s32 %s18, 2
    %s31 = sadd.s32 1, %s26
    %p32 = scmp.ge.s32.totalorder %s31, 1
    %s33 = scalar_select %p32, 0, %s31
    %s34 = sadd.s32 1, %s25
    %s35 = scalar_select %p32, %s34, %s25
    %p36 = scmp.ge.s32.totalorder %s35, 2
    %s37 = scalar_select %p36, 0, %s35
    %s38 = ssub.s32 %s25, %s37
    %s39 = ssub.s32 %s26, %s33
    %s40 = sor.u32 %s38, %s39
    %p41 = scmp.eq.s32.totalorder %s40, 0
    %s43 = sadd.s32 %s42, 1
    %s44 = scalar_select %p41, %s42, %s43
    %p47 = pneg %p41
    %p48 = scmp.eq.s32.totalorder %s18, 1
    %p49 = por %p47, %p48
    %p50 = scmp.ne.s32.totalorder %s42, %s45
    %p51 = scmp.eq.s32.totalorder %s18, 0
    %p52 = por %p50, %p51
    %p53 = scmp.ne.s32.totalorder %s42, %s45
    %p54 = scmp.eq.s32.totalorder %s23, 1
    %p55 = por %p53, %p54
    %p56 = scmp.ne.s32.totalorder %s45, %s46
    %p57 = scmp.eq.s32.totalorder %s23, 0
    %p58 = por %p56, %p57
    %p59 = scmp.ne.s32.totalorder %s45, %s46
    %p60 = scmp.eq.s32.totalorder %s24, 1
    %p61 = por %p59, %p60
    %p63 = scmp.ne.s32.totalorder %s46, %s62
    %p64 = scmp.eq.s32.totalorder %s24, 0
    %p65 = por %p63, %p64
    %s66 = ssub.s32 %s26, %s33
    %p67 = scmp.eq.s32.totalorder %s66, 0
    %s69 = sadd.s32 %s68, 1
    %s70 = scalar_select %p67, %s68, %s69
    %p73 = pneg %p67
    %p74 = scmp.eq.s32.totalorder %s18, 1
    %p75 = por %p73, %p74
    %p76 = scmp.ne.s32.totalorder %s68, %s71
    %p77 = scmp.eq.s32.totalorder %s18, 0
    %p78 = por %p76, %p77
    %p79 = scmp.ne.s32.totalorder %s68, %s71
    %p80 = scmp.eq.s32.totalorder %s23, 1
    %p81 = por %p79, %p80
    %p82 = scmp.ne.s32.totalorder %s71, %s72
    %p83 = scmp.eq.s32.totalorder %s23, 0
    %p84 = por %p82, %p83
    %p85 = scmp.ne.s32.totalorder %s71, %s72
    %p86 = scmp.eq.s32.totalorder %s24, 1
    %p87 = por %p85, %p86
    %p89 = scmp.ne.s32.totalorder %s72, %s88
    %p90 = scmp.eq.s32.totalorder %s24, 0
    %p91 = por %p89, %p90
    %s93 = sadd.s32 %s92, 1
    %p96 = scmp.eq.s32.totalorder %s18, 1
    %p97 = scmp.ne.s32.totalorder %s92, %s94
    %p98 = scmp.eq.s32.totalorder %s18, 0
    %p99 = por %p97, %p98
    %p100 = scmp.ne.s32.totalorder %s92, %s94
    %p101 = scmp.eq.s32.totalorder %s23, 1
    %p102 = por %p100, %p101
    %p103 = scmp.ne.s32.totalorder %s94, %s95
    %p104 = scmp.eq.s32.totalorder %s23, 0
    %p105 = por %p103, %p104
    %p106 = scmp.ne.s32.totalorder %s94, %s95
    %p107 = scmp.eq.s32.totalorder %s24, 1
    %p108 = por %p106, %p107
    %p110 = scmp.ne.s32.totalorder %s95, %s109
    %p111 = scmp.eq.s32.totalorder %s24, 0
    %p112 = por %p110, %p111
    %s113 = ssub.s32 %s25, %s37
    %p114 = scmp.eq.s32.totalorder %s113, 0
    %s116 = sadd.s32 %s115, 1
    %s117 = scalar_select %p114, %s115, %s116
    %p120 = pneg %p114
    %p121 = scmp.eq.s32.totalorder %s18, 1
    %p122 = por %p120, %p121
    %p123 = scmp.ne.s32.totalorder %s115, %s118
    %p124 = scmp.eq.s32.totalorder %s18, 0
    %p125 = por %p123, %p124
    %p126 = scmp.ne.s32.totalorder %s115, %s118
    %p127 = scmp.eq.s32.totalorder %s23, 1
    %p128 = por %p126, %p127
    %p129 = scmp.ne.s32.totalorder %s118, %s119
    %p130 = scmp.eq.s32.totalorder %s23, 0
    %p131 = por %p129, %p130
    %p132 = scmp.ne.s32.totalorder %s118, %s119
    %p133 = scmp.eq.s32.totalorder %s24, 1
    %p134 = por %p132, %p133
    %p136 = scmp.ne.s32.totalorder %s119, %s135
    %p137 = scmp.eq.s32.totalorder %s24, 0
    %p138 = por %p136, %p137
    %s140 = sadd.s32 %s139, 1
    %p143 = scmp.eq.s32.totalorder %s18, 1
    %p144 = scmp.ne.s32.totalorder %s139, %s141
    %p145 = scmp.eq.s32.totalorder %s18, 0
    %p146 = por %p144, %p145
    %p147 = scmp.ne.s32.totalorder %s139, %s141
    %p148 = scmp.eq.s32.totalorder %s23, 1
    %p149 = por %p147, %p148
    %p150 = scmp.ne.s32.totalorder %s141, %s142
    %p151 = scmp.eq.s32.totalorder %s23, 0
    %p152 = por %p150, %p151
    %p153 = scmp.ne.s32.totalorder %s141, %s142
    %p154 = scmp.eq.s32.totalorder %s24, 1
    %p155 = por %p153, %p154
    %p157 = scmp.ne.s32.totalorder %s142, %s156
    %p158 = scmp.eq.s32.totalorder %s24, 0
    %p159 = por %p157, %p158
    %s161 = sadd.s32 %s160, 1
    %p164 = scmp.eq.s32.totalorder %s18, 1
    %p165 = scmp.ne.s32.totalorder %s160, %s162
    %p166 = scmp.eq.s32.totalorder %s18, 0
    %p167 = por %p165, %p166
    %p168 = scmp.ne.s32.totalorder %s160, %s162
    %p169 = scmp.eq.s32.totalorder %s23, 1
    %p170 = por %p168, %p169
    %p171 = scmp.ne.s32.totalorder %s162, %s163
    %p172 = scmp.eq.s32.totalorder %s23, 0
    %p173 = por %p171, %p172
    %p174 = scmp.ne.s32.totalorder %s162, %s163
    %p175 = scmp.eq.s32.totalorder %s24, 1
    %p176 = por %p174, %p175
    %p178 = scmp.ne.s32.totalorder %s163, %s177
    %p179 = scmp.eq.s32.totalorder %s24, 0
    %p180 = por %p178, %p179
    %s181 = ssub.s32 %s25, %s37
    %p182 = scmp.eq.s32.totalorder %s181, 0
    %s184 = sadd.s32 %s183, 1
    %s185 = scalar_select %p182, %s183, %s184
    %p188 = pneg %p182
    %p189 = scmp.eq.s32.totalorder %s18, 1
    %p190 = por %p188, %p189
    %p191 = scmp.ne.s32.totalorder %s183, %s186
    %p192 = scmp.eq.s32.totalorder %s18, 0
    %p193 = por %p191, %p192
    %p194 = scmp.ne.s32.totalorder %s183, %s186
    %p195 = scmp.eq.s32.totalorder %s23, 1
    %p196 = por %p194, %p195
    %p197 = scmp.ne.s32.totalorder %s186, %s187
    %p198 = scmp.eq.s32.totalorder %s23, 0
    %p199 = por %p197, %p198
    %p200 = scmp.ne.s32.totalorder %s186, %s187
    %p201 = scmp.eq.s32.totalorder %s24, 1
    %p202 = por %p200, %p201
    %p204 = scmp.ne.s32.totalorder %s187, %s203
    %p205 = scmp.eq.s32.totalorder %s24, 0
    %p206 = por %p204, %p205
    %s207 = ssub.s32 %s25, %s37
    %p208 = scmp.eq.s32.totalorder %s207, 0
    %s210 = sadd.s32 %s209, 1
    %s211 = scalar_select %p208, %s209, %s210
    %p214 = pneg %p208
    %p215 = scmp.eq.s32.totalorder %s18, 1
    %p216 = por %p214, %p215
    %p217 = scmp.ne.s32.totalorder %s209, %s212
    %p218 = scmp.eq.s32.totalorder %s18, 0
    %p219 = por %p217, %p218
    %p220 = scmp.ne.s32.totalorder %s209, %s212
    %p221 = scmp.eq.s32.totalorder %s23, 1
    %p222 = por %p220, %p221
    %p223 = scmp.ne.s32.totalorder %s212, %s213
    %p224 = scmp.eq.s32.totalorder %s23, 0
    %p225 = por %p223, %p224
    %p226 = scmp.ne.s32.totalorder %s212, %s213
    %p227 = scmp.eq.s32.totalorder %s24, 1
    %p228 = por %p226, %p227
    %p230 = scmp.ne.s32.totalorder %s213, %s229
    %p231 = scmp.eq.s32.totalorder %s24, 0
    %p232 = por %p230, %p231
    %s233 = ssub.s32 %s25, %s37
    %p234 = scmp.eq.s32.totalorder %s233, 0
    %s236 = sadd.s32 %s235, 1
    %s237 = scalar_select %p234, %s235, %s236
    %p240 = pneg %p234
    %p241 = scmp.eq.s32.totalorder %s18, 1
    %p242 = por %p240, %p241
    %p243 = scmp.ne.s32.totalorder %s235, %s238
    %p244 = scmp.eq.s32.totalorder %s18, 0
    %p245 = por %p243, %p244
    %p246 = scmp.ne.s32.totalorder %s235, %s238
    %p247 = scmp.eq.s32.totalorder %s23, 1
    %p248 = por %p246, %p247
    %p249 = scmp.ne.s32.totalorder %s238, %s239
    %p250 = scmp.eq.s32.totalorder %s23, 0
    %p251 = por %p249, %p250
    %p252 = scmp.ne.s32.totalorder %s238, %s239
    %p253 = scmp.eq.s32.totalorder %s24, 1
    %p254 = por %p252, %p253
    %p256 = scmp.ne.s32.totalorder %s239, %s255
    %p257 = scmp.eq.s32.totalorder %s24, 0
    %p258 = por %p256, %p257
    %s259 = ssub.s32 %s25, %s37
    %p260 = scmp.eq.s32.totalorder %s259, 0
    %s262 = sadd.s32 %s261, 1
    %s263 = scalar_select %p260, %s261, %s262
    %p266 = pneg %p260
    %p267 = scmp.eq.s32.totalorder %s18, 1
    %p268 = por %p266, %p267
    %p269 = scmp.ne.s32.totalorder %s261, %s264
    %p270 = scmp.eq.s32.totalorder %s18, 0
    %p271 = por %p269, %p270
    %p272 = scmp.ne.s32.totalorder %s261, %s264
    %p273 = scmp.eq.s32.totalorder %s23, 1
    %p274 = por %p272, %p273
    %p275 = scmp.ne.s32.totalorder %s264, %s265
    %p276 = scmp.eq.s32.totalorder %s23, 0
    %p277 = por %p275, %p276
    %p278 = scmp.ne.s32.totalorder %s264, %s265
    %p279 = scmp.eq.s32.totalorder %s24, 1
    %p280 = por %p278, %p279
    %p282 = scmp.ne.s32.totalorder %s265, %s281
    %p283 = scmp.eq.s32.totalorder %s24, 0
    %p284 = por %p282, %p283
    %s285 = ssub.s32 %s25, %s37
    %p286 = scmp.eq.s32.totalorder %s285, 0
    %s288 = sadd.s32 %s287, 1
    %s289 = scalar_select %p286, %s287, %s288
    %p292 = pneg %p286
    %p293 = scmp.eq.s32.totalorder %s18, 1
    %p294 = por %p292, %p293
    %p295 = scmp.ne.s32.totalorder %s287, %s290
    %p296 = scmp.eq.s32.totalorder %s18, 0
    %p297 = por %p295, %p296
    %p298 = scmp.ne.s32.totalorder %s287, %s290
    %p299 = scmp.eq.s32.totalorder %s23, 1
    %p300 = por %p298, %p299
    %p301 = scmp.ne.s32.totalorder %s290, %s291
    %p302 = scmp.eq.s32.totalorder %s23, 0
    %p303 = por %p301, %p302
    %p304 = scmp.ne.s32.totalorder %s290, %s291
    %p305 = scmp.eq.s32.totalorder %s24, 1
    %p306 = por %p304, %p305
    %p308 = scmp.ne.s32.totalorder %s291, %s307
    %p309 = scmp.eq.s32.totalorder %s24, 0
    %p310 = por %p308, %p309
    %s311 = ssub.s32 %s25, %s37
    %p312 = scmp.eq.s32.totalorder %s311, 0
    %s314 = sadd.s32 %s313, 1
    %s315 = scalar_select %p312, %s313, %s314
    %p318 = pneg %p312
    %p319 = scmp.eq.s32.totalorder %s18, 1
    %p320 = por %p318, %p319
    %p321 = scmp.ne.s32.totalorder %s313, %s316
    %p322 = scmp.eq.s32.totalorder %s18, 0
    %p323 = por %p321, %p322
    %p324 = scmp.ne.s32.totalorder %s313, %s316
    %p325 = scmp.eq.s32.totalorder %s23, 1
    %p326 = por %p324, %p325
    %p327 = scmp.ne.s32.totalorder %s316, %s317
    %p328 = scmp.eq.s32.totalorder %s23, 0
    %p329 = por %p327, %p328
    %p330 = scmp.ne.s32.totalorder %s316, %s317
    %p331 = scmp.eq.s32.totalorder %s24, 1
    %p332 = por %p330, %p331
    %p334 = scmp.ne.s32.totalorder %s317, %s333
    %p335 = scmp.eq.s32.totalorder %s24, 0
    %p336 = por %p334, %p335
    %p337 = scmp.le.s32.totalorder 1, %s18
    %p338 = scmp.lt.s32.totalorder %s18, 3
    %p339 = pnand %p337, %p338
    %p340 = pneg %p339
    // Predicated region
    $region9: #{residual_block_3d.6} parent=5 // pred_check
      _
    $region10: #{residual_block_3d.6} parent=5 // pred_check_branch
      %342 = sbr.rel (%p339) target = $region12
    $region11: #{residual_block_3d.6} parent=5 // pred_region
      %s343 = ssub.s32 %s18, 1
      // Predicated region
      $region13: #{residual_block_3d.6} parent=11 // pred_check
        %p344 = pneg %p84
      $region14: #{residual_block_3d.6} parent=11 // pred_check_branch
        %346 = sbr.rel (%p344) target = $region16
      $region15: #{residual_block_3d.6} parent=11 // pred_region
        %s347 = smul.u32 32, %s28
        %p348 = scmp.lt.s32.totalorder %s347, 31
        %s349 = scalar_select %p348, %s347, 31
        %s350 = smul.addr %s349, 4
        %s351 = scalar_lea.vmem %s1, %s350
        %s352 = smul.u32 32, %s28
      $region16: #{residual_block_3d.6} parent=11 // pred_fallthru
        _
      // Predicated region
      $region17: #{residual_block_3d.6} parent=11 // pred_check
        %p353 = pneg %p105
      $region18: #{residual_block_3d.6} parent=11 // pred_check_branch
        %355 = sbr.rel (%p353) target = $region20
      $region19: #{residual_block_3d.6} parent=11 // pred_region
        _
      $region20: #{residual_block_3d.6} parent=11 // pred_fallthru
        _
      // Predicated region
      $region21: #{residual_block_3d.6} parent=11 // pred_check
        %p356 = pneg %p152
      $region22: #{residual_block_3d.6} parent=11 // pred_check_branch
        %358 = sbr.rel (%p356) target = $region24
      $region23: #{residual_block_3d.6} parent=11 // pred_region
        _
      $region24: #{residual_block_3d.6} parent=11 // pred_fallthru
        _
      // Predicated region
      $region25: #{residual_block_3d.6} parent=11 // pred_check
        %p359 = pneg %p173
      $region26: #{residual_block_3d.6} parent=11 // pred_check_branch
        %361 = sbr.rel (%p359) target = $region28
      $region27: #{residual_block_3d.6} parent=11 // pred_region
        _
      $region28: #{residual_block_3d.6} parent=11 // pred_fallthru
        _
    $region12: #{residual_block_3d.6} parent=5 // pred_fallthru
      _
    %p362 = scmp.lt.s32.totalorder %s18, 2
    // Predicated region
    $region29: #{residual_block_3d.6} parent=5 // pred_check
      %p363 = pneg %p362
    $region30: #{residual_block_3d.6} parent=5 // pred_check_branch
      %365 = sbr.rel (%p363) target = $region32
    $region31: #{residual_block_3d.6} parent=5 // pred_region
      // Predicated region
      $region33: #{residual_block_3d.6} parent=31 // pred_check
        %p366 = pneg %p52
      $region34: #{residual_block_3d.6} parent=31 // pred_check_branch
        %368 = sbr.rel (%p366) target = $region36
      $region35: #{residual_block_3d.6} parent=31 // pred_region
        %s369 = smul.u32 64, %s25
        %s370 = smul.u32 2, %s26
        %p371 = scmp.lt.s32.totalorder %s369, 127
        %s372 = scalar_select %p371, %s369, 127
        %p373 = scmp.lt.s32.totalorder %s370, 1
        %s374 = scalar_select %p373, %s370, 1
        %s375 = smul.addr %s372, 2
        %s376 = sadd.s32 %s374, %s375
        %s377 = smul.addr %s376, 4
        %s378 = scalar_lea.vmem %s0, %s377
        %s379 = smul.u32 64, %s25
        %s380 = smul.u32 2, %s26
      $region36: #{residual_block_3d.6} parent=31 // pred_fallthru
        _
      // Predicated region
      $region37: #{residual_block_3d.6} parent=31 // pred_check
        %p381 = pneg %p125
      $region38: #{residual_block_3d.6} parent=31 // pred_check_branch
        %383 = sbr.rel (%p381) target = $region40
      $region39: #{residual_block_3d.6} parent=31 // pred_region
        %s384 = smul.u32 64, %s25
        %p385 = scmp.lt.s32.totalorder %s384, 127
        %s386 = scalar_select %p385, %s384, 127
        %s387 = smul.addr %s386, 4
        %s388 = scalar_lea.vmem %s3, %s387
        %s389 = smul.u32 64, %s25
      $region40: #{residual_block_3d.6} parent=31 // pred_fallthru
        _
    $region32: #{residual_block_3d.6} parent=5 // pred_fallthru
      _
    %p390 = scmp.le.s32.totalorder 1, %s18
    %p391 = scmp.lt.s32.totalorder %s18, 3
    %p392 = pnand %p390, %p391
    %p393 = pneg %p392
    // Predicated region
    $region41: #{residual_block_3d.6} parent=5 // pred_check
      _
    $region42: #{residual_block_3d.6} parent=5 // pred_check_branch
      %395 = sbr.rel (%p392) target = $region44
    $region43: #{residual_block_3d.6} parent=5 // pred_region
      %s396 = ssub.s32 %s18, 1
      %s397 = smul.u32 64, %s27
      %s398 = smul.u32 2, %s28
      %p399 = scmp.lt.s32.totalorder %s397, 127
      %s400 = scalar_select %p399, %s397, 127
      %p401 = scmp.lt.s32.totalorder %s398, 1
      %s402 = scalar_select %p401, %s398, 1
      %s403 = smul.addr %s400, 2
      %s404 = sadd.s32 %s402, %s403
      %s405 = smul.addr %s404, 4
      %s406 = scalar_lea.vmem %s0, %s405
      %p407 = pneg %p58
      %p408 = pneg %p55
      %s409 = smul.u32 32, %s28
      %p410 = scmp.lt.s32.totalorder %s409, 31
      %s411 = scalar_select %p410, %s409, 31
      %s412 = smul.addr %s411, 4
      %s413 = scalar_lea.vmem %s1, %s412
      %p414 = pneg %p84
      %p415 = pneg %p81
      %p416 = pneg %p105
      %p417 = pneg %p102
      %s418 = smul.u32 64, %s27
      %p419 = scmp.lt.s32.totalorder %s418, 127
      %s420 = scalar_select %p419, %s418, 127
      %s421 = smul.addr %s420, 4
      %s422 = scalar_lea.vmem %s3, %s421
      %p423 = pneg %p131
      %p424 = pneg %p128
      %p425 = pneg %p152
      %p426 = pneg %p149
      %p427 = pneg %p173
      %p428 = pneg %p170
      %p429 = pneg %p199
      %p430 = pneg %p196
      %s431 = smul.u32 64, %s27
      %p432 = scmp.lt.s32.totalorder %s431, 127
      %s433 = scalar_select %p432, %s431, 127
      %s434 = smul.addr %s433, 4
      %s435 = scalar_lea.vmem %s6, %s434
      %p436 = pneg %p225
      %p437 = pneg %p222
      %p438 = scmp.lt.s32.totalorder %s27, 1
      %s439 = scalar_select %p438, %s27, 1
      %s440 = scalar_lea.vmem %s7, %s439
      %p441 = pneg %p251
      %p442 = pneg %p248
      %p443 = scmp.lt.s32.totalorder %s27, 1
      %s444 = scalar_select %p443, %s27, 1
      %s445 = scalar_lea.vmem %s8, %s444
      %p446 = pneg %p277
      %p447 = pneg %p274
      %s448 = smul.u32 64, %s27
      %p449 = scmp.lt.s32.totalorder %s448, 127
      %s450 = scalar_select %p449, %s448, 127
      %s451 = smul.addr %s450, 4
      %s452 = scalar_lea.vmem %s9, %s451
      %p453 = pneg %p303
      %p454 = pneg %p300
      %p455 = scmp.lt.s32.totalorder %s27, 1
      %s456 = scalar_select %p455, %s27, 1
      %s457 = scalar_lea.vmem %s10, %s456
      %p458 = pneg %p329
      %p459 = pneg %p326
      %p460 = scmp.lt.s32.totalorder %s27, 1
      %s461 = scalar_select %p460, %s27, 1
      %s462 = scalar_lea.vmem %s11, %s461
      %s463 = smul.u32 64, %s27
      %s464 = smul.u32 2, %s28
      %p465 = scmp.lt.s32.totalorder %s463, 127
      %s466 = scalar_select %p465, %s463, 127
      %p467 = scmp.lt.s32.totalorder %s464, 1
      %s468 = scalar_select %p467, %s464, 1
      %s469 = smul.addr %s466, 2
      %s470 = sadd.s32 %s468, %s469
      %s471 = smul.addr %s470, 4
      %s472 = scalar_lea.vmem %s0, %s471
      %s473 = smul.u32 64, %s27
      %s474 = smul.u32 2, %s28
      %s475 = smul.u32 32, %s28
      %p476 = scmp.lt.s32.totalorder %s475, 31
      %s477 = scalar_select %p476, %s475, 31
      %s478 = smul.addr %s477, 4
      %s479 = scalar_lea.vmem %s1, %s478
      %s480 = smul.u32 32, %s28
      %s481 = smul.u32 64, %s27
      %p482 = scmp.lt.s32.totalorder %s481, 127
      %s483 = scalar_select %p482, %s481, 127
      %s484 = smul.addr %s483, 4
      %s485 = scalar_lea.vmem %s3, %s484
      %s486 = smul.u32 64, %s27
      %s487 = smul.u32 64, %s27
      %p488 = scmp.lt.s32.totalorder %s487, 127
      %s489 = scalar_select %p488, %s487, 127
      %s490 = smul.addr %s489, 4
      %s491 = scalar_lea.vmem %s6, %s490
      %s492 = smul.u32 64, %s27
      %p493 = scmp.lt.s32.totalorder %s27, 1
      %s494 = scalar_select %p493, %s27, 1
      %s495 = scalar_lea.vmem %s7, %s494
      %p496 = scmp.lt.s32.totalorder %s27, 1
      %s497 = scalar_select %p496, %s27, 1
      %s498 = scalar_lea.vmem %s8, %s497
      %s499 = smul.u32 64, %s27
      %p500 = scmp.lt.s32.totalorder %s499, 127
      %s501 = scalar_select %p500, %s499, 127
      %s502 = smul.addr %s501, 4
      %s503 = scalar_lea.vmem %s9, %s502
      %s504 = smul.u32 64, %s27
      %p505 = scmp.lt.s32.totalorder %s27, 1
      %s506 = scalar_select %p505, %s27, 1
      %s507 = scalar_lea.vmem %s10, %s506
      %p508 = scmp.lt.s32.totalorder %s27, 1
      %s509 = scalar_select %p508, %s27, 1
      %s510 = scalar_lea.vmem %s11, %s509
      %p511 = scmp.eq.s32.totalorder %s28, 0
      // Predicated region
      $region45: #{residual_block_3d.6} parent=43 // pred_check
        %p512 = pneg %p511
      $region46: #{residual_block_3d.6} parent=43 // pred_check_branch
        %514 = sbr.rel (%p512) target = $region48
      $region47: #{residual_block_3d.6} parent=43 // pred_region
        %515 = vst [vmem:[#allocation2] sm:$0xff] 0.0
        %516 = vst [vmem:[#allocation2 + $0x8] sm:$0xff] 0.0
        %517 = vst [vmem:[#allocation2 + $0x10] sm:$0xff] 0.0
        %518 = vst [vmem:[#allocation2 + $0x18] sm:$0xff] 0.0
        %519 = vst [vmem:[#allocation2 + $0x20] sm:$0xff] 0.0
        %520 = vst [vmem:[#allocation2 + $0x28] sm:$0xff] 0.0
        %521 = vst [vmem:[#allocation2 + $0x30] sm:$0xff] 0.0
        %522 = vst [vmem:[#allocation2 + $0x38] sm:$0xff] 0.0
        %523 = vst [vmem:[#allocation2 + $0x40] sm:$0xff] 0.0
        %524 = vst [vmem:[#allocation2 + $0x48] sm:$0xff] 0.0
        %525 = vst [vmem:[#allocation2 + $0x50] sm:$0xff] 0.0
        %526 = vst [vmem:[#allocation2 + $0x58] sm:$0xff] 0.0
        %527 = vst [vmem:[#allocation2 + $0x60] sm:$0xff] 0.0
        %528 = vst [vmem:[#allocation2 + $0x68] sm:$0xff] 0.0
        %529 = vst [vmem:[#allocation2 + $0x70] sm:$0xff] 0.0
        %530 = vst [vmem:[#allocation2 + $0x78] sm:$0xff] 0.0
        %531 = vst [vmem:[#allocation2 + $0x80] sm:$0xff] 0.0
        %532 = vst [vmem:[#allocation2 + $0x88] sm:$0xff] 0.0
        %533 = vst [vmem:[#allocation2 + $0x90] sm:$0xff] 0.0
        %534 = vst [vmem:[#allocation2 + $0x98] sm:$0xff] 0.0
        %535 = vst [vmem:[#allocation2 + $0xa0] sm:$0xff] 0.0
        %536 = vst [vmem:[#allocation2 + $0xa8] sm:$0xff] 0.0
        %537 = vst [vmem:[#allocation2 + $0xb0] sm:$0xff] 0.0
        %538 = vst [vmem:[#allocation2 + $0xb8] sm:$0xff] 0.0
        %539 = vst [vmem:[#allocation2 + $0xc0] sm:$0xff] 0.0
        %540 = vst [vmem:[#allocation2 + $0xc8] sm:$0xff] 0.0
        %541 = vst [vmem:[#allocation2 + $0xd0] sm:$0xff] 0.0
        %542 = vst [vmem:[#allocation2 + $0xd8] sm:$0xff] 0.0
        %543 = vst [vmem:[#allocation2 + $0xe0] sm:$0xff] 0.0
        %544 = vst [vmem:[#allocation2 + $0xe8] sm:$0xff] 0.0
        %545 = vst [vmem:[#allocation2 + $0xf0] sm:$0xff] 0.0
        %546 = vst [vmem:[#allocation2 + $0xf8] sm:$0xff] 0.0
        %547 = vst [vmem:[#allocation2 + $0x100] sm:$0xff] 0.0
        %548 = vst [vmem:[#allocation2 + $0x108] sm:$0xff] 0.0
        %549 = vst [vmem:[#allocation2 + $0x110] sm:$0xff] 0.0
        %550 = vst [vmem:[#allocation2 + $0x118] sm:$0xff] 0.0
        %551 = vst [vmem:[#allocation2 + $0x120] sm:$0xff] 0.0
        %552 = vst [vmem:[#allocation2 + $0x128] sm:$0xff] 0.0
        %553 = vst [vmem:[#allocation2 + $0x130] sm:$0xff] 0.0
        %554 = vst [vmem:[#allocation2 + $0x138] sm:$0xff] 0.0
        %555 = vst [vmem:[#allocation2 + $0x140] sm:$0xff] 0.0
        %556 = vst [vmem:[#allocation2 + $0x148] sm:$0xff] 0.0
        %557 = vst [vmem:[#allocation2 + $0x150] sm:$0xff] 0.0
        %558 = vst [vmem:[#allocation2 + $0x158] sm:$0xff] 0.0
        %559 = vst [vmem:[#allocation2 + $0x160] sm:$0xff] 0.0
        %560 = vst [vmem:[#allocation2 + $0x168] sm:$0xff] 0.0
        %561 = vst [vmem:[#allocation2 + $0x170] sm:$0xff] 0.0
        %562 = vst [vmem:[#allocation2 + $0x178] sm:$0xff] 0.0
        %563 = vst [vmem:[#allocation2 + $0x180] sm:$0xff] 0.0
        %564 = vst [vmem:[#allocation2 + $0x188] sm:$0xff] 0.0
        %565 = vst [vmem:[#allocation2 + $0x190] sm:$0xff] 0.0
        %566 = vst [vmem:[#allocation2 + $0x198] sm:$0xff] 0.0
        %567 = vst [vmem:[#allocation2 + $0x1a0] sm:$0xff] 0.0
        %568 = vst [vmem:[#allocation2 + $0x1a8] sm:$0xff] 0.0
        %569 = vst [vmem:[#allocation2 + $0x1b0] sm:$0xff] 0.0
        %570 = vst [vmem:[#allocation2 + $0x1b8] sm:$0xff] 0.0
        %571 = vst [vmem:[#allocation2 + $0x1c0] sm:$0xff] 0.0
        %572 = vst [vmem:[#allocation2 + $0x1c8] sm:$0xff] 0.0
        %573 = vst [vmem:[#allocation2 + $0x1d0] sm:$0xff] 0.0
        %574 = vst [vmem:[#allocation2 + $0x1d8] sm:$0xff] 0.0
        %575 = vst [vmem:[#allocation2 + $0x1e0] sm:$0xff] 0.0
        %576 = vst [vmem:[#allocation2 + $0x1e8] sm:$0xff] 0.0
        %577 = vst [vmem:[#allocation2 + $0x1f0] sm:$0xff] 0.0
        %578 = vst [vmem:[#allocation2 + $0x1f8] sm:$0xff] 0.0
        %v579 = vld [vmem:[%s485] sm:$0xf]
        %v580 = vld [vmem:[%s485 + $0x4] sm:$0xf]
        %v581 = vld [vmem:[%s485 + $0x8] sm:$0xf]
        %v582 = vld [vmem:[%s485 + $0xc] sm:$0xf]
        %v583 = vld [vmem:[%s485 + $0x10] sm:$0xf]
        %v584 = vld [vmem:[%s485 + $0x14] sm:$0xf]
        %v585 = vld [vmem:[%s485 + $0x18] sm:$0xf]
        %v586 = vld [vmem:[%s485 + $0x1c] sm:$0xf]
        %v587 = vld [vmem:[%s485 + $0x20] sm:$0xf]
        %v588 = vld [vmem:[%s485 + $0x24] sm:$0xf]
        %v589 = vld [vmem:[%s485 + $0x28] sm:$0xf]
        %v590 = vld [vmem:[%s485 + $0x2c] sm:$0xf]
        %v591 = vld [vmem:[%s485 + $0x30] sm:$0xf]
        %v592 = vld [vmem:[%s485 + $0x34] sm:$0xf]
        %v593 = vld [vmem:[%s485 + $0x38] sm:$0xf]
        %v594 = vld [vmem:[%s485 + $0x3c] sm:$0xf]
        %v595 = vld [vmem:[%s485 + $0x40] sm:$0xf]
        %v596 = vld [vmem:[%s485 + $0x44] sm:$0xf]
        %v597 = vld [vmem:[%s485 + $0x48] sm:$0xf]
        %v598 = vld [vmem:[%s485 + $0x4c] sm:$0xf]
        %v599 = vld [vmem:[%s485 + $0x50] sm:$0xf]
        %v600 = vld [vmem:[%s485 + $0x54] sm:$0xf]
        %v601 = vld [vmem:[%s485 + $0x58] sm:$0xf]
        %v602 = vld [vmem:[%s485 + $0x5c] sm:$0xf]
        %v603 = vld [vmem:[%s485 + $0x60] sm:$0xf]
        %v604 = vld [vmem:[%s485 + $0x64] sm:$0xf]
        %v605 = vld [vmem:[%s485 + $0x68] sm:$0xf]
        %v606 = vld [vmem:[%s485 + $0x6c] sm:$0xf]
        %v607 = vld [vmem:[%s485 + $0x70] sm:$0xf]
        %v608 = vld [vmem:[%s485 + $0x74] sm:$0xf]
        %v609 = vld [vmem:[%s485 + $0x78] sm:$0xf]
        %v610 = vld [vmem:[%s485 + $0x7c] sm:$0xf]
        %v611 = vld [vmem:[%s485 + $0x80] sm:$0xf]
        %v612 = vld [vmem:[%s485 + $0x84] sm:$0xf]
        %v613 = vld [vmem:[%s485 + $0x88] sm:$0xf]
        %v614 = vld [vmem:[%s485 + $0x8c] sm:$0xf]
        %v615 = vld [vmem:[%s485 + $0x90] sm:$0xf]
        %v616 = vld [vmem:[%s485 + $0x94] sm:$0xf]
        %v617 = vld [vmem:[%s485 + $0x98] sm:$0xf]
        %v618 = vld [vmem:[%s485 + $0x9c] sm:$0xf]
        %v619 = vld [vmem:[%s485 + $0xa0] sm:$0xf]
        %v620 = vld [vmem:[%s485 + $0xa4] sm:$0xf]
        %v621 = vld [vmem:[%s485 + $0xa8] sm:$0xf]
        %v622 = vld [vmem:[%s485 + $0xac] sm:$0xf]
        %v623 = vld [vmem:[%s485 + $0xb0] sm:$0xf]
        %v624 = vld [vmem:[%s485 + $0xb4] sm:$0xf]
        %v625 = vld [vmem:[%s485 + $0xb8] sm:$0xf]
        %v626 = vld [vmem:[%s485 + $0xbc] sm:$0xf]
        %v627 = vld [vmem:[%s485 + $0xc0] sm:$0xf]
        %v628 = vld [vmem:[%s485 + $0xc4] sm:$0xf]
        %v629 = vld [vmem:[%s485 + $0xc8] sm:$0xf]
        %v630 = vld [vmem:[%s485 + $0xcc] sm:$0xf]
        %v631 = vld [vmem:[%s485 + $0xd0] sm:$0xf]
        %v632 = vld [vmem:[%s485 + $0xd4] sm:$0xf]
        %v633 = vld [vmem:[%s485 + $0xd8] sm:$0xf]
        %v634 = vld [vmem:[%s485 + $0xdc] sm:$0xf]
        %v635 = vld [vmem:[%s485 + $0xe0] sm:$0xf]
        %v636 = vld [vmem:[%s485 + $0xe4] sm:$0xf]
        %v637 = vld [vmem:[%s485 + $0xe8] sm:$0xf]
        %v638 = vld [vmem:[%s485 + $0xec] sm:$0xf]
        %v639 = vld [vmem:[%s485 + $0xf0] sm:$0xf]
        %v640 = vld [vmem:[%s485 + $0xf4] sm:$0xf]
        %v641 = vld [vmem:[%s485 + $0xf8] sm:$0xf]
        %v642 = vld [vmem:[%s485 + $0xfc] sm:$0xf]
        %v643 = vld [vmem:[%s4] sm:$0xf]
        %v644 = vld [vmem:[%s4 + $0x4] sm:$0xf]
        %v645 = vld [vmem:[%s4 + $0x8] sm:$0xf]
        %v646 = vld [vmem:[%s4 + $0xc] sm:$0xf]
        %v647 = vld [vmem:[%s4 + $0x10] sm:$0xf]
        %v648 = vld [vmem:[%s4 + $0x14] sm:$0xf]
        %v649 = vld [vmem:[%s4 + $0x18] sm:$0xf]
        %v650 = vld [vmem:[%s4 + $0x1c] sm:$0xf]
        %v651 = vld [vmem:[%s4 + $0x20] sm:$0xf]
        %v652 = vld [vmem:[%s4 + $0x24] sm:$0xf]
        %v653 = vld [vmem:[%s4 + $0x28] sm:$0xf]
        %v654 = vld [vmem:[%s4 + $0x2c] sm:$0xf]
        %v655 = vld [vmem:[%s4 + $0x30] sm:$0xf]
        %v656 = vld [vmem:[%s4 + $0x34] sm:$0xf]
        %v657 = vld [vmem:[%s4 + $0x38] sm:$0xf]
        %v658 = vld [vmem:[%s4 + $0x3c] sm:$0xf]
        %v659 = vld [vmem:[%s5] sm:$0x1]
        %v661 = vperm.slane %v659, 0
        %v727 = vunpack.c.l.b16 %v579
        %v728 = vunpack.c.l.b16 %v580
        %v729 = vunpack.c.l.b16 %v581
        %v730 = vunpack.c.l.b16 %v582
        %v731 = vunpack.c.l.b16 %v583
        %v732 = vunpack.c.l.b16 %v584
        %v733 = vunpack.c.l.b16 %v585
        %v734 = vunpack.c.l.b16 %v586
        %v735 = vunpack.c.l.b16 %v587
        %v736 = vunpack.c.l.b16 %v588
        %v737 = vunpack.c.l.b16 %v589
        %v738 = vunpack.c.l.b16 %v590
        %v739 = vunpack.c.l.b16 %v591
        %v740 = vunpack.c.l.b16 %v592
        %v741 = vunpack.c.l.b16 %v593
        %v742 = vunpack.c.l.b16 %v594
        %v743 = vunpack.c.l.b16 %v595
        %v744 = vunpack.c.l.b16 %v596
        %v745 = vunpack.c.l.b16 %v597
        %v746 = vunpack.c.l.b16 %v598
        %v747 = vunpack.c.l.b16 %v599
        %v748 = vunpack.c.l.b16 %v600
        %v749 = vunpack.c.l.b16 %v601
        %v750 = vunpack.c.l.b16 %v602
        %v751 = vunpack.c.l.b16 %v603
        %v752 = vunpack.c.l.b16 %v604
        %v753 = vunpack.c.l.b16 %v605
        %v754 = vunpack.c.l.b16 %v606
        %v755 = vunpack.c.l.b16 %v607
        %v756 = vunpack.c.l.b16 %v608
        %v757 = vunpack.c.l.b16 %v609
        %v758 = vunpack.c.l.b16 %v610
        %v759 = vunpack.c.l.b16 %v611
        %v760 = vunpack.c.l.b16 %v612
        %v761 = vunpack.c.l.b16 %v613
        %v762 = vunpack.c.l.b16 %v614
        %v763 = vunpack.c.l.b16 %v615
        %v764 = vunpack.c.l.b16 %v616
        %v765 = vunpack.c.l.b16 %v617
        %v766 = vunpack.c.l.b16 %v618
        %v767 = vunpack.c.l.b16 %v619
        %v768 = vunpack.c.l.b16 %v620
        %v769 = vunpack.c.l.b16 %v621
        %v770 = vunpack.c.l.b16 %v622
        %v771 = vunpack.c.l.b16 %v623
        %v772 = vunpack.c.l.b16 %v624
        %v773 = vunpack.c.l.b16 %v625
        %v774 = vunpack.c.l.b16 %v626
        %v775 = vunpack.c.l.b16 %v627
        %v776 = vunpack.c.l.b16 %v628
        %v777 = vunpack.c.l.b16 %v629
        %v778 = vunpack.c.l.b16 %v630
        %v779 = vunpack.c.l.b16 %v631
        %v780 = vunpack.c.l.b16 %v632
        %v781 = vunpack.c.l.b16 %v633
        %v782 = vunpack.c.l.b16 %v634
        %v783 = vunpack.c.l.b16 %v635
        %v784 = vunpack.c.l.b16 %v636
        %v785 = vunpack.c.l.b16 %v637
        %v786 = vunpack.c.l.b16 %v638
        %v787 = vunpack.c.l.b16 %v639
        %v788 = vunpack.c.l.b16 %v640
        %v789 = vunpack.c.l.b16 %v641
        %v790 = vunpack.c.l.b16 %v642
        %v791 = vpack.c.b16 %v728, %v727
        %v792 = vpack.c.b16 %v730, %v729
        %v793 = vpack.c.b16 %v732, %v731
        %v794 = vpack.c.b16 %v734, %v733
        %v795 = vpack.c.b16 %v736, %v735
        %v796 = vpack.c.b16 %v738, %v737
        %v797 = vpack.c.b16 %v740, %v739
        %v798 = vpack.c.b16 %v742, %v741
        %v799 = vpack.c.b16 %v744, %v743
        %v800 = vpack.c.b16 %v746, %v745
        %v801 = vpack.c.b16 %v748, %v747
        %v802 = vpack.c.b16 %v750, %v749
        %v803 = vpack.c.b16 %v752, %v751
        %v804 = vpack.c.b16 %v754, %v753
        %v805 = vpack.c.b16 %v756, %v755
        %v806 = vpack.c.b16 %v758, %v757
        %v807 = vpack.c.b16 %v760, %v759
        %v808 = vpack.c.b16 %v762, %v761
        %v809 = vpack.c.b16 %v764, %v763
        %v810 = vpack.c.b16 %v766, %v765
        %v811 = vpack.c.b16 %v768, %v767
        %v812 = vpack.c.b16 %v770, %v769
        %v813 = vpack.c.b16 %v772, %v771
        %v814 = vpack.c.b16 %v774, %v773
        %v815 = vpack.c.b16 %v776, %v775
        %v816 = vpack.c.b16 %v778, %v777
        %v817 = vpack.c.b16 %v780, %v779
        %v818 = vpack.c.b16 %v782, %v781
        %v819 = vpack.c.b16 %v784, %v783
        %v820 = vpack.c.b16 %v786, %v785
        %v821 = vpack.c.b16 %v788, %v787
        %v822 = vpack.c.b16 %v790, %v789
        %v871 = vunpack.c.l.b16 %v643
        %v872 = vunpack.c.l.b16 %v644
        %v873 = vunpack.c.l.b16 %v645
        %v874 = vunpack.c.l.b16 %v646
        %v875 = vunpack.c.l.b16 %v647
        %v876 = vunpack.c.l.b16 %v648
        %v877 = vunpack.c.l.b16 %v649
        %v878 = vunpack.c.l.b16 %v650
        %v879 = vunpack.c.l.b16 %v651
        %v880 = vunpack.c.l.b16 %v652
        %v881 = vunpack.c.l.b16 %v653
        %v882 = vunpack.c.l.b16 %v654
        %v883 = vunpack.c.l.b16 %v655
        %v884 = vunpack.c.l.b16 %v656
        %v885 = vunpack.c.l.b16 %v657
        %v886 = vunpack.c.l.b16 %v658
        %v887 = vpack.c.b16 %v872, %v871
        %v888 = vpack.c.b16 %v874, %v873
        %v889 = vpack.c.b16 %v876, %v875
        %v890 = vpack.c.b16 %v878, %v877
        %v891 = vpack.c.b16 %v880, %v879
        %v892 = vpack.c.b16 %v882, %v881
        %v893 = vpack.c.b16 %v884, %v883
        %v894 = vpack.c.b16 %v886, %v885
        %903 = vmatpush.bf16.msra.mxu0 %v894
        %904 = vmatpush.bf16.msra.mxu0 %v893
        %905 = vmatpush.bf16.msra.mxu0 %v892
        %906 = vmatpush.bf16.msra.mxu0 %v891
        %907 = vmatpush.bf16.msra.mxu0 %v890
        %908 = vmatpush.bf16.msra.mxu0 %v889
        %909 = vmatpush.bf16.msra.mxu0 %v888
        %910 = vmatpush.bf16.msra.mxu0 %v887
        %911 = vmatmul.bf16.gmra.mxu0 %v791
        %v912 = vpop.f32.mrf.mxu0
        %v913 = vadd.f32 %v661, %v912
        %v914 = vpop.f32.mrf.mxu0
        %v915 = vadd.f32 %v661, %v914
        %916 = vmatmul.bf16.gmra.mxu0 %v792
        %v917 = vpop.f32.mrf.mxu0
        %v918 = vadd.f32 %v661, %v917
        %v919 = vpop.f32.mrf.mxu0
        %v920 = vadd.f32 %v661, %v919
        %921 = vmatmul.bf16.gmra.mxu0 %v793
        %v922 = vpop.f32.mrf.mxu0
        %v923 = vadd.f32 %v661, %v922
        %v924 = vpop.f32.mrf.mxu0
        %v925 = vadd.f32 %v661, %v924
        %926 = vmatmul.bf16.gmra.mxu0 %v794
        %v927 = vpop.f32.mrf.mxu0
        %v928 = vadd.f32 %v661, %v927
        %v929 = vpop.f32.mrf.mxu0
        %v930 = vadd.f32 %v661, %v929
        %931 = vmatmul.bf16.gmra.mxu0 %v795
        %v932 = vpop.f32.mrf.mxu0
        %v933 = vadd.f32 %v661, %v932
        %v934 = vpop.f32.mrf.mxu0
        %v935 = vadd.f32 %v661, %v934
        %936 = vmatmul.bf16.gmra.mxu0 %v796
        %v937 = vpop.f32.mrf.mxu0
        %v938 = vadd.f32 %v661, %v937
        %v939 = vpop.f32.mrf.mxu0
        %v940 = vadd.f32 %v661, %v939
        %941 = vmatmul.bf16.gmra.mxu0 %v797
        %v942 = vpop.f32.mrf.mxu0
        %v943 = vadd.f32 %v661, %v942
        %v944 = vpop.f32.mrf.mxu0
        %v945 = vadd.f32 %v661, %v944
        %946 = vmatmul.bf16.gmra.mxu0 %v798
        %v947 = vpop.f32.mrf.mxu0
        %v948 = vadd.f32 %v661, %v947
        %v949 = vpop.f32.mrf.mxu0
        %v950 = vadd.f32 %v661, %v949
        %951 = vmatmul.bf16.gmra.mxu0 %v799
        %v952 = vpop.f32.mrf.mxu0
        %v953 = vadd.f32 %v661, %v952
        %v954 = vpop.f32.mrf.mxu0
        %v955 = vadd.f32 %v661, %v954
        %956 = vmatmul.bf16.gmra.mxu0 %v800
        %v957 = vpop.f32.mrf.mxu0
        %v958 = vadd.f32 %v661, %v957
        %v959 = vpop.f32.mrf.mxu0
        %v960 = vadd.f32 %v661, %v959
        %961 = vmatmul.bf16.gmra.mxu0 %v801
        %v962 = vpop.f32.mrf.mxu0
        %v963 = vadd.f32 %v661, %v962
        %v964 = vpop.f32.mrf.mxu0
        %v965 = vadd.f32 %v661, %v964
        %966 = vmatmul.bf16.gmra.mxu0 %v802
        %v967 = vpop.f32.mrf.mxu0
        %v968 = vadd.f32 %v661, %v967
        %v969 = vpop.f32.mrf.mxu0
        %v970 = vadd.f32 %v661, %v969
        %971 = vmatmul.bf16.gmra.mxu0 %v803
        %v972 = vpop.f32.mrf.mxu0
        %v973 = vadd.f32 %v661, %v972
        %v974 = vpop.f32.mrf.mxu0
        %v975 = vadd.f32 %v661, %v974
        %976 = vmatmul.bf16.gmra.mxu0 %v804
        %v977 = vpop.f32.mrf.mxu0
        %v978 = vadd.f32 %v661, %v977
        %v979 = vpop.f32.mrf.mxu0
        %v980 = vadd.f32 %v661, %v979
        %981 = vmatmul.bf16.gmra.mxu0 %v805
        %v982 = vpop.f32.mrf.mxu0
        %v983 = vadd.f32 %v661, %v982
        %v984 = vpop.f32.mrf.mxu0
        %v985 = vadd.f32 %v661, %v984
        %986 = vmatmul.bf16.gmra.mxu0 %v806
        %v987 = vpop.f32.mrf.mxu0
        %v988 = vadd.f32 %v661, %v987
        %v989 = vpop.f32.mrf.mxu0
        %v990 = vadd.f32 %v661, %v989
        %991 = vmatmul.bf16.gmra.mxu0 %v807
        %v992 = vpop.f32.mrf.mxu0
        %v993 = vadd.f32 %v661, %v992
        %v994 = vpop.f32.mrf.mxu0
        %v995 = vadd.f32 %v661, %v994
        %996 = vmatmul.bf16.gmra.mxu0 %v808
        %v997 = vpop.f32.mrf.mxu0
        %v998 = vadd.f32 %v661, %v997
        %v999 = vpop.f32.mrf.mxu0
        %v1000 = vadd.f32 %v661, %v999
        %1001 = vmatmul.bf16.gmra.mxu0 %v809
        %v1002 = vpop.f32.mrf.mxu0
        %v1003 = vadd.f32 %v661, %v1002
        %v1004 = vpop.f32.mrf.mxu0
        %v1005 = vadd.f32 %v661, %v1004
        %1006 = vmatmul.bf16.gmra.mxu0 %v810
        %v1007 = vpop.f32.mrf.mxu0
        %v1008 = vadd.f32 %v661, %v1007
        %v1009 = vpop.f32.mrf.mxu0
        %v1010 = vadd.f32 %v661, %v1009
        %1011 = vmatmul.bf16.gmra.mxu0 %v811
        %v1012 = vpop.f32.mrf.mxu0
        %v1013 = vadd.f32 %v661, %v1012
        %v1014 = vpop.f32.mrf.mxu0
        %v1015 = vadd.f32 %v661, %v1014
        %1016 = vmatmul.bf16.gmra.mxu0 %v812
        %v1017 = vpop.f32.mrf.mxu0
        %v1018 = vadd.f32 %v661, %v1017
        %v1019 = vpop.f32.mrf.mxu0
        %v1020 = vadd.f32 %v661, %v1019
        %1021 = vmatmul.bf16.gmra.mxu0 %v813
        %v1022 = vpop.f32.mrf.mxu0
        %v1023 = vadd.f32 %v661, %v1022
        %v1024 = vpop.f32.mrf.mxu0
        %v1025 = vadd.f32 %v661, %v1024
        %1026 = vmatmul.bf16.gmra.mxu0 %v814
        %v1027 = vpop.f32.mrf.mxu0
        %v1028 = vadd.f32 %v661, %v1027
        %v1029 = vpop.f32.mrf.mxu0
        %v1030 = vadd.f32 %v661, %v1029
        %1031 = vmatmul.bf16.gmra.mxu0 %v815
        %v1032 = vpop.f32.mrf.mxu0
        %v1033 = vadd.f32 %v661, %v1032
        %v1034 = vpop.f32.mrf.mxu0
        %v1035 = vadd.f32 %v661, %v1034
        %1036 = vmatmul.bf16.gmra.mxu0 %v816
        %v1037 = vpop.f32.mrf.mxu0
        %v1038 = vadd.f32 %v661, %v1037
        %v1039 = vpop.f32.mrf.mxu0
        %v1040 = vadd.f32 %v661, %v1039
        %1041 = vmatmul.bf16.gmra.mxu0 %v817
        %v1042 = vpop.f32.mrf.mxu0
        %v1043 = vadd.f32 %v661, %v1042
        %v1044 = vpop.f32.mrf.mxu0
        %v1045 = vadd.f32 %v661, %v1044
        %1046 = vmatmul.bf16.gmra.mxu0 %v818
        %v1047 = vpop.f32.mrf.mxu0
        %v1048 = vadd.f32 %v661, %v1047
        %v1049 = vpop.f32.mrf.mxu0
        %v1050 = vadd.f32 %v661, %v1049
        %1051 = vmatmul.bf16.gmra.mxu0 %v819
        %v1052 = vpop.f32.mrf.mxu0
        %v1053 = vadd.f32 %v661, %v1052
        %v1054 = vpop.f32.mrf.mxu0
        %v1055 = vadd.f32 %v661, %v1054
        %1056 = vmatmul.bf16.gmra.mxu0 %v820
        %v1057 = vpop.f32.mrf.mxu0
        %v1058 = vadd.f32 %v661, %v1057
        %v1059 = vpop.f32.mrf.mxu0
        %v1060 = vadd.f32 %v661, %v1059
        %1061 = vmatmul.bf16.gmra.mxu0 %v821
        %v1062 = vpop.f32.mrf.mxu0
        %v1063 = vadd.f32 %v661, %v1062
        %v1064 = vpop.f32.mrf.mxu0
        %v1065 = vadd.f32 %v661, %v1064
        %1066 = vmatmul.bf16.gmra.mxu0 %v822
        %v1067 = vpop.f32.mrf.mxu0
        %v1068 = vadd.f32 %v661, %v1067
        %v1069 = vpop.f32.mrf.mxu0
        %v1070 = vadd.f32 %v661, %v1069
        %1071 = vdwg.mxu0
        %v1072 = vpack.c.bf16 %v913, %v913
        %v1073 = vpack.c.bf16 %v915, %v915
        %v1074 = vpack.c.bf16 %v918, %v918
        %v1075 = vpack.c.bf16 %v920, %v920
        %v1076 = vpack.c.bf16 %v923, %v923
        %v1077 = vpack.c.bf16 %v925, %v925
        %v1078 = vpack.c.bf16 %v928, %v928
        %v1079 = vpack.c.bf16 %v930, %v930
        %v1080 = vpack.c.bf16 %v933, %v933
        %v1081 = vpack.c.bf16 %v935, %v935
        %v1082 = vpack.c.bf16 %v938, %v938
        %v1083 = vpack.c.bf16 %v940, %v940
        %v1084 = vpack.c.bf16 %v943, %v943
        %v1085 = vpack.c.bf16 %v945, %v945
        %v1086 = vpack.c.bf16 %v948, %v948
        %v1087 = vpack.c.bf16 %v950, %v950
        %v1088 = vpack.c.bf16 %v953, %v953
        %v1089 = vpack.c.bf16 %v955, %v955
        %v1090 = vpack.c.bf16 %v958, %v958
        %v1091 = vpack.c.bf16 %v960, %v960
        %v1092 = vpack.c.bf16 %v963, %v963
        %v1093 = vpack.c.bf16 %v965, %v965
        %v1094 = vpack.c.bf16 %v968, %v968
        %v1095 = vpack.c.bf16 %v970, %v970
        %v1096 = vpack.c.bf16 %v973, %v973
        %v1097 = vpack.c.bf16 %v975, %v975
        %v1098 = vpack.c.bf16 %v978, %v978
        %v1099 = vpack.c.bf16 %v980, %v980
        %v1100 = vpack.c.bf16 %v983, %v983
        %v1101 = vpack.c.bf16 %v985, %v985
        %v1102 = vpack.c.bf16 %v988, %v988
        %v1103 = vpack.c.bf16 %v990, %v990
        %v1104 = vpack.c.bf16 %v993, %v993
        %v1105 = vpack.c.bf16 %v995, %v995
        %v1106 = vpack.c.bf16 %v998, %v998
        %v1107 = vpack.c.bf16 %v1000, %v1000
        %v1108 = vpack.c.bf16 %v1003, %v1003
        %v1109 = vpack.c.bf16 %v1005, %v1005
        %v1110 = vpack.c.bf16 %v1008, %v1008
        %v1111 = vpack.c.bf16 %v1010, %v1010
        %v1112 = vpack.c.bf16 %v1013, %v1013
        %v1113 = vpack.c.bf16 %v1015, %v1015
        %v1114 = vpack.c.bf16 %v1018, %v1018
        %v1115 = vpack.c.bf16 %v1020, %v1020
        %v1116 = vpack.c.bf16 %v1023, %v1023
        %v1117 = vpack.c.bf16 %v1025, %v1025
        %v1118 = vpack.c.bf16 %v1028, %v1028
        %v1119 = vpack.c.bf16 %v1030, %v1030
        %v1120 = vpack.c.bf16 %v1033, %v1033
        %v1121 = vpack.c.bf16 %v1035, %v1035
        %v1122 = vpack.c.bf16 %v1038, %v1038
        %v1123 = vpack.c.bf16 %v1040, %v1040
        %v1124 = vpack.c.bf16 %v1043, %v1043
        %v1125 = vpack.c.bf16 %v1045, %v1045
        %v1126 = vpack.c.bf16 %v1048, %v1048
        %v1127 = vpack.c.bf16 %v1050, %v1050
        %v1128 = vpack.c.bf16 %v1053, %v1053
        %v1129 = vpack.c.bf16 %v1055, %v1055
        %v1130 = vpack.c.bf16 %v1058, %v1058
        %v1131 = vpack.c.bf16 %v1060, %v1060
        %v1132 = vpack.c.bf16 %v1063, %v1063
        %v1133 = vpack.c.bf16 %v1065, %v1065
        %v1134 = vpack.c.bf16 %v1068, %v1068
        %v1135 = vpack.c.bf16 %v1070, %v1070
        %1136 = vst [vmem:[%s503] sm:$0xf] %v1072
        %1137 = vst [vmem:[%s503 + $0x4] sm:$0xf] %v1073
        %1138 = vst [vmem:[%s503 + $0x8] sm:$0xf] %v1074
        %1139 = vst [vmem:[%s503 + $0xc] sm:$0xf] %v1075
        %1140 = vst [vmem:[%s503 + $0x10] sm:$0xf] %v1076
        %1141 = vst [vmem:[%s503 + $0x14] sm:$0xf] %v1077
        %1142 = vst [vmem:[%s503 + $0x18] sm:$0xf] %v1078
        %1143 = vst [vmem:[%s503 + $0x1c] sm:$0xf] %v1079
        %1144 = vst [vmem:[%s503 + $0x20] sm:$0xf] %v1080
        %1145 = vst [vmem:[%s503 + $0x24] sm:$0xf] %v1081
        %1146 = vst [vmem:[%s503 + $0x28] sm:$0xf] %v1082
        %1147 = vst [vmem:[%s503 + $0x2c] sm:$0xf] %v1083
        %1148 = vst [vmem:[%s503 + $0x30] sm:$0xf] %v1084
        %1149 = vst [vmem:[%s503 + $0x34] sm:$0xf] %v1085
        %1150 = vst [vmem:[%s503 + $0x38] sm:$0xf] %v1086
        %1151 = vst [vmem:[%s503 + $0x3c] sm:$0xf] %v1087
        %1152 = vst [vmem:[%s503 + $0x40] sm:$0xf] %v1088
        %1153 = vst [vmem:[%s503 + $0x44] sm:$0xf] %v1089
        %1154 = vst [vmem:[%s503 + $0x48] sm:$0xf] %v1090
        %1155 = vst [vmem:[%s503 + $0x4c] sm:$0xf] %v1091
        %1156 = vst [vmem:[%s503 + $0x50] sm:$0xf] %v1092
        %1157 = vst [vmem:[%s503 + $0x54] sm:$0xf] %v1093
        %1158 = vst [vmem:[%s503 + $0x58] sm:$0xf] %v1094
        %1159 = vst [vmem:[%s503 + $0x5c] sm:$0xf] %v1095
        %1160 = vst [vmem:[%s503 + $0x60] sm:$0xf] %v1096
        %1161 = vst [vmem:[%s503 + $0x64] sm:$0xf] %v1097
        %1162 = vst [vmem:[%s503 + $0x68] sm:$0xf] %v1098
        %1163 = vst [vmem:[%s503 + $0x6c] sm:$0xf] %v1099
        %1164 = vst [vmem:[%s503 + $0x70] sm:$0xf] %v1100
        %1165 = vst [vmem:[%s503 + $0x74] sm:$0xf] %v1101
        %1166 = vst [vmem:[%s503 + $0x78] sm:$0xf] %v1102
        %1167 = vst [vmem:[%s503 + $0x7c] sm:$0xf] %v1103
        %1168 = vst [vmem:[%s503 + $0x80] sm:$0xf] %v1104
        %1169 = vst [vmem:[%s503 + $0x84] sm:$0xf] %v1105
        %1170 = vst [vmem:[%s503 + $0x88] sm:$0xf] %v1106
        %1171 = vst [vmem:[%s503 + $0x8c] sm:$0xf] %v1107
        %1172 = vst [vmem:[%s503 + $0x90] sm:$0xf] %v1108
        %1173 = vst [vmem:[%s503 + $0x94] sm:$0xf] %v1109
        %1174 = vst [vmem:[%s503 + $0x98] sm:$0xf] %v1110
        %1175 = vst [vmem:[%s503 + $0x9c] sm:$0xf] %v1111
        %1176 = vst [vmem:[%s503 + $0xa0] sm:$0xf] %v1112
        %1177 = vst [vmem:[%s503 + $0xa4] sm:$0xf] %v1113
        %1178 = vst [vmem:[%s503 + $0xa8] sm:$0xf] %v1114
        %1179 = vst [vmem:[%s503 + $0xac] sm:$0xf] %v1115
        %1180 = vst [vmem:[%s503 + $0xb0] sm:$0xf] %v1116
        %1181 = vst [vmem:[%s503 + $0xb4] sm:$0xf] %v1117
        %1182 = vst [vmem:[%s503 + $0xb8] sm:$0xf] %v1118
        %1183 = vst [vmem:[%s503 + $0xbc] sm:$0xf] %v1119
        %1184 = vst [vmem:[%s503 + $0xc0] sm:$0xf] %v1120
        %1185 = vst [vmem:[%s503 + $0xc4] sm:$0xf] %v1121
        %1186 = vst [vmem:[%s503 + $0xc8] sm:$0xf] %v1122
        %1187 = vst [vmem:[%s503 + $0xcc] sm:$0xf] %v1123
        %1188 = vst [vmem:[%s503 + $0xd0] sm:$0xf] %v1124
        %1189 = vst [vmem:[%s503 + $0xd4] sm:$0xf] %v1125
        %1190 = vst [vmem:[%s503 + $0xd8] sm:$0xf] %v1126
        %1191 = vst [vmem:[%s503 + $0xdc] sm:$0xf] %v1127
        %1192 = vst [vmem:[%s503 + $0xe0] sm:$0xf] %v1128
        %1193 = vst [vmem:[%s503 + $0xe4] sm:$0xf] %v1129
        %1194 = vst [vmem:[%s503 + $0xe8] sm:$0xf] %v1130
        %1195 = vst [vmem:[%s503 + $0xec] sm:$0xf] %v1131
        %1196 = vst [vmem:[%s503 + $0xf0] sm:$0xf] %v1132
        %1197 = vst [vmem:[%s503 + $0xf4] sm:$0xf] %v1133
        %1198 = vst [vmem:[%s503 + $0xf8] sm:$0xf] %v1134
        %1199 = vst [vmem:[%s503 + $0xfc] sm:$0xf] %v1135
        %p1200 = scmp.lt.s32.totalorder %s27, 1
        // Predicated region
        $region49: #{residual_block_3d.6} parent=47 // pred_check
          %p1201 = pneg %p1200
        $region50: #{residual_block_3d.6} parent=47 // pred_check_branch
          %1203 = sbr.rel (%p1201) target = $region52
        $region51: #{residual_block_3d.6} parent=47 // pred_region
          %v1204 = vadd.f32 %v913, %v915
          %v1205 = vadd.f32 %v1204, %v918
          %v1206 = vadd.f32 %v1205, %v920
          %v1207 = vadd.f32 %v1206, %v923
          %v1208 = vadd.f32 %v1207, %v925
          %v1209 = vadd.f32 %v1208, %v928
          %v1210 = vadd.f32 %v1209, %v930
          %v1211 = vadd.f32 %v1210, %v933
          %v1212 = vadd.f32 %v1211, %v935
          %v1213 = vadd.f32 %v1212, %v938
          %v1214 = vadd.f32 %v1213, %v940
          %v1215 = vadd.f32 %v1214, %v943
          %v1216 = vadd.f32 %v1215, %v945
          %v1217 = vadd.f32 %v1216, %v948
          %v1218 = vadd.f32 %v1217, %v950
          %v1219 = vadd.f32 %v1218, %v953
          %v1220 = vadd.f32 %v1219, %v955
          %v1221 = vadd.f32 %v1220, %v958
          %v1222 = vadd.f32 %v1221, %v960
          %v1223 = vadd.f32 %v1222, %v963
          %v1224 = vadd.f32 %v1223, %v965
          %v1225 = vadd.f32 %v1224, %v968
          %v1226 = vadd.f32 %v1225, %v970
          %v1227 = vadd.f32 %v1226, %v973
          %v1228 = vadd.f32 %v1227, %v975
          %v1229 = vadd.f32 %v1228, %v978
          %v1230 = vadd.f32 %v1229, %v980
          %v1231 = vadd.f32 %v1230, %v983
          %v1232 = vadd.f32 %v1231, %v985
          %v1233 = vadd.f32 %v1232, %v988
          %v1234 = vadd.f32 %v1233, %v990
          %v1235 = vadd.f32 %v1234, %v993
          %v1236 = vadd.f32 %v1235, %v995
          %v1237 = vadd.f32 %v1236, %v998
          %v1238 = vadd.f32 %v1237, %v1000
          %v1239 = vadd.f32 %v1238, %v1003
          %v1240 = vadd.f32 %v1239, %v1005
          %v1241 = vadd.f32 %v1240, %v1008
          %v1242 = vadd.f32 %v1241, %v1010
          %v1243 = vadd.f32 %v1242, %v1013
          %v1244 = vadd.f32 %v1243, %v1015
          %v1245 = vadd.f32 %v1244, %v1018
          %v1246 = vadd.f32 %v1245, %v1020
          %v1247 = vadd.f32 %v1246, %v1023
          %v1248 = vadd.f32 %v1247, %v1025
          %v1249 = vadd.f32 %v1248, %v1028
          %v1250 = vadd.f32 %v1249, %v1030
          %v1251 = vadd.f32 %v1250, %v1033
          %v1252 = vadd.f32 %v1251, %v1035
          %v1253 = vadd.f32 %v1252, %v1038
          %v1254 = vadd.f32 %v1253, %v1040
          %v1255 = vadd.f32 %v1254, %v1043
          %v1256 = vadd.f32 %v1255, %v1045
          %v1257 = vadd.f32 %v1256, %v1048
          %v1258 = vadd.f32 %v1257, %v1050
          %v1259 = vadd.f32 %v1258, %v1053
          %v1260 = vadd.f32 %v1259, %v1055
          %v1261 = vadd.f32 %v1260, %v1058
          %v1262 = vadd.f32 %v1261, %v1060
          %v1263 = vadd.f32 %v1262, %v1063
          %v1264 = vadd.f32 %v1263, %v1065
          %v1265 = vadd.f32 %v1264, %v1068
          %v1266 = vadd.f32 %v1265, %v1070
          %v1267 = vrot.slane %v1266, 4
          %v1268 = vadd.f32 %v1266, %v1267
          %v1269 = vrot.slane %v1268, 2
          %v1270 = vadd.f32 %v1268, %v1269
          %v1271 = vrot.slane %v1270, 1
          %v1272 = vadd.f32 %v1270, %v1271
          %1273 = vst [vmem:[%s507] sm:$0x1] %v1272
          %v1274 = vmul.f32 %v913, %v913
          %v1275 = vmul.f32 %v915, %v915
          %v1276 = vmul.f32 %v918, %v918
          %v1277 = vmul.f32 %v920, %v920
          %v1278 = vmul.f32 %v923, %v923
          %v1279 = vmul.f32 %v925, %v925
          %v1280 = vmul.f32 %v928, %v928
          %v1281 = vmul.f32 %v930, %v930
          %v1282 = vmul.f32 %v933, %v933
          %v1283 = vmul.f32 %v935, %v935
          %v1284 = vmul.f32 %v938, %v938
          %v1285 = vmul.f32 %v940, %v940
          %v1286 = vmul.f32 %v943, %v943
          %v1287 = vmul.f32 %v945, %v945
          %v1288 = vmul.f32 %v948, %v948
          %v1289 = vmul.f32 %v950, %v950
          %v1290 = vmul.f32 %v953, %v953
          %v1291 = vmul.f32 %v955, %v955
          %v1292 = vmul.f32 %v958, %v958
          %v1293 = vmul.f32 %v960, %v960
          %v1294 = vmul.f32 %v963, %v963
          %v1295 = vmul.f32 %v965, %v965
          %v1296 = vmul.f32 %v968, %v968
          %v1297 = vmul.f32 %v970, %v970
          %v1298 = vmul.f32 %v973, %v973
          %v1299 = vmul.f32 %v975, %v975
          %v1300 = vmul.f32 %v978, %v978
          %v1301 = vmul.f32 %v980, %v980
          %v1302 = vmul.f32 %v983, %v983
          %v1303 = vmul.f32 %v985, %v985
          %v1304 = vmul.f32 %v988, %v988
          %v1305 = vmul.f32 %v990, %v990
          %v1306 = vmul.f32 %v993, %v993
          %v1307 = vmul.f32 %v995, %v995
          %v1308 = vmul.f32 %v998, %v998
          %v1309 = vmul.f32 %v1000, %v1000
          %v1310 = vmul.f32 %v1003, %v1003
          %v1311 = vmul.f32 %v1005, %v1005
          %v1312 = vmul.f32 %v1008, %v1008
          %v1313 = vmul.f32 %v1010, %v1010
          %v1314 = vmul.f32 %v1013, %v1013
          %v1315 = vmul.f32 %v1015, %v1015
          %v1316 = vmul.f32 %v1018, %v1018
          %v1317 = vmul.f32 %v1020, %v1020
          %v1318 = vmul.f32 %v1023, %v1023
          %v1319 = vmul.f32 %v1025, %v1025
          %v1320 = vmul.f32 %v1028, %v1028
          %v1321 = vmul.f32 %v1030, %v1030
          %v1322 = vmul.f32 %v1033, %v1033
          %v1323 = vmul.f32 %v1035, %v1035
          %v1324 = vmul.f32 %v1038, %v1038
          %v1325 = vmul.f32 %v1040, %v1040
          %v1326 = vmul.f32 %v1043, %v1043
          %v1327 = vmul.f32 %v1045, %v1045
          %v1328 = vmul.f32 %v1048, %v1048
          %v1329 = vmul.f32 %v1050, %v1050
          %v1330 = vmul.f32 %v1053, %v1053
          %v1331 = vmul.f32 %v1055, %v1055
          %v1332 = vmul.f32 %v1058, %v1058
          %v1333 = vmul.f32 %v1060, %v1060
          %v1334 = vmul.f32 %v1063, %v1063
          %v1335 = vmul.f32 %v1065, %v1065
          %v1336 = vmul.f32 %v1068, %v1068
          %v1337 = vmul.f32 %v1070, %v1070
          %v1338 = vadd.f32 %v1274, %v1275
          %v1339 = vadd.f32 %v1338, %v1276
          %v1340 = vadd.f32 %v1339, %v1277
          %v1341 = vadd.f32 %v1340, %v1278
          %v1342 = vadd.f32 %v1341, %v1279
          %v1343 = vadd.f32 %v1342, %v1280
          %v1344 = vadd.f32 %v1343, %v1281
          %v1345 = vadd.f32 %v1344, %v1282
          %v1346 = vadd.f32 %v1345, %v1283
          %v1347 = vadd.f32 %v1346, %v1284
          %v1348 = vadd.f32 %v1347, %v1285
          %v1349 = vadd.f32 %v1348, %v1286
          %v1350 = vadd.f32 %v1349, %v1287
          %v1351 = vadd.f32 %v1350, %v1288
          %v1352 = vadd.f32 %v1351, %v1289
          %v1353 = vadd.f32 %v1352, %v1290
          %v1354 = vadd.f32 %v1353, %v1291
          %v1355 = vadd.f32 %v1354, %v1292
          %v1356 = vadd.f32 %v1355, %v1293
          %v1357 = vadd.f32 %v1356, %v1294
          %v1358 = vadd.f32 %v1357, %v1295
          %v1359 = vadd.f32 %v1358, %v1296
          %v1360 = vadd.f32 %v1359, %v1297
          %v1361 = vadd.f32 %v1360, %v1298
          %v1362 = vadd.f32 %v1361, %v1299
          %v1363 = vadd.f32 %v1362, %v1300
          %v1364 = vadd.f32 %v1363, %v1301
          %v1365 = vadd.f32 %v1364, %v1302
          %v1366 = vadd.f32 %v1365, %v1303
          %v1367 = vadd.f32 %v1366, %v1304
          %v1368 = vadd.f32 %v1367, %v1305
          %v1369 = vadd.f32 %v1368, %v1306
          %v1370 = vadd.f32 %v1369, %v1307
          %v1371 = vadd.f32 %v1370, %v1308
          %v1372 = vadd.f32 %v1371, %v1309
          %v1373 = vadd.f32 %v1372, %v1310
          %v1374 = vadd.f32 %v1373, %v1311
          %v1375 = vadd.f32 %v1374, %v1312
          %v1376 = vadd.f32 %v1375, %v1313
          %v1377 = vadd.f32 %v1376, %v1314
          %v1378 = vadd.f32 %v1377, %v1315
          %v1379 = vadd.f32 %v1378, %v1316
          %v1380 = vadd.f32 %v1379, %v1317
          %v1381 = vadd.f32 %v1380, %v1318
          %v1382 = vadd.f32 %v1381, %v1319
          %v1383 = vadd.f32 %v1382, %v1320
          %v1384 = vadd.f32 %v1383, %v1321
          %v1385 = vadd.f32 %v1384, %v1322
          %v1386 = vadd.f32 %v1385, %v1323
          %v1387 = vadd.f32 %v1386, %v1324
          %v1388 = vadd.f32 %v1387, %v1325
          %v1389 = vadd.f32 %v1388, %v1326
          %v1390 = vadd.f32 %v1389, %v1327
          %v1391 = vadd.f32 %v1390, %v1328
          %v1392 = vadd.f32 %v1391, %v1329
          %v1393 = vadd.f32 %v1392, %v1330
          %v1394 = vadd.f32 %v1393, %v1331
          %v1395 = vadd.f32 %v1394, %v1332
          %v1396 = vadd.f32 %v1395, %v1333
          %v1397 = vadd.f32 %v1396, %v1334
          %v1398 = vadd.f32 %v1397, %v1335
          %v1399 = vadd.f32 %v1398, %v1336
          %v1400 = vadd.f32 %v1399, %v1337
          %v1401 = vrot.slane %v1400, 4
          %v1402 = vadd.f32 %v1400, %v1401
          %v1403 = vrot.slane %v1402, 2
          %v1404 = vadd.f32 %v1402, %v1403
          %v1405 = vrot.slane %v1404, 1
          %v1406 = vadd.f32 %v1404, %v1405
          %1407 = vst [vmem:[%s510] sm:$0x1] %v1406
        $region52: #{residual_block_3d.6} parent=47 // pred_fallthru
          _
        %p1408 = scmp.eq.s32.totalorder %s27, 1
        // Predicated region
        $region53: #{residual_block_3d.6} parent=47 // pred_check
          %p1409 = pneg %p1408
        $region54: #{residual_block_3d.6} parent=47 // pred_check_branch
          %1411 = sbr.rel (%p1409) target = $region56
        $region55: #{residual_block_3d.6} parent=47 // pred_region
          %s1412 = smul.u32 %s27, 512
          %v1413 = vlaneseq
          %v1414 = vshrl.u32 %v1413, 7
          %v1415 = vadd.s32 %v1414, 8
          %v1416 = vadd.s32 %v1414, 16
          %v1417 = vadd.s32 %v1414, 24
          %v1418 = vadd.s32 %v1414, 32
          %v1419 = vadd.s32 %v1414, 40
          %v1420 = vadd.s32 %v1414, 48
          %v1421 = vadd.s32 %v1414, 56
          %v1422 = vadd.s32 %v1414, 64
          %v1423 = vadd.s32 %v1414, 72
          %v1424 = vadd.s32 %v1414, 80
          %v1425 = vadd.s32 %v1414, 88
          %v1426 = vadd.s32 %v1414, 96
          %v1427 = vadd.s32 %v1414, 104
          %v1428 = vadd.s32 %v1414, 112
          %v1429 = vadd.s32 %v1414, 120
          %v1430 = vadd.s32 %v1414, 128
          %v1431 = vadd.s32 %v1414, 136
          %v1432 = vadd.s32 %v1414, 144
          %v1433 = vadd.s32 %v1414, 152
          %v1434 = vadd.s32 %v1414, 160
          %v1435 = vadd.s32 %v1414, 168
          %v1436 = vadd.s32 %v1414, 176
          %v1437 = vadd.s32 %v1414, 184
          %v1438 = vadd.s32 %v1414, 192
          %v1439 = vadd.s32 %v1414, 200
          %v1440 = vadd.s32 %v1414, 208
          %v1441 = vadd.s32 %v1414, 216
          %v1442 = vadd.s32 %v1414, 224
          %v1443 = vadd.s32 %v1414, 232
          %v1444 = vadd.s32 %v1414, 240
          %v1445 = vadd.s32 %v1414, 248
          %v1446 = vadd.s32 %v1414, 256
          %v1447 = vadd.s32 %v1414, 264
          %v1448 = vadd.s32 %v1414, 272
          %v1449 = vadd.s32 %v1414, 280
          %v1450 = vadd.s32 %v1414, 288
          %v1451 = vadd.s32 %v1414, 296
          %v1452 = vadd.s32 %v1414, 304
          %v1453 = vadd.s32 %v1414, 312
          %v1454 = vadd.s32 %v1414, 320
          %v1455 = vadd.s32 %v1414, 328
          %v1456 = vadd.s32 %v1414, 336
          %v1457 = vadd.s32 %v1414, 344
          %v1458 = vadd.s32 %v1414, 352
          %v1459 = vadd.s32 %v1414, 360
          %v1460 = vadd.s32 %v1414, 368
          %v1461 = vadd.s32 %v1414, 376
          %v1462 = vadd.s32 %v1414, 384
          %v1463 = vadd.s32 %v1414, 392
          %v1464 = vadd.s32 %v1414, 400
          %v1465 = vadd.s32 %v1414, 408
          %v1466 = vadd.s32 %v1414, 416
          %v1467 = vadd.s32 %v1414, 424
          %v1468 = vadd.s32 %v1414, 432
          %v1469 = vadd.s32 %v1414, 440
          %v1470 = vadd.s32 %v1414, 448
          %v1471 = vadd.s32 %v1414, 456
          %v1472 = vadd.s32 %v1414, 464
          %v1473 = vadd.s32 %v1414, 472
          %v1474 = vadd.s32 %v1414, 480
          %v1475 = vadd.s32 %v1414, 488
          %v1476 = vadd.s32 %v1414, 496
          %v1477 = vadd.s32 %v1414, 504
          %v1478 = vstv %s1412
          %v1479 = vadd.s32 %v1478, %v1414
          %v1480 = vadd.s32 %v1478, %v1415
          %v1481 = vadd.s32 %v1478, %v1416
          %v1482 = vadd.s32 %v1478, %v1417
          %v1483 = vadd.s32 %v1478, %v1418
          %v1484 = vadd.s32 %v1478, %v1419
          %v1485 = vadd.s32 %v1478, %v1420
          %v1486 = vadd.s32 %v1478, %v1421
          %v1487 = vadd.s32 %v1478, %v1422
          %v1488 = vadd.s32 %v1478, %v1423
          %v1489 = vadd.s32 %v1478, %v1424
          %v1490 = vadd.s32 %v1478, %v1425
          %v1491 = vadd.s32 %v1478, %v1426
          %v1492 = vadd.s32 %v1478, %v1427
          %v1493 = vadd.s32 %v1478, %v1428
          %v1494 = vadd.s32 %v1478, %v1429
          %v1495 = vadd.s32 %v1478, %v1430
          %v1496 = vadd.s32 %v1478, %v1431
          %v1497 = vadd.s32 %v1478, %v1432
          %v1498 = vadd.s32 %v1478, %v1433
          %v1499 = vadd.s32 %v1478, %v1434
          %v1500 = vadd.s32 %v1478, %v1435
          %v1501 = vadd.s32 %v1478, %v1436
          %v1502 = vadd.s32 %v1478, %v1437
          %v1503 = vadd.s32 %v1478, %v1438
          %v1504 = vadd.s32 %v1478, %v1439
          %v1505 = vadd.s32 %v1478, %v1440
          %v1506 = vadd.s32 %v1478, %v1441
          %v1507 = vadd.s32 %v1478, %v1442
          %v1508 = vadd.s32 %v1478, %v1443
          %v1509 = vadd.s32 %v1478, %v1444
          %v1510 = vadd.s32 %v1478, %v1445
          %v1511 = vadd.s32 %v1478, %v1446
          %v1512 = vadd.s32 %v1478, %v1447
          %v1513 = vadd.s32 %v1478, %v1448
          %v1514 = vadd.s32 %v1478, %v1449
          %v1515 = vadd.s32 %v1478, %v1450
          %v1516 = vadd.s32 %v1478, %v1451
          %v1517 = vadd.s32 %v1478, %v1452
          %v1518 = vadd.s32 %v1478, %v1453
          %v1519 = vadd.s32 %v1478, %v1454
          %v1520 = vadd.s32 %v1478, %v1455
          %v1521 = vadd.s32 %v1478, %v1456
          %v1522 = vadd.s32 %v1478, %v1457
          %v1523 = vadd.s32 %v1478, %v1458
          %v1524 = vadd.s32 %v1478, %v1459
          %v1525 = vadd.s32 %v1478, %v1460
          %v1526 = vadd.s32 %v1478, %v1461
          %v1527 = vadd.s32 %v1478, %v1462
          %v1528 = vadd.s32 %v1478, %v1463
          %v1529 = vadd.s32 %v1478, %v1464
          %v1530 = vadd.s32 %v1478, %v1465
          %v1531 = vadd.s32 %v1478, %v1466
          %v1532 = vadd.s32 %v1478, %v1467
          %v1533 = vadd.s32 %v1478, %v1468
          %v1534 = vadd.s32 %v1478, %v1469
          %v1535 = vadd.s32 %v1478, %v1470
          %v1536 = vadd.s32 %v1478, %v1471
          %v1537 = vadd.s32 %v1478, %v1472
          %v1538 = vadd.s32 %v1478, %v1473
          %v1539 = vadd.s32 %v1478, %v1474
          %v1540 = vadd.s32 %v1478, %v1475
          %v1541 = vadd.s32 %v1478, %v1476
          %v1542 = vadd.s32 %v1478, %v1477
          %vm1543 = vcmp.lt.s32.totalorder %v1479, 1024
          %vm1544 = vcmp.lt.s32.totalorder %v1480, 1024
          %vm1545 = vcmp.lt.s32.totalorder %v1481, 1024
          %vm1546 = vcmp.lt.s32.totalorder %v1482, 1024
          %vm1547 = vcmp.lt.s32.totalorder %v1483, 1024
          %vm1548 = vcmp.lt.s32.totalorder %v1484, 1024
          %vm1549 = vcmp.lt.s32.totalorder %v1485, 1024
          %vm1550 = vcmp.lt.s32.totalorder %v1486, 1024
          %vm1551 = vcmp.lt.s32.totalorder %v1487, 1024
          %vm1552 = vcmp.lt.s32.totalorder %v1488, 1024
          %vm1553 = vcmp.lt.s32.totalorder %v1489, 1024
          %vm1554 = vcmp.lt.s32.totalorder %v1490, 1024
          %vm1555 = vcmp.lt.s32.totalorder %v1491, 1024
          %vm1556 = vcmp.lt.s32.totalorder %v1492, 1024
          %vm1557 = vcmp.lt.s32.totalorder %v1493, 1024
          %vm1558 = vcmp.lt.s32.totalorder %v1494, 1024
          %vm1559 = vcmp.lt.s32.totalorder %v1495, 1024
          %vm1560 = vcmp.lt.s32.totalorder %v1496, 1024
          %vm1561 = vcmp.lt.s32.totalorder %v1497, 1024
          %vm1562 = vcmp.lt.s32.totalorder %v1498, 1024
          %vm1563 = vcmp.lt.s32.totalorder %v1499, 1024
          %vm1564 = vcmp.lt.s32.totalorder %v1500, 1024
          %vm1565 = vcmp.lt.s32.totalorder %v1501, 1024
          %vm1566 = vcmp.lt.s32.totalorder %v1502, 1024
          %vm1567 = vcmp.lt.s32.totalorder %v1503, 1024
          %vm1568 = vcmp.lt.s32.totalorder %v1504, 1024
          %vm1569 = vcmp.lt.s32.totalorder %v1505, 1024
          %vm1570 = vcmp.lt.s32.totalorder %v1506, 1024
          %vm1571 = vcmp.lt.s32.totalorder %v1507, 1024
          %vm1572 = vcmp.lt.s32.totalorder %v1508, 1024
          %vm1573 = vcmp.lt.s32.totalorder %v1509, 1024
          %vm1574 = vcmp.lt.s32.totalorder %v1510, 1024
          %vm1575 = vcmp.lt.s32.totalorder %v1511, 1024
          %vm1576 = vcmp.lt.s32.totalorder %v1512, 1024
          %vm1577 = vcmp.lt.s32.totalorder %v1513, 1024
          %vm1578 = vcmp.lt.s32.totalorder %v1514, 1024
          %vm1579 = vcmp.lt.s32.totalorder %v1515, 1024
          %vm1580 = vcmp.lt.s32.totalorder %v1516, 1024
          %vm1581 = vcmp.lt.s32.totalorder %v1517, 1024
          %vm1582 = vcmp.lt.s32.totalorder %v1518, 1024
          %vm1583 = vcmp.lt.s32.totalorder %v1519, 1024
          %vm1584 = vcmp.lt.s32.totalorder %v1520, 1024
          %vm1585 = vcmp.lt.s32.totalorder %v1521, 1024
          %vm1586 = vcmp.lt.s32.totalorder %v1522, 1024
          %vm1587 = vcmp.lt.s32.totalorder %v1523, 1024
          %vm1588 = vcmp.lt.s32.totalorder %v1524, 1024
          %vm1589 = vcmp.lt.s32.totalorder %v1525, 1024
          %vm1590 = vcmp.lt.s32.totalorder %v1526, 1024
          %vm1591 = vcmp.lt.s32.totalorder %v1527, 1024
          %vm1592 = vcmp.lt.s32.totalorder %v1528, 1024
          %vm1593 = vcmp.lt.s32.totalorder %v1529, 1024
          %vm1594 = vcmp.lt.s32.totalorder %v1530, 1024
          %vm1595 = vcmp.lt.s32.totalorder %v1531, 1024
          %vm1596 = vcmp.lt.s32.totalorder %v1532, 1024
          %vm1597 = vcmp.lt.s32.totalorder %v1533, 1024
          %vm1598 = vcmp.lt.s32.totalorder %v1534, 1024
          %vm1599 = vcmp.lt.s32.totalorder %v1535, 1024
          %vm1600 = vcmp.lt.s32.totalorder %v1536, 1024
          %vm1601 = vcmp.lt.s32.totalorder %v1537, 1024
          %vm1602 = vcmp.lt.s32.totalorder %v1538, 1024
          %vm1603 = vcmp.lt.s32.totalorder %v1539, 1024
          %vm1604 = vcmp.lt.s32.totalorder %v1540, 1024
          %vm1605 = vcmp.lt.s32.totalorder %v1541, 1024
          %vm1606 = vcmp.lt.s32.totalorder %v1542, 1024
          %v1607 = vsel %vm1543, 1, 0
          %v1608 = vsel %vm1544, 1, 0
          %v1609 = vsel %vm1545, 1, 0
          %v1610 = vsel %vm1546, 1, 0
          %v1611 = vsel %vm1547, 1, 0
          %v1612 = vsel %vm1548, 1, 0
          %v1613 = vsel %vm1549, 1, 0
          %v1614 = vsel %vm1550, 1, 0
          %v1615 = vsel %vm1551, 1, 0
          %v1616 = vsel %vm1552, 1, 0
          %v1617 = vsel %vm1553, 1, 0
          %v1618 = vsel %vm1554, 1, 0
          %v1619 = vsel %vm1555, 1, 0
          %v1620 = vsel %vm1556, 1, 0
          %v1621 = vsel %vm1557, 1, 0
          %v1622 = vsel %vm1558, 1, 0
          %v1623 = vsel %vm1559, 1, 0
          %v1624 = vsel %vm1560, 1, 0
          %v1625 = vsel %vm1561, 1, 0
          %v1626 = vsel %vm1562, 1, 0
          %v1627 = vsel %vm1563, 1, 0
          %v1628 = vsel %vm1564, 1, 0
          %v1629 = vsel %vm1565, 1, 0
          %v1630 = vsel %vm1566, 1, 0
          %v1631 = vsel %vm1567, 1, 0
          %v1632 = vsel %vm1568, 1, 0
          %v1633 = vsel %vm1569, 1, 0
          %v1634 = vsel %vm1570, 1, 0
          %v1635 = vsel %vm1571, 1, 0
          %v1636 = vsel %vm1572, 1, 0
          %v1637 = vsel %vm1573, 1, 0
          %v1638 = vsel %vm1574, 1, 0
          %v1639 = vsel %vm1575, 1, 0
          %v1640 = vsel %vm1576, 1, 0
          %v1641 = vsel %vm1577, 1, 0
          %v1642 = vsel %vm1578, 1, 0
          %v1643 = vsel %vm1579, 1, 0
          %v1644 = vsel %vm1580, 1, 0
          %v1645 = vsel %vm1581, 1, 0
          %v1646 = vsel %vm1582, 1, 0
          %v1647 = vsel %vm1583, 1, 0
          %v1648 = vsel %vm1584, 1, 0
          %v1649 = vsel %vm1585, 1, 0
          %v1650 = vsel %vm1586, 1, 0
          %v1651 = vsel %vm1587, 1, 0
          %v1652 = vsel %vm1588, 1, 0
          %v1653 = vsel %vm1589, 1, 0
          %v1654 = vsel %vm1590, 1, 0
          %v1655 = vsel %vm1591, 1, 0
          %v1656 = vsel %vm1592, 1, 0
          %v1657 = vsel %vm1593, 1, 0
          %v1658 = vsel %vm1594, 1, 0
          %v1659 = vsel %vm1595, 1, 0
          %v1660 = vsel %vm1596, 1, 0
          %v1661 = vsel %vm1597, 1, 0
          %v1662 = vsel %vm1598, 1, 0
          %v1663 = vsel %vm1599, 1, 0
          %v1664 = vsel %vm1600, 1, 0
          %v1665 = vsel %vm1601, 1, 0
          %v1666 = vsel %vm1602, 1, 0
          %v1667 = vsel %vm1603, 1, 0
          %v1668 = vsel %vm1604, 1, 0
          %v1669 = vsel %vm1605, 1, 0
          %v1670 = vsel %vm1606, 1, 0
          %vm1671 = vcmp.eq.s32.totalorder %v1607, 1
          %vm1672 = vcmp.eq.s32.totalorder %v1608, 1
          %vm1673 = vcmp.eq.s32.totalorder %v1609, 1
          %vm1674 = vcmp.eq.s32.totalorder %v1610, 1
          %vm1675 = vcmp.eq.s32.totalorder %v1611, 1
          %vm1676 = vcmp.eq.s32.totalorder %v1612, 1
          %vm1677 = vcmp.eq.s32.totalorder %v1613, 1
          %vm1678 = vcmp.eq.s32.totalorder %v1614, 1
          %vm1679 = vcmp.eq.s32.totalorder %v1615, 1
          %vm1680 = vcmp.eq.s32.totalorder %v1616, 1
          %vm1681 = vcmp.eq.s32.totalorder %v1617, 1
          %vm1682 = vcmp.eq.s32.totalorder %v1618, 1
          %vm1683 = vcmp.eq.s32.totalorder %v1619, 1
          %vm1684 = vcmp.eq.s32.totalorder %v1620, 1
          %vm1685 = vcmp.eq.s32.totalorder %v1621, 1
          %vm1686 = vcmp.eq.s32.totalorder %v1622, 1
          %vm1687 = vcmp.eq.s32.totalorder %v1623, 1
          %vm1688 = vcmp.eq.s32.totalorder %v1624, 1
          %vm1689 = vcmp.eq.s32.totalorder %v1625, 1
          %vm1690 = vcmp.eq.s32.totalorder %v1626, 1
          %vm1691 = vcmp.eq.s32.totalorder %v1627, 1
          %vm1692 = vcmp.eq.s32.totalorder %v1628, 1
          %vm1693 = vcmp.eq.s32.totalorder %v1629, 1
          %vm1694 = vcmp.eq.s32.totalorder %v1630, 1
          %vm1695 = vcmp.eq.s32.totalorder %v1631, 1
          %vm1696 = vcmp.eq.s32.totalorder %v1632, 1
          %vm1697 = vcmp.eq.s32.totalorder %v1633, 1
          %vm1698 = vcmp.eq.s32.totalorder %v1634, 1
          %vm1699 = vcmp.eq.s32.totalorder %v1635, 1
          %vm1700 = vcmp.eq.s32.totalorder %v1636, 1
          %vm1701 = vcmp.eq.s32.totalorder %v1637, 1
          %vm1702 = vcmp.eq.s32.totalorder %v1638, 1
          %vm1703 = vcmp.eq.s32.totalorder %v1639, 1
          %vm1704 = vcmp.eq.s32.totalorder %v1640, 1
          %vm1705 = vcmp.eq.s32.totalorder %v1641, 1
          %vm1706 = vcmp.eq.s32.totalorder %v1642, 1
          %vm1707 = vcmp.eq.s32.totalorder %v1643, 1
          %vm1708 = vcmp.eq.s32.totalorder %v1644, 1
          %vm1709 = vcmp.eq.s32.totalorder %v1645, 1
          %vm1710 = vcmp.eq.s32.totalorder %v1646, 1
          %vm1711 = vcmp.eq.s32.totalorder %v1647, 1
          %vm1712 = vcmp.eq.s32.totalorder %v1648, 1
          %vm1713 = vcmp.eq.s32.totalorder %v1649, 1
          %vm1714 = vcmp.eq.s32.totalorder %v1650, 1
          %vm1715 = vcmp.eq.s32.totalorder %v1651, 1
          %vm1716 = vcmp.eq.s32.totalorder %v1652, 1
          %vm1717 = vcmp.eq.s32.totalorder %v1653, 1
          %vm1718 = vcmp.eq.s32.totalorder %v1654, 1
          %vm1719 = vcmp.eq.s32.totalorder %v1655, 1
          %vm1720 = vcmp.eq.s32.totalorder %v1656, 1
          %vm1721 = vcmp.eq.s32.totalorder %v1657, 1
          %vm1722 = vcmp.eq.s32.totalorder %v1658, 1
          %vm1723 = vcmp.eq.s32.totalorder %v1659, 1
          %vm1724 = vcmp.eq.s32.totalorder %v1660, 1
          %vm1725 = vcmp.eq.s32.totalorder %v1661, 1
          %vm1726 = vcmp.eq.s32.totalorder %v1662, 1
          %vm1727 = vcmp.eq.s32.totalorder %v1663, 1
          %vm1728 = vcmp.eq.s32.totalorder %v1664, 1
          %vm1729 = vcmp.eq.s32.totalorder %v1665, 1
          %vm1730 = vcmp.eq.s32.totalorder %v1666, 1
          %vm1731 = vcmp.eq.s32.totalorder %v1667, 1
          %vm1732 = vcmp.eq.s32.totalorder %v1668, 1
          %vm1733 = vcmp.eq.s32.totalorder %v1669, 1
          %vm1734 = vcmp.eq.s32.totalorder %v1670, 1
          %v1735 = vsel %vm1671, %v913, 0.0
          %v1736 = vsel %vm1672, %v915, 0.0
          %v1737 = vsel %vm1673, %v918, 0.0
          %v1738 = vsel %vm1674, %v920, 0.0
          %v1739 = vsel %vm1675, %v923, 0.0
          %v1740 = vsel %vm1676, %v925, 0.0
          %v1741 = vsel %vm1677, %v928, 0.0
          %v1742 = vsel %vm1678, %v930, 0.0
          %v1743 = vsel %vm1679, %v933, 0.0
          %v1744 = vsel %vm1680, %v935, 0.0
          %v1745 = vsel %vm1681, %v938, 0.0
          %v1746 = vsel %vm1682, %v940, 0.0
          %v1747 = vsel %vm1683, %v943, 0.0
          %v1748 = vsel %vm1684, %v945, 0.0
          %v1749 = vsel %vm1685, %v948, 0.0
          %v1750 = vsel %vm1686, %v950, 0.0
          %v1751 = vsel %vm1687, %v953, 0.0
          %v1752 = vsel %vm1688, %v955, 0.0
          %v1753 = vsel %vm1689, %v958, 0.0
          %v1754 = vsel %vm1690, %v960, 0.0
          %v1755 = vsel %vm1691, %v963, 0.0
          %v1756 = vsel %vm1692, %v965, 0.0
          %v1757 = vsel %vm1693, %v968, 0.0
          %v1758 = vsel %vm1694, %v970, 0.0
          %v1759 = vsel %vm1695, %v973, 0.0
          %v1760 = vsel %vm1696, %v975, 0.0
          %v1761 = vsel %vm1697, %v978, 0.0
          %v1762 = vsel %vm1698, %v980, 0.0
          %v1763 = vsel %vm1699, %v983, 0.0
          %v1764 = vsel %vm1700, %v985, 0.0
          %v1765 = vsel %vm1701, %v988, 0.0
          %v1766 = vsel %vm1702, %v990, 0.0
          %v1767 = vsel %vm1703, %v993, 0.0
          %v1768 = vsel %vm1704, %v995, 0.0
          %v1769 = vsel %vm1705, %v998, 0.0
          %v1770 = vsel %vm1706, %v1000, 0.0
          %v1771 = vsel %vm1707, %v1003, 0.0
          %v1772 = vsel %vm1708, %v1005, 0.0
          %v1773 = vsel %vm1709, %v1008, 0.0
          %v1774 = vsel %vm1710, %v1010, 0.0
          %v1775 = vsel %vm1711, %v1013, 0.0
          %v1776 = vsel %vm1712, %v1015, 0.0
          %v1777 = vsel %vm1713, %v1018, 0.0
          %v1778 = vsel %vm1714, %v1020, 0.0
          %v1779 = vsel %vm1715, %v1023, 0.0
          %v1780 = vsel %vm1716, %v1025, 0.0
          %v1781 = vsel %vm1717, %v1028, 0.0
          %v1782 = vsel %vm1718, %v1030, 0.0
          %v1783 = vsel %vm1719, %v1033, 0.0
          %v1784 = vsel %vm1720, %v1035, 0.0
          %v1785 = vsel %vm1721, %v1038, 0.0
          %v1786 = vsel %vm1722, %v1040, 0.0
          %v1787 = vsel %vm1723, %v1043, 0.0
          %v1788 = vsel %vm1724, %v1045, 0.0
          %v1789 = vsel %vm1725, %v1048, 0.0
          %v1790 = vsel %vm1726, %v1050, 0.0
          %v1791 = vsel %vm1727, %v1053, 0.0
          %v1792 = vsel %vm1728, %v1055, 0.0
          %v1793 = vsel %vm1729, %v1058, 0.0
          %v1794 = vsel %vm1730, %v1060, 0.0
          %v1795 = vsel %vm1731, %v1063, 0.0
          %v1796 = vsel %vm1732, %v1065, 0.0
          %v1797 = vsel %vm1733, %v1068, 0.0
          %v1798 = vsel %vm1734, %v1070, 0.0
          %v1799 = vadd.f32 %v1735, %v1736
          %v1800 = vadd.f32 %v1799, %v1737
          %v1801 = vadd.f32 %v1800, %v1738
          %v1802 = vadd.f32 %v1801, %v1739
          %v1803 = vadd.f32 %v1802, %v1740
          %v1804 = vadd.f32 %v1803, %v1741
          %v1805 = vadd.f32 %v1804, %v1742
          %v1806 = vadd.f32 %v1805, %v1743
          %v1807 = vadd.f32 %v1806, %v1744
          %v1808 = vadd.f32 %v1807, %v1745
          %v1809 = vadd.f32 %v1808, %v1746
          %v1810 = vadd.f32 %v1809, %v1747
          %v1811 = vadd.f32 %v1810, %v1748
          %v1812 = vadd.f32 %v1811, %v1749
          %v1813 = vadd.f32 %v1812, %v1750
          %v1814 = vadd.f32 %v1813, %v1751
          %v1815 = vadd.f32 %v1814, %v1752
          %v1816 = vadd.f32 %v1815, %v1753
          %v1817 = vadd.f32 %v1816, %v1754
          %v1818 = vadd.f32 %v1817, %v1755
          %v1819 = vadd.f32 %v1818, %v1756
          %v1820 = vadd.f32 %v1819, %v1757
          %v1821 = vadd.f32 %v1820, %v1758
          %v1822 = vadd.f32 %v1821, %v1759
          %v1823 = vadd.f32 %v1822, %v1760
          %v1824 = vadd.f32 %v1823, %v1761
          %v1825 = vadd.f32 %v1824, %v1762
          %v1826 = vadd.f32 %v1825, %v1763
          %v1827 = vadd.f32 %v1826, %v1764
          %v1828 = vadd.f32 %v1827, %v1765
          %v1829 = vadd.f32 %v1828, %v1766
          %v1830 = vadd.f32 %v1829, %v1767
          %v1831 = vadd.f32 %v1830, %v1768
          %v1832 = vadd.f32 %v1831, %v1769
          %v1833 = vadd.f32 %v1832, %v1770
          %v1834 = vadd.f32 %v1833, %v1771
          %v1835 = vadd.f32 %v1834, %v1772
          %v1836 = vadd.f32 %v1835, %v1773
          %v1837 = vadd.f32 %v1836, %v1774
          %v1838 = vadd.f32 %v1837, %v1775
          %v1839 = vadd.f32 %v1838, %v1776
          %v1840 = vadd.f32 %v1839, %v1777
          %v1841 = vadd.f32 %v1840, %v1778
          %v1842 = vadd.f32 %v1841, %v1779
          %v1843 = vadd.f32 %v1842, %v1780
          %v1844 = vadd.f32 %v1843, %v1781
          %v1845 = vadd.f32 %v1844, %v1782
          %v1846 = vadd.f32 %v1845, %v1783
          %v1847 = vadd.f32 %v1846, %v1784
          %v1848 = vadd.f32 %v1847, %v1785
          %v1849 = vadd.f32 %v1848, %v1786
          %v1850 = vadd.f32 %v1849, %v1787
          %v1851 = vadd.f32 %v1850, %v1788
          %v1852 = vadd.f32 %v1851, %v1789
          %v1853 = vadd.f32 %v1852, %v1790
          %v1854 = vadd.f32 %v1853, %v1791
          %v1855 = vadd.f32 %v1854, %v1792
          %v1856 = vadd.f32 %v1855, %v1793
          %v1857 = vadd.f32 %v1856, %v1794
          %v1858 = vadd.f32 %v1857, %v1795
          %v1859 = vadd.f32 %v1858, %v1796
          %v1860 = vadd.f32 %v1859, %v1797
          %v1861 = vadd.f32 %v1860, %v1798
          %v1862 = vrot.slane %v1861, 4
          %v1863 = vadd.f32 %v1861, %v1862
          %v1864 = vrot.slane %v1863, 2
          %v1865 = vadd.f32 %v1863, %v1864
          %v1866 = vrot.slane %v1865, 1
          %v1867 = vadd.f32 %v1865, %v1866
          %1868 = vst [vmem:[%s507] sm:$0x1] %v1867
          %v1869 = vmul.f32 %v1735, %v1735
          %v1870 = vmul.f32 %v1736, %v1736
          %v1871 = vmul.f32 %v1737, %v1737
          %v1872 = vmul.f32 %v1738, %v1738
          %v1873 = vmul.f32 %v1739, %v1739
          %v1874 = vmul.f32 %v1740, %v1740
          %v1875 = vmul.f32 %v1741, %v1741
          %v1876 = vmul.f32 %v1742, %v1742
          %v1877 = vmul.f32 %v1743, %v1743
          %v1878 = vmul.f32 %v1744, %v1744
          %v1879 = vmul.f32 %v1745, %v1745
          %v1880 = vmul.f32 %v1746, %v1746
          %v1881 = vmul.f32 %v1747, %v1747
          %v1882 = vmul.f32 %v1748, %v1748
          %v1883 = vmul.f32 %v1749, %v1749
          %v1884 = vmul.f32 %v1750, %v1750
          %v1885 = vmul.f32 %v1751, %v1751
          %v1886 = vmul.f32 %v1752, %v1752
          %v1887 = vmul.f32 %v1753, %v1753
          %v1888 = vmul.f32 %v1754, %v1754
          %v1889 = vmul.f32 %v1755, %v1755
          %v1890 = vmul.f32 %v1756, %v1756
          %v1891 = vmul.f32 %v1757, %v1757
          %v1892 = vmul.f32 %v1758, %v1758
          %v1893 = vmul.f32 %v1759, %v1759
          %v1894 = vmul.f32 %v1760, %v1760
          %v1895 = vmul.f32 %v1761, %v1761
          %v1896 = vmul.f32 %v1762, %v1762
          %v1897 = vmul.f32 %v1763, %v1763
          %v1898 = vmul.f32 %v1764, %v1764
          %v1899 = vmul.f32 %v1765, %v1765
          %v1900 = vmul.f32 %v1766, %v1766
          %v1901 = vmul.f32 %v1767, %v1767
          %v1902 = vmul.f32 %v1768, %v1768
          %v1903 = vmul.f32 %v1769, %v1769
          %v1904 = vmul.f32 %v1770, %v1770
          %v1905 = vmul.f32 %v1771, %v1771
          %v1906 = vmul.f32 %v1772, %v1772
          %v1907 = vmul.f32 %v1773, %v1773
          %v1908 = vmul.f32 %v1774, %v1774
          %v1909 = vmul.f32 %v1775, %v1775
          %v1910 = vmul.f32 %v1776, %v1776
          %v1911 = vmul.f32 %v1777, %v1777
          %v1912 = vmul.f32 %v1778, %v1778
          %v1913 = vmul.f32 %v1779, %v1779
          %v1914 = vmul.f32 %v1780, %v1780
          %v1915 = vmul.f32 %v1781, %v1781
          %v1916 = vmul.f32 %v1782, %v1782
          %v1917 = vmul.f32 %v1783, %v1783
          %v1918 = vmul.f32 %v1784, %v1784
          %v1919 = vmul.f32 %v1785, %v1785
          %v1920 = vmul.f32 %v1786, %v1786
          %v1921 = vmul.f32 %v1787, %v1787
          %v1922 = vmul.f32 %v1788, %v1788
          %v1923 = vmul.f32 %v1789, %v1789
          %v1924 = vmul.f32 %v1790, %v1790
          %v1925 = vmul.f32 %v1791, %v1791
          %v1926 = vmul.f32 %v1792, %v1792
          %v1927 = vmul.f32 %v1793, %v1793
          %v1928 = vmul.f32 %v1794, %v1794
          %v1929 = vmul.f32 %v1795, %v1795
          %v1930 = vmul.f32 %v1796, %v1796
          %v1931 = vmul.f32 %v1797, %v1797
          %v1932 = vmul.f32 %v1798, %v1798
          %v1933 = vadd.f32 %v1869, %v1870
          %v1934 = vadd.f32 %v1933, %v1871
          %v1935 = vadd.f32 %v1934, %v1872
          %v1936 = vadd.f32 %v1935, %v1873
          %v1937 = vadd.f32 %v1936, %v1874
          %v1938 = vadd.f32 %v1937, %v1875
          %v1939 = vadd.f32 %v1938, %v1876
          %v1940 = vadd.f32 %v1939, %v1877
          %v1941 = vadd.f32 %v1940, %v1878
          %v1942 = vadd.f32 %v1941, %v1879
          %v1943 = vadd.f32 %v1942, %v1880
          %v1944 = vadd.f32 %v1943, %v1881
          %v1945 = vadd.f32 %v1944, %v1882
          %v1946 = vadd.f32 %v1945, %v1883
          %v1947 = vadd.f32 %v1946, %v1884
          %v1948 = vadd.f32 %v1947, %v1885
          %v1949 = vadd.f32 %v1948, %v1886
          %v1950 = vadd.f32 %v1949, %v1887
          %v1951 = vadd.f32 %v1950, %v1888
          %v1952 = vadd.f32 %v1951, %v1889
          %v1953 = vadd.f32 %v1952, %v1890
          %v1954 = vadd.f32 %v1953, %v1891
          %v1955 = vadd.f32 %v1954, %v1892
          %v1956 = vadd.f32 %v1955, %v1893
          %v1957 = vadd.f32 %v1956, %v1894
          %v1958 = vadd.f32 %v1957, %v1895
          %v1959 = vadd.f32 %v1958, %v1896
          %v1960 = vadd.f32 %v1959, %v1897
          %v1961 = vadd.f32 %v1960, %v1898
          %v1962 = vadd.f32 %v1961, %v1899
          %v1963 = vadd.f32 %v1962, %v1900
          %v1964 = vadd.f32 %v1963, %v1901
          %v1965 = vadd.f32 %v1964, %v1902
          %v1966 = vadd.f32 %v1965, %v1903
          %v1967 = vadd.f32 %v1966, %v1904
          %v1968 = vadd.f32 %v1967, %v1905
          %v1969 = vadd.f32 %v1968, %v1906
          %v1970 = vadd.f32 %v1969, %v1907
          %v1971 = vadd.f32 %v1970, %v1908
          %v1972 = vadd.f32 %v1971, %v1909
          %v1973 = vadd.f32 %v1972, %v1910
          %v1974 = vadd.f32 %v1973, %v1911
          %v1975 = vadd.f32 %v1974, %v1912
          %v1976 = vadd.f32 %v1975, %v1913
          %v1977 = vadd.f32 %v1976, %v1914
          %v1978 = vadd.f32 %v1977, %v1915
          %v1979 = vadd.f32 %v1978, %v1916
          %v1980 = vadd.f32 %v1979, %v1917
          %v1981 = vadd.f32 %v1980, %v1918
          %v1982 = vadd.f32 %v1981, %v1919
          %v1983 = vadd.f32 %v1982, %v1920
          %v1984 = vadd.f32 %v1983, %v1921
          %v1985 = vadd.f32 %v1984, %v1922
          %v1986 = vadd.f32 %v1985, %v1923
          %v1987 = vadd.f32 %v1986, %v1924
          %v1988 = vadd.f32 %v1987, %v1925
          %v1989 = vadd.f32 %v1988, %v1926
          %v1990 = vadd.f32 %v1989, %v1927
          %v1991 = vadd.f32 %v1990, %v1928
          %v1992 = vadd.f32 %v1991, %v1929
          %v1993 = vadd.f32 %v1992, %v1930
          %v1994 = vadd.f32 %v1993, %v1931
          %v1995 = vadd.f32 %v1994, %v1932
          %v1996 = vrot.slane %v1995, 4
          %v1997 = vadd.f32 %v1995, %v1996
          %v1998 = vrot.slane %v1997, 2
          %v1999 = vadd.f32 %v1997, %v1998
          %v2000 = vrot.slane %v1999, 1
          %v2001 = vadd.f32 %v1999, %v2000
          %2002 = vst [vmem:[%s510] sm:$0x1] %v2001
        $region56: #{residual_block_3d.6} parent=47 // pred_fallthru
          _
      $region48: #{residual_block_3d.6} parent=43 // pred_fallthru
        _
      %v2003 = vld [vmem:[#allocation2] sm:$0xff]
      %v2004 = vld [vmem:[#allocation2 + $0x8] sm:$0xff]
      %v2005 = vld [vmem:[#allocation2 + $0x10] sm:$0xff]
      %v2006 = vld [vmem:[#allocation2 + $0x18] sm:$0xff]
      %v2007 = vld [vmem:[#allocation2 + $0x20] sm:$0xff]
      %v2008 = vld [vmem:[#allocation2 + $0x28] sm:$0xff]
      %v2009 = vld [vmem:[#allocation2 + $0x30] sm:$0xff]
      %v2010 = vld [vmem:[#allocation2 + $0x38] sm:$0xff]
      %v2011 = vld [vmem:[#allocation2 + $0x40] sm:$0xff]
      %v2012 = vld [vmem:[#allocation2 + $0x48] sm:$0xff]
      %v2013 = vld [vmem:[#allocation2 + $0x50] sm:$0xff]
      %v2014 = vld [vmem:[#allocation2 + $0x58] sm:$0xff]
      %v2015 = vld [vmem:[#allocation2 + $0x60] sm:$0xff]
      %v2016 = vld [vmem:[#allocation2 + $0x68] sm:$0xff]
      %v2017 = vld [vmem:[#allocation2 + $0x70] sm:$0xff]
      %v2018 = vld [vmem:[#allocation2 + $0x78] sm:$0xff]
      %v2019 = vld [vmem:[#allocation2 + $0x80] sm:$0xff]
      %v2020 = vld [vmem:[#allocation2 + $0x88] sm:$0xff]
      %v2021 = vld [vmem:[#allocation2 + $0x90] sm:$0xff]
      %v2022 = vld [vmem:[#allocation2 + $0x98] sm:$0xff]
      %v2023 = vld [vmem:[#allocation2 + $0xa0] sm:$0xff]
      %v2024 = vld [vmem:[#allocation2 + $0xa8] sm:$0xff]
      %v2025 = vld [vmem:[#allocation2 + $0xb0] sm:$0xff]
      %v2026 = vld [vmem:[#allocation2 + $0xb8] sm:$0xff]
      %v2027 = vld [vmem:[#allocation2 + $0xc0] sm:$0xff]
      %v2028 = vld [vmem:[#allocation2 + $0xc8] sm:$0xff]
      %v2029 = vld [vmem:[#allocation2 + $0xd0] sm:$0xff]
      %v2030 = vld [vmem:[#allocation2 + $0xd8] sm:$0xff]
      %v2031 = vld [vmem:[#allocation2 + $0xe0] sm:$0xff]
      %v2032 = vld [vmem:[#allocation2 + $0xe8] sm:$0xff]
      %v2033 = vld [vmem:[#allocation2 + $0xf0] sm:$0xff]
      %v2034 = vld [vmem:[#allocation2 + $0xf8] sm:$0xff]
      %v2035 = vld [vmem:[#allocation2 + $0x100] sm:$0xff]
      %v2036 = vld [vmem:[#allocation2 + $0x108] sm:$0xff]
      %v2037 = vld [vmem:[#allocation2 + $0x110] sm:$0xff]
      %v2038 = vld [vmem:[#allocation2 + $0x118] sm:$0xff]
      %v2039 = vld [vmem:[#allocation2 + $0x120] sm:$0xff]
      %v2040 = vld [vmem:[#allocation2 + $0x128] sm:$0xff]
      %v2041 = vld [vmem:[#allocation2 + $0x130] sm:$0xff]
      %v2042 = vld [vmem:[#allocation2 + $0x138] sm:$0xff]
      %v2043 = vld [vmem:[#allocation2 + $0x140] sm:$0xff]
      %v2044 = vld [vmem:[#allocation2 + $0x148] sm:$0xff]
      %v2045 = vld [vmem:[#allocation2 + $0x150] sm:$0xff]
      %v2046 = vld [vmem:[#allocation2 + $0x158] sm:$0xff]
      %v2047 = vld [vmem:[#allocation2 + $0x160] sm:$0xff]
      %v2048 = vld [vmem:[#allocation2 + $0x168] sm:$0xff]
      %v2049 = vld [vmem:[#allocation2 + $0x170] sm:$0xff]
      %v2050 = vld [vmem:[#allocation2 + $0x178] sm:$0xff]
      %v2051 = vld [vmem:[#allocation2 + $0x180] sm:$0xff]
      %v2052 = vld [vmem:[#allocation2 + $0x188] sm:$0xff]
      %v2053 = vld [vmem:[#allocation2 + $0x190] sm:$0xff]
      %v2054 = vld [vmem:[#allocation2 + $0x198] sm:$0xff]
      %v2055 = vld [vmem:[#allocation2 + $0x1a0] sm:$0xff]
      %v2056 = vld [vmem:[#allocation2 + $0x1a8] sm:$0xff]
      %v2057 = vld [vmem:[#allocation2 + $0x1b0] sm:$0xff]
      %v2058 = vld [vmem:[#allocation2 + $0x1b8] sm:$0xff]
      %v2059 = vld [vmem:[#allocation2 + $0x1c0] sm:$0xff]
      %v2060 = vld [vmem:[#allocation2 + $0x1c8] sm:$0xff]
      %v2061 = vld [vmem:[#allocation2 + $0x1d0] sm:$0xff]
      %v2062 = vld [vmem:[#allocation2 + $0x1d8] sm:$0xff]
      %v2063 = vld [vmem:[#allocation2 + $0x1e0] sm:$0xff]
      %v2064 = vld [vmem:[#allocation2 + $0x1e8] sm:$0xff]
      %v2065 = vld [vmem:[#allocation2 + $0x1f0] sm:$0xff]
      %v2066 = vld [vmem:[#allocation2 + $0x1f8] sm:$0xff]
      %v2067 = vld [vmem:[%s472] sm:$0xff]
      %v2068 = vld [vmem:[%s472 + $0x8] sm:$0xff]
      %v2069 = vld [vmem:[%s472 + $0x10] sm:$0xff]
      %v2070 = vld [vmem:[%s472 + $0x18] sm:$0xff]
      %v2071 = vld [vmem:[%s472 + $0x20] sm:$0xff]
      %v2072 = vld [vmem:[%s472 + $0x28] sm:$0xff]
      %v2073 = vld [vmem:[%s472 + $0x30] sm:$0xff]
      %v2074 = vld [vmem:[%s472 + $0x38] sm:$0xff]
      %v2075 = vld [vmem:[%s472 + $0x40] sm:$0xff]
      %v2076 = vld [vmem:[%s472 + $0x48] sm:$0xff]
      %v2077 = vld [vmem:[%s472 + $0x50] sm:$0xff]
      %v2078 = vld [vmem:[%s472 + $0x58] sm:$0xff]
      %v2079 = vld [vmem:[%s472 + $0x60] sm:$0xff]
      %v2080 = vld [vmem:[%s472 + $0x68] sm:$0xff]
      %v2081 = vld [vmem:[%s472 + $0x70] sm:$0xff]
      %v2082 = vld [vmem:[%s472 + $0x78] sm:$0xff]
      %v2083 = vld [vmem:[%s472 + $0x80] sm:$0xff]
      %v2084 = vld [vmem:[%s472 + $0x88] sm:$0xff]
      %v2085 = vld [vmem:[%s472 + $0x90] sm:$0xff]
      %v2086 = vld [vmem:[%s472 + $0x98] sm:$0xff]
      %v2087 = vld [vmem:[%s472 + $0xa0] sm:$0xff]
      %v2088 = vld [vmem:[%s472 + $0xa8] sm:$0xff]
      %v2089 = vld [vmem:[%s472 + $0xb0] sm:$0xff]
      %v2090 = vld [vmem:[%s472 + $0xb8] sm:$0xff]
      %v2091 = vld [vmem:[%s472 + $0xc0] sm:$0xff]
      %v2092 = vld [vmem:[%s472 + $0xc8] sm:$0xff]
      %v2093 = vld [vmem:[%s472 + $0xd0] sm:$0xff]
      %v2094 = vld [vmem:[%s472 + $0xd8] sm:$0xff]
      %v2095 = vld [vmem:[%s472 + $0xe0] sm:$0xff]
      %v2096 = vld [vmem:[%s472 + $0xe8] sm:$0xff]
      %v2097 = vld [vmem:[%s472 + $0xf0] sm:$0xff]
      %v2098 = vld [vmem:[%s472 + $0xf8] sm:$0xff]
      %v2099 = vld [vmem:[%s472 + $0x100] sm:$0xff]
      %v2100 = vld [vmem:[%s472 + $0x108] sm:$0xff]
      %v2101 = vld [vmem:[%s472 + $0x110] sm:$0xff]
      %v2102 = vld [vmem:[%s472 + $0x118] sm:$0xff]
      %v2103 = vld [vmem:[%s472 + $0x120] sm:$0xff]
      %v2104 = vld [vmem:[%s472 + $0x128] sm:$0xff]
      %v2105 = vld [vmem:[%s472 + $0x130] sm:$0xff]
      %v2106 = vld [vmem:[%s472 + $0x138] sm:$0xff]
      %v2107 = vld [vmem:[%s472 + $0x140] sm:$0xff]
      %v2108 = vld [vmem:[%s472 + $0x148] sm:$0xff]
      %v2109 = vld [vmem:[%s472 + $0x150] sm:$0xff]
      %v2110 = vld [vmem:[%s472 + $0x158] sm:$0xff]
      %v2111 = vld [vmem:[%s472 + $0x160] sm:$0xff]
      %v2112 = vld [vmem:[%s472 + $0x168] sm:$0xff]
      %v2113 = vld [vmem:[%s472 + $0x170] sm:$0xff]
      %v2114 = vld [vmem:[%s472 + $0x178] sm:$0xff]
      %v2115 = vld [vmem:[%s472 + $0x180] sm:$0xff]
      %v2116 = vld [vmem:[%s472 + $0x188] sm:$0xff]
      %v2117 = vld [vmem:[%s472 + $0x190] sm:$0xff]
      %v2118 = vld [vmem:[%s472 + $0x198] sm:$0xff]
      %v2119 = vld [vmem:[%s472 + $0x1a0] sm:$0xff]
      %v2120 = vld [vmem:[%s472 + $0x1a8] sm:$0xff]
      %v2121 = vld [vmem:[%s472 + $0x1b0] sm:$0xff]
      %v2122 = vld [vmem:[%s472 + $0x1b8] sm:$0xff]
      %v2123 = vld [vmem:[%s472 + $0x1c0] sm:$0xff]
      %v2124 = vld [vmem:[%s472 + $0x1c8] sm:$0xff]
      %v2125 = vld [vmem:[%s472 + $0x1d0] sm:$0xff]
      %v2126 = vld [vmem:[%s472 + $0x1d8] sm:$0xff]
      %v2127 = vld [vmem:[%s472 + $0x1e0] sm:$0xff]
      %v2128 = vld [vmem:[%s472 + $0x1e8] sm:$0xff]
      %v2129 = vld [vmem:[%s472 + $0x1f0] sm:$0xff]
      %v2130 = vld [vmem:[%s472 + $0x1f8] sm:$0xff]
      %v2131 = vld [vmem:[%s479] sm:$0xf]
      %v2132 = vld [vmem:[%s479 + $0x4] sm:$0xf]
      %v2133 = vld [vmem:[%s479 + $0x8] sm:$0xf]
      %v2134 = vld [vmem:[%s479 + $0xc] sm:$0xf]
      %v2135 = vld [vmem:[%s479 + $0x10] sm:$0xf]
      %v2136 = vld [vmem:[%s479 + $0x14] sm:$0xf]
      %v2137 = vld [vmem:[%s479 + $0x18] sm:$0xf]
      %v2138 = vld [vmem:[%s479 + $0x1c] sm:$0xf]
      %v2139 = vld [vmem:[%s479 + $0x20] sm:$0xf]
      %v2140 = vld [vmem:[%s479 + $0x24] sm:$0xf]
      %v2141 = vld [vmem:[%s479 + $0x28] sm:$0xf]
      %v2142 = vld [vmem:[%s479 + $0x2c] sm:$0xf]
      %v2143 = vld [vmem:[%s479 + $0x30] sm:$0xf]
      %v2144 = vld [vmem:[%s479 + $0x34] sm:$0xf]
      %v2145 = vld [vmem:[%s479 + $0x38] sm:$0xf]
      %v2146 = vld [vmem:[%s479 + $0x3c] sm:$0xf]
      %v2147 = vld [vmem:[%s479 + $0x40] sm:$0xf]
      %v2148 = vld [vmem:[%s479 + $0x44] sm:$0xf]
      %v2149 = vld [vmem:[%s479 + $0x48] sm:$0xf]
      %v2150 = vld [vmem:[%s479 + $0x4c] sm:$0xf]
      %v2151 = vld [vmem:[%s479 + $0x50] sm:$0xf]
      %v2152 = vld [vmem:[%s479 + $0x54] sm:$0xf]
      %v2153 = vld [vmem:[%s479 + $0x58] sm:$0xf]
      %v2154 = vld [vmem:[%s479 + $0x5c] sm:$0xf]
      %v2155 = vld [vmem:[%s479 + $0x60] sm:$0xf]
      %v2156 = vld [vmem:[%s479 + $0x64] sm:$0xf]
      %v2157 = vld [vmem:[%s479 + $0x68] sm:$0xf]
      %v2158 = vld [vmem:[%s479 + $0x6c] sm:$0xf]
      %v2159 = vld [vmem:[%s479 + $0x70] sm:$0xf]
      %v2160 = vld [vmem:[%s479 + $0x74] sm:$0xf]
      %v2161 = vld [vmem:[%s479 + $0x78] sm:$0xf]
      %v2162 = vld [vmem:[%s479 + $0x7c] sm:$0xf]
      %v2227 = vunpack.c.l.b16 %v2067
      %v2228 = vunpack.c.h.b16 %v2067
      %v2229 = vunpack.c.l.b16 %v2068
      %v2230 = vunpack.c.h.b16 %v2068
      %v2231 = vunpack.c.l.b16 %v2069
      %v2232 = vunpack.c.h.b16 %v2069
      %v2233 = vunpack.c.l.b16 %v2070
      %v2234 = vunpack.c.h.b16 %v2070
      %v2235 = vunpack.c.l.b16 %v2071
      %v2236 = vunpack.c.h.b16 %v2071
      %v2237 = vunpack.c.l.b16 %v2072
      %v2238 = vunpack.c.h.b16 %v2072
      %v2239 = vunpack.c.l.b16 %v2073
      %v2240 = vunpack.c.h.b16 %v2073
      %v2241 = vunpack.c.l.b16 %v2074
      %v2242 = vunpack.c.h.b16 %v2074
      %v2243 = vunpack.c.l.b16 %v2075
      %v2244 = vunpack.c.h.b16 %v2075
      %v2245 = vunpack.c.l.b16 %v2076
      %v2246 = vunpack.c.h.b16 %v2076
      %v2247 = vunpack.c.l.b16 %v2077
      %v2248 = vunpack.c.h.b16 %v2077
      %v2249 = vunpack.c.l.b16 %v2078
      %v2250 = vunpack.c.h.b16 %v2078
      %v2251 = vunpack.c.l.b16 %v2079
      %v2252 = vunpack.c.h.b16 %v2079
      %v2253 = vunpack.c.l.b16 %v2080
      %v2254 = vunpack.c.h.b16 %v2080
      %v2255 = vunpack.c.l.b16 %v2081
      %v2256 = vunpack.c.h.b16 %v2081
      %v2257 = vunpack.c.l.b16 %v2082
      %v2258 = vunpack.c.h.b16 %v2082
      %v2259 = vunpack.c.l.b16 %v2083
      %v2260 = vunpack.c.h.b16 %v2083
      %v2261 = vunpack.c.l.b16 %v2084
      %v2262 = vunpack.c.h.b16 %v2084
      %v2263 = vunpack.c.l.b16 %v2085
      %v2264 = vunpack.c.h.b16 %v2085
      %v2265 = vunpack.c.l.b16 %v2086
      %v2266 = vunpack.c.h.b16 %v2086
      %v2267 = vunpack.c.l.b16 %v2087
      %v2268 = vunpack.c.h.b16 %v2087
      %v2269 = vunpack.c.l.b16 %v2088
      %v2270 = vunpack.c.h.b16 %v2088
      %v2271 = vunpack.c.l.b16 %v2089
      %v2272 = vunpack.c.h.b16 %v2089
      %v2273 = vunpack.c.l.b16 %v2090
      %v2274 = vunpack.c.h.b16 %v2090
      %v2275 = vunpack.c.l.b16 %v2091
      %v2276 = vunpack.c.h.b16 %v2091
      %v2277 = vunpack.c.l.b16 %v2092
      %v2278 = vunpack.c.h.b16 %v2092
      %v2279 = vunpack.c.l.b16 %v2093
      %v2280 = vunpack.c.h.b16 %v2093
      %v2281 = vunpack.c.l.b16 %v2094
      %v2282 = vunpack.c.h.b16 %v2094
      %v2283 = vunpack.c.l.b16 %v2095
      %v2284 = vunpack.c.h.b16 %v2095
      %v2285 = vunpack.c.l.b16 %v2096
      %v2286 = vunpack.c.h.b16 %v2096
      %v2287 = vunpack.c.l.b16 %v2097
      %v2288 = vunpack.c.h.b16 %v2097
      %v2289 = vunpack.c.l.b16 %v2098
      %v2290 = vunpack.c.h.b16 %v2098
      %v2291 = vunpack.c.l.b16 %v2099
      %v2292 = vunpack.c.h.b16 %v2099
      %v2293 = vunpack.c.l.b16 %v2100
      %v2294 = vunpack.c.h.b16 %v2100
      %v2295 = vunpack.c.l.b16 %v2101
      %v2296 = vunpack.c.h.b16 %v2101
      %v2297 = vunpack.c.l.b16 %v2102
      %v2298 = vunpack.c.h.b16 %v2102
      %v2299 = vunpack.c.l.b16 %v2103
      %v2300 = vunpack.c.h.b16 %v2103
      %v2301 = vunpack.c.l.b16 %v2104
      %v2302 = vunpack.c.h.b16 %v2104
      %v2303 = vunpack.c.l.b16 %v2105
      %v2304 = vunpack.c.h.b16 %v2105
      %v2305 = vunpack.c.l.b16 %v2106
      %v2306 = vunpack.c.h.b16 %v2106
      %v2307 = vunpack.c.l.b16 %v2107
      %v2308 = vunpack.c.h.b16 %v2107
      %v2309 = vunpack.c.l.b16 %v2108
      %v2310 = vunpack.c.h.b16 %v2108
      %v2311 = vunpack.c.l.b16 %v2109
      %v2312 = vunpack.c.h.b16 %v2109
      %v2313 = vunpack.c.l.b16 %v2110
      %v2314 = vunpack.c.h.b16 %v2110
      %v2315 = vunpack.c.l.b16 %v2111
      %v2316 = vunpack.c.h.b16 %v2111
      %v2317 = vunpack.c.l.b16 %v2112
      %v2318 = vunpack.c.h.b16 %v2112
      %v2319 = vunpack.c.l.b16 %v2113
      %v2320 = vunpack.c.h.b16 %v2113
      %v2321 = vunpack.c.l.b16 %v2114
      %v2322 = vunpack.c.h.b16 %v2114
      %v2323 = vunpack.c.l.b16 %v2115
      %v2324 = vunpack.c.h.b16 %v2115
      %v2325 = vunpack.c.l.b16 %v2116
      %v2326 = vunpack.c.h.b16 %v2116
      %v2327 = vunpack.c.l.b16 %v2117
      %v2328 = vunpack.c.h.b16 %v2117
      %v2329 = vunpack.c.l.b16 %v2118
      %v2330 = vunpack.c.h.b16 %v2118
      %v2331 = vunpack.c.l.b16 %v2119
      %v2332 = vunpack.c.h.b16 %v2119
      %v2333 = vunpack.c.l.b16 %v2120
      %v2334 = vunpack.c.h.b16 %v2120
      %v2335 = vunpack.c.l.b16 %v2121
      %v2336 = vunpack.c.h.b16 %v2121
      %v2337 = vunpack.c.l.b16 %v2122
      %v2338 = vunpack.c.h.b16 %v2122
      %v2339 = vunpack.c.l.b16 %v2123
      %v2340 = vunpack.c.h.b16 %v2123
      %v2341 = vunpack.c.l.b16 %v2124
      %v2342 = vunpack.c.h.b16 %v2124
      %v2343 = vunpack.c.l.b16 %v2125
      %v2344 = vunpack.c.h.b16 %v2125
      %v2345 = vunpack.c.l.b16 %v2126
      %v2346 = vunpack.c.h.b16 %v2126
      %v2347 = vunpack.c.l.b16 %v2127
      %v2348 = vunpack.c.h.b16 %v2127
      %v2349 = vunpack.c.l.b16 %v2128
      %v2350 = vunpack.c.h.b16 %v2128
      %v2351 = vunpack.c.l.b16 %v2129
      %v2352 = vunpack.c.h.b16 %v2129
      %v2353 = vunpack.c.l.b16 %v2130
      %v2354 = vunpack.c.h.b16 %v2130
      %v2355 = vpack.c.b16 %v2229, %v2227
      %v2356 = vpack.c.b16 %v2230, %v2228
      %v2357 = vpack.c.b16 %v2233, %v2231
      %v2358 = vpack.c.b16 %v2234, %v2232
      %v2359 = vpack.c.b16 %v2237, %v2235
      %v2360 = vpack.c.b16 %v2238, %v2236
      %v2361 = vpack.c.b16 %v2241, %v2239
      %v2362 = vpack.c.b16 %v2242, %v2240
      %v2363 = vpack.c.b16 %v2245, %v2243
      %v2364 = vpack.c.b16 %v2246, %v2244
      %v2365 = vpack.c.b16 %v2249, %v2247
      %v2366 = vpack.c.b16 %v2250, %v2248
      %v2367 = vpack.c.b16 %v2253, %v2251
      %v2368 = vpack.c.b16 %v2254, %v2252
      %v2369 = vpack.c.b16 %v2257, %v2255
      %v2370 = vpack.c.b16 %v2258, %v2256
      %v2371 = vpack.c.b16 %v2261, %v2259
      %v2372 = vpack.c.b16 %v2262, %v2260
      %v2373 = vpack.c.b16 %v2265, %v2263
      %v2374 = vpack.c.b16 %v2266, %v2264
      %v2375 = vpack.c.b16 %v2269, %v2267
      %v2376 = vpack.c.b16 %v2270, %v2268
      %v2377 = vpack.c.b16 %v2273, %v2271
      %v2378 = vpack.c.b16 %v2274, %v2272
      %v2379 = vpack.c.b16 %v2277, %v2275
      %v2380 = vpack.c.b16 %v2278, %v2276
      %v2381 = vpack.c.b16 %v2281, %v2279
      %v2382 = vpack.c.b16 %v2282, %v2280
      %v2383 = vpack.c.b16 %v2285, %v2283
      %v2384 = vpack.c.b16 %v2286, %v2284
      %v2385 = vpack.c.b16 %v2289, %v2287
      %v2386 = vpack.c.b16 %v2290, %v2288
      %v2387 = vpack.c.b16 %v2293, %v2291
      %v2388 = vpack.c.b16 %v2294, %v2292
      %v2389 = vpack.c.b16 %v2297, %v2295
      %v2390 = vpack.c.b16 %v2298, %v2296
      %v2391 = vpack.c.b16 %v2301, %v2299
      %v2392 = vpack.c.b16 %v2302, %v2300
      %v2393 = vpack.c.b16 %v2305, %v2303
      %v2394 = vpack.c.b16 %v2306, %v2304
      %v2395 = vpack.c.b16 %v2309, %v2307
      %v2396 = vpack.c.b16 %v2310, %v2308
      %v2397 = vpack.c.b16 %v2313, %v2311
      %v2398 = vpack.c.b16 %v2314, %v2312
      %v2399 = vpack.c.b16 %v2317, %v2315
      %v2400 = vpack.c.b16 %v2318, %v2316
      %v2401 = vpack.c.b16 %v2321, %v2319
      %v2402 = vpack.c.b16 %v2322, %v2320
      %v2403 = vpack.c.b16 %v2325, %v2323
      %v2404 = vpack.c.b16 %v2326, %v2324
      %v2405 = vpack.c.b16 %v2329, %v2327
      %v2406 = vpack.c.b16 %v2330, %v2328
      %v2407 = vpack.c.b16 %v2333, %v2331
      %v2408 = vpack.c.b16 %v2334, %v2332
      %v2409 = vpack.c.b16 %v2337, %v2335
      %v2410 = vpack.c.b16 %v2338, %v2336
      %v2411 = vpack.c.b16 %v2341, %v2339
      %v2412 = vpack.c.b16 %v2342, %v2340
      %v2413 = vpack.c.b16 %v2345, %v2343
      %v2414 = vpack.c.b16 %v2346, %v2344
      %v2415 = vpack.c.b16 %v2349, %v2347
      %v2416 = vpack.c.b16 %v2350, %v2348
      %v2417 = vpack.c.b16 %v2353, %v2351
      %v2418 = vpack.c.b16 %v2354, %v2352
      %v2515 = vunpack.c.l.b16 %v2131
      %v2516 = vunpack.c.l.b16 %v2132
      %v2517 = vunpack.c.l.b16 %v2133
      %v2518 = vunpack.c.l.b16 %v2134
      %v2519 = vunpack.c.l.b16 %v2135
      %v2520 = vunpack.c.l.b16 %v2136
      %v2521 = vunpack.c.l.b16 %v2137
      %v2522 = vunpack.c.l.b16 %v2138
      %v2523 = vunpack.c.l.b16 %v2139
      %v2524 = vunpack.c.l.b16 %v2140
      %v2525 = vunpack.c.l.b16 %v2141
      %v2526 = vunpack.c.l.b16 %v2142
      %v2527 = vunpack.c.l.b16 %v2143
      %v2528 = vunpack.c.l.b16 %v2144
      %v2529 = vunpack.c.l.b16 %v2145
      %v2530 = vunpack.c.l.b16 %v2146
      %v2531 = vunpack.c.l.b16 %v2147
      %v2532 = vunpack.c.l.b16 %v2148
      %v2533 = vunpack.c.l.b16 %v2149
      %v2534 = vunpack.c.l.b16 %v2150
      %v2535 = vunpack.c.l.b16 %v2151
      %v2536 = vunpack.c.l.b16 %v2152
      %v2537 = vunpack.c.l.b16 %v2153
      %v2538 = vunpack.c.l.b16 %v2154
      %v2539 = vunpack.c.l.b16 %v2155
      %v2540 = vunpack.c.l.b16 %v2156
      %v2541 = vunpack.c.l.b16 %v2157
      %v2542 = vunpack.c.l.b16 %v2158
      %v2543 = vunpack.c.l.b16 %v2159
      %v2544 = vunpack.c.l.b16 %v2160
      %v2545 = vunpack.c.l.b16 %v2161
      %v2546 = vunpack.c.l.b16 %v2162
      %v2547 = vpack.c.b16 %v2516, %v2515
      %v2548 = vpack.c.b16 %v2518, %v2517
      %v2549 = vpack.c.b16 %v2520, %v2519
      %v2550 = vpack.c.b16 %v2522, %v2521
      %v2551 = vpack.c.b16 %v2524, %v2523
      %v2552 = vpack.c.b16 %v2526, %v2525
      %v2553 = vpack.c.b16 %v2528, %v2527
      %v2554 = vpack.c.b16 %v2530, %v2529
      %v2555 = vpack.c.b16 %v2532, %v2531
      %v2556 = vpack.c.b16 %v2534, %v2533
      %v2557 = vpack.c.b16 %v2536, %v2535
      %v2558 = vpack.c.b16 %v2538, %v2537
      %v2559 = vpack.c.b16 %v2540, %v2539
      %v2560 = vpack.c.b16 %v2542, %v2541
      %v2561 = vpack.c.b16 %v2544, %v2543
      %v2562 = vpack.c.b16 %v2546, %v2545
      %2579 = vmatpush.bf16.msra.mxu0 %v2554
      %2580 = vmatpush.bf16.msra.mxu0 %v2553
      %2581 = vmatpush.bf16.msra.mxu0 %v2552
      %2582 = vmatpush.bf16.msra.mxu0 %v2551
      %2583 = vmatpush.bf16.msra.mxu0 %v2550
      %2584 = vmatpush.bf16.msra.mxu0 %v2549
      %2585 = vmatpush.bf16.msra.mxu0 %v2548
      %2586 = vmatpush.bf16.msra.mxu0 %v2547
      %2587 = vmatmul.bf16.gmra.mxu0 %v2355
      %v2588 = vpop.f32.mrf.mxu0
      %v2589 = vadd.f32 0.0, %v2588
      %v2590 = vpop.f32.mrf.mxu0
      %v2591 = vadd.f32 0.0, %v2590
      %2592 = vmatmul.bf16.gmra.mxu0 %v2357
      %v2593 = vpop.f32.mrf.mxu0
      %v2594 = vadd.f32 0.0, %v2593
      %v2595 = vpop.f32.mrf.mxu0
      %v2596 = vadd.f32 0.0, %v2595
      %2597 = vmatmul.bf16.gmra.mxu0 %v2359
      %v2598 = vpop.f32.mrf.mxu0
      %v2599 = vadd.f32 0.0, %v2598
      %v2600 = vpop.f32.mrf.mxu0
      %v2601 = vadd.f32 0.0, %v2600
      %2602 = vmatmul.bf16.gmra.mxu0 %v2361
      %v2603 = vpop.f32.mrf.mxu0
      %v2604 = vadd.f32 0.0, %v2603
      %v2605 = vpop.f32.mrf.mxu0
      %v2606 = vadd.f32 0.0, %v2605
      %2607 = vmatmul.bf16.gmra.mxu0 %v2363
      %v2608 = vpop.f32.mrf.mxu0
      %v2609 = vadd.f32 0.0, %v2608
      %v2610 = vpop.f32.mrf.mxu0
      %v2611 = vadd.f32 0.0, %v2610
      %2612 = vmatmul.bf16.gmra.mxu0 %v2365
      %v2613 = vpop.f32.mrf.mxu0
      %v2614 = vadd.f32 0.0, %v2613
      %v2615 = vpop.f32.mrf.mxu0
      %v2616 = vadd.f32 0.0, %v2615
      %2617 = vmatmul.bf16.gmra.mxu0 %v2367
      %v2618 = vpop.f32.mrf.mxu0
      %v2619 = vadd.f32 0.0, %v2618
      %v2620 = vpop.f32.mrf.mxu0
      %v2621 = vadd.f32 0.0, %v2620
      %2622 = vmatmul.bf16.gmra.mxu0 %v2369
      %v2623 = vpop.f32.mrf.mxu0
      %v2624 = vadd.f32 0.0, %v2623
      %v2625 = vpop.f32.mrf.mxu0
      %v2626 = vadd.f32 0.0, %v2625
      %2627 = vmatmul.bf16.gmra.mxu0 %v2371
      %v2628 = vpop.f32.mrf.mxu0
      %v2629 = vadd.f32 0.0, %v2628
      %v2630 = vpop.f32.mrf.mxu0
      %v2631 = vadd.f32 0.0, %v2630
      %2632 = vmatmul.bf16.gmra.mxu0 %v2373
      %v2633 = vpop.f32.mrf.mxu0
      %v2634 = vadd.f32 0.0, %v2633
      %v2635 = vpop.f32.mrf.mxu0
      %v2636 = vadd.f32 0.0, %v2635
      %2637 = vmatmul.bf16.gmra.mxu0 %v2375
      %v2638 = vpop.f32.mrf.mxu0
      %v2639 = vadd.f32 0.0, %v2638
      %v2640 = vpop.f32.mrf.mxu0
      %v2641 = vadd.f32 0.0, %v2640
      %2642 = vmatmul.bf16.gmra.mxu0 %v2377
      %v2643 = vpop.f32.mrf.mxu0
      %v2644 = vadd.f32 0.0, %v2643
      %v2645 = vpop.f32.mrf.mxu0
      %v2646 = vadd.f32 0.0, %v2645
      %2647 = vmatmul.bf16.gmra.mxu0 %v2379
      %v2648 = vpop.f32.mrf.mxu0
      %v2649 = vadd.f32 0.0, %v2648
      %v2650 = vpop.f32.mrf.mxu0
      %v2651 = vadd.f32 0.0, %v2650
      %2652 = vmatmul.bf16.gmra.mxu0 %v2381
      %v2653 = vpop.f32.mrf.mxu0
      %v2654 = vadd.f32 0.0, %v2653
      %v2655 = vpop.f32.mrf.mxu0
      %v2656 = vadd.f32 0.0, %v2655
      %2657 = vmatmul.bf16.gmra.mxu0 %v2383
      %v2658 = vpop.f32.mrf.mxu0
      %v2659 = vadd.f32 0.0, %v2658
      %v2660 = vpop.f32.mrf.mxu0
      %v2661 = vadd.f32 0.0, %v2660
      %2662 = vmatmul.bf16.gmra.mxu0 %v2385
      %v2663 = vpop.f32.mrf.mxu0
      %v2664 = vadd.f32 0.0, %v2663
      %v2665 = vpop.f32.mrf.mxu0
      %v2666 = vadd.f32 0.0, %v2665
      %2667 = vmatmul.bf16.gmra.mxu0 %v2387
      %v2668 = vpop.f32.mrf.mxu0
      %v2669 = vadd.f32 0.0, %v2668
      %v2670 = vpop.f32.mrf.mxu0
      %v2671 = vadd.f32 0.0, %v2670
      %2672 = vmatmul.bf16.gmra.mxu0 %v2389
      %v2673 = vpop.f32.mrf.mxu0
      %v2674 = vadd.f32 0.0, %v2673
      %v2675 = vpop.f32.mrf.mxu0
      %v2676 = vadd.f32 0.0, %v2675
      %2677 = vmatmul.bf16.gmra.mxu0 %v2391
      %v2678 = vpop.f32.mrf.mxu0
      %v2679 = vadd.f32 0.0, %v2678
      %v2680 = vpop.f32.mrf.mxu0
      %v2681 = vadd.f32 0.0, %v2680
      %2682 = vmatmul.bf16.gmra.mxu0 %v2393
      %v2683 = vpop.f32.mrf.mxu0
      %v2684 = vadd.f32 0.0, %v2683
      %v2685 = vpop.f32.mrf.mxu0
      %v2686 = vadd.f32 0.0, %v2685
      %2687 = vmatmul.bf16.gmra.mxu0 %v2395
      %v2688 = vpop.f32.mrf.mxu0
      %v2689 = vadd.f32 0.0, %v2688
      %v2690 = vpop.f32.mrf.mxu0
      %v2691 = vadd.f32 0.0, %v2690
      %2692 = vmatmul.bf16.gmra.mxu0 %v2397
      %v2693 = vpop.f32.mrf.mxu0
      %v2694 = vadd.f32 0.0, %v2693
      %v2695 = vpop.f32.mrf.mxu0
      %v2696 = vadd.f32 0.0, %v2695
      %2697 = vmatmul.bf16.gmra.mxu0 %v2399
      %v2698 = vpop.f32.mrf.mxu0
      %v2699 = vadd.f32 0.0, %v2698
      %v2700 = vpop.f32.mrf.mxu0
      %v2701 = vadd.f32 0.0, %v2700
      %2702 = vmatmul.bf16.gmra.mxu0 %v2401
      %v2703 = vpop.f32.mrf.mxu0
      %v2704 = vadd.f32 0.0, %v2703
      %v2705 = vpop.f32.mrf.mxu0
      %v2706 = vadd.f32 0.0, %v2705
      %2707 = vmatmul.bf16.gmra.mxu0 %v2403
      %v2708 = vpop.f32.mrf.mxu0
      %v2709 = vadd.f32 0.0, %v2708
      %v2710 = vpop.f32.mrf.mxu0
      %v2711 = vadd.f32 0.0, %v2710
      %2712 = vmatmul.bf16.gmra.mxu0 %v2405
      %v2713 = vpop.f32.mrf.mxu0
      %v2714 = vadd.f32 0.0, %v2713
      %v2715 = vpop.f32.mrf.mxu0
      %v2716 = vadd.f32 0.0, %v2715
      %2717 = vmatmul.bf16.gmra.mxu0 %v2407
      %v2718 = vpop.f32.mrf.mxu0
      %v2719 = vadd.f32 0.0, %v2718
      %v2720 = vpop.f32.mrf.mxu0
      %v2721 = vadd.f32 0.0, %v2720
      %2722 = vmatmul.bf16.gmra.mxu0 %v2409
      %v2723 = vpop.f32.mrf.mxu0
      %v2724 = vadd.f32 0.0, %v2723
      %v2725 = vpop.f32.mrf.mxu0
      %v2726 = vadd.f32 0.0, %v2725
      %2727 = vmatmul.bf16.gmra.mxu0 %v2411
      %v2728 = vpop.f32.mrf.mxu0
      %v2729 = vadd.f32 0.0, %v2728
      %v2730 = vpop.f32.mrf.mxu0
      %v2731 = vadd.f32 0.0, %v2730
      %2732 = vmatmul.bf16.gmra.mxu0 %v2413
      %v2733 = vpop.f32.mrf.mxu0
      %v2734 = vadd.f32 0.0, %v2733
      %v2735 = vpop.f32.mrf.mxu0
      %v2736 = vadd.f32 0.0, %v2735
      %2737 = vmatmul.bf16.gmra.mxu0 %v2415
      %v2738 = vpop.f32.mrf.mxu0
      %v2739 = vadd.f32 0.0, %v2738
      %v2740 = vpop.f32.mrf.mxu0
      %v2741 = vadd.f32 0.0, %v2740
      %2742 = vmatmul.bf16.gmra.mxu0 %v2417
      %v2743 = vpop.f32.mrf.mxu0
      %v2744 = vadd.f32 0.0, %v2743
      %v2745 = vpop.f32.mrf.mxu0
      %v2746 = vadd.f32 0.0, %v2745
      %2747 = vdwg.mxu0
      %2748 = vmatpush.bf16.msra.mxu0 %v2562
      %2749 = vmatpush.bf16.msra.mxu0 %v2561
      %2750 = vmatpush.bf16.msra.mxu0 %v2560
      %2751 = vmatpush.bf16.msra.mxu0 %v2559
      %2752 = vmatpush.bf16.msra.mxu0 %v2558
      %2753 = vmatpush.bf16.msra.mxu0 %v2557
      %2754 = vmatpush.bf16.msra.mxu0 %v2556
      %2755 = vmatpush.bf16.msra.mxu0 %v2555
      %2756 = vmatmul.bf16.gmra.mxu0 %v2356
      %v2757 = vpop.f32.mrf.mxu0
      %v2758 = vadd.f32 %v2589, %v2757
      %v2759 = vpop.f32.mrf.mxu0
      %v2760 = vadd.f32 %v2591, %v2759
      %2761 = vmatmul.bf16.gmra.mxu0 %v2358
      %v2762 = vpop.f32.mrf.mxu0
      %v2763 = vadd.f32 %v2594, %v2762
      %v2764 = vpop.f32.mrf.mxu0
      %v2765 = vadd.f32 %v2596, %v2764
      %2766 = vmatmul.bf16.gmra.mxu0 %v2360
      %v2767 = vpop.f32.mrf.mxu0
      %v2768 = vadd.f32 %v2599, %v2767
      %v2769 = vpop.f32.mrf.mxu0
      %v2770 = vadd.f32 %v2601, %v2769
      %2771 = vmatmul.bf16.gmra.mxu0 %v2362
      %v2772 = vpop.f32.mrf.mxu0
      %v2773 = vadd.f32 %v2604, %v2772
      %v2774 = vpop.f32.mrf.mxu0
      %v2775 = vadd.f32 %v2606, %v2774
      %2776 = vmatmul.bf16.gmra.mxu0 %v2364
      %v2777 = vpop.f32.mrf.mxu0
      %v2778 = vadd.f32 %v2609, %v2777
      %v2779 = vpop.f32.mrf.mxu0
      %v2780 = vadd.f32 %v2611, %v2779
      %2781 = vmatmul.bf16.gmra.mxu0 %v2366
      %v2782 = vpop.f32.mrf.mxu0
      %v2783 = vadd.f32 %v2614, %v2782
      %v2784 = vpop.f32.mrf.mxu0
      %v2785 = vadd.f32 %v2616, %v2784
      %2786 = vmatmul.bf16.gmra.mxu0 %v2368
      %v2787 = vpop.f32.mrf.mxu0
      %v2788 = vadd.f32 %v2619, %v2787
      %v2789 = vpop.f32.mrf.mxu0
      %v2790 = vadd.f32 %v2621, %v2789
      %2791 = vmatmul.bf16.gmra.mxu0 %v2370
      %v2792 = vpop.f32.mrf.mxu0
      %v2793 = vadd.f32 %v2624, %v2792
      %v2794 = vpop.f32.mrf.mxu0
      %v2795 = vadd.f32 %v2626, %v2794
      %2796 = vmatmul.bf16.gmra.mxu0 %v2372
      %v2797 = vpop.f32.mrf.mxu0
      %v2798 = vadd.f32 %v2629, %v2797
      %v2799 = vpop.f32.mrf.mxu0
      %v2800 = vadd.f32 %v2631, %v2799
      %2801 = vmatmul.bf16.gmra.mxu0 %v2374
      %v2802 = vpop.f32.mrf.mxu0
      %v2803 = vadd.f32 %v2634, %v2802
      %v2804 = vpop.f32.mrf.mxu0
      %v2805 = vadd.f32 %v2636, %v2804
      %2806 = vmatmul.bf16.gmra.mxu0 %v2376
      %v2807 = vpop.f32.mrf.mxu0
      %v2808 = vadd.f32 %v2639, %v2807
      %v2809 = vpop.f32.mrf.mxu0
      %v2810 = vadd.f32 %v2641, %v2809
      %2811 = vmatmul.bf16.gmra.mxu0 %v2378
      %v2812 = vpop.f32.mrf.mxu0
      %v2813 = vadd.f32 %v2644, %v2812
      %v2814 = vpop.f32.mrf.mxu0
      %v2815 = vadd.f32 %v2646, %v2814
      %2816 = vmatmul.bf16.gmra.mxu0 %v2380
      %v2817 = vpop.f32.mrf.mxu0
      %v2818 = vadd.f32 %v2649, %v2817
      %v2819 = vpop.f32.mrf.mxu0
      %v2820 = vadd.f32 %v2651, %v2819
      %2821 = vmatmul.bf16.gmra.mxu0 %v2382
      %v2822 = vpop.f32.mrf.mxu0
      %v2823 = vadd.f32 %v2654, %v2822
      %v2824 = vpop.f32.mrf.mxu0
      %v2825 = vadd.f32 %v2656, %v2824
      %2826 = vmatmul.bf16.gmra.mxu0 %v2384
      %v2827 = vpop.f32.mrf.mxu0
      %v2828 = vadd.f32 %v2659, %v2827
      %v2829 = vpop.f32.mrf.mxu0
      %v2830 = vadd.f32 %v2661, %v2829
      %2831 = vmatmul.bf16.gmra.mxu0 %v2386
      %v2832 = vpop.f32.mrf.mxu0
      %v2833 = vadd.f32 %v2664, %v2832
      %v2834 = vpop.f32.mrf.mxu0
      %v2835 = vadd.f32 %v2666, %v2834
      %2836 = vmatmul.bf16.gmra.mxu0 %v2388
      %v2837 = vpop.f32.mrf.mxu0
      %v2838 = vadd.f32 %v2669, %v2837
      %v2839 = vpop.f32.mrf.mxu0
      %v2840 = vadd.f32 %v2671, %v2839
      %2841 = vmatmul.bf16.gmra.mxu0 %v2390
      %v2842 = vpop.f32.mrf.mxu0
      %v2843 = vadd.f32 %v2674, %v2842
      %v2844 = vpop.f32.mrf.mxu0
      %v2845 = vadd.f32 %v2676, %v2844
      %2846 = vmatmul.bf16.gmra.mxu0 %v2392
      %v2847 = vpop.f32.mrf.mxu0
      %v2848 = vadd.f32 %v2679, %v2847
      %v2849 = vpop.f32.mrf.mxu0
      %v2850 = vadd.f32 %v2681, %v2849
      %2851 = vmatmul.bf16.gmra.mxu0 %v2394
      %v2852 = vpop.f32.mrf.mxu0
      %v2853 = vadd.f32 %v2684, %v2852
      %v2854 = vpop.f32.mrf.mxu0
      %v2855 = vadd.f32 %v2686, %v2854
      %2856 = vmatmul.bf16.gmra.mxu0 %v2396
      %v2857 = vpop.f32.mrf.mxu0
      %v2858 = vadd.f32 %v2689, %v2857
      %v2859 = vpop.f32.mrf.mxu0
      %v2860 = vadd.f32 %v2691, %v2859
      %2861 = vmatmul.bf16.gmra.mxu0 %v2398
      %v2862 = vpop.f32.mrf.mxu0
      %v2863 = vadd.f32 %v2694, %v2862
      %v2864 = vpop.f32.mrf.mxu0
      %v2865 = vadd.f32 %v2696, %v2864
      %2866 = vmatmul.bf16.gmra.mxu0 %v2400
      %v2867 = vpop.f32.mrf.mxu0
      %v2868 = vadd.f32 %v2699, %v2867
      %v2869 = vpop.f32.mrf.mxu0
      %v2870 = vadd.f32 %v2701, %v2869
      %2871 = vmatmul.bf16.gmra.mxu0 %v2402
      %v2872 = vpop.f32.mrf.mxu0
      %v2873 = vadd.f32 %v2704, %v2872
      %v2874 = vpop.f32.mrf.mxu0
      %v2875 = vadd.f32 %v2706, %v2874
      %2876 = vmatmul.bf16.gmra.mxu0 %v2404
      %v2877 = vpop.f32.mrf.mxu0
      %v2878 = vadd.f32 %v2709, %v2877
      %v2879 = vpop.f32.mrf.mxu0
      %v2880 = vadd.f32 %v2711, %v2879
      %2881 = vmatmul.bf16.gmra.mxu0 %v2406
      %v2882 = vpop.f32.mrf.mxu0
      %v2883 = vadd.f32 %v2714, %v2882
      %v2884 = vpop.f32.mrf.mxu0
      %v2885 = vadd.f32 %v2716, %v2884
      %2886 = vmatmul.bf16.gmra.mxu0 %v2408
      %v2887 = vpop.f32.mrf.mxu0
      %v2888 = vadd.f32 %v2719, %v2887
      %v2889 = vpop.f32.mrf.mxu0
      %v2890 = vadd.f32 %v2721, %v2889
      %2891 = vmatmul.bf16.gmra.mxu0 %v2410
      %v2892 = vpop.f32.mrf.mxu0
      %v2893 = vadd.f32 %v2724, %v2892
      %v2894 = vpop.f32.mrf.mxu0
      %v2895 = vadd.f32 %v2726, %v2894
      %2896 = vmatmul.bf16.gmra.mxu0 %v2412
      %v2897 = vpop.f32.mrf.mxu0
      %v2898 = vadd.f32 %v2729, %v2897
      %v2899 = vpop.f32.mrf.mxu0
      %v2900 = vadd.f32 %v2731, %v2899
      %2901 = vmatmul.bf16.gmra.mxu0 %v2414
      %v2902 = vpop.f32.mrf.mxu0
      %v2903 = vadd.f32 %v2734, %v2902
      %v2904 = vpop.f32.mrf.mxu0
      %v2905 = vadd.f32 %v2736, %v2904
      %2906 = vmatmul.bf16.gmra.mxu0 %v2416
      %v2907 = vpop.f32.mrf.mxu0
      %v2908 = vadd.f32 %v2739, %v2907
      %v2909 = vpop.f32.mrf.mxu0
      %v2910 = vadd.f32 %v2741, %v2909
      %2911 = vmatmul.bf16.gmra.mxu0 %v2418
      %v2912 = vpop.f32.mrf.mxu0
      %v2913 = vadd.f32 %v2744, %v2912
      %v2914 = vpop.f32.mrf.mxu0
      %v2915 = vadd.f32 %v2746, %v2914
      %2916 = vdwg.mxu0
      %v2917 = vadd.f32 %v2003, %v2758
      %v2918 = vadd.f32 %v2004, %v2760
      %v2919 = vadd.f32 %v2005, %v2763
      %v2920 = vadd.f32 %v2006, %v2765
      %v2921 = vadd.f32 %v2007, %v2768
      %v2922 = vadd.f32 %v2008, %v2770
      %v2923 = vadd.f32 %v2009, %v2773
      %v2924 = vadd.f32 %v2010, %v2775
      %v2925 = vadd.f32 %v2011, %v2778
      %v2926 = vadd.f32 %v2012, %v2780
      %v2927 = vadd.f32 %v2013, %v2783
      %v2928 = vadd.f32 %v2014, %v2785
      %v2929 = vadd.f32 %v2015, %v2788
      %v2930 = vadd.f32 %v2016, %v2790
      %v2931 = vadd.f32 %v2017, %v2793
      %v2932 = vadd.f32 %v2018, %v2795
      %v2933 = vadd.f32 %v2019, %v2798
      %v2934 = vadd.f32 %v2020, %v2800
      %v2935 = vadd.f32 %v2021, %v2803
      %v2936 = vadd.f32 %v2022, %v2805
      %v2937 = vadd.f32 %v2023, %v2808
      %v2938 = vadd.f32 %v2024, %v2810
      %v2939 = vadd.f32 %v2025, %v2813
      %v2940 = vadd.f32 %v2026, %v2815
      %v2941 = vadd.f32 %v2027, %v2818
      %v2942 = vadd.f32 %v2028, %v2820
      %v2943 = vadd.f32 %v2029, %v2823
      %v2944 = vadd.f32 %v2030, %v2825
      %v2945 = vadd.f32 %v2031, %v2828
      %v2946 = vadd.f32 %v2032, %v2830
      %v2947 = vadd.f32 %v2033, %v2833
      %v2948 = vadd.f32 %v2034, %v2835
      %v2949 = vadd.f32 %v2035, %v2838
      %v2950 = vadd.f32 %v2036, %v2840
      %v2951 = vadd.f32 %v2037, %v2843
      %v2952 = vadd.f32 %v2038, %v2845
      %v2953 = vadd.f32 %v2039, %v2848
      %v2954 = vadd.f32 %v2040, %v2850
      %v2955 = vadd.f32 %v2041, %v2853
      %v2956 = vadd.f32 %v2042, %v2855
      %v2957 = vadd.f32 %v2043, %v2858
      %v2958 = vadd.f32 %v2044, %v2860
      %v2959 = vadd.f32 %v2045, %v2863
      %v2960 = vadd.f32 %v2046, %v2865
      %v2961 = vadd.f32 %v2047, %v2868
      %v2962 = vadd.f32 %v2048, %v2870
      %v2963 = vadd.f32 %v2049, %v2873
      %v2964 = vadd.f32 %v2050, %v2875
      %v2965 = vadd.f32 %v2051, %v2878
      %v2966 = vadd.f32 %v2052, %v2880
      %v2967 = vadd.f32 %v2053, %v2883
      %v2968 = vadd.f32 %v2054, %v2885
      %v2969 = vadd.f32 %v2055, %v2888
      %v2970 = vadd.f32 %v2056, %v2890
      %v2971 = vadd.f32 %v2057, %v2893
      %v2972 = vadd.f32 %v2058, %v2895
      %v2973 = vadd.f32 %v2059, %v2898
      %v2974 = vadd.f32 %v2060, %v2900
      %v2975 = vadd.f32 %v2061, %v2903
      %v2976 = vadd.f32 %v2062, %v2905
      %v2977 = vadd.f32 %v2063, %v2908
      %v2978 = vadd.f32 %v2064, %v2910
      %v2979 = vadd.f32 %v2065, %v2913
      %v2980 = vadd.f32 %v2066, %v2915
      %2981 = vst [vmem:[#allocation2] sm:$0xff] %v2917
      %2982 = vst [vmem:[#allocation2 + $0x8] sm:$0xff] %v2918
      %2983 = vst [vmem:[#allocation2 + $0x10] sm:$0xff] %v2919
      %2984 = vst [vmem:[#allocation2 + $0x18] sm:$0xff] %v2920
      %2985 = vst [vmem:[#allocation2 + $0x20] sm:$0xff] %v2921
      %2986 = vst [vmem:[#allocation2 + $0x28] sm:$0xff] %v2922
      %2987 = vst [vmem:[#allocation2 + $0x30] sm:$0xff] %v2923
      %2988 = vst [vmem:[#allocation2 + $0x38] sm:$0xff] %v2924
      %2989 = vst [vmem:[#allocation2 + $0x40] sm:$0xff] %v2925
      %2990 = vst [vmem:[#allocation2 + $0x48] sm:$0xff] %v2926
      %2991 = vst [vmem:[#allocation2 + $0x50] sm:$0xff] %v2927
      %2992 = vst [vmem:[#allocation2 + $0x58] sm:$0xff] %v2928
      %2993 = vst [vmem:[#allocation2 + $0x60] sm:$0xff] %v2929
      %2994 = vst [vmem:[#allocation2 + $0x68] sm:$0xff] %v2930
      %2995 = vst [vmem:[#allocation2 + $0x70] sm:$0xff] %v2931
      %2996 = vst [vmem:[#allocation2 + $0x78] sm:$0xff] %v2932
      %2997 = vst [vmem:[#allocation2 + $0x80] sm:$0xff] %v2933
      %2998 = vst [vmem:[#allocation2 + $0x88] sm:$0xff] %v2934
      %2999 = vst [vmem:[#allocation2 + $0x90] sm:$0xff] %v2935
      %3000 = vst [vmem:[#allocation2 + $0x98] sm:$0xff] %v2936
      %3001 = vst [vmem:[#allocation2 + $0xa0] sm:$0xff] %v2937
      %3002 = vst [vmem:[#allocation2 + $0xa8] sm:$0xff] %v2938
      %3003 = vst [vmem:[#allocation2 + $0xb0] sm:$0xff] %v2939
      %3004 = vst [vmem:[#allocation2 + $0xb8] sm:$0xff] %v2940
      %3005 = vst [vmem:[#allocation2 + $0xc0] sm:$0xff] %v2941
      %3006 = vst [vmem:[#allocation2 + $0xc8] sm:$0xff] %v2942
      %3007 = vst [vmem:[#allocation2 + $0xd0] sm:$0xff] %v2943
      %3008 = vst [vmem:[#allocation2 + $0xd8] sm:$0xff] %v2944
      %3009 = vst [vmem:[#allocation2 + $0xe0] sm:$0xff] %v2945
      %3010 = vst [vmem:[#allocation2 + $0xe8] sm:$0xff] %v2946
      %3011 = vst [vmem:[#allocation2 + $0xf0] sm:$0xff] %v2947
      %3012 = vst [vmem:[#allocation2 + $0xf8] sm:$0xff] %v2948
      %3013 = vst [vmem:[#allocation2 + $0x100] sm:$0xff] %v2949
      %3014 = vst [vmem:[#allocation2 + $0x108] sm:$0xff] %v2950
      %3015 = vst [vmem:[#allocation2 + $0x110] sm:$0xff] %v2951
      %3016 = vst [vmem:[#allocation2 + $0x118] sm:$0xff] %v2952
      %3017 = vst [vmem:[#allocation2 + $0x120] sm:$0xff] %v2953
      %3018 = vst [vmem:[#allocation2 + $0x128] sm:$0xff] %v2954
      %3019 = vst [vmem:[#allocation2 + $0x130] sm:$0xff] %v2955
      %3020 = vst [vmem:[#allocation2 + $0x138] sm:$0xff] %v2956
      %3021 = vst [vmem:[#allocation2 + $0x140] sm:$0xff] %v2957
      %3022 = vst [vmem:[#allocation2 + $0x148] sm:$0xff] %v2958
      %3023 = vst [vmem:[#allocation2 + $0x150] sm:$0xff] %v2959
      %3024 = vst [vmem:[#allocation2 + $0x158] sm:$0xff] %v2960
      %3025 = vst [vmem:[#allocation2 + $0x160] sm:$0xff] %v2961
      %3026 = vst [vmem:[#allocation2 + $0x168] sm:$0xff] %v2962
      %3027 = vst [vmem:[#allocation2 + $0x170] sm:$0xff] %v2963
      %3028 = vst [vmem:[#allocation2 + $0x178] sm:$0xff] %v2964
      %3029 = vst [vmem:[#allocation2 + $0x180] sm:$0xff] %v2965
      %3030 = vst [vmem:[#allocation2 + $0x188] sm:$0xff] %v2966
      %3031 = vst [vmem:[#allocation2 + $0x190] sm:$0xff] %v2967
      %3032 = vst [vmem:[#allocation2 + $0x198] sm:$0xff] %v2968
      %3033 = vst [vmem:[#allocation2 + $0x1a0] sm:$0xff] %v2969
      %3034 = vst [vmem:[#allocation2 + $0x1a8] sm:$0xff] %v2970
      %3035 = vst [vmem:[#allocation2 + $0x1b0] sm:$0xff] %v2971
      %3036 = vst [vmem:[#allocation2 + $0x1b8] sm:$0xff] %v2972
      %3037 = vst [vmem:[#allocation2 + $0x1c0] sm:$0xff] %v2973
      %3038 = vst [vmem:[#allocation2 + $0x1c8] sm:$0xff] %v2974
      %3039 = vst [vmem:[#allocation2 + $0x1d0] sm:$0xff] %v2975
      %3040 = vst [vmem:[#allocation2 + $0x1d8] sm:$0xff] %v2976
      %3041 = vst [vmem:[#allocation2 + $0x1e0] sm:$0xff] %v2977
      %3042 = vst [vmem:[#allocation2 + $0x1e8] sm:$0xff] %v2978
      %3043 = vst [vmem:[#allocation2 + $0x1f0] sm:$0xff] %v2979
      %3044 = vst [vmem:[#allocation2 + $0x1f8] sm:$0xff] %v2980
      // Predicated region
      $region57: #{residual_block_3d.6} parent=43 // pred_check
        %p3045 = pneg %p511
      $region58: #{residual_block_3d.6} parent=43 // pred_check_branch
        %3047 = sbr.rel (%p3045) target = $region60
      $region59: #{residual_block_3d.6} parent=43 // pred_region
        %v3048 = vld [vmem:[#allocation2] sm:$0xff]
        %v3049 = vld [vmem:[#allocation2 + $0x8] sm:$0xff]
        %v3050 = vld [vmem:[#allocation2 + $0x10] sm:$0xff]
        %v3051 = vld [vmem:[#allocation2 + $0x18] sm:$0xff]
        %v3052 = vld [vmem:[#allocation2 + $0x20] sm:$0xff]
        %v3053 = vld [vmem:[#allocation2 + $0x28] sm:$0xff]
        %v3054 = vld [vmem:[#allocation2 + $0x30] sm:$0xff]
        %v3055 = vld [vmem:[#allocation2 + $0x38] sm:$0xff]
        %v3056 = vld [vmem:[#allocation2 + $0x40] sm:$0xff]
        %v3057 = vld [vmem:[#allocation2 + $0x48] sm:$0xff]
        %v3058 = vld [vmem:[#allocation2 + $0x50] sm:$0xff]
        %v3059 = vld [vmem:[#allocation2 + $0x58] sm:$0xff]
        %v3060 = vld [vmem:[#allocation2 + $0x60] sm:$0xff]
        %v3061 = vld [vmem:[#allocation2 + $0x68] sm:$0xff]
        %v3062 = vld [vmem:[#allocation2 + $0x70] sm:$0xff]
        %v3063 = vld [vmem:[#allocation2 + $0x78] sm:$0xff]
        %v3064 = vld [vmem:[#allocation2 + $0x80] sm:$0xff]
        %v3065 = vld [vmem:[#allocation2 + $0x88] sm:$0xff]
        %v3066 = vld [vmem:[#allocation2 + $0x90] sm:$0xff]
        %v3067 = vld [vmem:[#allocation2 + $0x98] sm:$0xff]
        %v3068 = vld [vmem:[#allocation2 + $0xa0] sm:$0xff]
        %v3069 = vld [vmem:[#allocation2 + $0xa8] sm:$0xff]
        %v3070 = vld [vmem:[#allocation2 + $0xb0] sm:$0xff]
        %v3071 = vld [vmem:[#allocation2 + $0xb8] sm:$0xff]
        %v3072 = vld [vmem:[#allocation2 + $0xc0] sm:$0xff]
        %v3073 = vld [vmem:[#allocation2 + $0xc8] sm:$0xff]
        %v3074 = vld [vmem:[#allocation2 + $0xd0] sm:$0xff]
        %v3075 = vld [vmem:[#allocation2 + $0xd8] sm:$0xff]
        %v3076 = vld [vmem:[#allocation2 + $0xe0] sm:$0xff]
        %v3077 = vld [vmem:[#allocation2 + $0xe8] sm:$0xff]
        %v3078 = vld [vmem:[#allocation2 + $0xf0] sm:$0xff]
        %v3079 = vld [vmem:[#allocation2 + $0xf8] sm:$0xff]
        %v3080 = vld [vmem:[#allocation2 + $0x100] sm:$0xff]
        %v3081 = vld [vmem:[#allocation2 + $0x108] sm:$0xff]
        %v3082 = vld [vmem:[#allocation2 + $0x110] sm:$0xff]
        %v3083 = vld [vmem:[#allocation2 + $0x118] sm:$0xff]
        %v3084 = vld [vmem:[#allocation2 + $0x120] sm:$0xff]
        %v3085 = vld [vmem:[#allocation2 + $0x128] sm:$0xff]
        %v3086 = vld [vmem:[#allocation2 + $0x130] sm:$0xff]
        %v3087 = vld [vmem:[#allocation2 + $0x138] sm:$0xff]
        %v3088 = vld [vmem:[#allocation2 + $0x140] sm:$0xff]
        %v3089 = vld [vmem:[#allocation2 + $0x148] sm:$0xff]
        %v3090 = vld [vmem:[#allocation2 + $0x150] sm:$0xff]
        %v3091 = vld [vmem:[#allocation2 + $0x158] sm:$0xff]
        %v3092 = vld [vmem:[#allocation2 + $0x160] sm:$0xff]
        %v3093 = vld [vmem:[#allocation2 + $0x168] sm:$0xff]
        %v3094 = vld [vmem:[#allocation2 + $0x170] sm:$0xff]
        %v3095 = vld [vmem:[#allocation2 + $0x178] sm:$0xff]
        %v3096 = vld [vmem:[#allocation2 + $0x180] sm:$0xff]
        %v3097 = vld [vmem:[#allocation2 + $0x188] sm:$0xff]
        %v3098 = vld [vmem:[#allocation2 + $0x190] sm:$0xff]
        %v3099 = vld [vmem:[#allocation2 + $0x198] sm:$0xff]
        %v3100 = vld [vmem:[#allocation2 + $0x1a0] sm:$0xff]
        %v3101 = vld [vmem:[#allocation2 + $0x1a8] sm:$0xff]
        %v3102 = vld [vmem:[#allocation2 + $0x1b0] sm:$0xff]
        %v3103 = vld [vmem:[#allocation2 + $0x1b8] sm:$0xff]
        %v3104 = vld [vmem:[#allocation2 + $0x1c0] sm:$0xff]
        %v3105 = vld [vmem:[#allocation2 + $0x1c8] sm:$0xff]
        %v3106 = vld [vmem:[#allocation2 + $0x1d0] sm:$0xff]
        %v3107 = vld [vmem:[#allocation2 + $0x1d8] sm:$0xff]
        %v3108 = vld [vmem:[#allocation2 + $0x1e0] sm:$0xff]
        %v3109 = vld [vmem:[#allocation2 + $0x1e8] sm:$0xff]
        %v3110 = vld [vmem:[#allocation2 + $0x1f0] sm:$0xff]
        %v3111 = vld [vmem:[#allocation2 + $0x1f8] sm:$0xff]
        %v3112 = vld [vmem:[%s2] sm:$0x1]
        %v3114 = vperm.slane %v3112, 0
        %v3116 = vadd.f32 %v3048, %v3114
        %v3117 = vadd.f32 %v3049, %v3114
        %v3118 = vadd.f32 %v3050, %v3114
        %v3119 = vadd.f32 %v3051, %v3114
        %v3120 = vadd.f32 %v3052, %v3114
        %v3121 = vadd.f32 %v3053, %v3114
        %v3122 = vadd.f32 %v3054, %v3114
        %v3123 = vadd.f32 %v3055, %v3114
        %v3124 = vadd.f32 %v3056, %v3114
        %v3125 = vadd.f32 %v3057, %v3114
        %v3126 = vadd.f32 %v3058, %v3114
        %v3127 = vadd.f32 %v3059, %v3114
        %v3128 = vadd.f32 %v3060, %v3114
        %v3129 = vadd.f32 %v3061, %v3114
        %v3130 = vadd.f32 %v3062, %v3114
        %v3131 = vadd.f32 %v3063, %v3114
        %v3132 = vadd.f32 %v3064, %v3114
        %v3133 = vadd.f32 %v3065, %v3114
        %v3134 = vadd.f32 %v3066, %v3114
        %v3135 = vadd.f32 %v3067, %v3114
        %v3136 = vadd.f32 %v3068, %v3114
        %v3137 = vadd.f32 %v3069, %v3114
        %v3138 = vadd.f32 %v3070, %v3114
        %v3139 = vadd.f32 %v3071, %v3114
        %v3140 = vadd.f32 %v3072, %v3114
        %v3141 = vadd.f32 %v3073, %v3114
        %v3142 = vadd.f32 %v3074, %v3114
        %v3143 = vadd.f32 %v3075, %v3114
        %v3144 = vadd.f32 %v3076, %v3114
        %v3145 = vadd.f32 %v3077, %v3114
        %v3146 = vadd.f32 %v3078, %v3114
        %v3147 = vadd.f32 %v3079, %v3114
        %v3148 = vadd.f32 %v3080, %v3114
        %v3149 = vadd.f32 %v3081, %v3114
        %v3150 = vadd.f32 %v3082, %v3114
        %v3151 = vadd.f32 %v3083, %v3114
        %v3152 = vadd.f32 %v3084, %v3114
        %v3153 = vadd.f32 %v3085, %v3114
        %v3154 = vadd.f32 %v3086, %v3114
        %v3155 = vadd.f32 %v3087, %v3114
        %v3156 = vadd.f32 %v3088, %v3114
        %v3157 = vadd.f32 %v3089, %v3114
        %v3158 = vadd.f32 %v3090, %v3114
        %v3159 = vadd.f32 %v3091, %v3114
        %v3160 = vadd.f32 %v3092, %v3114
        %v3161 = vadd.f32 %v3093, %v3114
        %v3162 = vadd.f32 %v3094, %v3114
        %v3163 = vadd.f32 %v3095, %v3114
        %v3164 = vadd.f32 %v3096, %v3114
        %v3165 = vadd.f32 %v3097, %v3114
        %v3166 = vadd.f32 %v3098, %v3114
        %v3167 = vadd.f32 %v3099, %v3114
        %v3168 = vadd.f32 %v3100, %v3114
        %v3169 = vadd.f32 %v3101, %v3114
        %v3170 = vadd.f32 %v3102, %v3114
        %v3171 = vadd.f32 %v3103, %v3114
        %v3172 = vadd.f32 %v3104, %v3114
        %v3173 = vadd.f32 %v3105, %v3114
        %v3174 = vadd.f32 %v3106, %v3114
        %v3175 = vadd.f32 %v3107, %v3114
        %v3176 = vadd.f32 %v3108, %v3114
        %v3177 = vadd.f32 %v3109, %v3114
        %v3178 = vadd.f32 %v3110, %v3114
        %v3179 = vadd.f32 %v3111, %v3114
        %v3180 = vpack.c.bf16 %v3116, %v3116
        %v3181 = vpack.c.bf16 %v3117, %v3117
        %v3182 = vpack.c.bf16 %v3118, %v3118
        %v3183 = vpack.c.bf16 %v3119, %v3119
        %v3184 = vpack.c.bf16 %v3120, %v3120
        %v3185 = vpack.c.bf16 %v3121, %v3121
        %v3186 = vpack.c.bf16 %v3122, %v3122
        %v3187 = vpack.c.bf16 %v3123, %v3123
        %v3188 = vpack.c.bf16 %v3124, %v3124
        %v3189 = vpack.c.bf16 %v3125, %v3125
        %v3190 = vpack.c.bf16 %v3126, %v3126
        %v3191 = vpack.c.bf16 %v3127, %v3127
        %v3192 = vpack.c.bf16 %v3128, %v3128
        %v3193 = vpack.c.bf16 %v3129, %v3129
        %v3194 = vpack.c.bf16 %v3130, %v3130
        %v3195 = vpack.c.bf16 %v3131, %v3131
        %v3196 = vpack.c.bf16 %v3132, %v3132
        %v3197 = vpack.c.bf16 %v3133, %v3133
        %v3198 = vpack.c.bf16 %v3134, %v3134
        %v3199 = vpack.c.bf16 %v3135, %v3135
        %v3200 = vpack.c.bf16 %v3136, %v3136
        %v3201 = vpack.c.bf16 %v3137, %v3137
        %v3202 = vpack.c.bf16 %v3138, %v3138
        %v3203 = vpack.c.bf16 %v3139, %v3139
        %v3204 = vpack.c.bf16 %v3140, %v3140
        %v3205 = vpack.c.bf16 %v3141, %v3141
        %v3206 = vpack.c.bf16 %v3142, %v3142
        %v3207 = vpack.c.bf16 %v3143, %v3143
        %v3208 = vpack.c.bf16 %v3144, %v3144
        %v3209 = vpack.c.bf16 %v3145, %v3145
        %v3210 = vpack.c.bf16 %v3146, %v3146
        %v3211 = vpack.c.bf16 %v3147, %v3147
        %v3212 = vpack.c.bf16 %v3148, %v3148
        %v3213 = vpack.c.bf16 %v3149, %v3149
        %v3214 = vpack.c.bf16 %v3150, %v3150
        %v3215 = vpack.c.bf16 %v3151, %v3151
        %v3216 = vpack.c.bf16 %v3152, %v3152
        %v3217 = vpack.c.bf16 %v3153, %v3153
        %v3218 = vpack.c.bf16 %v3154, %v3154
        %v3219 = vpack.c.bf16 %v3155, %v3155
        %v3220 = vpack.c.bf16 %v3156, %v3156
        %v3221 = vpack.c.bf16 %v3157, %v3157
        %v3222 = vpack.c.bf16 %v3158, %v3158
        %v3223 = vpack.c.bf16 %v3159, %v3159
        %v3224 = vpack.c.bf16 %v3160, %v3160
        %v3225 = vpack.c.bf16 %v3161, %v3161
        %v3226 = vpack.c.bf16 %v3162, %v3162
        %v3227 = vpack.c.bf16 %v3163, %v3163
        %v3228 = vpack.c.bf16 %v3164, %v3164
        %v3229 = vpack.c.bf16 %v3165, %v3165
        %v3230 = vpack.c.bf16 %v3166, %v3166
        %v3231 = vpack.c.bf16 %v3167, %v3167
        %v3232 = vpack.c.bf16 %v3168, %v3168
        %v3233 = vpack.c.bf16 %v3169, %v3169
        %v3234 = vpack.c.bf16 %v3170, %v3170
        %v3235 = vpack.c.bf16 %v3171, %v3171
        %v3236 = vpack.c.bf16 %v3172, %v3172
        %v3237 = vpack.c.bf16 %v3173, %v3173
        %v3238 = vpack.c.bf16 %v3174, %v3174
        %v3239 = vpack.c.bf16 %v3175, %v3175
        %v3240 = vpack.c.bf16 %v3176, %v3176
        %v3241 = vpack.c.bf16 %v3177, %v3177
        %v3242 = vpack.c.bf16 %v3178, %v3178
        %v3243 = vpack.c.bf16 %v3179, %v3179
        %3244 = vst [vmem:[%s491] sm:$0xf] %v3180
        %3245 = vst [vmem:[%s491 + $0x4] sm:$0xf] %v3181
        %3246 = vst [vmem:[%s491 + $0x8] sm:$0xf] %v3182
        %3247 = vst [vmem:[%s491 + $0xc] sm:$0xf] %v3183
        %3248 = vst [vmem:[%s491 + $0x10] sm:$0xf] %v3184
        %3249 = vst [vmem:[%s491 + $0x14] sm:$0xf] %v3185
        %3250 = vst [vmem:[%s491 + $0x18] sm:$0xf] %v3186
        %3251 = vst [vmem:[%s491 + $0x1c] sm:$0xf] %v3187
        %3252 = vst [vmem:[%s491 + $0x20] sm:$0xf] %v3188
        %3253 = vst [vmem:[%s491 + $0x24] sm:$0xf] %v3189
        %3254 = vst [vmem:[%s491 + $0x28] sm:$0xf] %v3190
        %3255 = vst [vmem:[%s491 + $0x2c] sm:$0xf] %v3191
        %3256 = vst [vmem:[%s491 + $0x30] sm:$0xf] %v3192
        %3257 = vst [vmem:[%s491 + $0x34] sm:$0xf] %v3193
        %3258 = vst [vmem:[%s491 + $0x38] sm:$0xf] %v3194
        %3259 = vst [vmem:[%s491 + $0x3c] sm:$0xf] %v3195
        %3260 = vst [vmem:[%s491 + $0x40] sm:$0xf] %v3196
        %3261 = vst [vmem:[%s491 + $0x44] sm:$0xf] %v3197
        %3262 = vst [vmem:[%s491 + $0x48] sm:$0xf] %v3198
        %3263 = vst [vmem:[%s491 + $0x4c] sm:$0xf] %v3199
        %3264 = vst [vmem:[%s491 + $0x50] sm:$0xf] %v3200
        %3265 = vst [vmem:[%s491 + $0x54] sm:$0xf] %v3201
        %3266 = vst [vmem:[%s491 + $0x58] sm:$0xf] %v3202
        %3267 = vst [vmem:[%s491 + $0x5c] sm:$0xf] %v3203
        %3268 = vst [vmem:[%s491 + $0x60] sm:$0xf] %v3204
        %3269 = vst [vmem:[%s491 + $0x64] sm:$0xf] %v3205
        %3270 = vst [vmem:[%s491 + $0x68] sm:$0xf] %v3206
        %3271 = vst [vmem:[%s491 + $0x6c] sm:$0xf] %v3207
        %3272 = vst [vmem:[%s491 + $0x70] sm:$0xf] %v3208
        %3273 = vst [vmem:[%s491 + $0x74] sm:$0xf] %v3209
        %3274 = vst [vmem:[%s491 + $0x78] sm:$0xf] %v3210
        %3275 = vst [vmem:[%s491 + $0x7c] sm:$0xf] %v3211
        %3276 = vst [vmem:[%s491 + $0x80] sm:$0xf] %v3212
        %3277 = vst [vmem:[%s491 + $0x84] sm:$0xf] %v3213
        %3278 = vst [vmem:[%s491 + $0x88] sm:$0xf] %v3214
        %3279 = vst [vmem:[%s491 + $0x8c] sm:$0xf] %v3215
        %3280 = vst [vmem:[%s491 + $0x90] sm:$0xf] %v3216
        %3281 = vst [vmem:[%s491 + $0x94] sm:$0xf] %v3217
        %3282 = vst [vmem:[%s491 + $0x98] sm:$0xf] %v3218
        %3283 = vst [vmem:[%s491 + $0x9c] sm:$0xf] %v3219
        %3284 = vst [vmem:[%s491 + $0xa0] sm:$0xf] %v3220
        %3285 = vst [vmem:[%s491 + $0xa4] sm:$0xf] %v3221
        %3286 = vst [vmem:[%s491 + $0xa8] sm:$0xf] %v3222
        %3287 = vst [vmem:[%s491 + $0xac] sm:$0xf] %v3223
        %3288 = vst [vmem:[%s491 + $0xb0] sm:$0xf] %v3224
        %3289 = vst [vmem:[%s491 + $0xb4] sm:$0xf] %v3225
        %3290 = vst [vmem:[%s491 + $0xb8] sm:$0xf] %v3226
        %3291 = vst [vmem:[%s491 + $0xbc] sm:$0xf] %v3227
        %3292 = vst [vmem:[%s491 + $0xc0] sm:$0xf] %v3228
        %3293 = vst [vmem:[%s491 + $0xc4] sm:$0xf] %v3229
        %3294 = vst [vmem:[%s491 + $0xc8] sm:$0xf] %v3230
        %3295 = vst [vmem:[%s491 + $0xcc] sm:$0xf] %v3231
        %3296 = vst [vmem:[%s491 + $0xd0] sm:$0xf] %v3232
        %3297 = vst [vmem:[%s491 + $0xd4] sm:$0xf] %v3233
        %3298 = vst [vmem:[%s491 + $0xd8] sm:$0xf] %v3234
        %3299 = vst [vmem:[%s491 + $0xdc] sm:$0xf] %v3235
        %3300 = vst [vmem:[%s491 + $0xe0] sm:$0xf] %v3236
        %3301 = vst [vmem:[%s491 + $0xe4] sm:$0xf] %v3237
        %3302 = vst [vmem:[%s491 + $0xe8] sm:$0xf] %v3238
        %3303 = vst [vmem:[%s491 + $0xec] sm:$0xf] %v3239
        %3304 = vst [vmem:[%s491 + $0xf0] sm:$0xf] %v3240
        %3305 = vst [vmem:[%s491 + $0xf4] sm:$0xf] %v3241
        %3306 = vst [vmem:[%s491 + $0xf8] sm:$0xf] %v3242
        %3307 = vst [vmem:[%s491 + $0xfc] sm:$0xf] %v3243
        %p3308 = scmp.lt.s32.totalorder %s27, 1
        // Predicated region
        $region61: #{residual_block_3d.6} parent=59 // pred_check
          %p3309 = pneg %p3308
        $region62: #{residual_block_3d.6} parent=59 // pred_check_branch
          %3311 = sbr.rel (%p3309) target = $region64
        $region63: #{residual_block_3d.6} parent=59 // pred_region
          %v3312 = vadd.f32 %v3116, %v3117
          %v3313 = vadd.f32 %v3312, %v3118
          %v3314 = vadd.f32 %v3313, %v3119
          %v3315 = vadd.f32 %v3314, %v3120
          %v3316 = vadd.f32 %v3315, %v3121
          %v3317 = vadd.f32 %v3316, %v3122
          %v3318 = vadd.f32 %v3317, %v3123
          %v3319 = vadd.f32 %v3318, %v3124
          %v3320 = vadd.f32 %v3319, %v3125
          %v3321 = vadd.f32 %v3320, %v3126
          %v3322 = vadd.f32 %v3321, %v3127
          %v3323 = vadd.f32 %v3322, %v3128
          %v3324 = vadd.f32 %v3323, %v3129
          %v3325 = vadd.f32 %v3324, %v3130
          %v3326 = vadd.f32 %v3325, %v3131
          %v3327 = vadd.f32 %v3326, %v3132
          %v3328 = vadd.f32 %v3327, %v3133
          %v3329 = vadd.f32 %v3328, %v3134
          %v3330 = vadd.f32 %v3329, %v3135
          %v3331 = vadd.f32 %v3330, %v3136
          %v3332 = vadd.f32 %v3331, %v3137
          %v3333 = vadd.f32 %v3332, %v3138
          %v3334 = vadd.f32 %v3333, %v3139
          %v3335 = vadd.f32 %v3334, %v3140
          %v3336 = vadd.f32 %v3335, %v3141
          %v3337 = vadd.f32 %v3336, %v3142
          %v3338 = vadd.f32 %v3337, %v3143
          %v3339 = vadd.f32 %v3338, %v3144
          %v3340 = vadd.f32 %v3339, %v3145
          %v3341 = vadd.f32 %v3340, %v3146
          %v3342 = vadd.f32 %v3341, %v3147
          %v3343 = vadd.f32 %v3342, %v3148
          %v3344 = vadd.f32 %v3343, %v3149
          %v3345 = vadd.f32 %v3344, %v3150
          %v3346 = vadd.f32 %v3345, %v3151
          %v3347 = vadd.f32 %v3346, %v3152
          %v3348 = vadd.f32 %v3347, %v3153
          %v3349 = vadd.f32 %v3348, %v3154
          %v3350 = vadd.f32 %v3349, %v3155
          %v3351 = vadd.f32 %v3350, %v3156
          %v3352 = vadd.f32 %v3351, %v3157
          %v3353 = vadd.f32 %v3352, %v3158
          %v3354 = vadd.f32 %v3353, %v3159
          %v3355 = vadd.f32 %v3354, %v3160
          %v3356 = vadd.f32 %v3355, %v3161
          %v3357 = vadd.f32 %v3356, %v3162
          %v3358 = vadd.f32 %v3357, %v3163
          %v3359 = vadd.f32 %v3358, %v3164
          %v3360 = vadd.f32 %v3359, %v3165
          %v3361 = vadd.f32 %v3360, %v3166
          %v3362 = vadd.f32 %v3361, %v3167
          %v3363 = vadd.f32 %v3362, %v3168
          %v3364 = vadd.f32 %v3363, %v3169
          %v3365 = vadd.f32 %v3364, %v3170
          %v3366 = vadd.f32 %v3365, %v3171
          %v3367 = vadd.f32 %v3366, %v3172
          %v3368 = vadd.f32 %v3367, %v3173
          %v3369 = vadd.f32 %v3368, %v3174
          %v3370 = vadd.f32 %v3369, %v3175
          %v3371 = vadd.f32 %v3370, %v3176
          %v3372 = vadd.f32 %v3371, %v3177
          %v3373 = vadd.f32 %v3372, %v3178
          %v3374 = vadd.f32 %v3373, %v3179
          %v3375 = vrot.slane %v3374, 4
          %v3376 = vadd.f32 %v3374, %v3375
          %v3377 = vrot.slane %v3376, 2
          %v3378 = vadd.f32 %v3376, %v3377
          %v3379 = vrot.slane %v3378, 1
          %v3380 = vadd.f32 %v3378, %v3379
          %3381 = vst [vmem:[%s495] sm:$0x1] %v3380
          %v3382 = vmul.f32 %v3116, %v3116
          %v3383 = vmul.f32 %v3117, %v3117
          %v3384 = vmul.f32 %v3118, %v3118
          %v3385 = vmul.f32 %v3119, %v3119
          %v3386 = vmul.f32 %v3120, %v3120
          %v3387 = vmul.f32 %v3121, %v3121
          %v3388 = vmul.f32 %v3122, %v3122
          %v3389 = vmul.f32 %v3123, %v3123
          %v3390 = vmul.f32 %v3124, %v3124
          %v3391 = vmul.f32 %v3125, %v3125
          %v3392 = vmul.f32 %v3126, %v3126
          %v3393 = vmul.f32 %v3127, %v3127
          %v3394 = vmul.f32 %v3128, %v3128
          %v3395 = vmul.f32 %v3129, %v3129
          %v3396 = vmul.f32 %v3130, %v3130
          %v3397 = vmul.f32 %v3131, %v3131
          %v3398 = vmul.f32 %v3132, %v3132
          %v3399 = vmul.f32 %v3133, %v3133
          %v3400 = vmul.f32 %v3134, %v3134
          %v3401 = vmul.f32 %v3135, %v3135
          %v3402 = vmul.f32 %v3136, %v3136
          %v3403 = vmul.f32 %v3137, %v3137
          %v3404 = vmul.f32 %v3138, %v3138
          %v3405 = vmul.f32 %v3139, %v3139
          %v3406 = vmul.f32 %v3140, %v3140
          %v3407 = vmul.f32 %v3141, %v3141
          %v3408 = vmul.f32 %v3142, %v3142
          %v3409 = vmul.f32 %v3143, %v3143
          %v3410 = vmul.f32 %v3144, %v3144
          %v3411 = vmul.f32 %v3145, %v3145
          %v3412 = vmul.f32 %v3146, %v3146
          %v3413 = vmul.f32 %v3147, %v3147
          %v3414 = vmul.f32 %v3148, %v3148
          %v3415 = vmul.f32 %v3149, %v3149
          %v3416 = vmul.f32 %v3150, %v3150
          %v3417 = vmul.f32 %v3151, %v3151
          %v3418 = vmul.f32 %v3152, %v3152
          %v3419 = vmul.f32 %v3153, %v3153
          %v3420 = vmul.f32 %v3154, %v3154
          %v3421 = vmul.f32 %v3155, %v3155
          %v3422 = vmul.f32 %v3156, %v3156
          %v3423 = vmul.f32 %v3157, %v3157
          %v3424 = vmul.f32 %v3158, %v3158
          %v3425 = vmul.f32 %v3159, %v3159
          %v3426 = vmul.f32 %v3160, %v3160
          %v3427 = vmul.f32 %v3161, %v3161
          %v3428 = vmul.f32 %v3162, %v3162
          %v3429 = vmul.f32 %v3163, %v3163
          %v3430 = vmul.f32 %v3164, %v3164
          %v3431 = vmul.f32 %v3165, %v3165
          %v3432 = vmul.f32 %v3166, %v3166
          %v3433 = vmul.f32 %v3167, %v3167
          %v3434 = vmul.f32 %v3168, %v3168
          %v3435 = vmul.f32 %v3169, %v3169
          %v3436 = vmul.f32 %v3170, %v3170
          %v3437 = vmul.f32 %v3171, %v3171
          %v3438 = vmul.f32 %v3172, %v3172
          %v3439 = vmul.f32 %v3173, %v3173
          %v3440 = vmul.f32 %v3174, %v3174
          %v3441 = vmul.f32 %v3175, %v3175
          %v3442 = vmul.f32 %v3176, %v3176
          %v3443 = vmul.f32 %v3177, %v3177
          %v3444 = vmul.f32 %v3178, %v3178
          %v3445 = vmul.f32 %v3179, %v3179
          %v3446 = vadd.f32 %v3382, %v3383
          %v3447 = vadd.f32 %v3446, %v3384
          %v3448 = vadd.f32 %v3447, %v3385
          %v3449 = vadd.f32 %v3448, %v3386
          %v3450 = vadd.f32 %v3449, %v3387
          %v3451 = vadd.f32 %v3450, %v3388
          %v3452 = vadd.f32 %v3451, %v3389
          %v3453 = vadd.f32 %v3452, %v3390
          %v3454 = vadd.f32 %v3453, %v3391
          %v3455 = vadd.f32 %v3454, %v3392
          %v3456 = vadd.f32 %v3455, %v3393
          %v3457 = vadd.f32 %v3456, %v3394
          %v3458 = vadd.f32 %v3457, %v3395
          %v3459 = vadd.f32 %v3458, %v3396
          %v3460 = vadd.f32 %v3459, %v3397
          %v3461 = vadd.f32 %v3460, %v3398
          %v3462 = vadd.f32 %v3461, %v3399
          %v3463 = vadd.f32 %v3462, %v3400
          %v3464 = vadd.f32 %v3463, %v3401
          %v3465 = vadd.f32 %v3464, %v3402
          %v3466 = vadd.f32 %v3465, %v3403
          %v3467 = vadd.f32 %v3466, %v3404
          %v3468 = vadd.f32 %v3467, %v3405
          %v3469 = vadd.f32 %v3468, %v3406
          %v3470 = vadd.f32 %v3469, %v3407
          %v3471 = vadd.f32 %v3470, %v3408
          %v3472 = vadd.f32 %v3471, %v3409
          %v3473 = vadd.f32 %v3472, %v3410
          %v3474 = vadd.f32 %v3473, %v3411
          %v3475 = vadd.f32 %v3474, %v3412
          %v3476 = vadd.f32 %v3475, %v3413
          %v3477 = vadd.f32 %v3476, %v3414
          %v3478 = vadd.f32 %v3477, %v3415
          %v3479 = vadd.f32 %v3478, %v3416
          %v3480 = vadd.f32 %v3479, %v3417
          %v3481 = vadd.f32 %v3480, %v3418
          %v3482 = vadd.f32 %v3481, %v3419
          %v3483 = vadd.f32 %v3482, %v3420
          %v3484 = vadd.f32 %v3483, %v3421
          %v3485 = vadd.f32 %v3484, %v3422
          %v3486 = vadd.f32 %v3485, %v3423
          %v3487 = vadd.f32 %v3486, %v3424
          %v3488 = vadd.f32 %v3487, %v3425
          %v3489 = vadd.f32 %v3488, %v3426
          %v3490 = vadd.f32 %v3489, %v3427
          %v3491 = vadd.f32 %v3490, %v3428
          %v3492 = vadd.f32 %v3491, %v3429
          %v3493 = vadd.f32 %v3492, %v3430
          %v3494 = vadd.f32 %v3493, %v3431
          %v3495 = vadd.f32 %v3494, %v3432
          %v3496 = vadd.f32 %v3495, %v3433
          %v3497 = vadd.f32 %v3496, %v3434
          %v3498 = vadd.f32 %v3497, %v3435
          %v3499 = vadd.f32 %v3498, %v3436
          %v3500 = vadd.f32 %v3499, %v3437
          %v3501 = vadd.f32 %v3500, %v3438
          %v3502 = vadd.f32 %v3501, %v3439
          %v3503 = vadd.f32 %v3502, %v3440
          %v3504 = vadd.f32 %v3503, %v3441
          %v3505 = vadd.f32 %v3504, %v3442
          %v3506 = vadd.f32 %v3505, %v3443
          %v3507 = vadd.f32 %v3506, %v3444
          %v3508 = vadd.f32 %v3507, %v3445
          %v3509 = vrot.slane %v3508, 4
          %v3510 = vadd.f32 %v3508, %v3509
          %v3511 = vrot.slane %v3510, 2
          %v3512 = vadd.f32 %v3510, %v3511
          %v3513 = vrot.slane %v3512, 1
          %v3514 = vadd.f32 %v3512, %v3513
          %3515 = vst [vmem:[%s498] sm:$0x1] %v3514
        $region64: #{residual_block_3d.6} parent=59 // pred_fallthru
          _
        %p3516 = scmp.eq.s32.totalorder %s27, 1
        // Predicated region
        $region65: #{residual_block_3d.6} parent=59 // pred_check
          %p3517 = pneg %p3516
        $region66: #{residual_block_3d.6} parent=59 // pred_check_branch
          %3519 = sbr.rel (%p3517) target = $region68
        $region67: #{residual_block_3d.6} parent=59 // pred_region
          %s3520 = smul.u32 %s27, 512
          %v3521 = vlaneseq
          %v3522 = vshrl.u32 %v3521, 7
          %v3523 = vadd.s32 %v3522, 8
          %v3524 = vadd.s32 %v3522, 16
          %v3525 = vadd.s32 %v3522, 24
          %v3526 = vadd.s32 %v3522, 32
          %v3527 = vadd.s32 %v3522, 40
          %v3528 = vadd.s32 %v3522, 48
          %v3529 = vadd.s32 %v3522, 56
          %v3530 = vadd.s32 %v3522, 64
          %v3531 = vadd.s32 %v3522, 72
          %v3532 = vadd.s32 %v3522, 80
          %v3533 = vadd.s32 %v3522, 88
          %v3534 = vadd.s32 %v3522, 96
          %v3535 = vadd.s32 %v3522, 104
          %v3536 = vadd.s32 %v3522, 112
          %v3537 = vadd.s32 %v3522, 120
          %v3538 = vadd.s32 %v3522, 128
          %v3539 = vadd.s32 %v3522, 136
          %v3540 = vadd.s32 %v3522, 144
          %v3541 = vadd.s32 %v3522, 152
          %v3542 = vadd.s32 %v3522, 160
          %v3543 = vadd.s32 %v3522, 168
          %v3544 = vadd.s32 %v3522, 176
          %v3545 = vadd.s32 %v3522, 184
          %v3546 = vadd.s32 %v3522, 192
          %v3547 = vadd.s32 %v3522, 200
          %v3548 = vadd.s32 %v3522, 208
          %v3549 = vadd.s32 %v3522, 216
          %v3550 = vadd.s32 %v3522, 224
          %v3551 = vadd.s32 %v3522, 232
          %v3552 = vadd.s32 %v3522, 240
          %v3553 = vadd.s32 %v3522, 248
          %v3554 = vadd.s32 %v3522, 256
          %v3555 = vadd.s32 %v3522, 264
          %v3556 = vadd.s32 %v3522, 272
          %v3557 = vadd.s32 %v3522, 280
          %v3558 = vadd.s32 %v3522, 288
          %v3559 = vadd.s32 %v3522, 296
          %v3560 = vadd.s32 %v3522, 304
          %v3561 = vadd.s32 %v3522, 312
          %v3562 = vadd.s32 %v3522, 320
          %v3563 = vadd.s32 %v3522, 328
          %v3564 = vadd.s32 %v3522, 336
          %v3565 = vadd.s32 %v3522, 344
          %v3566 = vadd.s32 %v3522, 352
          %v3567 = vadd.s32 %v3522, 360
          %v3568 = vadd.s32 %v3522, 368
          %v3569 = vadd.s32 %v3522, 376
          %v3570 = vadd.s32 %v3522, 384
          %v3571 = vadd.s32 %v3522, 392
          %v3572 = vadd.s32 %v3522, 400
          %v3573 = vadd.s32 %v3522, 408
          %v3574 = vadd.s32 %v3522, 416
          %v3575 = vadd.s32 %v3522, 424
          %v3576 = vadd.s32 %v3522, 432
          %v3577 = vadd.s32 %v3522, 440
          %v3578 = vadd.s32 %v3522, 448
          %v3579 = vadd.s32 %v3522, 456
          %v3580 = vadd.s32 %v3522, 464
          %v3581 = vadd.s32 %v3522, 472
          %v3582 = vadd.s32 %v3522, 480
          %v3583 = vadd.s32 %v3522, 488
          %v3584 = vadd.s32 %v3522, 496
          %v3585 = vadd.s32 %v3522, 504
          %v3586 = vstv %s3520
          %v3587 = vadd.s32 %v3586, %v3522
          %v3588 = vadd.s32 %v3586, %v3523
          %v3589 = vadd.s32 %v3586, %v3524
          %v3590 = vadd.s32 %v3586, %v3525
          %v3591 = vadd.s32 %v3586, %v3526
          %v3592 = vadd.s32 %v3586, %v3527
          %v3593 = vadd.s32 %v3586, %v3528
          %v3594 = vadd.s32 %v3586, %v3529
          %v3595 = vadd.s32 %v3586, %v3530
          %v3596 = vadd.s32 %v3586, %v3531
          %v3597 = vadd.s32 %v3586, %v3532
          %v3598 = vadd.s32 %v3586, %v3533
          %v3599 = vadd.s32 %v3586, %v3534
          %v3600 = vadd.s32 %v3586, %v3535
          %v3601 = vadd.s32 %v3586, %v3536
          %v3602 = vadd.s32 %v3586, %v3537
          %v3603 = vadd.s32 %v3586, %v3538
          %v3604 = vadd.s32 %v3586, %v3539
          %v3605 = vadd.s32 %v3586, %v3540
          %v3606 = vadd.s32 %v3586, %v3541
          %v3607 = vadd.s32 %v3586, %v3542
          %v3608 = vadd.s32 %v3586, %v3543
          %v3609 = vadd.s32 %v3586, %v3544
          %v3610 = vadd.s32 %v3586, %v3545
          %v3611 = vadd.s32 %v3586, %v3546
          %v3612 = vadd.s32 %v3586, %v3547
          %v3613 = vadd.s32 %v3586, %v3548
          %v3614 = vadd.s32 %v3586, %v3549
          %v3615 = vadd.s32 %v3586, %v3550
          %v3616 = vadd.s32 %v3586, %v3551
          %v3617 = vadd.s32 %v3586, %v3552
          %v3618 = vadd.s32 %v3586, %v3553
          %v3619 = vadd.s32 %v3586, %v3554
          %v3620 = vadd.s32 %v3586, %v3555
          %v3621 = vadd.s32 %v3586, %v3556
          %v3622 = vadd.s32 %v3586, %v3557
          %v3623 = vadd.s32 %v3586, %v3558
          %v3624 = vadd.s32 %v3586, %v3559
          %v3625 = vadd.s32 %v3586, %v3560
          %v3626 = vadd.s32 %v3586, %v3561
          %v3627 = vadd.s32 %v3586, %v3562
          %v3628 = vadd.s32 %v3586, %v3563
          %v3629 = vadd.s32 %v3586, %v3564
          %v3630 = vadd.s32 %v3586, %v3565
          %v3631 = vadd.s32 %v3586, %v3566
          %v3632 = vadd.s32 %v3586, %v3567
          %v3633 = vadd.s32 %v3586, %v3568
          %v3634 = vadd.s32 %v3586, %v3569
          %v3635 = vadd.s32 %v3586, %v3570
          %v3636 = vadd.s32 %v3586, %v3571
          %v3637 = vadd.s32 %v3586, %v3572
          %v3638 = vadd.s32 %v3586, %v3573
          %v3639 = vadd.s32 %v3586, %v3574
          %v3640 = vadd.s32 %v3586, %v3575
          %v3641 = vadd.s32 %v3586, %v3576
          %v3642 = vadd.s32 %v3586, %v3577
          %v3643 = vadd.s32 %v3586, %v3578
          %v3644 = vadd.s32 %v3586, %v3579
          %v3645 = vadd.s32 %v3586, %v3580
          %v3646 = vadd.s32 %v3586, %v3581
          %v3647 = vadd.s32 %v3586, %v3582
          %v3648 = vadd.s32 %v3586, %v3583
          %v3649 = vadd.s32 %v3586, %v3584
          %v3650 = vadd.s32 %v3586, %v3585
          %vm3651 = vcmp.lt.s32.totalorder %v3587, 1024
          %vm3652 = vcmp.lt.s32.totalorder %v3588, 1024
          %vm3653 = vcmp.lt.s32.totalorder %v3589, 1024
          %vm3654 = vcmp.lt.s32.totalorder %v3590, 1024
          %vm3655 = vcmp.lt.s32.totalorder %v3591, 1024
          %vm3656 = vcmp.lt.s32.totalorder %v3592, 1024
          %vm3657 = vcmp.lt.s32.totalorder %v3593, 1024
          %vm3658 = vcmp.lt.s32.totalorder %v3594, 1024
          %vm3659 = vcmp.lt.s32.totalorder %v3595, 1024
          %vm3660 = vcmp.lt.s32.totalorder %v3596, 1024
          %vm3661 = vcmp.lt.s32.totalorder %v3597, 1024
          %vm3662 = vcmp.lt.s32.totalorder %v3598, 1024
          %vm3663 = vcmp.lt.s32.totalorder %v3599, 1024
          %vm3664 = vcmp.lt.s32.totalorder %v3600, 1024
          %vm3665 = vcmp.lt.s32.totalorder %v3601, 1024
          %vm3666 = vcmp.lt.s32.totalorder %v3602, 1024
          %vm3667 = vcmp.lt.s32.totalorder %v3603, 1024
          %vm3668 = vcmp.lt.s32.totalorder %v3604, 1024
          %vm3669 = vcmp.lt.s32.totalorder %v3605, 1024
          %vm3670 = vcmp.lt.s32.totalorder %v3606, 1024
          %vm3671 = vcmp.lt.s32.totalorder %v3607, 1024
          %vm3672 = vcmp.lt.s32.totalorder %v3608, 1024
          %vm3673 = vcmp.lt.s32.totalorder %v3609, 1024
          %vm3674 = vcmp.lt.s32.totalorder %v3610, 1024
          %vm3675 = vcmp.lt.s32.totalorder %v3611, 1024
          %vm3676 = vcmp.lt.s32.totalorder %v3612, 1024
          %vm3677 = vcmp.lt.s32.totalorder %v3613, 1024
          %vm3678 = vcmp.lt.s32.totalorder %v3614, 1024
          %vm3679 = vcmp.lt.s32.totalorder %v3615, 1024
          %vm3680 = vcmp.lt.s32.totalorder %v3616, 1024
          %vm3681 = vcmp.lt.s32.totalorder %v3617, 1024
          %vm3682 = vcmp.lt.s32.totalorder %v3618, 1024
          %vm3683 = vcmp.lt.s32.totalorder %v3619, 1024
          %vm3684 = vcmp.lt.s32.totalorder %v3620, 1024
          %vm3685 = vcmp.lt.s32.totalorder %v3621, 1024
          %vm3686 = vcmp.lt.s32.totalorder %v3622, 1024
          %vm3687 = vcmp.lt.s32.totalorder %v3623, 1024
          %vm3688 = vcmp.lt.s32.totalorder %v3624, 1024
          %vm3689 = vcmp.lt.s32.totalorder %v3625, 1024
          %vm3690 = vcmp.lt.s32.totalorder %v3626, 1024
          %vm3691 = vcmp.lt.s32.totalorder %v3627, 1024
          %vm3692 = vcmp.lt.s32.totalorder %v3628, 1024
          %vm3693 = vcmp.lt.s32.totalorder %v3629, 1024
          %vm3694 = vcmp.lt.s32.totalorder %v3630, 1024
          %vm3695 = vcmp.lt.s32.totalorder %v3631, 1024
          %vm3696 = vcmp.lt.s32.totalorder %v3632, 1024
          %vm3697 = vcmp.lt.s32.totalorder %v3633, 1024
          %vm3698 = vcmp.lt.s32.totalorder %v3634, 1024
          %vm3699 = vcmp.lt.s32.totalorder %v3635, 1024
          %vm3700 = vcmp.lt.s32.totalorder %v3636, 1024
          %vm3701 = vcmp.lt.s32.totalorder %v3637, 1024
          %vm3702 = vcmp.lt.s32.totalorder %v3638, 1024
          %vm3703 = vcmp.lt.s32.totalorder %v3639, 1024
          %vm3704 = vcmp.lt.s32.totalorder %v3640, 1024
          %vm3705 = vcmp.lt.s32.totalorder %v3641, 1024
          %vm3706 = vcmp.lt.s32.totalorder %v3642, 1024
          %vm3707 = vcmp.lt.s32.totalorder %v3643, 1024
          %vm3708 = vcmp.lt.s32.totalorder %v3644, 1024
          %vm3709 = vcmp.lt.s32.totalorder %v3645, 1024
          %vm3710 = vcmp.lt.s32.totalorder %v3646, 1024
          %vm3711 = vcmp.lt.s32.totalorder %v3647, 1024
          %vm3712 = vcmp.lt.s32.totalorder %v3648, 1024
          %vm3713 = vcmp.lt.s32.totalorder %v3649, 1024
          %vm3714 = vcmp.lt.s32.totalorder %v3650, 1024
          %v3715 = vsel %vm3651, 1, 0
          %v3716 = vsel %vm3652, 1, 0
          %v3717 = vsel %vm3653, 1, 0
          %v3718 = vsel %vm3654, 1, 0
          %v3719 = vsel %vm3655, 1, 0
          %v3720 = vsel %vm3656, 1, 0
          %v3721 = vsel %vm3657, 1, 0
          %v3722 = vsel %vm3658, 1, 0
          %v3723 = vsel %vm3659, 1, 0
          %v3724 = vsel %vm3660, 1, 0
          %v3725 = vsel %vm3661, 1, 0
          %v3726 = vsel %vm3662, 1, 0
          %v3727 = vsel %vm3663, 1, 0
          %v3728 = vsel %vm3664, 1, 0
          %v3729 = vsel %vm3665, 1, 0
          %v3730 = vsel %vm3666, 1, 0
          %v3731 = vsel %vm3667, 1, 0
          %v3732 = vsel %vm3668, 1, 0
          %v3733 = vsel %vm3669, 1, 0
          %v3734 = vsel %vm3670, 1, 0
          %v3735 = vsel %vm3671, 1, 0
          %v3736 = vsel %vm3672, 1, 0
          %v3737 = vsel %vm3673, 1, 0
          %v3738 = vsel %vm3674, 1, 0
          %v3739 = vsel %vm3675, 1, 0
          %v3740 = vsel %vm3676, 1, 0
          %v3741 = vsel %vm3677, 1, 0
          %v3742 = vsel %vm3678, 1, 0
          %v3743 = vsel %vm3679, 1, 0
          %v3744 = vsel %vm3680, 1, 0
          %v3745 = vsel %vm3681, 1, 0
          %v3746 = vsel %vm3682, 1, 0
          %v3747 = vsel %vm3683, 1, 0
          %v3748 = vsel %vm3684, 1, 0
          %v3749 = vsel %vm3685, 1, 0
          %v3750 = vsel %vm3686, 1, 0
          %v3751 = vsel %vm3687, 1, 0
          %v3752 = vsel %vm3688, 1, 0
          %v3753 = vsel %vm3689, 1, 0
          %v3754 = vsel %vm3690, 1, 0
          %v3755 = vsel %vm3691, 1, 0
          %v3756 = vsel %vm3692, 1, 0
          %v3757 = vsel %vm3693, 1, 0
          %v3758 = vsel %vm3694, 1, 0
          %v3759 = vsel %vm3695, 1, 0
          %v3760 = vsel %vm3696, 1, 0
          %v3761 = vsel %vm3697, 1, 0
          %v3762 = vsel %vm3698, 1, 0
          %v3763 = vsel %vm3699, 1, 0
          %v3764 = vsel %vm3700, 1, 0
          %v3765 = vsel %vm3701, 1, 0
          %v3766 = vsel %vm3702, 1, 0
          %v3767 = vsel %vm3703, 1, 0
          %v3768 = vsel %vm3704, 1, 0
          %v3769 = vsel %vm3705, 1, 0
          %v3770 = vsel %vm3706, 1, 0
          %v3771 = vsel %vm3707, 1, 0
          %v3772 = vsel %vm3708, 1, 0
          %v3773 = vsel %vm3709, 1, 0
          %v3774 = vsel %vm3710, 1, 0
          %v3775 = vsel %vm3711, 1, 0
          %v3776 = vsel %vm3712, 1, 0
          %v3777 = vsel %vm3713, 1, 0
          %v3778 = vsel %vm3714, 1, 0
          %vm3779 = vcmp.eq.s32.totalorder %v3715, 1
          %vm3780 = vcmp.eq.s32.totalorder %v3716, 1
          %vm3781 = vcmp.eq.s32.totalorder %v3717, 1
          %vm3782 = vcmp.eq.s32.totalorder %v3718, 1
          %vm3783 = vcmp.eq.s32.totalorder %v3719, 1
          %vm3784 = vcmp.eq.s32.totalorder %v3720, 1
          %vm3785 = vcmp.eq.s32.totalorder %v3721, 1
          %vm3786 = vcmp.eq.s32.totalorder %v3722, 1
          %vm3787 = vcmp.eq.s32.totalorder %v3723, 1
          %vm3788 = vcmp.eq.s32.totalorder %v3724, 1
          %vm3789 = vcmp.eq.s32.totalorder %v3725, 1
          %vm3790 = vcmp.eq.s32.totalorder %v3726, 1
          %vm3791 = vcmp.eq.s32.totalorder %v3727, 1
          %vm3792 = vcmp.eq.s32.totalorder %v3728, 1
          %vm3793 = vcmp.eq.s32.totalorder %v3729, 1
          %vm3794 = vcmp.eq.s32.totalorder %v3730, 1
          %vm3795 = vcmp.eq.s32.totalorder %v3731, 1
          %vm3796 = vcmp.eq.s32.totalorder %v3732, 1
          %vm3797 = vcmp.eq.s32.totalorder %v3733, 1
          %vm3798 = vcmp.eq.s32.totalorder %v3734, 1
          %vm3799 = vcmp.eq.s32.totalorder %v3735, 1
          %vm3800 = vcmp.eq.s32.totalorder %v3736, 1
          %vm3801 = vcmp.eq.s32.totalorder %v3737, 1
          %vm3802 = vcmp.eq.s32.totalorder %v3738, 1
          %vm3803 = vcmp.eq.s32.totalorder %v3739, 1
          %vm3804 = vcmp.eq.s32.totalorder %v3740, 1
          %vm3805 = vcmp.eq.s32.totalorder %v3741, 1
          %vm3806 = vcmp.eq.s32.totalorder %v3742, 1
          %vm3807 = vcmp.eq.s32.totalorder %v3743, 1
          %vm3808 = vcmp.eq.s32.totalorder %v3744, 1
          %vm3809 = vcmp.eq.s32.totalorder %v3745, 1
          %vm3810 = vcmp.eq.s32.totalorder %v3746, 1
          %vm3811 = vcmp.eq.s32.totalorder %v3747, 1
          %vm3812 = vcmp.eq.s32.totalorder %v3748, 1
          %vm3813 = vcmp.eq.s32.totalorder %v3749, 1
          %vm3814 = vcmp.eq.s32.totalorder %v3750, 1
          %vm3815 = vcmp.eq.s32.totalorder %v3751, 1
          %vm3816 = vcmp.eq.s32.totalorder %v3752, 1
          %vm3817 = vcmp.eq.s32.totalorder %v3753, 1
          %vm3818 = vcmp.eq.s32.totalorder %v3754, 1
          %vm3819 = vcmp.eq.s32.totalorder %v3755, 1
          %vm3820 = vcmp.eq.s32.totalorder %v3756, 1
          %vm3821 = vcmp.eq.s32.totalorder %v3757, 1
          %vm3822 = vcmp.eq.s32.totalorder %v3758, 1
          %vm3823 = vcmp.eq.s32.totalorder %v3759, 1
          %vm3824 = vcmp.eq.s32.totalorder %v3760, 1
          %vm3825 = vcmp.eq.s32.totalorder %v3761, 1
          %vm3826 = vcmp.eq.s32.totalorder %v3762, 1
          %vm3827 = vcmp.eq.s32.totalorder %v3763, 1
          %vm3828 = vcmp.eq.s32.totalorder %v3764, 1
          %vm3829 = vcmp.eq.s32.totalorder %v3765, 1
          %vm3830 = vcmp.eq.s32.totalorder %v3766, 1
          %vm3831 = vcmp.eq.s32.totalorder %v3767, 1
          %vm3832 = vcmp.eq.s32.totalorder %v3768, 1
          %vm3833 = vcmp.eq.s32.totalorder %v3769, 1
          %vm3834 = vcmp.eq.s32.totalorder %v3770, 1
          %vm3835 = vcmp.eq.s32.totalorder %v3771, 1
          %vm3836 = vcmp.eq.s32.totalorder %v3772, 1
          %vm3837 = vcmp.eq.s32.totalorder %v3773, 1
          %vm3838 = vcmp.eq.s32.totalorder %v3774, 1
          %vm3839 = vcmp.eq.s32.totalorder %v3775, 1
          %vm3840 = vcmp.eq.s32.totalorder %v3776, 1
          %vm3841 = vcmp.eq.s32.totalorder %v3777, 1
          %vm3842 = vcmp.eq.s32.totalorder %v3778, 1
          %v3843 = vsel %vm3779, %v3116, 0.0
          %v3844 = vsel %vm3780, %v3117, 0.0
          %v3845 = vsel %vm3781, %v3118, 0.0
          %v3846 = vsel %vm3782, %v3119, 0.0
          %v3847 = vsel %vm3783, %v3120, 0.0
          %v3848 = vsel %vm3784, %v3121, 0.0
          %v3849 = vsel %vm3785, %v3122, 0.0
          %v3850 = vsel %vm3786, %v3123, 0.0
          %v3851 = vsel %vm3787, %v3124, 0.0
          %v3852 = vsel %vm3788, %v3125, 0.0
          %v3853 = vsel %vm3789, %v3126, 0.0
          %v3854 = vsel %vm3790, %v3127, 0.0
          %v3855 = vsel %vm3791, %v3128, 0.0
          %v3856 = vsel %vm3792, %v3129, 0.0
          %v3857 = vsel %vm3793, %v3130, 0.0
          %v3858 = vsel %vm3794, %v3131, 0.0
          %v3859 = vsel %vm3795, %v3132, 0.0
          %v3860 = vsel %vm3796, %v3133, 0.0
          %v3861 = vsel %vm3797, %v3134, 0.0
          %v3862 = vsel %vm3798, %v3135, 0.0
          %v3863 = vsel %vm3799, %v3136, 0.0
          %v3864 = vsel %vm3800, %v3137, 0.0
          %v3865 = vsel %vm3801, %v3138, 0.0
          %v3866 = vsel %vm3802, %v3139, 0.0
          %v3867 = vsel %vm3803, %v3140, 0.0
          %v3868 = vsel %vm3804, %v3141, 0.0
          %v3869 = vsel %vm3805, %v3142, 0.0
          %v3870 = vsel %vm3806, %v3143, 0.0
          %v3871 = vsel %vm3807, %v3144, 0.0
          %v3872 = vsel %vm3808, %v3145, 0.0
          %v3873 = vsel %vm3809, %v3146, 0.0
          %v3874 = vsel %vm3810, %v3147, 0.0
          %v3875 = vsel %vm3811, %v3148, 0.0
          %v3876 = vsel %vm3812, %v3149, 0.0
          %v3877 = vsel %vm3813, %v3150, 0.0
          %v3878 = vsel %vm3814, %v3151, 0.0
          %v3879 = vsel %vm3815, %v3152, 0.0
          %v3880 = vsel %vm3816, %v3153, 0.0
          %v3881 = vsel %vm3817, %v3154, 0.0
          %v3882 = vsel %vm3818, %v3155, 0.0
          %v3883 = vsel %vm3819, %v3156, 0.0
          %v3884 = vsel %vm3820, %v3157, 0.0
          %v3885 = vsel %vm3821, %v3158, 0.0
          %v3886 = vsel %vm3822, %v3159, 0.0
          %v3887 = vsel %vm3823, %v3160, 0.0
          %v3888 = vsel %vm3824, %v3161, 0.0
          %v3889 = vsel %vm3825, %v3162, 0.0
          %v3890 = vsel %vm3826, %v3163, 0.0
          %v3891 = vsel %vm3827, %v3164, 0.0
          %v3892 = vsel %vm3828, %v3165, 0.0
          %v3893 = vsel %vm3829, %v3166, 0.0
          %v3894 = vsel %vm3830, %v3167, 0.0
          %v3895 = vsel %vm3831, %v3168, 0.0
          %v3896 = vsel %vm3832, %v3169, 0.0
          %v3897 = vsel %vm3833, %v3170, 0.0
          %v3898 = vsel %vm3834, %v3171, 0.0
          %v3899 = vsel %vm3835, %v3172, 0.0
          %v3900 = vsel %vm3836, %v3173, 0.0
          %v3901 = vsel %vm3837, %v3174, 0.0
          %v3902 = vsel %vm3838, %v3175, 0.0
          %v3903 = vsel %vm3839, %v3176, 0.0
          %v3904 = vsel %vm3840, %v3177, 0.0
          %v3905 = vsel %vm3841, %v3178, 0.0
          %v3906 = vsel %vm3842, %v3179, 0.0
          %v3907 = vadd.f32 %v3843, %v3844
          %v3908 = vadd.f32 %v3907, %v3845
          %v3909 = vadd.f32 %v3908, %v3846
          %v3910 = vadd.f32 %v3909, %v3847
          %v3911 = vadd.f32 %v3910, %v3848
          %v3912 = vadd.f32 %v3911, %v3849
          %v3913 = vadd.f32 %v3912, %v3850
          %v3914 = vadd.f32 %v3913, %v3851
          %v3915 = vadd.f32 %v3914, %v3852
          %v3916 = vadd.f32 %v3915, %v3853
          %v3917 = vadd.f32 %v3916, %v3854
          %v3918 = vadd.f32 %v3917, %v3855
          %v3919 = vadd.f32 %v3918, %v3856
          %v3920 = vadd.f32 %v3919, %v3857
          %v3921 = vadd.f32 %v3920, %v3858
          %v3922 = vadd.f32 %v3921, %v3859
          %v3923 = vadd.f32 %v3922, %v3860
          %v3924 = vadd.f32 %v3923, %v3861
          %v3925 = vadd.f32 %v3924, %v3862
          %v3926 = vadd.f32 %v3925, %v3863
          %v3927 = vadd.f32 %v3926, %v3864
          %v3928 = vadd.f32 %v3927, %v3865
          %v3929 = vadd.f32 %v3928, %v3866
          %v3930 = vadd.f32 %v3929, %v3867
          %v3931 = vadd.f32 %v3930, %v3868
          %v3932 = vadd.f32 %v3931, %v3869
          %v3933 = vadd.f32 %v3932, %v3870
          %v3934 = vadd.f32 %v3933, %v3871
          %v3935 = vadd.f32 %v3934, %v3872
          %v3936 = vadd.f32 %v3935, %v3873
          %v3937 = vadd.f32 %v3936, %v3874
          %v3938 = vadd.f32 %v3937, %v3875
          %v3939 = vadd.f32 %v3938, %v3876
          %v3940 = vadd.f32 %v3939, %v3877
          %v3941 = vadd.f32 %v3940, %v3878
          %v3942 = vadd.f32 %v3941, %v3879
          %v3943 = vadd.f32 %v3942, %v3880
          %v3944 = vadd.f32 %v3943, %v3881
          %v3945 = vadd.f32 %v3944, %v3882
          %v3946 = vadd.f32 %v3945, %v3883
          %v3947 = vadd.f32 %v3946, %v3884
          %v3948 = vadd.f32 %v3947, %v3885
          %v3949 = vadd.f32 %v3948, %v3886
          %v3950 = vadd.f32 %v3949, %v3887
          %v3951 = vadd.f32 %v3950, %v3888
          %v3952 = vadd.f32 %v3951, %v3889
          %v3953 = vadd.f32 %v3952, %v3890
          %v3954 = vadd.f32 %v3953, %v3891
          %v3955 = vadd.f32 %v3954, %v3892
          %v3956 = vadd.f32 %v3955, %v3893
          %v3957 = vadd.f32 %v3956, %v3894
          %v3958 = vadd.f32 %v3957, %v3895
          %v3959 = vadd.f32 %v3958, %v3896
          %v3960 = vadd.f32 %v3959, %v3897
          %v3961 = vadd.f32 %v3960, %v3898
          %v3962 = vadd.f32 %v3961, %v3899
          %v3963 = vadd.f32 %v3962, %v3900
          %v3964 = vadd.f32 %v3963, %v3901
          %v3965 = vadd.f32 %v3964, %v3902
          %v3966 = vadd.f32 %v3965, %v3903
          %v3967 = vadd.f32 %v3966, %v3904
          %v3968 = vadd.f32 %v3967, %v3905
          %v3969 = vadd.f32 %v3968, %v3906
          %v3970 = vrot.slane %v3969, 4
          %v3971 = vadd.f32 %v3969, %v3970
          %v3972 = vrot.slane %v3971, 2
          %v3973 = vadd.f32 %v3971, %v3972
          %v3974 = vrot.slane %v3973, 1
          %v3975 = vadd.f32 %v3973, %v3974
          %3976 = vst [vmem:[%s495] sm:$0x1] %v3975
          %v3977 = vmul.f32 %v3843, %v3843
          %v3978 = vmul.f32 %v3844, %v3844
          %v3979 = vmul.f32 %v3845, %v3845
          %v3980 = vmul.f32 %v3846, %v3846
          %v3981 = vmul.f32 %v3847, %v3847
          %v3982 = vmul.f32 %v3848, %v3848
          %v3983 = vmul.f32 %v3849, %v3849
          %v3984 = vmul.f32 %v3850, %v3850
          %v3985 = vmul.f32 %v3851, %v3851
          %v3986 = vmul.f32 %v3852, %v3852
          %v3987 = vmul.f32 %v3853, %v3853
          %v3988 = vmul.f32 %v3854, %v3854
          %v3989 = vmul.f32 %v3855, %v3855
          %v3990 = vmul.f32 %v3856, %v3856
          %v3991 = vmul.f32 %v3857, %v3857
          %v3992 = vmul.f32 %v3858, %v3858
          %v3993 = vmul.f32 %v3859, %v3859
          %v3994 = vmul.f32 %v3860, %v3860
          %v3995 = vmul.f32 %v3861, %v3861
          %v3996 = vmul.f32 %v3862, %v3862
          %v3997 = vmul.f32 %v3863, %v3863
          %v3998 = vmul.f32 %v3864, %v3864
          %v3999 = vmul.f32 %v3865, %v3865
          %v4000 = vmul.f32 %v3866, %v3866
          %v4001 = vmul.f32 %v3867, %v3867
          %v4002 = vmul.f32 %v3868, %v3868
          %v4003 = vmul.f32 %v3869, %v3869
          %v4004 = vmul.f32 %v3870, %v3870
          %v4005 = vmul.f32 %v3871, %v3871
          %v4006 = vmul.f32 %v3872, %v3872
          %v4007 = vmul.f32 %v3873, %v3873
          %v4008 = vmul.f32 %v3874, %v3874
          %v4009 = vmul.f32 %v3875, %v3875
          %v4010 = vmul.f32 %v3876, %v3876
          %v4011 = vmul.f32 %v3877, %v3877
          %v4012 = vmul.f32 %v3878, %v3878
          %v4013 = vmul.f32 %v3879, %v3879
          %v4014 = vmul.f32 %v3880, %v3880
          %v4015 = vmul.f32 %v3881, %v3881
          %v4016 = vmul.f32 %v3882, %v3882
          %v4017 = vmul.f32 %v3883, %v3883
          %v4018 = vmul.f32 %v3884, %v3884
          %v4019 = vmul.f32 %v3885, %v3885
          %v4020 = vmul.f32 %v3886, %v3886
          %v4021 = vmul.f32 %v3887, %v3887
          %v4022 = vmul.f32 %v3888, %v3888
          %v4023 = vmul.f32 %v3889, %v3889
          %v4024 = vmul.f32 %v3890, %v3890
          %v4025 = vmul.f32 %v3891, %v3891
          %v4026 = vmul.f32 %v3892, %v3892
          %v4027 = vmul.f32 %v3893, %v3893
          %v4028 = vmul.f32 %v3894, %v3894
          %v4029 = vmul.f32 %v3895, %v3895
          %v4030 = vmul.f32 %v3896, %v3896
          %v4031 = vmul.f32 %v3897, %v3897
          %v4032 = vmul.f32 %v3898, %v3898
          %v4033 = vmul.f32 %v3899, %v3899
          %v4034 = vmul.f32 %v3900, %v3900
          %v4035 = vmul.f32 %v3901, %v3901
          %v4036 = vmul.f32 %v3902, %v3902
          %v4037 = vmul.f32 %v3903, %v3903
          %v4038 = vmul.f32 %v3904, %v3904
          %v4039 = vmul.f32 %v3905, %v3905
          %v4040 = vmul.f32 %v3906, %v3906
          %v4041 = vadd.f32 %v3977, %v3978
          %v4042 = vadd.f32 %v4041, %v3979
          %v4043 = vadd.f32 %v4042, %v3980
          %v4044 = vadd.f32 %v4043, %v3981
          %v4045 = vadd.f32 %v4044, %v3982
          %v4046 = vadd.f32 %v4045, %v3983
          %v4047 = vadd.f32 %v4046, %v3984
          %v4048 = vadd.f32 %v4047, %v3985
          %v4049 = vadd.f32 %v4048, %v3986
          %v4050 = vadd.f32 %v4049, %v3987
          %v4051 = vadd.f32 %v4050, %v3988
          %v4052 = vadd.f32 %v4051, %v3989
          %v4053 = vadd.f32 %v4052, %v3990
          %v4054 = vadd.f32 %v4053, %v3991
          %v4055 = vadd.f32 %v4054, %v3992
          %v4056 = vadd.f32 %v4055, %v3993
          %v4057 = vadd.f32 %v4056, %v3994
          %v4058 = vadd.f32 %v4057, %v3995
          %v4059 = vadd.f32 %v4058, %v3996
          %v4060 = vadd.f32 %v4059, %v3997
          %v4061 = vadd.f32 %v4060, %v3998
          %v4062 = vadd.f32 %v4061, %v3999
          %v4063 = vadd.f32 %v4062, %v4000
          %v4064 = vadd.f32 %v4063, %v4001
          %v4065 = vadd.f32 %v4064, %v4002
          %v4066 = vadd.f32 %v4065, %v4003
          %v4067 = vadd.f32 %v4066, %v4004
          %v4068 = vadd.f32 %v4067, %v4005
          %v4069 = vadd.f32 %v4068, %v4006
          %v4070 = vadd.f32 %v4069, %v4007
          %v4071 = vadd.f32 %v4070, %v4008
          %v4072 = vadd.f32 %v4071, %v4009
          %v4073 = vadd.f32 %v4072, %v4010
          %v4074 = vadd.f32 %v4073, %v4011
          %v4075 = vadd.f32 %v4074, %v4012
          %v4076 = vadd.f32 %v4075, %v4013
          %v4077 = vadd.f32 %v4076, %v4014
          %v4078 = vadd.f32 %v4077, %v4015
          %v4079 = vadd.f32 %v4078, %v4016
          %v4080 = vadd.f32 %v4079, %v4017
          %v4081 = vadd.f32 %v4080, %v4018
          %v4082 = vadd.f32 %v4081, %v4019
          %v4083 = vadd.f32 %v4082, %v4020
          %v4084 = vadd.f32 %v4083, %v4021
          %v4085 = vadd.f32 %v4084, %v4022
          %v4086 = vadd.f32 %v4085, %v4023
          %v4087 = vadd.f32 %v4086, %v4024
          %v4088 = vadd.f32 %v4087, %v4025
          %v4089 = vadd.f32 %v4088, %v4026
          %v4090 = vadd.f32 %v4089, %v4027
          %v4091 = vadd.f32 %v4090, %v4028
          %v4092 = vadd.f32 %v4091, %v4029
          %v4093 = vadd.f32 %v4092, %v4030
          %v4094 = vadd.f32 %v4093, %v4031
          %v4095 = vadd.f32 %v4094, %v4032
          %v4096 = vadd.f32 %v4095, %v4033
          %v4097 = vadd.f32 %v4096, %v4034
          %v4098 = vadd.f32 %v4097, %v4035
          %v4099 = vadd.f32 %v4098, %v4036
          %v4100 = vadd.f32 %v4099, %v4037
          %v4101 = vadd.f32 %v4100, %v4038
          %v4102 = vadd.f32 %v4101, %v4039
          %v4103 = vadd.f32 %v4102, %v4040
          %v4104 = vrot.slane %v4103, 4
          %v4105 = vadd.f32 %v4103, %v4104
          %v4106 = vrot.slane %v4105, 2
          %v4107 = vadd.f32 %v4105, %v4106
          %v4108 = vrot.slane %v4107, 1
          %v4109 = vadd.f32 %v4107, %v4108
          %4110 = vst [vmem:[%s498] sm:$0x1] %v4109
        $region68: #{residual_block_3d.6} parent=59 // pred_fallthru
          _
      $region60: #{residual_block_3d.6} parent=43 // pred_fallthru
        _
      %s4111 = smul.u32 64, %s27
      %p4112 = scmp.lt.s32.totalorder %s4111, 127
      %s4113 = scalar_select %p4112, %s4111, 127
      %s4114 = smul.addr %s4113, 4
      %s4115 = scalar_lea.vmem %s6, %s4114
      %p4116 = scmp.lt.s32.totalorder %s27, 1
      %s4117 = scalar_select %p4116, %s27, 1
      %s4118 = scalar_lea.vmem %s7, %s4117
      %p4119 = scmp.lt.s32.totalorder %s27, 1
      %s4120 = scalar_select %p4119, %s27, 1
      %s4121 = scalar_lea.vmem %s8, %s4120
      %s4122 = smul.u32 64, %s27
      %p4123 = scmp.lt.s32.totalorder %s4122, 127
      %s4124 = scalar_select %p4123, %s4122, 127
      %s4125 = smul.addr %s4124, 4
      %s4126 = scalar_lea.vmem %s9, %s4125
      %p4127 = scmp.lt.s32.totalorder %s27, 1
      %s4128 = scalar_select %p4127, %s27, 1
      %s4129 = scalar_lea.vmem %s10, %s4128
      %p4130 = scmp.lt.s32.totalorder %s27, 1
      %s4131 = scalar_select %p4130, %s27, 1
      %s4132 = scalar_lea.vmem %s11, %s4131
      // Predicated region
      $region69: #{residual_block_3d.6} parent=43 // pred_check
        %p4133 = pneg %p196
      $region70: #{residual_block_3d.6} parent=43 // pred_check_branch
        %4135 = sbr.rel (%p4133) target = $region72
      $region71: #{residual_block_3d.6} parent=43 // pred_region
        %s4136 = smul.u32 64, %s27
      $region72: #{residual_block_3d.6} parent=43 // pred_fallthru
        _
      // Predicated region
      $region73: #{residual_block_3d.6} parent=43 // pred_check
        %p4137 = pneg %p222
      $region74: #{residual_block_3d.6} parent=43 // pred_check_branch
        %4139 = sbr.rel (%p4137) target = $region76
      $region75: #{residual_block_3d.6} parent=43 // pred_region
        _
      $region76: #{residual_block_3d.6} parent=43 // pred_fallthru
        _
      // Predicated region
      $region77: #{residual_block_3d.6} parent=43 // pred_check
        %p4140 = pneg %p248
      $region78: #{residual_block_3d.6} parent=43 // pred_check_branch
        %4142 = sbr.rel (%p4140) target = $region80
      $region79: #{residual_block_3d.6} parent=43 // pred_region
        _
      $region80: #{residual_block_3d.6} parent=43 // pred_fallthru
        _
      // Predicated region
      $region81: #{residual_block_3d.6} parent=43 // pred_check
        %p4143 = pneg %p274
      $region82: #{residual_block_3d.6} parent=43 // pred_check_branch
        %4145 = sbr.rel (%p4143) target = $region84
      $region83: #{residual_block_3d.6} parent=43 // pred_region
        %s4146 = smul.u32 64, %s27
      $region84: #{residual_block_3d.6} parent=43 // pred_fallthru
        _
      // Predicated region
      $region85: #{residual_block_3d.6} parent=43 // pred_check
        %p4147 = pneg %p300
      $region86: #{residual_block_3d.6} parent=43 // pred_check_branch
        %4149 = sbr.rel (%p4147) target = $region88
      $region87: #{residual_block_3d.6} parent=43 // pred_region
        _
      $region88: #{residual_block_3d.6} parent=43 // pred_fallthru
        _
      // Predicated region
      $region89: #{residual_block_3d.6} parent=43 // pred_check
        %p4150 = pneg %p326
      $region90: #{residual_block_3d.6} parent=43 // pred_check_branch
        %4152 = sbr.rel (%p4150) target = $region92
      $region91: #{residual_block_3d.6} parent=43 // pred_region
        _
      $region92: #{residual_block_3d.6} parent=43 // pred_fallthru
        _
    $region44: #{residual_block_3d.6} parent=5 // pred_fallthru
      _
    %p4153 = scmp.le.s32.totalorder 2, %s18
    // Predicated region
    $region93: #{residual_block_3d.6} parent=5 // pred_check
      %p4154 = pneg %p4153
    $region94: #{residual_block_3d.6} parent=5 // pred_check_branch
      %4156 = sbr.rel (%p4154) target = $region96
    $region95: #{residual_block_3d.6} parent=5 // pred_region
      %s4157 = ssub.s32 %s18, 2
      // Predicated region
      $region97: #{residual_block_3d.6} parent=95 // pred_check
        %p4158 = pneg %p202
      $region98: #{residual_block_3d.6} parent=95 // pred_check_branch
        %4160 = sbr.rel (%p4158) target = $region100
      $region99: #{residual_block_3d.6} parent=95 // pred_region
        %s4161 = smul.u32 64, %s29
        %p4162 = scmp.lt.s32.totalorder %s4161, 127
        %s4163 = scalar_select %p4162, %s4161, 127
        %s4164 = smul.addr %s4163, 4
        %s4165 = scalar_lea.vmem %s6, %s4164
      $region100: #{residual_block_3d.6} parent=95 // pred_fallthru
        _
      // Predicated region
      $region101: #{residual_block_3d.6} parent=95 // pred_check
        %p4166 = pneg %p228
      $region102: #{residual_block_3d.6} parent=95 // pred_check_branch
        %4168 = sbr.rel (%p4166) target = $region104
      $region103: #{residual_block_3d.6} parent=95 // pred_region
        %p4169 = scmp.lt.s32.totalorder %s29, 1
        %s4170 = scalar_select %p4169, %s29, 1
        %s4171 = scalar_lea.vmem %s7, %s4170
      $region104: #{residual_block_3d.6} parent=95 // pred_fallthru
        _
      // Predicated region
      $region105: #{residual_block_3d.6} parent=95 // pred_check
        %p4172 = pneg %p254
      $region106: #{residual_block_3d.6} parent=95 // pred_check_branch
        %4174 = sbr.rel (%p4172) target = $region108
      $region107: #{residual_block_3d.6} parent=95 // pred_region
        %p4175 = scmp.lt.s32.totalorder %s29, 1
        %s4176 = scalar_select %p4175, %s29, 1
        %s4177 = scalar_lea.vmem %s8, %s4176
      $region108: #{residual_block_3d.6} parent=95 // pred_fallthru
        _
      // Predicated region
      $region109: #{residual_block_3d.6} parent=95 // pred_check
        %p4178 = pneg %p280
      $region110: #{residual_block_3d.6} parent=95 // pred_check_branch
        %4180 = sbr.rel (%p4178) target = $region112
      $region111: #{residual_block_3d.6} parent=95 // pred_region
        %s4181 = smul.u32 64, %s29
        %p4182 = scmp.lt.s32.totalorder %s4181, 127
        %s4183 = scalar_select %p4182, %s4181, 127
        %s4184 = smul.addr %s4183, 4
        %s4185 = scalar_lea.vmem %s9, %s4184
      $region112: #{residual_block_3d.6} parent=95 // pred_fallthru
        _
      // Predicated region
      $region113: #{residual_block_3d.6} parent=95 // pred_check
        %p4186 = pneg %p306
      $region114: #{residual_block_3d.6} parent=95 // pred_check_branch
        %4188 = sbr.rel (%p4186) target = $region116
      $region115: #{residual_block_3d.6} parent=95 // pred_region
        %p4189 = scmp.lt.s32.totalorder %s29, 1
        %s4190 = scalar_select %p4189, %s29, 1
        %s4191 = scalar_lea.vmem %s10, %s4190
      $region116: #{residual_block_3d.6} parent=95 // pred_fallthru
        _
      // Predicated region
      $region117: #{residual_block_3d.6} parent=95 // pred_check
        %p4192 = pneg %p332
      $region118: #{residual_block_3d.6} parent=95 // pred_check_branch
        %4194 = sbr.rel (%p4192) target = $region120
      $region119: #{residual_block_3d.6} parent=95 // pred_region
        %p4195 = scmp.lt.s32.totalorder %s29, 1
        %s4196 = scalar_select %p4195, %s29, 1
        %s4197 = scalar_lea.vmem %s11, %s4196
      $region120: #{residual_block_3d.6} parent=95 // pred_fallthru
        _
    $region96: #{residual_block_3d.6} parent=5 // pred_fallthru
      _
  $region6: #{residual_block_3d.6} parent=0 // loop_footer
    %s22 = sadd.s32 1, %s18
  $region7: #{residual_block_3d.6} parent=0 // loop_footer_branch
    %17 = sbr.rel target = $region3
  $region8: #{residual_block_3d.6} parent=0 // loop_exit
    _

</llo_original>
